<compile_context>
chip_gen: v6e
topology: v6e:2x2x1
jax: 0.10.0
libtpu: 0.0.40
codegen_flags: <defaults>
</compile_context>

<pallas_src>
import numpy as np
import jax
import jax.numpy as jnp
from jax.experimental import pallas as pl
from jax.experimental.pallas import tpu as pltpu

KS = (10, 10, 10, 10, 10, 6)            # conv kernel sizes (conv1..conv6)
H_IN = 100                              # architecture forces 100x100 input
LANES = 128
ROWS_IN = (104, 96, 88, 80, 64, 56)     # padded input rows per conv (mult. of 8)
ROWS_OUT = (96, 88, 80, 64, 56, 56)     # padded output rows per conv (mult. of 8)


def _p4_kernel(img_ref, cb_ref,
               r1_hbm, r2_hbm, r3_hbm, r4_hbm, r5_hbm, r6_hbm,
               aexp_hbm, acol_hbm, w1t_hbm, w2t_hbm,
               o_ref,
               r1_buf, r2_buf, r3_buf, r4_buf, r5_buf, r6_buf,
               aexp_buf, acol_buf, w1t_buf, w2t_buf, dma_sem):
    # Hoist all SMEM scalar reads above every DMA start/wait.
    biases = [cb_ref[c] for c in range(6)]

    r_hbm = (r1_hbm, r2_hbm, r3_hbm, r4_hbm, r5_hbm, r6_hbm)
    r_buf = (r1_buf, r2_buf, r3_buf, r4_buf, r5_buf, r6_buf)
    c_hbm = (aexp_hbm, acol_hbm, w1t_hbm, w2t_hbm)
    c_buf = (aexp_buf, acol_buf, w1t_buf, w2t_buf)

    # Kick off every weight / constant DMA immediately (in the order they are
    # consumed); all but r1 fully overlap conv compute, and r1 overlaps the
    # image load + conv1 im2col rolls below.
    r_copies = []
    for i in range(6):
        cp = pltpu.make_async_copy(r_hbm[i], r_buf[i], dma_sem.at[i])
        cp.start()
        r_copies.append(cp)
    c_copies = []
    for i in range(4):
        cp = pltpu.make_async_copy(c_hbm[i], c_buf[i], dma_sem.at[6 + i])
        cp.start()
        c_copies.append(cp)

    x32 = img_ref[...]                                   # (104, 128) f32

    for c in range(6):
        K = KS[c]
        if c == 0:
            # conv1: build all lane-rolled bf16 pieces (image-only work)
            # BEFORE waiting on r1's DMA so the copy is hidden behind it.
            pieces = [x32.astype(jnp.bfloat16)] + [
                pltpu.roll(x32, shift=LANES - dj, axis=1).astype(jnp.bfloat16)
                for dj in range(1, K)]
        r_copies[c].wait()
        rbuf = r_buf[c]
        acc = None
        for dj in range(K):
            if c == 0:
                piece = pieces[dj]
            elif dj == 0:
                piece = x32.astype(jnp.bfloat16)
            else:
                # XLU lane roll interleaves with the MXU pushes; wrapped lanes
                # only ever land in the padded / invalid output columns.
                piece = pltpu.roll(x32, shift=LANES - dj,
                                   axis=1).astype(jnp.bfloat16)
            contrib = jnp.dot(rbuf[dj], piece,
                              preferred_element_type=jnp.float32)
            acc = contrib if acc is None else acc + contrib
        x32 = jnp.maximum(acc + biases[c], 0.0)          # (ROWS_OUT[c], 128) f32

    # AvgPool2d(5,5) + flatten + Linear(100,25), folded (all f32):
    #   P[c, q]  = sum_p Aexp[c, p] * x[p, q]     (row pooling, row-expanded)
    #   flat[c]  = sum_q P[c, q] * Acol[c, q]     (column pooling -> flat vec)
    #   h1[k]    = sum_c flat[c] * W1[k, c]       (Linear(100, 25))
    for cp in c_copies:
        cp.wait()
    p_full = jnp.dot(aexp_buf[...], x32,
                     preferred_element_type=jnp.float32)                  # (128,128)
    flat_col = jnp.sum(p_full * acol_buf[...], axis=1, keepdims=True)     # (128, 1)
    h1 = jnp.maximum(jnp.sum(w1t_buf[...] * flat_col, axis=0,
                             keepdims=True), 0.0)                          # (1, 32)

    # Linear(25, 5) + ReLU + softmax (PyTorch softmax(dim=0) on the 5-vector).
    h2 = jnp.maximum(jnp.dot(h1, w2t_buf[...],
                             preferred_element_type=jnp.float32), 0.0)     # (1, 5)
    m = jnp.max(h2, axis=-1, keepdims=True)
    e = jnp.exp(h2 - m)
    o_ref[...] = e / jnp.sum(e, axis=-1, keepdims=True)


def _check_geometry():
    """Build-time invariants: padded conv geometry + lane-roll wrap safety."""
    valid = H_IN
    for c in range(6):
        K = KS[c]
        v_out = valid - K + 1
        assert ROWS_IN[c] % 8 == 0 and ROWS_OUT[c] % 8 == 0
        assert valid <= ROWS_IN[c] <= LANES
        assert v_out <= ROWS_OUT[c] <= LANES
        # valid output cols only ever read valid input cols (no roll wrap):
        assert v_out + (K - 1) <= valid <= LANES
        if c < 5:
            assert ROWS_OUT[c] == ROWS_IN[c + 1]
        valid = v_out
    assert valid == 50 and (valid // 5) * (valid // 5) == 100


def _build_rcat3(w, rows_in, rows_out):
    """Per-dj banded matrices R with
       out = sum_dj R[dj] @ roll(x, -dj, lanes),
       R[dj, i, i+di] = w[di, dj]."""
    K = w.shape[0]
    R = np.zeros((K, rows_out, rows_in), np.float32)
    i_idx = np.arange(rows_out)
    for dj in range(K):
        for di in range(K):
            p = i_idx + di
            ok = p < rows_in
            R[dj, i_idx[ok], p[ok]] = w[di, dj]
    return R


def prepare_params(params):
    """One-time parameter glue, hoisted out of the per-call forward path."""
    _check_geometry()
    conv_ws = [np.asarray(w, np.float32) for w in params["conv_ws"]]
    cb = np.asarray([float(b) for b in params["conv_bs"]], np.float32)     # (6,)
    w1 = np.asarray(params["w1"], np.float32)                              # (25, 100)
    w2 = np.asarray(params["w2"], np.float32)                              # (5, 25)

    # Banded conv matrices in bf16 (MXU-native; halves the weight DMA bytes).
    rcats = tuple(jnp.asarray(_build_rcat3(conv_ws[c], ROWS_IN[c], ROWS_OUT[c]),
                              dtype=jnp.bfloat16)
                  for c in range(6))

    # Row-pool expansion (128, 56) and column-pool mask (128, 128); exact zeros
    # over padded rows/cols kill any garbage from the padded conv region.
    aexp = np.zeros((LANES, ROWS_OUT[5]), np.float32)
    acol = np.zeros((LANES, LANES), np.float32)
    for c in range(100):
        aexp[c, 5 * (c // 10): 5 * (c // 10) + 5] = 0.2
        acol[c, 5 * (c % 10): 5 * (c % 10) + 5] = 0.2

    w1t = np.zeros((LANES, 32), np.float32)
    w1t[:100, :25] = w1.T
    w2t = np.zeros((32, 5), np.float32)
    w2t[:25, :] = w2.T

    return {"rcats": rcats, "cb": jnp.asarray(cb), "aexp": jnp.asarray(aexp),
            "acol": jnp.asarray(acol), "w1t": jnp.asarray(w1t),
            "w2t": jnp.asarray(w2t)}


@jax.jit
def p4_cnn_forward(x, prep):
    # Pad the single-channel 100x100 image into a zeroed (104, 128) tile
    # (the zero padding keeps the invalid region finite so the exact-zero
    # pooling coefficients can kill it).
    img = jnp.zeros((ROWS_IN[0], LANES), jnp.float32)
    img = img.at[:H_IN, :H_IN].set(x[0, 0].astype(jnp.float32))

    vmem = pl.BlockSpec(memory_space=pltpu.MemorySpace.VMEM)
    smem = pl.BlockSpec(memory_space=pltpu.MemorySpace.SMEM)
    hbm = pl.BlockSpec(memory_space=pl.ANY)

    out = pl.pallas_call(
        _p4_kernel,
        out_shape=jax.ShapeDtypeStruct((1, 5), jnp.float32),
        in_specs=[vmem, smem] + [hbm] * 10,
        out_specs=vmem,
        scratch_shapes=(
            [pltpu.VMEM((KS[c], ROWS_OUT[c], ROWS_IN[c]), jnp.bfloat16)
             for c in range(6)]
            + [pltpu.VMEM((LANES, ROWS_OUT[5]), jnp.float32),   # aexp
               pltpu.VMEM((LANES, LANES), jnp.float32),         # acol
               pltpu.VMEM((LANES, 32), jnp.float32),            # w1^T (padded)
               pltpu.VMEM((32, 5), jnp.float32),                # w2^T (padded)
               pltpu.SemaphoreType.DMA((10,))]),
    )(img, prep["cb"], *prep["rcats"], prep["aexp"], prep["acol"],
      prep["w1t"], prep["w2t"])
    return out[0]                                         # (5,)


def reference_f32(x, params):
    """Pure-JAX f32 reference of the PyTorch forward."""
    y = x.astype(jnp.float32)
    for c in range(6):
        w = params["conv_ws"][c][None, None]              # OIHW (1,1,K,K)
        y = jax.lax.conv_general_dilated(
            y, w, (1, 1), "VALID",
            dimension_numbers=("NCHW", "OIHW", "NCHW"))
        y = jax.nn.relu(y + params["conv_bs"][c])
    y = jax.lax.reduce_window(y, 0.0, jax.lax.add,
                              (1, 1, 5, 5), (1, 1, 5, 5), "VALID") / 25.0
    flat = y.reshape(-1)                                  # (100,)
    h1 = jax.nn.relu(params["w1"] @ flat)
    h2 = jax.nn.relu(params["w2"] @ h1)
    return jax.nn.softmax(h2)


def reference_bf16(x, params):
    """Reference matching the kernel's precision policy: bf16 conv inputs and
    weights, f32 accumulation; pooling / linears / softmax in f32."""
    y = x.astype(jnp.float32)
    for c in range(6):
        w = params["conv_ws"][c].astype(jnp.bfloat16)[None, None]
        y = jax.lax.conv_general_dilated(
            y.astype(jnp.bfloat16), w, (1, 1), "VALID",
            dimension_numbers=("NCHW", "OIHW", "NCHW"),
            preferred_element_type=jnp.float32)
        y = jax.nn.relu(y + params["conv_bs"][c])
    y = jax.lax.reduce_window(y, 0.0, jax.lax.add,
                              (1, 1, 5, 5), (1, 1, 5, 5), "VALID") / 25.0
    flat = y.reshape(-1)
    h1 = jax.nn.relu(params["w1"] @ flat)
    h2 = jax.nn.relu(params["w2"] @ h1)
    return jax.nn.softmax(h2)


if __name__ == "__main__":
    key = jax.random.PRNGKey(0)
    keys = jax.random.split(key, 16)

    conv_ws, conv_bs = [], []
    for c in range(6):
        K = KS[c]
        bound = 1.0 / np.sqrt(K * K)
        conv_ws.append(jax.random.uniform(keys[c], (K, K), jnp.float32,
                                          -bound, bound))
        conv_bs.append(jax.random.uniform(keys[6 + c], (), jnp.float32,
                                          -bound, bound))
    w1 = jax.random.uniform(keys[12], (25, 100), jnp.float32, -0.1, 0.1)
    w2 = jax.random.uniform(keys[13], (5, 25), jnp.float32, -0.2, 0.2)
    params = {"conv_ws": conv_ws, "conv_bs": conv_bs, "w1": w1, "w2": w2}

    # NCHW input; Linear(100, ...) after the conv/pool stack implies 100x100.
    x = jax.random.normal(keys[14], (1, 1, H_IN, H_IN), jnp.float32)

    prep = prepare_params(params)        # one-time glue (hoisted out of forward)
    out = jax.block_until_ready(p4_cnn_forward(x, prep))
    ref_bf = jax.block_until_ready(reference_bf16(x, params))
    ref_32 = jax.block_until_ready(reference_f32(x, params))

    assert out.shape == (5,)
    # Tight check against the bf16-matched reference (implementation check).
    np.testing.assert_allclose(np.asarray(out), np.asarray(ref_bf),
                               rtol=1e-3, atol=1e-4)
    # Looser check against the full-f32 reference (bf16 MXU inputs only).
    np.testing.assert_allclose(np.asarray(out), np.asarray(ref_32),
                               rtol=5e-2, atol=5e-3)
    print("KERNEL_OK")
</pallas_src>

<mosaic_0001>
module attributes {stable_mosaic.version = 11 : i64} {
  func.func @_p4_kernel(%arg0: memref<104x128xf32, #tpu.memory_space<vmem>>, %arg1: memref<6xf32, #tpu.memory_space<smem>>, %arg2: memref<10x96x104xbf16, #tpu.memory_space<any>>, %arg3: memref<10x88x96xbf16, #tpu.memory_space<any>>, %arg4: memref<10x80x88xbf16, #tpu.memory_space<any>>, %arg5: memref<10x64x80xbf16, #tpu.memory_space<any>>, %arg6: memref<10x56x64xbf16, #tpu.memory_space<any>>, %arg7: memref<6x56x56xbf16, #tpu.memory_space<any>>, %arg8: memref<128x56xf32, #tpu.memory_space<any>>, %arg9: memref<128x128xf32, #tpu.memory_space<any>>, %arg10: memref<128x32xf32, #tpu.memory_space<any>>, %arg11: memref<32x5xf32, #tpu.memory_space<any>>, %arg12: memref<1x5xf32, #tpu.memory_space<vmem>>, %arg13: memref<10x96x104xbf16, #tpu.memory_space<vmem>>, %arg14: memref<10x88x96xbf16, #tpu.memory_space<vmem>>, %arg15: memref<10x80x88xbf16, #tpu.memory_space<vmem>>, %arg16: memref<10x64x80xbf16, #tpu.memory_space<vmem>>, %arg17: memref<10x56x64xbf16, #tpu.memory_space<vmem>>, %arg18: memref<6x56x56xbf16, #tpu.memory_space<vmem>>, %arg19: memref<128x56xf32, #tpu.memory_space<vmem>>, %arg20: memref<128x128xf32, #tpu.memory_space<vmem>>, %arg21: memref<128x32xf32, #tpu.memory_space<vmem>>, %arg22: memref<32x5xf32, #tpu.memory_space<vmem>>, %arg23: memref<10x!tpu.dma_semaphore, #tpu.memory_space<semaphore_mem>>) attributes {dimension_semantics = [], scalar_prefetch = 0 : i64, scratch_operands = 11 : i64, tpu.core_type = #tpu.core_type<tc>} {
    %c0 = arith.constant 0 : index
    %0 = memref.load %arg1[%c0] : memref<6xf32, #tpu.memory_space<smem>>
    %c1 = arith.constant 1 : index
    %1 = memref.load %arg1[%c1] : memref<6xf32, #tpu.memory_space<smem>>
    %c2 = arith.constant 2 : index
    %2 = memref.load %arg1[%c2] : memref<6xf32, #tpu.memory_space<smem>>
    %c3 = arith.constant 3 : index
    %3 = memref.load %arg1[%c3] : memref<6xf32, #tpu.memory_space<smem>>
    %c4 = arith.constant 4 : index
    %4 = memref.load %arg1[%c4] : memref<6xf32, #tpu.memory_space<smem>>
    %c5 = arith.constant 5 : index
    %5 = memref.load %arg1[%c5] : memref<6xf32, #tpu.memory_space<smem>>
    %c0_i32 = arith.constant 0 : i32
    %6 = tpu.memref_slice %arg23[%c0_i32] : memref<10x!tpu.dma_semaphore, #tpu.memory_space<semaphore_mem>> -> memref<1x!tpu.dma_semaphore, #tpu.memory_space<semaphore_mem>>
    %7 = tpu.memref_squeeze %6 : memref<1x!tpu.dma_semaphore, #tpu.memory_space<semaphore_mem>> -> memref<!tpu.dma_semaphore, #tpu.memory_space<semaphore_mem>>
    tpu.enqueue_dma source(%arg2 : memref<10x96x104xbf16, #tpu.memory_space<any>>) target(%arg13 : memref<10x96x104xbf16, #tpu.memory_space<vmem>>) target_semaphore(%7 : memref<!tpu.dma_semaphore, #tpu.memory_space<semaphore_mem>>)
    %c1_i32 = arith.constant 1 : i32
    %8 = tpu.memref_slice %arg23[%c1_i32] : memref<10x!tpu.dma_semaphore, #tpu.memory_space<semaphore_mem>> -> memref<1x!tpu.dma_semaphore, #tpu.memory_space<semaphore_mem>>
    %9 = tpu.memref_squeeze %8 : memref<1x!tpu.dma_semaphore, #tpu.memory_space<semaphore_mem>> -> memref<!tpu.dma_semaphore, #tpu.memory_space<semaphore_mem>>
    tpu.enqueue_dma source(%arg3 : memref<10x88x96xbf16, #tpu.memory_space<any>>) target(%arg14 : memref<10x88x96xbf16, #tpu.memory_space<vmem>>) target_semaphore(%9 : memref<!tpu.dma_semaphore, #tpu.memory_space<semaphore_mem>>)
    %c2_i32 = arith.constant 2 : i32
    %10 = tpu.memref_slice %arg23[%c2_i32] : memref<10x!tpu.dma_semaphore, #tpu.memory_space<semaphore_mem>> -> memref<1x!tpu.dma_semaphore, #tpu.memory_space<semaphore_mem>>
    %11 = tpu.memref_squeeze %10 : memref<1x!tpu.dma_semaphore, #tpu.memory_space<semaphore_mem>> -> memref<!tpu.dma_semaphore, #tpu.memory_space<semaphore_mem>>
    tpu.enqueue_dma source(%arg4 : memref<10x80x88xbf16, #tpu.memory_space<any>>) target(%arg15 : memref<10x80x88xbf16, #tpu.memory_space<vmem>>) target_semaphore(%11 : memref<!tpu.dma_semaphore, #tpu.memory_space<semaphore_mem>>)
    %c3_i32 = arith.constant 3 : i32
    %12 = tpu.memref_slice %arg23[%c3_i32] : memref<10x!tpu.dma_semaphore, #tpu.memory_space<semaphore_mem>> -> memref<1x!tpu.dma_semaphore, #tpu.memory_space<semaphore_mem>>
    %13 = tpu.memref_squeeze %12 : memref<1x!tpu.dma_semaphore, #tpu.memory_space<semaphore_mem>> -> memref<!tpu.dma_semaphore, #tpu.memory_space<semaphore_mem>>
    tpu.enqueue_dma source(%arg5 : memref<10x64x80xbf16, #tpu.memory_space<any>>) target(%arg16 : memref<10x64x80xbf16, #tpu.memory_space<vmem>>) target_semaphore(%13 : memref<!tpu.dma_semaphore, #tpu.memory_space<semaphore_mem>>)
    %c4_i32 = arith.constant 4 : i32
    %14 = tpu.memref_slice %arg23[%c4_i32] : memref<10x!tpu.dma_semaphore, #tpu.memory_space<semaphore_mem>> -> memref<1x!tpu.dma_semaphore, #tpu.memory_space<semaphore_mem>>
    %15 = tpu.memref_squeeze %14 : memref<1x!tpu.dma_semaphore, #tpu.memory_space<semaphore_mem>> -> memref<!tpu.dma_semaphore, #tpu.memory_space<semaphore_mem>>
    tpu.enqueue_dma source(%arg6 : memref<10x56x64xbf16, #tpu.memory_space<any>>) target(%arg17 : memref<10x56x64xbf16, #tpu.memory_space<vmem>>) target_semaphore(%15 : memref<!tpu.dma_semaphore, #tpu.memory_space<semaphore_mem>>)
    %c5_i32 = arith.constant 5 : i32
    %16 = tpu.memref_slice %arg23[%c5_i32] : memref<10x!tpu.dma_semaphore, #tpu.memory_space<semaphore_mem>> -> memref<1x!tpu.dma_semaphore, #tpu.memory_space<semaphore_mem>>
    %17 = tpu.memref_squeeze %16 : memref<1x!tpu.dma_semaphore, #tpu.memory_space<semaphore_mem>> -> memref<!tpu.dma_semaphore, #tpu.memory_space<semaphore_mem>>
    tpu.enqueue_dma source(%arg7 : memref<6x56x56xbf16, #tpu.memory_space<any>>) target(%arg18 : memref<6x56x56xbf16, #tpu.memory_space<vmem>>) target_semaphore(%17 : memref<!tpu.dma_semaphore, #tpu.memory_space<semaphore_mem>>)
    %c6_i32 = arith.constant 6 : i32
    %18 = tpu.memref_slice %arg23[%c6_i32] : memref<10x!tpu.dma_semaphore, #tpu.memory_space<semaphore_mem>> -> memref<1x!tpu.dma_semaphore, #tpu.memory_space<semaphore_mem>>
    %19 = tpu.memref_squeeze %18 : memref<1x!tpu.dma_semaphore, #tpu.memory_space<semaphore_mem>> -> memref<!tpu.dma_semaphore, #tpu.memory_space<semaphore_mem>>
    tpu.enqueue_dma source(%arg8 : memref<128x56xf32, #tpu.memory_space<any>>) target(%arg19 : memref<128x56xf32, #tpu.memory_space<vmem>>) target_semaphore(%19 : memref<!tpu.dma_semaphore, #tpu.memory_space<semaphore_mem>>)
    %c7_i32 = arith.constant 7 : i32
    %20 = tpu.memref_slice %arg23[%c7_i32] : memref<10x!tpu.dma_semaphore, #tpu.memory_space<semaphore_mem>> -> memref<1x!tpu.dma_semaphore, #tpu.memory_space<semaphore_mem>>
    %21 = tpu.memref_squeeze %20 : memref<1x!tpu.dma_semaphore, #tpu.memory_space<semaphore_mem>> -> memref<!tpu.dma_semaphore, #tpu.memory_space<semaphore_mem>>
    tpu.enqueue_dma source(%arg9 : memref<128x128xf32, #tpu.memory_space<any>>) target(%arg20 : memref<128x128xf32, #tpu.memory_space<vmem>>) target_semaphore(%21 : memref<!tpu.dma_semaphore, #tpu.memory_space<semaphore_mem>>)
    %c8_i32 = arith.constant 8 : i32
    %22 = tpu.memref_slice %arg23[%c8_i32] : memref<10x!tpu.dma_semaphore, #tpu.memory_space<semaphore_mem>> -> memref<1x!tpu.dma_semaphore, #tpu.memory_space<semaphore_mem>>
    %23 = tpu.memref_squeeze %22 : memref<1x!tpu.dma_semaphore, #tpu.memory_space<semaphore_mem>> -> memref<!tpu.dma_semaphore, #tpu.memory_space<semaphore_mem>>
    tpu.enqueue_dma source(%arg10 : memref<128x32xf32, #tpu.memory_space<any>>) target(%arg21 : memref<128x32xf32, #tpu.memory_space<vmem>>) target_semaphore(%23 : memref<!tpu.dma_semaphore, #tpu.memory_space<semaphore_mem>>)
    %c9_i32 = arith.constant 9 : i32
    %24 = tpu.memref_slice %arg23[%c9_i32] : memref<10x!tpu.dma_semaphore, #tpu.memory_space<semaphore_mem>> -> memref<1x!tpu.dma_semaphore, #tpu.memory_space<semaphore_mem>>
    %25 = tpu.memref_squeeze %24 : memref<1x!tpu.dma_semaphore, #tpu.memory_space<semaphore_mem>> -> memref<!tpu.dma_semaphore, #tpu.memory_space<semaphore_mem>>
    tpu.enqueue_dma source(%arg11 : memref<32x5xf32, #tpu.memory_space<any>>) target(%arg22 : memref<32x5xf32, #tpu.memory_space<vmem>>) target_semaphore(%25 : memref<!tpu.dma_semaphore, #tpu.memory_space<semaphore_mem>>)
    %c0_0 = arith.constant 0 : index
    %c0_1 = arith.constant 0 : index
    %26 = vector.load %arg0[%c0_0, %c0_1] : memref<104x128xf32, #tpu.memory_space<vmem>>, vector<104x128xf32>
    %27 = arith.truncf %26 : vector<104x128xf32> to vector<104x128xbf16>
    %c127_i32 = arith.constant 127 : i32
    %28 = tpu.dynamic_rotate %26 by %c127_i32 dim 1 : vector<104x128xf32>, i32 -> vector<104x128xf32>
    %29 = arith.truncf %28 : vector<104x128xf32> to vector<104x128xbf16>
    %c126_i32 = arith.constant 126 : i32
    %30 = tpu.dynamic_rotate %26 by %c126_i32 dim 1 : vector<104x128xf32>, i32 -> vector<104x128xf32>
    %31 = arith.truncf %30 : vector<104x128xf32> to vector<104x128xbf16>
    %c125_i32 = arith.constant 125 : i32
    %32 = tpu.dynamic_rotate %26 by %c125_i32 dim 1 : vector<104x128xf32>, i32 -> vector<104x128xf32>
    %33 = arith.truncf %32 : vector<104x128xf32> to vector<104x128xbf16>
    %c124_i32 = arith.constant 124 : i32
    %34 = tpu.dynamic_rotate %26 by %c124_i32 dim 1 : vector<104x128xf32>, i32 -> vector<104x128xf32>
    %35 = arith.truncf %34 : vector<104x128xf32> to vector<104x128xbf16>
    %c123_i32 = arith.constant 123 : i32
    %36 = tpu.dynamic_rotate %26 by %c123_i32 dim 1 : vector<104x128xf32>, i32 -> vector<104x128xf32>
    %37 = arith.truncf %36 : vector<104x128xf32> to vector<104x128xbf16>
    %c122_i32 = arith.constant 122 : i32
    %38 = tpu.dynamic_rotate %26 by %c122_i32 dim 1 : vector<104x128xf32>, i32 -> vector<104x128xf32>
    %39 = arith.truncf %38 : vector<104x128xf32> to vector<104x128xbf16>
    %c121_i32 = arith.constant 121 : i32
    %40 = tpu.dynamic_rotate %26 by %c121_i32 dim 1 : vector<104x128xf32>, i32 -> vector<104x128xf32>
    %41 = arith.truncf %40 : vector<104x128xf32> to vector<104x128xbf16>
    %c120_i32 = arith.constant 120 : i32
    %42 = tpu.dynamic_rotate %26 by %c120_i32 dim 1 : vector<104x128xf32>, i32 -> vector<104x128xf32>
    %43 = arith.truncf %42 : vector<104x128xf32> to vector<104x128xbf16>
    %c119_i32 = arith.constant 119 : i32
    %44 = tpu.dynamic_rotate %26 by %c119_i32 dim 1 : vector<104x128xf32>, i32 -> vector<104x128xf32>
    %45 = arith.truncf %44 : vector<104x128xf32> to vector<104x128xbf16>
    %c0_i32_2 = arith.constant 0 : i32
    %46 = tpu.memref_slice %arg23[%c0_i32_2] : memref<10x!tpu.dma_semaphore, #tpu.memory_space<semaphore_mem>> -> memref<1x!tpu.dma_semaphore, #tpu.memory_space<semaphore_mem>>
    %47 = tpu.memref_squeeze %46 : memref<1x!tpu.dma_semaphore, #tpu.memory_space<semaphore_mem>> -> memref<!tpu.dma_semaphore, #tpu.memory_space<semaphore_mem>>
    tpu.wait_dma2 semaphore(%47 : memref<!tpu.dma_semaphore, #tpu.memory_space<semaphore_mem>>) src(%arg2 : memref<10x96x104xbf16, #tpu.memory_space<any>>) dst(%arg13 : memref<10x96x104xbf16, #tpu.memory_space<vmem>>)
    %c0_3 = arith.constant 0 : index
    %c0_4 = arith.constant 0 : index
    %c0_5 = arith.constant 0 : index
    %48 = vector.load %arg13[%c0_3, %c0_4, %c0_5] : memref<10x96x104xbf16, #tpu.memory_space<vmem>>, vector<1x96x104xbf16>
    %49 = vector.shape_cast %48 : vector<1x96x104xbf16> to vector<96x104xbf16>
    %cst = arith.constant dense<0.000000e+00> : vector<96x128xf32>
    %50 = tpu.matmul %49, %27, %cst {dimension_numbers = #tpu.dot_dimension_numbers<[1], [0], [0], [1], [0, 0, 1, 1], [], []>} : vector<96x104xbf16>, vector<104x128xbf16>, vector<96x128xf32> -> vector<96x128xf32>
    %c1_6 = arith.constant 1 : index
    %c0_7 = arith.constant 0 : index
    %c0_8 = arith.constant 0 : index
    %51 = vector.load %arg13[%c1_6, %c0_7, %c0_8] : memref<10x96x104xbf16, #tpu.memory_space<vmem>>, vector<1x96x104xbf16>
    %52 = vector.shape_cast %51 : vector<1x96x104xbf16> to vector<96x104xbf16>
    %cst_9 = arith.constant dense<0.000000e+00> : vector<96x128xf32>
    %53 = tpu.matmul %52, %29, %cst_9 {dimension_numbers = #tpu.dot_dimension_numbers<[1], [0], [0], [1], [0, 0, 1, 1], [], []>} : vector<96x104xbf16>, vector<104x128xbf16>, vector<96x128xf32> -> vector<96x128xf32>
    %54 = arith.addf %50, %53 : vector<96x128xf32>
    %c2_10 = arith.constant 2 : index
    %c0_11 = arith.constant 0 : index
    %c0_12 = arith.constant 0 : index
    %55 = vector.load %arg13[%c2_10, %c0_11, %c0_12] : memref<10x96x104xbf16, #tpu.memory_space<vmem>>, vector<1x96x104xbf16>
    %56 = vector.shape_cast %55 : vector<1x96x104xbf16> to vector<96x104xbf16>
    %cst_13 = arith.constant dense<0.000000e+00> : vector<96x128xf32>
    %57 = tpu.matmul %56, %31, %cst_13 {dimension_numbers = #tpu.dot_dimension_numbers<[1], [0], [0], [1], [0, 0, 1, 1], [], []>} : vector<96x104xbf16>, vector<104x128xbf16>, vector<96x128xf32> -> vector<96x128xf32>
    %58 = arith.addf %54, %57 : vector<96x128xf32>
    %c3_14 = arith.constant 3 : index
    %c0_15 = arith.constant 0 : index
    %c0_16 = arith.constant 0 : index
    %59 = vector.load %arg13[%c3_14, %c0_15, %c0_16] : memref<10x96x104xbf16, #tpu.memory_space<vmem>>, vector<1x96x104xbf16>
    %60 = vector.shape_cast %59 : vector<1x96x104xbf16> to vector<96x104xbf16>
    %cst_17 = arith.constant dense<0.000000e+00> : vector<96x128xf32>
    %61 = tpu.matmul %60, %33, %cst_17 {dimension_numbers = #tpu.dot_dimension_numbers<[1], [0], [0], [1], [0, 0, 1, 1], [], []>} : vector<96x104xbf16>, vector<104x128xbf16>, vector<96x128xf32> -> vector<96x128xf32>
    %62 = arith.addf %58, %61 : vector<96x128xf32>
    %c4_18 = arith.constant 4 : index
    %c0_19 = arith.constant 0 : index
    %c0_20 = arith.constant 0 : index
    %63 = vector.load %arg13[%c4_18, %c0_19, %c0_20] : memref<10x96x104xbf16, #tpu.memory_space<vmem>>, vector<1x96x104xbf16>
    %64 = vector.shape_cast %63 : vector<1x96x104xbf16> to vector<96x104xbf16>
    %cst_21 = arith.constant dense<0.000000e+00> : vector<96x128xf32>
    %65 = tpu.matmul %64, %35, %cst_21 {dimension_numbers = #tpu.dot_dimension_numbers<[1], [0], [0], [1], [0, 0, 1, 1], [], []>} : vector<96x104xbf16>, vector<104x128xbf16>, vector<96x128xf32> -> vector<96x128xf32>
    %66 = arith.addf %62, %65 : vector<96x128xf32>
    %c5_22 = arith.constant 5 : index
    %c0_23 = arith.constant 0 : index
    %c0_24 = arith.constant 0 : index
    %67 = vector.load %arg13[%c5_22, %c0_23, %c0_24] : memref<10x96x104xbf16, #tpu.memory_space<vmem>>, vector<1x96x104xbf16>
    %68 = vector.shape_cast %67 : vector<1x96x104xbf16> to vector<96x104xbf16>
    %cst_25 = arith.constant dense<0.000000e+00> : vector<96x128xf32>
    %69 = tpu.matmul %68, %37, %cst_25 {dimension_numbers = #tpu.dot_dimension_numbers<[1], [0], [0], [1], [0, 0, 1, 1], [], []>} : vector<96x104xbf16>, vector<104x128xbf16>, vector<96x128xf32> -> vector<96x128xf32>
    %70 = arith.addf %66, %69 : vector<96x128xf32>
    %c6 = arith.constant 6 : index
    %c0_26 = arith.constant 0 : index
    %c0_27 = arith.constant 0 : index
    %71 = vector.load %arg13[%c6, %c0_26, %c0_27] : memref<10x96x104xbf16, #tpu.memory_space<vmem>>, vector<1x96x104xbf16>
    %72 = vector.shape_cast %71 : vector<1x96x104xbf16> to vector<96x104xbf16>
    %cst_28 = arith.constant dense<0.000000e+00> : vector<96x128xf32>
    %73 = tpu.matmul %72, %39, %cst_28 {dimension_numbers = #tpu.dot_dimension_numbers<[1], [0], [0], [1], [0, 0, 1, 1], [], []>} : vector<96x104xbf16>, vector<104x128xbf16>, vector<96x128xf32> -> vector<96x128xf32>
    %74 = arith.addf %70, %73 : vector<96x128xf32>
    %c7 = arith.constant 7 : index
    %c0_29 = arith.constant 0 : index
    %c0_30 = arith.constant 0 : index
    %75 = vector.load %arg13[%c7, %c0_29, %c0_30] : memref<10x96x104xbf16, #tpu.memory_space<vmem>>, vector<1x96x104xbf16>
    %76 = vector.shape_cast %75 : vector<1x96x104xbf16> to vector<96x104xbf16>
    %cst_31 = arith.constant dense<0.000000e+00> : vector<96x128xf32>
    %77 = tpu.matmul %76, %41, %cst_31 {dimension_numbers = #tpu.dot_dimension_numbers<[1], [0], [0], [1], [0, 0, 1, 1], [], []>} : vector<96x104xbf16>, vector<104x128xbf16>, vector<96x128xf32> -> vector<96x128xf32>
    %78 = arith.addf %74, %77 : vector<96x128xf32>
    %c8 = arith.constant 8 : index
    %c0_32 = arith.constant 0 : index
    %c0_33 = arith.constant 0 : index
    %79 = vector.load %arg13[%c8, %c0_32, %c0_33] : memref<10x96x104xbf16, #tpu.memory_space<vmem>>, vector<1x96x104xbf16>
    %80 = vector.shape_cast %79 : vector<1x96x104xbf16> to vector<96x104xbf16>
    %cst_34 = arith.constant dense<0.000000e+00> : vector<96x128xf32>
    %81 = tpu.matmul %80, %43, %cst_34 {dimension_numbers = #tpu.dot_dimension_numbers<[1], [0], [0], [1], [0, 0, 1, 1], [], []>} : vector<96x104xbf16>, vector<104x128xbf16>, vector<96x128xf32> -> vector<96x128xf32>
    %82 = arith.addf %78, %81 : vector<96x128xf32>
    %c9 = arith.constant 9 : index
    %c0_35 = arith.constant 0 : index
    %c0_36 = arith.constant 0 : index
    %83 = vector.load %arg13[%c9, %c0_35, %c0_36] : memref<10x96x104xbf16, #tpu.memory_space<vmem>>, vector<1x96x104xbf16>
    %84 = vector.shape_cast %83 : vector<1x96x104xbf16> to vector<96x104xbf16>
    %cst_37 = arith.constant dense<0.000000e+00> : vector<96x128xf32>
    %85 = tpu.matmul %84, %45, %cst_37 {dimension_numbers = #tpu.dot_dimension_numbers<[1], [0], [0], [1], [0, 0, 1, 1], [], []>} : vector<96x104xbf16>, vector<104x128xbf16>, vector<96x128xf32> -> vector<96x128xf32>
    %86 = arith.addf %82, %85 : vector<96x128xf32>
    %87 = vector.broadcast %0 : f32 to vector<96x128xf32>
    %88 = arith.addf %86, %87 : vector<96x128xf32>
    %cst_38 = arith.constant 0.000000e+00 : f32
    %89 = vector.broadcast %cst_38 : f32 to vector<96x128xf32>
    %90 = arith.maximumf %88, %89 : vector<96x128xf32>
    %c1_i32_39 = arith.constant 1 : i32
    %91 = tpu.memref_slice %arg23[%c1_i32_39] : memref<10x!tpu.dma_semaphore, #tpu.memory_space<semaphore_mem>> -> memref<1x!tpu.dma_semaphore, #tpu.memory_space<semaphore_mem>>
    %92 = tpu.memref_squeeze %91 : memref<1x!tpu.dma_semaphore, #tpu.memory_space<semaphore_mem>> -> memref<!tpu.dma_semaphore, #tpu.memory_space<semaphore_mem>>
    tpu.wait_dma2 semaphore(%92 : memref<!tpu.dma_semaphore, #tpu.memory_space<semaphore_mem>>) src(%arg3 : memref<10x88x96xbf16, #tpu.memory_space<any>>) dst(%arg14 : memref<10x88x96xbf16, #tpu.memory_space<vmem>>)
    %93 = arith.truncf %90 : vector<96x128xf32> to vector<96x128xbf16>
    %c0_40 = arith.constant 0 : index
    %c0_41 = arith.constant 0 : index
    %c0_42 = arith.constant 0 : index
    %94 = vector.load %arg14[%c0_40, %c0_41, %c0_42] : memref<10x88x96xbf16, #tpu.memory_space<vmem>>, vector<1x88x96xbf16>
    %95 = vector.shape_cast %94 : vector<1x88x96xbf16> to vector<88x96xbf16>
    %cst_43 = arith.constant dense<0.000000e+00> : vector<88x128xf32>
    %96 = tpu.matmul %95, %93, %cst_43 {dimension_numbers = #tpu.dot_dimension_numbers<[1], [0], [0], [1], [0, 0, 1, 1], [], []>} : vector<88x96xbf16>, vector<96x128xbf16>, vector<88x128xf32> -> vector<88x128xf32>
    %c127_i32_44 = arith.constant 127 : i32
    %97 = tpu.dynamic_rotate %90 by %c127_i32_44 dim 1 : vector<96x128xf32>, i32 -> vector<96x128xf32>
    %98 = arith.truncf %97 : vector<96x128xf32> to vector<96x128xbf16>
    %c1_45 = arith.constant 1 : index
    %c0_46 = arith.constant 0 : index
    %c0_47 = arith.constant 0 : index
    %99 = vector.load %arg14[%c1_45, %c0_46, %c0_47] : memref<10x88x96xbf16, #tpu.memory_space<vmem>>, vector<1x88x96xbf16>
    %100 = vector.shape_cast %99 : vector<1x88x96xbf16> to vector<88x96xbf16>
    %cst_48 = arith.constant dense<0.000000e+00> : vector<88x128xf32>
    %101 = tpu.matmul %100, %98, %cst_48 {dimension_numbers = #tpu.dot_dimension_numbers<[1], [0], [0], [1], [0, 0, 1, 1], [], []>} : vector<88x96xbf16>, vector<96x128xbf16>, vector<88x128xf32> -> vector<88x128xf32>
    %102 = arith.addf %96, %101 : vector<88x128xf32>
    %c126_i32_49 = arith.constant 126 : i32
    %103 = tpu.dynamic_rotate %90 by %c126_i32_49 dim 1 : vector<96x128xf32>, i32 -> vector<96x128xf32>
    %104 = arith.truncf %103 : vector<96x128xf32> to vector<96x128xbf16>
    %c2_50 = arith.constant 2 : index
    %c0_51 = arith.constant 0 : index
    %c0_52 = arith.constant 0 : index
    %105 = vector.load %arg14[%c2_50, %c0_51, %c0_52] : memref<10x88x96xbf16, #tpu.memory_space<vmem>>, vector<1x88x96xbf16>
    %106 = vector.shape_cast %105 : vector<1x88x96xbf16> to vector<88x96xbf16>
    %cst_53 = arith.constant dense<0.000000e+00> : vector<88x128xf32>
    %107 = tpu.matmul %106, %104, %cst_53 {dimension_numbers = #tpu.dot_dimension_numbers<[1], [0], [0], [1], [0, 0, 1, 1], [], []>} : vector<88x96xbf16>, vector<96x128xbf16>, vector<88x128xf32> -> vector<88x128xf32>
    %108 = arith.addf %102, %107 : vector<88x128xf32>
    %c125_i32_54 = arith.constant 125 : i32
    %109 = tpu.dynamic_rotate %90 by %c125_i32_54 dim 1 : vector<96x128xf32>, i32 -> vector<96x128xf32>
    %110 = arith.truncf %109 : vector<96x128xf32> to vector<96x128xbf16>
    %c3_55 = arith.constant 3 : index
    %c0_56 = arith.constant 0 : index
    %c0_57 = arith.constant 0 : index
    %111 = vector.load %arg14[%c3_55, %c0_56, %c0_57] : memref<10x88x96xbf16, #tpu.memory_space<vmem>>, vector<1x88x96xbf16>
    %112 = vector.shape_cast %111 : vector<1x88x96xbf16> to vector<88x96xbf16>
    %cst_58 = arith.constant dense<0.000000e+00> : vector<88x128xf32>
    %113 = tpu.matmul %112, %110, %cst_58 {dimension_numbers = #tpu.dot_dimension_numbers<[1], [0], [0], [1], [0, 0, 1, 1], [], []>} : vector<88x96xbf16>, vector<96x128xbf16>, vector<88x128xf32> -> vector<88x128xf32>
    %114 = arith.addf %108, %113 : vector<88x128xf32>
    %c124_i32_59 = arith.constant 124 : i32
    %115 = tpu.dynamic_rotate %90 by %c124_i32_59 dim 1 : vector<96x128xf32>, i32 -> vector<96x128xf32>
    %116 = arith.truncf %115 : vector<96x128xf32> to vector<96x128xbf16>
    %c4_60 = arith.constant 4 : index
    %c0_61 = arith.constant 0 : index
    %c0_62 = arith.constant 0 : index
    %117 = vector.load %arg14[%c4_60, %c0_61, %c0_62] : memref<10x88x96xbf16, #tpu.memory_space<vmem>>, vector<1x88x96xbf16>
    %118 = vector.shape_cast %117 : vector<1x88x96xbf16> to vector<88x96xbf16>
    %cst_63 = arith.constant dense<0.000000e+00> : vector<88x128xf32>
    %119 = tpu.matmul %118, %116, %cst_63 {dimension_numbers = #tpu.dot_dimension_numbers<[1], [0], [0], [1], [0, 0, 1, 1], [], []>} : vector<88x96xbf16>, vector<96x128xbf16>, vector<88x128xf32> -> vector<88x128xf32>
    %120 = arith.addf %114, %119 : vector<88x128xf32>
    %c123_i32_64 = arith.constant 123 : i32
    %121 = tpu.dynamic_rotate %90 by %c123_i32_64 dim 1 : vector<96x128xf32>, i32 -> vector<96x128xf32>
    %122 = arith.truncf %121 : vector<96x128xf32> to vector<96x128xbf16>
    %c5_65 = arith.constant 5 : index
    %c0_66 = arith.constant 0 : index
    %c0_67 = arith.constant 0 : index
    %123 = vector.load %arg14[%c5_65, %c0_66, %c0_67] : memref<10x88x96xbf16, #tpu.memory_space<vmem>>, vector<1x88x96xbf16>
    %124 = vector.shape_cast %123 : vector<1x88x96xbf16> to vector<88x96xbf16>
    %cst_68 = arith.constant dense<0.000000e+00> : vector<88x128xf32>
    %125 = tpu.matmul %124, %122, %cst_68 {dimension_numbers = #tpu.dot_dimension_numbers<[1], [0], [0], [1], [0, 0, 1, 1], [], []>} : vector<88x96xbf16>, vector<96x128xbf16>, vector<88x128xf32> -> vector<88x128xf32>
    %126 = arith.addf %120, %125 : vector<88x128xf32>
    %c122_i32_69 = arith.constant 122 : i32
    %127 = tpu.dynamic_rotate %90 by %c122_i32_69 dim 1 : vector<96x128xf32>, i32 -> vector<96x128xf32>
    %128 = arith.truncf %127 : vector<96x128xf32> to vector<96x128xbf16>
    %c6_70 = arith.constant 6 : index
    %c0_71 = arith.constant 0 : index
    %c0_72 = arith.constant 0 : index
    %129 = vector.load %arg14[%c6_70, %c0_71, %c0_72] : memref<10x88x96xbf16, #tpu.memory_space<vmem>>, vector<1x88x96xbf16>
    %130 = vector.shape_cast %129 : vector<1x88x96xbf16> to vector<88x96xbf16>
    %cst_73 = arith.constant dense<0.000000e+00> : vector<88x128xf32>
    %131 = tpu.matmul %130, %128, %cst_73 {dimension_numbers = #tpu.dot_dimension_numbers<[1], [0], [0], [1], [0, 0, 1, 1], [], []>} : vector<88x96xbf16>, vector<96x128xbf16>, vector<88x128xf32> -> vector<88x128xf32>
    %132 = arith.addf %126, %131 : vector<88x128xf32>
    %c121_i32_74 = arith.constant 121 : i32
    %133 = tpu.dynamic_rotate %90 by %c121_i32_74 dim 1 : vector<96x128xf32>, i32 -> vector<96x128xf32>
    %134 = arith.truncf %133 : vector<96x128xf32> to vector<96x128xbf16>
    %c7_75 = arith.constant 7 : index
    %c0_76 = arith.constant 0 : index
    %c0_77 = arith.constant 0 : index
    %135 = vector.load %arg14[%c7_75, %c0_76, %c0_77] : memref<10x88x96xbf16, #tpu.memory_space<vmem>>, vector<1x88x96xbf16>
    %136 = vector.shape_cast %135 : vector<1x88x96xbf16> to vector<88x96xbf16>
    %cst_78 = arith.constant dense<0.000000e+00> : vector<88x128xf32>
    %137 = tpu.matmul %136, %134, %cst_78 {dimension_numbers = #tpu.dot_dimension_numbers<[1], [0], [0], [1], [0, 0, 1, 1], [], []>} : vector<88x96xbf16>, vector<96x128xbf16>, vector<88x128xf32> -> vector<88x128xf32>
    %138 = arith.addf %132, %137 : vector<88x128xf32>
    %c120_i32_79 = arith.constant 120 : i32
    %139 = tpu.dynamic_rotate %90 by %c120_i32_79 dim 1 : vector<96x128xf32>, i32 -> vector<96x128xf32>
    %140 = arith.truncf %139 : vector<96x128xf32> to vector<96x128xbf16>
    %c8_80 = arith.constant 8 : index
    %c0_81 = arith.constant 0 : index
    %c0_82 = arith.constant 0 : index
    %141 = vector.load %arg14[%c8_80, %c0_81, %c0_82] : memref<10x88x96xbf16, #tpu.memory_space<vmem>>, vector<1x88x96xbf16>
    %142 = vector.shape_cast %141 : vector<1x88x96xbf16> to vector<88x96xbf16>
    %cst_83 = arith.constant dense<0.000000e+00> : vector<88x128xf32>
    %143 = tpu.matmul %142, %140, %cst_83 {dimension_numbers = #tpu.dot_dimension_numbers<[1], [0], [0], [1], [0, 0, 1, 1], [], []>} : vector<88x96xbf16>, vector<96x128xbf16>, vector<88x128xf32> -> vector<88x128xf32>
    %144 = arith.addf %138, %143 : vector<88x128xf32>
    %c119_i32_84 = arith.constant 119 : i32
    %145 = tpu.dynamic_rotate %90 by %c119_i32_84 dim 1 : vector<96x128xf32>, i32 -> vector<96x128xf32>
    %146 = arith.truncf %145 : vector<96x128xf32> to vector<96x128xbf16>
    %c9_85 = arith.constant 9 : index
    %c0_86 = arith.constant 0 : index
    %c0_87 = arith.constant 0 : index
    %147 = vector.load %arg14[%c9_85, %c0_86, %c0_87] : memref<10x88x96xbf16, #tpu.memory_space<vmem>>, vector<1x88x96xbf16>
    %148 = vector.shape_cast %147 : vector<1x88x96xbf16> to vector<88x96xbf16>
    %cst_88 = arith.constant dense<0.000000e+00> : vector<88x128xf32>
    %149 = tpu.matmul %148, %146, %cst_88 {dimension_numbers = #tpu.dot_dimension_numbers<[1], [0], [0], [1], [0, 0, 1, 1], [], []>} : vector<88x96xbf16>, vector<96x128xbf16>, vector<88x128xf32> -> vector<88x128xf32>
    %150 = arith.addf %144, %149 : vector<88x128xf32>
    %151 = vector.broadcast %1 : f32 to vector<88x128xf32>
    %152 = arith.addf %150, %151 : vector<88x128xf32>
    %cst_89 = arith.constant 0.000000e+00 : f32
    %153 = vector.broadcast %cst_89 : f32 to vector<88x128xf32>
    %154 = arith.maximumf %152, %153 : vector<88x128xf32>
    %c2_i32_90 = arith.constant 2 : i32
    %155 = tpu.memref_slice %arg23[%c2_i32_90] : memref<10x!tpu.dma_semaphore, #tpu.memory_space<semaphore_mem>> -> memref<1x!tpu.dma_semaphore, #tpu.memory_space<semaphore_mem>>
    %156 = tpu.memref_squeeze %155 : memref<1x!tpu.dma_semaphore, #tpu.memory_space<semaphore_mem>> -> memref<!tpu.dma_semaphore, #tpu.memory_space<semaphore_mem>>
    tpu.wait_dma2 semaphore(%156 : memref<!tpu.dma_semaphore, #tpu.memory_space<semaphore_mem>>) src(%arg4 : memref<10x80x88xbf16, #tpu.memory_space<any>>) dst(%arg15 : memref<10x80x88xbf16, #tpu.memory_space<vmem>>)
    %157 = arith.truncf %154 : vector<88x128xf32> to vector<88x128xbf16>
    %c0_91 = arith.constant 0 : index
    %c0_92 = arith.constant 0 : index
    %c0_93 = arith.constant 0 : index
    %158 = vector.load %arg15[%c0_91, %c0_92, %c0_93] : memref<10x80x88xbf16, #tpu.memory_space<vmem>>, vector<1x80x88xbf16>
    %159 = vector.shape_cast %158 : vector<1x80x88xbf16> to vector<80x88xbf16>
    %cst_94 = arith.constant dense<0.000000e+00> : vector<80x128xf32>
    %160 = tpu.matmul %159, %157, %cst_94 {dimension_numbers = #tpu.dot_dimension_numbers<[1], [0], [0], [1], [0, 0, 1, 1], [], []>} : vector<80x88xbf16>, vector<88x128xbf16>, vector<80x128xf32> -> vector<80x128xf32>
    %c127_i32_95 = arith.constant 127 : i32
    %161 = tpu.dynamic_rotate %154 by %c127_i32_95 dim 1 : vector<88x128xf32>, i32 -> vector<88x128xf32>
    %162 = arith.truncf %161 : vector<88x128xf32> to vector<88x128xbf16>
    %c1_96 = arith.constant 1 : index
    %c0_97 = arith.constant 0 : index
    %c0_98 = arith.constant 0 : index
    %163 = vector.load %arg15[%c1_96, %c0_97, %c0_98] : memref<10x80x88xbf16, #tpu.memory_space<vmem>>, vector<1x80x88xbf16>
    %164 = vector.shape_cast %163 : vector<1x80x88xbf16> to vector<80x88xbf16>
    %cst_99 = arith.constant dense<0.000000e+00> : vector<80x128xf32>
    %165 = tpu.matmul %164, %162, %cst_99 {dimension_numbers = #tpu.dot_dimension_numbers<[1], [0], [0], [1], [0, 0, 1, 1], [], []>} : vector<80x88xbf16>, vector<88x128xbf16>, vector<80x128xf32> -> vector<80x128xf32>
    %166 = arith.addf %160, %165 : vector<80x128xf32>
    %c126_i32_100 = arith.constant 126 : i32
    %167 = tpu.dynamic_rotate %154 by %c126_i32_100 dim 1 : vector<88x128xf32>, i32 -> vector<88x128xf32>
    %168 = arith.truncf %167 : vector<88x128xf32> to vector<88x128xbf16>
    %c2_101 = arith.constant 2 : index
    %c0_102 = arith.constant 0 : index
    %c0_103 = arith.constant 0 : index
    %169 = vector.load %arg15[%c2_101, %c0_102, %c0_103] : memref<10x80x88xbf16, #tpu.memory_space<vmem>>, vector<1x80x88xbf16>
    %170 = vector.shape_cast %169 : vector<1x80x88xbf16> to vector<80x88xbf16>
    %cst_104 = arith.constant dense<0.000000e+00> : vector<80x128xf32>
    %171 = tpu.matmul %170, %168, %cst_104 {dimension_numbers = #tpu.dot_dimension_numbers<[1], [0], [0], [1], [0, 0, 1, 1], [], []>} : vector<80x88xbf16>, vector<88x128xbf16>, vector<80x128xf32> -> vector<80x128xf32>
    %172 = arith.addf %166, %171 : vector<80x128xf32>
    %c125_i32_105 = arith.constant 125 : i32
    %173 = tpu.dynamic_rotate %154 by %c125_i32_105 dim 1 : vector<88x128xf32>, i32 -> vector<88x128xf32>
    %174 = arith.truncf %173 : vector<88x128xf32> to vector<88x128xbf16>
    %c3_106 = arith.constant 3 : index
    %c0_107 = arith.constant 0 : index
    %c0_108 = arith.constant 0 : index
    %175 = vector.load %arg15[%c3_106, %c0_107, %c0_108] : memref<10x80x88xbf16, #tpu.memory_space<vmem>>, vector<1x80x88xbf16>
    %176 = vector.shape_cast %175 : vector<1x80x88xbf16> to vector<80x88xbf16>
    %cst_109 = arith.constant dense<0.000000e+00> : vector<80x128xf32>
    %177 = tpu.matmul %176, %174, %cst_109 {dimension_numbers = #tpu.dot_dimension_numbers<[1], [0], [0], [1], [0, 0, 1, 1], [], []>} : vector<80x88xbf16>, vector<88x128xbf16>, vector<80x128xf32> -> vector<80x128xf32>
    %178 = arith.addf %172, %177 : vector<80x128xf32>
    %c124_i32_110 = arith.constant 124 : i32
    %179 = tpu.dynamic_rotate %154 by %c124_i32_110 dim 1 : vector<88x128xf32>, i32 -> vector<88x128xf32>
    %180 = arith.truncf %179 : vector<88x128xf32> to vector<88x128xbf16>
    %c4_111 = arith.constant 4 : index
    %c0_112 = arith.constant 0 : index
    %c0_113 = arith.constant 0 : index
    %181 = vector.load %arg15[%c4_111, %c0_112, %c0_113] : memref<10x80x88xbf16, #tpu.memory_space<vmem>>, vector<1x80x88xbf16>
    %182 = vector.shape_cast %181 : vector<1x80x88xbf16> to vector<80x88xbf16>
    %cst_114 = arith.constant dense<0.000000e+00> : vector<80x128xf32>
    %183 = tpu.matmul %182, %180, %cst_114 {dimension_numbers = #tpu.dot_dimension_numbers<[1], [0], [0], [1], [0, 0, 1, 1], [], []>} : vector<80x88xbf16>, vector<88x128xbf16>, vector<80x128xf32> -> vector<80x128xf32>
    %184 = arith.addf %178, %183 : vector<80x128xf32>
    %c123_i32_115 = arith.constant 123 : i32
    %185 = tpu.dynamic_rotate %154 by %c123_i32_115 dim 1 : vector<88x128xf32>, i32 -> vector<88x128xf32>
    %186 = arith.truncf %185 : vector<88x128xf32> to vector<88x128xbf16>
    %c5_116 = arith.constant 5 : index
    %c0_117 = arith.constant 0 : index
    %c0_118 = arith.constant 0 : index
    %187 = vector.load %arg15[%c5_116, %c0_117, %c0_118] : memref<10x80x88xbf16, #tpu.memory_space<vmem>>, vector<1x80x88xbf16>
    %188 = vector.shape_cast %187 : vector<1x80x88xbf16> to vector<80x88xbf16>
    %cst_119 = arith.constant dense<0.000000e+00> : vector<80x128xf32>
    %189 = tpu.matmul %188, %186, %cst_119 {dimension_numbers = #tpu.dot_dimension_numbers<[1], [0], [0], [1], [0, 0, 1, 1], [], []>} : vector<80x88xbf16>, vector<88x128xbf16>, vector<80x128xf32> -> vector<80x128xf32>
    %190 = arith.addf %184, %189 : vector<80x128xf32>
    %c122_i32_120 = arith.constant 122 : i32
    %191 = tpu.dynamic_rotate %154 by %c122_i32_120 dim 1 : vector<88x128xf32>, i32 -> vector<88x128xf32>
    %192 = arith.truncf %191 : vector<88x128xf32> to vector<88x128xbf16>
    %c6_121 = arith.constant 6 : index
    %c0_122 = arith.constant 0 : index
    %c0_123 = arith.constant 0 : index
    %193 = vector.load %arg15[%c6_121, %c0_122, %c0_123] : memref<10x80x88xbf16, #tpu.memory_space<vmem>>, vector<1x80x88xbf16>
    %194 = vector.shape_cast %193 : vector<1x80x88xbf16> to vector<80x88xbf16>
    %cst_124 = arith.constant dense<0.000000e+00> : vector<80x128xf32>
    %195 = tpu.matmul %194, %192, %cst_124 {dimension_numbers = #tpu.dot_dimension_numbers<[1], [0], [0], [1], [0, 0, 1, 1], [], []>} : vector<80x88xbf16>, vector<88x128xbf16>, vector<80x128xf32> -> vector<80x128xf32>
    %196 = arith.addf %190, %195 : vector<80x128xf32>
    %c121_i32_125 = arith.constant 121 : i32
    %197 = tpu.dynamic_rotate %154 by %c121_i32_125 dim 1 : vector<88x128xf32>, i32 -> vector<88x128xf32>
    %198 = arith.truncf %197 : vector<88x128xf32> to vector<88x128xbf16>
    %c7_126 = arith.constant 7 : index
    %c0_127 = arith.constant 0 : index
    %c0_128 = arith.constant 0 : index
    %199 = vector.load %arg15[%c7_126, %c0_127, %c0_128] : memref<10x80x88xbf16, #tpu.memory_space<vmem>>, vector<1x80x88xbf16>
    %200 = vector.shape_cast %199 : vector<1x80x88xbf16> to vector<80x88xbf16>
    %cst_129 = arith.constant dense<0.000000e+00> : vector<80x128xf32>
    %201 = tpu.matmul %200, %198, %cst_129 {dimension_numbers = #tpu.dot_dimension_numbers<[1], [0], [0], [1], [0, 0, 1, 1], [], []>} : vector<80x88xbf16>, vector<88x128xbf16>, vector<80x128xf32> -> vector<80x128xf32>
    %202 = arith.addf %196, %201 : vector<80x128xf32>
    %c120_i32_130 = arith.constant 120 : i32
    %203 = tpu.dynamic_rotate %154 by %c120_i32_130 dim 1 : vector<88x128xf32>, i32 -> vector<88x128xf32>
    %204 = arith.truncf %203 : vector<88x128xf32> to vector<88x128xbf16>
    %c8_131 = arith.constant 8 : index
    %c0_132 = arith.constant 0 : index
    %c0_133 = arith.constant 0 : index
    %205 = vector.load %arg15[%c8_131, %c0_132, %c0_133] : memref<10x80x88xbf16, #tpu.memory_space<vmem>>, vector<1x80x88xbf16>
    %206 = vector.shape_cast %205 : vector<1x80x88xbf16> to vector<80x88xbf16>
    %cst_134 = arith.constant dense<0.000000e+00> : vector<80x128xf32>
    %207 = tpu.matmul %206, %204, %cst_134 {dimension_numbers = #tpu.dot_dimension_numbers<[1], [0], [0], [1], [0, 0, 1, 1], [], []>} : vector<80x88xbf16>, vector<88x128xbf16>, vector<80x128xf32> -> vector<80x128xf32>
    %208 = arith.addf %202, %207 : vector<80x128xf32>
    %c119_i32_135 = arith.constant 119 : i32
    %209 = tpu.dynamic_rotate %154 by %c119_i32_135 dim 1 : vector<88x128xf32>, i32 -> vector<88x128xf32>
    %210 = arith.truncf %209 : vector<88x128xf32> to vector<88x128xbf16>
    %c9_136 = arith.constant 9 : index
    %c0_137 = arith.constant 0 : index
    %c0_138 = arith.constant 0 : index
    %211 = vector.load %arg15[%c9_136, %c0_137, %c0_138] : memref<10x80x88xbf16, #tpu.memory_space<vmem>>, vector<1x80x88xbf16>
    %212 = vector.shape_cast %211 : vector<1x80x88xbf16> to vector<80x88xbf16>
    %cst_139 = arith.constant dense<0.000000e+00> : vector<80x128xf32>
    %213 = tpu.matmul %212, %210, %cst_139 {dimension_numbers = #tpu.dot_dimension_numbers<[1], [0], [0], [1], [0, 0, 1, 1], [], []>} : vector<80x88xbf16>, vector<88x128xbf16>, vector<80x128xf32> -> vector<80x128xf32>
    %214 = arith.addf %208, %213 : vector<80x128xf32>
    %215 = vector.broadcast %2 : f32 to vector<80x128xf32>
    %216 = arith.addf %214, %215 : vector<80x128xf32>
    %cst_140 = arith.constant 0.000000e+00 : f32
    %217 = vector.broadcast %cst_140 : f32 to vector<80x128xf32>
    %218 = arith.maximumf %216, %217 : vector<80x128xf32>
    %c3_i32_141 = arith.constant 3 : i32
    %219 = tpu.memref_slice %arg23[%c3_i32_141] : memref<10x!tpu.dma_semaphore, #tpu.memory_space<semaphore_mem>> -> memref<1x!tpu.dma_semaphore, #tpu.memory_space<semaphore_mem>>
    %220 = tpu.memref_squeeze %219 : memref<1x!tpu.dma_semaphore, #tpu.memory_space<semaphore_mem>> -> memref<!tpu.dma_semaphore, #tpu.memory_space<semaphore_mem>>
    tpu.wait_dma2 semaphore(%220 : memref<!tpu.dma_semaphore, #tpu.memory_space<semaphore_mem>>) src(%arg5 : memref<10x64x80xbf16, #tpu.memory_space<any>>) dst(%arg16 : memref<10x64x80xbf16, #tpu.memory_space<vmem>>)
    %221 = arith.truncf %218 : vector<80x128xf32> to vector<80x128xbf16>
    %c0_142 = arith.constant 0 : index
    %c0_143 = arith.constant 0 : index
    %c0_144 = arith.constant 0 : index
    %222 = vector.load %arg16[%c0_142, %c0_143, %c0_144] : memref<10x64x80xbf16, #tpu.memory_space<vmem>>, vector<1x64x80xbf16>
    %223 = vector.shape_cast %222 : vector<1x64x80xbf16> to vector<64x80xbf16>
    %cst_145 = arith.constant dense<0.000000e+00> : vector<64x128xf32>
    %224 = tpu.matmul %223, %221, %cst_145 {dimension_numbers = #tpu.dot_dimension_numbers<[1], [0], [0], [1], [0, 0, 1, 1], [], []>} : vector<64x80xbf16>, vector<80x128xbf16>, vector<64x128xf32> -> vector<64x128xf32>
    %c127_i32_146 = arith.constant 127 : i32
    %225 = tpu.dynamic_rotate %218 by %c127_i32_146 dim 1 : vector<80x128xf32>, i32 -> vector<80x128xf32>
    %226 = arith.truncf %225 : vector<80x128xf32> to vector<80x128xbf16>
    %c1_147 = arith.constant 1 : index
    %c0_148 = arith.constant 0 : index
    %c0_149 = arith.constant 0 : index
    %227 = vector.load %arg16[%c1_147, %c0_148, %c0_149] : memref<10x64x80xbf16, #tpu.memory_space<vmem>>, vector<1x64x80xbf16>
    %228 = vector.shape_cast %227 : vector<1x64x80xbf16> to vector<64x80xbf16>
    %cst_150 = arith.constant dense<0.000000e+00> : vector<64x128xf32>
    %229 = tpu.matmul %228, %226, %cst_150 {dimension_numbers = #tpu.dot_dimension_numbers<[1], [0], [0], [1], [0, 0, 1, 1], [], []>} : vector<64x80xbf16>, vector<80x128xbf16>, vector<64x128xf32> -> vector<64x128xf32>
    %230 = arith.addf %224, %229 : vector<64x128xf32>
    %c126_i32_151 = arith.constant 126 : i32
    %231 = tpu.dynamic_rotate %218 by %c126_i32_151 dim 1 : vector<80x128xf32>, i32 -> vector<80x128xf32>
    %232 = arith.truncf %231 : vector<80x128xf32> to vector<80x128xbf16>
    %c2_152 = arith.constant 2 : index
    %c0_153 = arith.constant 0 : index
    %c0_154 = arith.constant 0 : index
    %233 = vector.load %arg16[%c2_152, %c0_153, %c0_154] : memref<10x64x80xbf16, #tpu.memory_space<vmem>>, vector<1x64x80xbf16>
    %234 = vector.shape_cast %233 : vector<1x64x80xbf16> to vector<64x80xbf16>
    %cst_155 = arith.constant dense<0.000000e+00> : vector<64x128xf32>
    %235 = tpu.matmul %234, %232, %cst_155 {dimension_numbers = #tpu.dot_dimension_numbers<[1], [0], [0], [1], [0, 0, 1, 1], [], []>} : vector<64x80xbf16>, vector<80x128xbf16>, vector<64x128xf32> -> vector<64x128xf32>
    %236 = arith.addf %230, %235 : vector<64x128xf32>
    %c125_i32_156 = arith.constant 125 : i32
    %237 = tpu.dynamic_rotate %218 by %c125_i32_156 dim 1 : vector<80x128xf32>, i32 -> vector<80x128xf32>
    %238 = arith.truncf %237 : vector<80x128xf32> to vector<80x128xbf16>
    %c3_157 = arith.constant 3 : index
    %c0_158 = arith.constant 0 : index
    %c0_159 = arith.constant 0 : index
    %239 = vector.load %arg16[%c3_157, %c0_158, %c0_159] : memref<10x64x80xbf16, #tpu.memory_space<vmem>>, vector<1x64x80xbf16>
    %240 = vector.shape_cast %239 : vector<1x64x80xbf16> to vector<64x80xbf16>
    %cst_160 = arith.constant dense<0.000000e+00> : vector<64x128xf32>
    %241 = tpu.matmul %240, %238, %cst_160 {dimension_numbers = #tpu.dot_dimension_numbers<[1], [0], [0], [1], [0, 0, 1, 1], [], []>} : vector<64x80xbf16>, vector<80x128xbf16>, vector<64x128xf32> -> vector<64x128xf32>
    %242 = arith.addf %236, %241 : vector<64x128xf32>
    %c124_i32_161 = arith.constant 124 : i32
    %243 = tpu.dynamic_rotate %218 by %c124_i32_161 dim 1 : vector<80x128xf32>, i32 -> vector<80x128xf32>
    %244 = arith.truncf %243 : vector<80x128xf32> to vector<80x128xbf16>
    %c4_162 = arith.constant 4 : index
    %c0_163 = arith.constant 0 : index
    %c0_164 = arith.constant 0 : index
    %245 = vector.load %arg16[%c4_162, %c0_163, %c0_164] : memref<10x64x80xbf16, #tpu.memory_space<vmem>>, vector<1x64x80xbf16>
    %246 = vector.shape_cast %245 : vector<1x64x80xbf16> to vector<64x80xbf16>
    %cst_165 = arith.constant dense<0.000000e+00> : vector<64x128xf32>
    %247 = tpu.matmul %246, %244, %cst_165 {dimension_numbers = #tpu.dot_dimension_numbers<[1], [0], [0], [1], [0, 0, 1, 1], [], []>} : vector<64x80xbf16>, vector<80x128xbf16>, vector<64x128xf32> -> vector<64x128xf32>
    %248 = arith.addf %242, %247 : vector<64x128xf32>
    %c123_i32_166 = arith.constant 123 : i32
    %249 = tpu.dynamic_rotate %218 by %c123_i32_166 dim 1 : vector<80x128xf32>, i32 -> vector<80x128xf32>
    %250 = arith.truncf %249 : vector<80x128xf32> to vector<80x128xbf16>
    %c5_167 = arith.constant 5 : index
    %c0_168 = arith.constant 0 : index
    %c0_169 = arith.constant 0 : index
    %251 = vector.load %arg16[%c5_167, %c0_168, %c0_169] : memref<10x64x80xbf16, #tpu.memory_space<vmem>>, vector<1x64x80xbf16>
    %252 = vector.shape_cast %251 : vector<1x64x80xbf16> to vector<64x80xbf16>
    %cst_170 = arith.constant dense<0.000000e+00> : vector<64x128xf32>
    %253 = tpu.matmul %252, %250, %cst_170 {dimension_numbers = #tpu.dot_dimension_numbers<[1], [0], [0], [1], [0, 0, 1, 1], [], []>} : vector<64x80xbf16>, vector<80x128xbf16>, vector<64x128xf32> -> vector<64x128xf32>
    %254 = arith.addf %248, %253 : vector<64x128xf32>
    %c122_i32_171 = arith.constant 122 : i32
    %255 = tpu.dynamic_rotate %218 by %c122_i32_171 dim 1 : vector<80x128xf32>, i32 -> vector<80x128xf32>
    %256 = arith.truncf %255 : vector<80x128xf32> to vector<80x128xbf16>
    %c6_172 = arith.constant 6 : index
    %c0_173 = arith.constant 0 : index
    %c0_174 = arith.constant 0 : index
    %257 = vector.load %arg16[%c6_172, %c0_173, %c0_174] : memref<10x64x80xbf16, #tpu.memory_space<vmem>>, vector<1x64x80xbf16>
    %258 = vector.shape_cast %257 : vector<1x64x80xbf16> to vector<64x80xbf16>
    %cst_175 = arith.constant dense<0.000000e+00> : vector<64x128xf32>
    %259 = tpu.matmul %258, %256, %cst_175 {dimension_numbers = #tpu.dot_dimension_numbers<[1], [0], [0], [1], [0, 0, 1, 1], [], []>} : vector<64x80xbf16>, vector<80x128xbf16>, vector<64x128xf32> -> vector<64x128xf32>
    %260 = arith.addf %254, %259 : vector<64x128xf32>
    %c121_i32_176 = arith.constant 121 : i32
    %261 = tpu.dynamic_rotate %218 by %c121_i32_176 dim 1 : vector<80x128xf32>, i32 -> vector<80x128xf32>
    %262 = arith.truncf %261 : vector<80x128xf32> to vector<80x128xbf16>
    %c7_177 = arith.constant 7 : index
    %c0_178 = arith.constant 0 : index
    %c0_179 = arith.constant 0 : index
    %263 = vector.load %arg16[%c7_177, %c0_178, %c0_179] : memref<10x64x80xbf16, #tpu.memory_space<vmem>>, vector<1x64x80xbf16>
    %264 = vector.shape_cast %263 : vector<1x64x80xbf16> to vector<64x80xbf16>
    %cst_180 = arith.constant dense<0.000000e+00> : vector<64x128xf32>
    %265 = tpu.matmul %264, %262, %cst_180 {dimension_numbers = #tpu.dot_dimension_numbers<[1], [0], [0], [1], [0, 0, 1, 1], [], []>} : vector<64x80xbf16>, vector<80x128xbf16>, vector<64x128xf32> -> vector<64x128xf32>
    %266 = arith.addf %260, %265 : vector<64x128xf32>
    %c120_i32_181 = arith.constant 120 : i32
    %267 = tpu.dynamic_rotate %218 by %c120_i32_181 dim 1 : vector<80x128xf32>, i32 -> vector<80x128xf32>
    %268 = arith.truncf %267 : vector<80x128xf32> to vector<80x128xbf16>
    %c8_182 = arith.constant 8 : index
    %c0_183 = arith.constant 0 : index
    %c0_184 = arith.constant 0 : index
    %269 = vector.load %arg16[%c8_182, %c0_183, %c0_184] : memref<10x64x80xbf16, #tpu.memory_space<vmem>>, vector<1x64x80xbf16>
    %270 = vector.shape_cast %269 : vector<1x64x80xbf16> to vector<64x80xbf16>
    %cst_185 = arith.constant dense<0.000000e+00> : vector<64x128xf32>
    %271 = tpu.matmul %270, %268, %cst_185 {dimension_numbers = #tpu.dot_dimension_numbers<[1], [0], [0], [1], [0, 0, 1, 1], [], []>} : vector<64x80xbf16>, vector<80x128xbf16>, vector<64x128xf32> -> vector<64x128xf32>
    %272 = arith.addf %266, %271 : vector<64x128xf32>
    %c119_i32_186 = arith.constant 119 : i32
    %273 = tpu.dynamic_rotate %218 by %c119_i32_186 dim 1 : vector<80x128xf32>, i32 -> vector<80x128xf32>
    %274 = arith.truncf %273 : vector<80x128xf32> to vector<80x128xbf16>
    %c9_187 = arith.constant 9 : index
    %c0_188 = arith.constant 0 : index
    %c0_189 = arith.constant 0 : index
    %275 = vector.load %arg16[%c9_187, %c0_188, %c0_189] : memref<10x64x80xbf16, #tpu.memory_space<vmem>>, vector<1x64x80xbf16>
    %276 = vector.shape_cast %275 : vector<1x64x80xbf16> to vector<64x80xbf16>
    %cst_190 = arith.constant dense<0.000000e+00> : vector<64x128xf32>
    %277 = tpu.matmul %276, %274, %cst_190 {dimension_numbers = #tpu.dot_dimension_numbers<[1], [0], [0], [1], [0, 0, 1, 1], [], []>} : vector<64x80xbf16>, vector<80x128xbf16>, vector<64x128xf32> -> vector<64x128xf32>
    %278 = arith.addf %272, %277 : vector<64x128xf32>
    %279 = vector.broadcast %3 : f32 to vector<64x128xf32>
    %280 = arith.addf %278, %279 : vector<64x128xf32>
    %cst_191 = arith.constant 0.000000e+00 : f32
    %281 = vector.broadcast %cst_191 : f32 to vector<64x128xf32>
    %282 = arith.maximumf %280, %281 : vector<64x128xf32>
    %c4_i32_192 = arith.constant 4 : i32
    %283 = tpu.memref_slice %arg23[%c4_i32_192] : memref<10x!tpu.dma_semaphore, #tpu.memory_space<semaphore_mem>> -> memref<1x!tpu.dma_semaphore, #tpu.memory_space<semaphore_mem>>
    %284 = tpu.memref_squeeze %283 : memref<1x!tpu.dma_semaphore, #tpu.memory_space<semaphore_mem>> -> memref<!tpu.dma_semaphore, #tpu.memory_space<semaphore_mem>>
    tpu.wait_dma2 semaphore(%284 : memref<!tpu.dma_semaphore, #tpu.memory_space<semaphore_mem>>) src(%arg6 : memref<10x56x64xbf16, #tpu.memory_space<any>>) dst(%arg17 : memref<10x56x64xbf16, #tpu.memory_space<vmem>>)
    %285 = arith.truncf %282 : vector<64x128xf32> to vector<64x128xbf16>
    %c0_193 = arith.constant 0 : index
    %c0_194 = arith.constant 0 : index
    %c0_195 = arith.constant 0 : index
    %286 = vector.load %arg17[%c0_193, %c0_194, %c0_195] : memref<10x56x64xbf16, #tpu.memory_space<vmem>>, vector<1x56x64xbf16>
    %287 = vector.shape_cast %286 : vector<1x56x64xbf16> to vector<56x64xbf16>
    %cst_196 = arith.constant dense<0.000000e+00> : vector<56x128xf32>
    %288 = tpu.matmul %287, %285, %cst_196 {dimension_numbers = #tpu.dot_dimension_numbers<[1], [0], [0], [1], [0, 0, 1, 1], [], []>} : vector<56x64xbf16>, vector<64x128xbf16>, vector<56x128xf32> -> vector<56x128xf32>
    %c127_i32_197 = arith.constant 127 : i32
    %289 = tpu.dynamic_rotate %282 by %c127_i32_197 dim 1 : vector<64x128xf32>, i32 -> vector<64x128xf32>
    %290 = arith.truncf %289 : vector<64x128xf32> to vector<64x128xbf16>
    %c1_198 = arith.constant 1 : index
    %c0_199 = arith.constant 0 : index
    %c0_200 = arith.constant 0 : index
    %291 = vector.load %arg17[%c1_198, %c0_199, %c0_200] : memref<10x56x64xbf16, #tpu.memory_space<vmem>>, vector<1x56x64xbf16>
    %292 = vector.shape_cast %291 : vector<1x56x64xbf16> to vector<56x64xbf16>
    %cst_201 = arith.constant dense<0.000000e+00> : vector<56x128xf32>
    %293 = tpu.matmul %292, %290, %cst_201 {dimension_numbers = #tpu.dot_dimension_numbers<[1], [0], [0], [1], [0, 0, 1, 1], [], []>} : vector<56x64xbf16>, vector<64x128xbf16>, vector<56x128xf32> -> vector<56x128xf32>
    %294 = arith.addf %288, %293 : vector<56x128xf32>
    %c126_i32_202 = arith.constant 126 : i32
    %295 = tpu.dynamic_rotate %282 by %c126_i32_202 dim 1 : vector<64x128xf32>, i32 -> vector<64x128xf32>
    %296 = arith.truncf %295 : vector<64x128xf32> to vector<64x128xbf16>
    %c2_203 = arith.constant 2 : index
    %c0_204 = arith.constant 0 : index
    %c0_205 = arith.constant 0 : index
    %297 = vector.load %arg17[%c2_203, %c0_204, %c0_205] : memref<10x56x64xbf16, #tpu.memory_space<vmem>>, vector<1x56x64xbf16>
    %298 = vector.shape_cast %297 : vector<1x56x64xbf16> to vector<56x64xbf16>
    %cst_206 = arith.constant dense<0.000000e+00> : vector<56x128xf32>
    %299 = tpu.matmul %298, %296, %cst_206 {dimension_numbers = #tpu.dot_dimension_numbers<[1], [0], [0], [1], [0, 0, 1, 1], [], []>} : vector<56x64xbf16>, vector<64x128xbf16>, vector<56x128xf32> -> vector<56x128xf32>
    %300 = arith.addf %294, %299 : vector<56x128xf32>
    %c125_i32_207 = arith.constant 125 : i32
    %301 = tpu.dynamic_rotate %282 by %c125_i32_207 dim 1 : vector<64x128xf32>, i32 -> vector<64x128xf32>
    %302 = arith.truncf %301 : vector<64x128xf32> to vector<64x128xbf16>
    %c3_208 = arith.constant 3 : index
    %c0_209 = arith.constant 0 : index
    %c0_210 = arith.constant 0 : index
    %303 = vector.load %arg17[%c3_208, %c0_209, %c0_210] : memref<10x56x64xbf16, #tpu.memory_space<vmem>>, vector<1x56x64xbf16>
    %304 = vector.shape_cast %303 : vector<1x56x64xbf16> to vector<56x64xbf16>
    %cst_211 = arith.constant dense<0.000000e+00> : vector<56x128xf32>
    %305 = tpu.matmul %304, %302, %cst_211 {dimension_numbers = #tpu.dot_dimension_numbers<[1], [0], [0], [1], [0, 0, 1, 1], [], []>} : vector<56x64xbf16>, vector<64x128xbf16>, vector<56x128xf32> -> vector<56x128xf32>
    %306 = arith.addf %300, %305 : vector<56x128xf32>
    %c124_i32_212 = arith.constant 124 : i32
    %307 = tpu.dynamic_rotate %282 by %c124_i32_212 dim 1 : vector<64x128xf32>, i32 -> vector<64x128xf32>
    %308 = arith.truncf %307 : vector<64x128xf32> to vector<64x128xbf16>
    %c4_213 = arith.constant 4 : index
    %c0_214 = arith.constant 0 : index
    %c0_215 = arith.constant 0 : index
    %309 = vector.load %arg17[%c4_213, %c0_214, %c0_215] : memref<10x56x64xbf16, #tpu.memory_space<vmem>>, vector<1x56x64xbf16>
    %310 = vector.shape_cast %309 : vector<1x56x64xbf16> to vector<56x64xbf16>
    %cst_216 = arith.constant dense<0.000000e+00> : vector<56x128xf32>
    %311 = tpu.matmul %310, %308, %cst_216 {dimension_numbers = #tpu.dot_dimension_numbers<[1], [0], [0], [1], [0, 0, 1, 1], [], []>} : vector<56x64xbf16>, vector<64x128xbf16>, vector<56x128xf32> -> vector<56x128xf32>
    %312 = arith.addf %306, %311 : vector<56x128xf32>
    %c123_i32_217 = arith.constant 123 : i32
    %313 = tpu.dynamic_rotate %282 by %c123_i32_217 dim 1 : vector<64x128xf32>, i32 -> vector<64x128xf32>
    %314 = arith.truncf %313 : vector<64x128xf32> to vector<64x128xbf16>
    %c5_218 = arith.constant 5 : index
    %c0_219 = arith.constant 0 : index
    %c0_220 = arith.constant 0 : index
    %315 = vector.load %arg17[%c5_218, %c0_219, %c0_220] : memref<10x56x64xbf16, #tpu.memory_space<vmem>>, vector<1x56x64xbf16>
    %316 = vector.shape_cast %315 : vector<1x56x64xbf16> to vector<56x64xbf16>
    %cst_221 = arith.constant dense<0.000000e+00> : vector<56x128xf32>
    %317 = tpu.matmul %316, %314, %cst_221 {dimension_numbers = #tpu.dot_dimension_numbers<[1], [0], [0], [1], [0, 0, 1, 1], [], []>} : vector<56x64xbf16>, vector<64x128xbf16>, vector<56x128xf32> -> vector<56x128xf32>
    %318 = arith.addf %312, %317 : vector<56x128xf32>
    %c122_i32_222 = arith.constant 122 : i32
    %319 = tpu.dynamic_rotate %282 by %c122_i32_222 dim 1 : vector<64x128xf32>, i32 -> vector<64x128xf32>
    %320 = arith.truncf %319 : vector<64x128xf32> to vector<64x128xbf16>
    %c6_223 = arith.constant 6 : index
    %c0_224 = arith.constant 0 : index
    %c0_225 = arith.constant 0 : index
    %321 = vector.load %arg17[%c6_223, %c0_224, %c0_225] : memref<10x56x64xbf16, #tpu.memory_space<vmem>>, vector<1x56x64xbf16>
    %322 = vector.shape_cast %321 : vector<1x56x64xbf16> to vector<56x64xbf16>
    %cst_226 = arith.constant dense<0.000000e+00> : vector<56x128xf32>
    %323 = tpu.matmul %322, %320, %cst_226 {dimension_numbers = #tpu.dot_dimension_numbers<[1], [0], [0], [1], [0, 0, 1, 1], [], []>} : vector<56x64xbf16>, vector<64x128xbf16>, vector<56x128xf32> -> vector<56x128xf32>
    %324 = arith.addf %318, %323 : vector<56x128xf32>
    %c121_i32_227 = arith.constant 121 : i32
    %325 = tpu.dynamic_rotate %282 by %c121_i32_227 dim 1 : vector<64x128xf32>, i32 -> vector<64x128xf32>
    %326 = arith.truncf %325 : vector<64x128xf32> to vector<64x128xbf16>
    %c7_228 = arith.constant 7 : index
    %c0_229 = arith.constant 0 : index
    %c0_230 = arith.constant 0 : index
    %327 = vector.load %arg17[%c7_228, %c0_229, %c0_230] : memref<10x56x64xbf16, #tpu.memory_space<vmem>>, vector<1x56x64xbf16>
    %328 = vector.shape_cast %327 : vector<1x56x64xbf16> to vector<56x64xbf16>
    %cst_231 = arith.constant dense<0.000000e+00> : vector<56x128xf32>
    %329 = tpu.matmul %328, %326, %cst_231 {dimension_numbers = #tpu.dot_dimension_numbers<[1], [0], [0], [1], [0, 0, 1, 1], [], []>} : vector<56x64xbf16>, vector<64x128xbf16>, vector<56x128xf32> -> vector<56x128xf32>
    %330 = arith.addf %324, %329 : vector<56x128xf32>
    %c120_i32_232 = arith.constant 120 : i32
    %331 = tpu.dynamic_rotate %282 by %c120_i32_232 dim 1 : vector<64x128xf32>, i32 -> vector<64x128xf32>
    %332 = arith.truncf %331 : vector<64x128xf32> to vector<64x128xbf16>
    %c8_233 = arith.constant 8 : index
    %c0_234 = arith.constant 0 : index
    %c0_235 = arith.constant 0 : index
    %333 = vector.load %arg17[%c8_233, %c0_234, %c0_235] : memref<10x56x64xbf16, #tpu.memory_space<vmem>>, vector<1x56x64xbf16>
    %334 = vector.shape_cast %333 : vector<1x56x64xbf16> to vector<56x64xbf16>
    %cst_236 = arith.constant dense<0.000000e+00> : vector<56x128xf32>
    %335 = tpu.matmul %334, %332, %cst_236 {dimension_numbers = #tpu.dot_dimension_numbers<[1], [0], [0], [1], [0, 0, 1, 1], [], []>} : vector<56x64xbf16>, vector<64x128xbf16>, vector<56x128xf32> -> vector<56x128xf32>
    %336 = arith.addf %330, %335 : vector<56x128xf32>
    %c119_i32_237 = arith.constant 119 : i32
    %337 = tpu.dynamic_rotate %282 by %c119_i32_237 dim 1 : vector<64x128xf32>, i32 -> vector<64x128xf32>
    %338 = arith.truncf %337 : vector<64x128xf32> to vector<64x128xbf16>
    %c9_238 = arith.constant 9 : index
    %c0_239 = arith.constant 0 : index
    %c0_240 = arith.constant 0 : index
    %339 = vector.load %arg17[%c9_238, %c0_239, %c0_240] : memref<10x56x64xbf16, #tpu.memory_space<vmem>>, vector<1x56x64xbf16>
    %340 = vector.shape_cast %339 : vector<1x56x64xbf16> to vector<56x64xbf16>
    %cst_241 = arith.constant dense<0.000000e+00> : vector<56x128xf32>
    %341 = tpu.matmul %340, %338, %cst_241 {dimension_numbers = #tpu.dot_dimension_numbers<[1], [0], [0], [1], [0, 0, 1, 1], [], []>} : vector<56x64xbf16>, vector<64x128xbf16>, vector<56x128xf32> -> vector<56x128xf32>
    %342 = arith.addf %336, %341 : vector<56x128xf32>
    %343 = vector.broadcast %4 : f32 to vector<56x128xf32>
    %344 = arith.addf %342, %343 : vector<56x128xf32>
    %cst_242 = arith.constant 0.000000e+00 : f32
    %345 = vector.broadcast %cst_242 : f32 to vector<56x128xf32>
    %346 = arith.maximumf %344, %345 : vector<56x128xf32>
    %c5_i32_243 = arith.constant 5 : i32
    %347 = tpu.memref_slice %arg23[%c5_i32_243] : memref<10x!tpu.dma_semaphore, #tpu.memory_space<semaphore_mem>> -> memref<1x!tpu.dma_semaphore, #tpu.memory_space<semaphore_mem>>
    %348 = tpu.memref_squeeze %347 : memref<1x!tpu.dma_semaphore, #tpu.memory_space<semaphore_mem>> -> memref<!tpu.dma_semaphore, #tpu.memory_space<semaphore_mem>>
    tpu.wait_dma2 semaphore(%348 : memref<!tpu.dma_semaphore, #tpu.memory_space<semaphore_mem>>) src(%arg7 : memref<6x56x56xbf16, #tpu.memory_space<any>>) dst(%arg18 : memref<6x56x56xbf16, #tpu.memory_space<vmem>>)
    %349 = arith.truncf %346 : vector<56x128xf32> to vector<56x128xbf16>
    %c0_244 = arith.constant 0 : index
    %c0_245 = arith.constant 0 : index
    %c0_246 = arith.constant 0 : index
    %350 = vector.load %arg18[%c0_244, %c0_245, %c0_246] : memref<6x56x56xbf16, #tpu.memory_space<vmem>>, vector<1x56x56xbf16>
    %351 = vector.shape_cast %350 : vector<1x56x56xbf16> to vector<56x56xbf16>
    %cst_247 = arith.constant dense<0.000000e+00> : vector<56x128xf32>
    %352 = tpu.matmul %351, %349, %cst_247 {dimension_numbers = #tpu.dot_dimension_numbers<[1], [0], [0], [1], [0, 0, 1, 1], [], []>} : vector<56x56xbf16>, vector<56x128xbf16>, vector<56x128xf32> -> vector<56x128xf32>
    %c127_i32_248 = arith.constant 127 : i32
    %353 = tpu.dynamic_rotate %346 by %c127_i32_248 dim 1 : vector<56x128xf32>, i32 -> vector<56x128xf32>
    %354 = arith.truncf %353 : vector<56x128xf32> to vector<56x128xbf16>
    %c1_249 = arith.constant 1 : index
    %c0_250 = arith.constant 0 : index
    %c0_251 = arith.constant 0 : index
    %355 = vector.load %arg18[%c1_249, %c0_250, %c0_251] : memref<6x56x56xbf16, #tpu.memory_space<vmem>>, vector<1x56x56xbf16>
    %356 = vector.shape_cast %355 : vector<1x56x56xbf16> to vector<56x56xbf16>
    %cst_252 = arith.constant dense<0.000000e+00> : vector<56x128xf32>
    %357 = tpu.matmul %356, %354, %cst_252 {dimension_numbers = #tpu.dot_dimension_numbers<[1], [0], [0], [1], [0, 0, 1, 1], [], []>} : vector<56x56xbf16>, vector<56x128xbf16>, vector<56x128xf32> -> vector<56x128xf32>
    %358 = arith.addf %352, %357 : vector<56x128xf32>
    %c126_i32_253 = arith.constant 126 : i32
    %359 = tpu.dynamic_rotate %346 by %c126_i32_253 dim 1 : vector<56x128xf32>, i32 -> vector<56x128xf32>
    %360 = arith.truncf %359 : vector<56x128xf32> to vector<56x128xbf16>
    %c2_254 = arith.constant 2 : index
    %c0_255 = arith.constant 0 : index
    %c0_256 = arith.constant 0 : index
    %361 = vector.load %arg18[%c2_254, %c0_255, %c0_256] : memref<6x56x56xbf16, #tpu.memory_space<vmem>>, vector<1x56x56xbf16>
    %362 = vector.shape_cast %361 : vector<1x56x56xbf16> to vector<56x56xbf16>
    %cst_257 = arith.constant dense<0.000000e+00> : vector<56x128xf32>
    %363 = tpu.matmul %362, %360, %cst_257 {dimension_numbers = #tpu.dot_dimension_numbers<[1], [0], [0], [1], [0, 0, 1, 1], [], []>} : vector<56x56xbf16>, vector<56x128xbf16>, vector<56x128xf32> -> vector<56x128xf32>
    %364 = arith.addf %358, %363 : vector<56x128xf32>
    %c125_i32_258 = arith.constant 125 : i32
    %365 = tpu.dynamic_rotate %346 by %c125_i32_258 dim 1 : vector<56x128xf32>, i32 -> vector<56x128xf32>
    %366 = arith.truncf %365 : vector<56x128xf32> to vector<56x128xbf16>
    %c3_259 = arith.constant 3 : index
    %c0_260 = arith.constant 0 : index
    %c0_261 = arith.constant 0 : index
    %367 = vector.load %arg18[%c3_259, %c0_260, %c0_261] : memref<6x56x56xbf16, #tpu.memory_space<vmem>>, vector<1x56x56xbf16>
    %368 = vector.shape_cast %367 : vector<1x56x56xbf16> to vector<56x56xbf16>
    %cst_262 = arith.constant dense<0.000000e+00> : vector<56x128xf32>
    %369 = tpu.matmul %368, %366, %cst_262 {dimension_numbers = #tpu.dot_dimension_numbers<[1], [0], [0], [1], [0, 0, 1, 1], [], []>} : vector<56x56xbf16>, vector<56x128xbf16>, vector<56x128xf32> -> vector<56x128xf32>
    %370 = arith.addf %364, %369 : vector<56x128xf32>
    %c124_i32_263 = arith.constant 124 : i32
    %371 = tpu.dynamic_rotate %346 by %c124_i32_263 dim 1 : vector<56x128xf32>, i32 -> vector<56x128xf32>
    %372 = arith.truncf %371 : vector<56x128xf32> to vector<56x128xbf16>
    %c4_264 = arith.constant 4 : index
    %c0_265 = arith.constant 0 : index
    %c0_266 = arith.constant 0 : index
    %373 = vector.load %arg18[%c4_264, %c0_265, %c0_266] : memref<6x56x56xbf16, #tpu.memory_space<vmem>>, vector<1x56x56xbf16>
    %374 = vector.shape_cast %373 : vector<1x56x56xbf16> to vector<56x56xbf16>
    %cst_267 = arith.constant dense<0.000000e+00> : vector<56x128xf32>
    %375 = tpu.matmul %374, %372, %cst_267 {dimension_numbers = #tpu.dot_dimension_numbers<[1], [0], [0], [1], [0, 0, 1, 1], [], []>} : vector<56x56xbf16>, vector<56x128xbf16>, vector<56x128xf32> -> vector<56x128xf32>
    %376 = arith.addf %370, %375 : vector<56x128xf32>
    %c123_i32_268 = arith.constant 123 : i32
    %377 = tpu.dynamic_rotate %346 by %c123_i32_268 dim 1 : vector<56x128xf32>, i32 -> vector<56x128xf32>
    %378 = arith.truncf %377 : vector<56x128xf32> to vector<56x128xbf16>
    %c5_269 = arith.constant 5 : index
    %c0_270 = arith.constant 0 : index
    %c0_271 = arith.constant 0 : index
    %379 = vector.load %arg18[%c5_269, %c0_270, %c0_271] : memref<6x56x56xbf16, #tpu.memory_space<vmem>>, vector<1x56x56xbf16>
    %380 = vector.shape_cast %379 : vector<1x56x56xbf16> to vector<56x56xbf16>
    %cst_272 = arith.constant dense<0.000000e+00> : vector<56x128xf32>
    %381 = tpu.matmul %380, %378, %cst_272 {dimension_numbers = #tpu.dot_dimension_numbers<[1], [0], [0], [1], [0, 0, 1, 1], [], []>} : vector<56x56xbf16>, vector<56x128xbf16>, vector<56x128xf32> -> vector<56x128xf32>
    %382 = arith.addf %376, %381 : vector<56x128xf32>
    %383 = vector.broadcast %5 : f32 to vector<56x128xf32>
    %384 = arith.addf %382, %383 : vector<56x128xf32>
    %cst_273 = arith.constant 0.000000e+00 : f32
    %385 = vector.broadcast %cst_273 : f32 to vector<56x128xf32>
    %386 = arith.maximumf %384, %385 : vector<56x128xf32>
    %c6_i32_274 = arith.constant 6 : i32
    %387 = tpu.memref_slice %arg23[%c6_i32_274] : memref<10x!tpu.dma_semaphore, #tpu.memory_space<semaphore_mem>> -> memref<1x!tpu.dma_semaphore, #tpu.memory_space<semaphore_mem>>
    %388 = tpu.memref_squeeze %387 : memref<1x!tpu.dma_semaphore, #tpu.memory_space<semaphore_mem>> -> memref<!tpu.dma_semaphore, #tpu.memory_space<semaphore_mem>>
    tpu.wait_dma2 semaphore(%388 : memref<!tpu.dma_semaphore, #tpu.memory_space<semaphore_mem>>) src(%arg8 : memref<128x56xf32, #tpu.memory_space<any>>) dst(%arg19 : memref<128x56xf32, #tpu.memory_space<vmem>>)
    %c7_i32_275 = arith.constant 7 : i32
    %389 = tpu.memref_slice %arg23[%c7_i32_275] : memref<10x!tpu.dma_semaphore, #tpu.memory_space<semaphore_mem>> -> memref<1x!tpu.dma_semaphore, #tpu.memory_space<semaphore_mem>>
    %390 = tpu.memref_squeeze %389 : memref<1x!tpu.dma_semaphore, #tpu.memory_space<semaphore_mem>> -> memref<!tpu.dma_semaphore, #tpu.memory_space<semaphore_mem>>
    tpu.wait_dma2 semaphore(%390 : memref<!tpu.dma_semaphore, #tpu.memory_space<semaphore_mem>>) src(%arg9 : memref<128x128xf32, #tpu.memory_space<any>>) dst(%arg20 : memref<128x128xf32, #tpu.memory_space<vmem>>)
    %c8_i32_276 = arith.constant 8 : i32
    %391 = tpu.memref_slice %arg23[%c8_i32_276] : memref<10x!tpu.dma_semaphore, #tpu.memory_space<semaphore_mem>> -> memref<1x!tpu.dma_semaphore, #tpu.memory_space<semaphore_mem>>
    %392 = tpu.memref_squeeze %391 : memref<1x!tpu.dma_semaphore, #tpu.memory_space<semaphore_mem>> -> memref<!tpu.dma_semaphore, #tpu.memory_space<semaphore_mem>>
    tpu.wait_dma2 semaphore(%392 : memref<!tpu.dma_semaphore, #tpu.memory_space<semaphore_mem>>) src(%arg10 : memref<128x32xf32, #tpu.memory_space<any>>) dst(%arg21 : memref<128x32xf32, #tpu.memory_space<vmem>>)
    %c9_i32_277 = arith.constant 9 : i32
    %393 = tpu.memref_slice %arg23[%c9_i32_277] : memref<10x!tpu.dma_semaphore, #tpu.memory_space<semaphore_mem>> -> memref<1x!tpu.dma_semaphore, #tpu.memory_space<semaphore_mem>>
    %394 = tpu.memref_squeeze %393 : memref<1x!tpu.dma_semaphore, #tpu.memory_space<semaphore_mem>> -> memref<!tpu.dma_semaphore, #tpu.memory_space<semaphore_mem>>
    tpu.wait_dma2 semaphore(%394 : memref<!tpu.dma_semaphore, #tpu.memory_space<semaphore_mem>>) src(%arg11 : memref<32x5xf32, #tpu.memory_space<any>>) dst(%arg22 : memref<32x5xf32, #tpu.memory_space<vmem>>)
    %c0_278 = arith.constant 0 : index
    %c0_279 = arith.constant 0 : index
    %395 = vector.load %arg19[%c0_278, %c0_279] : memref<128x56xf32, #tpu.memory_space<vmem>>, vector<128x56xf32>
    %cst_280 = arith.constant dense<0.000000e+00> : vector<128x128xf32>
    %396 = tpu.matmul %395, %386, %cst_280 {dimension_numbers = #tpu.dot_dimension_numbers<[1], [0], [0], [1], [0, 0, 1, 1], [], []>} : vector<128x56xf32>, vector<56x128xf32>, vector<128x128xf32> -> vector<128x128xf32>
    %c0_281 = arith.constant 0 : index
    %c0_282 = arith.constant 0 : index
    %397 = vector.load %arg20[%c0_281, %c0_282] : memref<128x128xf32, #tpu.memory_space<vmem>>, vector<128x128xf32>
    %398 = arith.mulf %396, %397 : vector<128x128xf32>
    %cst_283 = arith.constant dense<0.000000e+00> : vector<128xf32>
    %399 = vector.multi_reduction <add>, %398, %cst_283 [1] : vector<128x128xf32> to vector<128xf32>
    %400 = vector.shape_cast %399 : vector<128xf32> to vector<128x1xf32>
    %c0_284 = arith.constant 0 : index
    %c0_285 = arith.constant 0 : index
    %401 = vector.load %arg21[%c0_284, %c0_285] : memref<128x32xf32, #tpu.memory_space<vmem>>, vector<128x32xf32>
    %402 = vector.broadcast %400 : vector<128x1xf32> to vector<128x32xf32>
    %403 = arith.mulf %401, %402 : vector<128x32xf32>
    %cst_286 = arith.constant dense<0.000000e+00> : vector<32xf32>
    %404 = vector.multi_reduction <add>, %403, %cst_286 [0] : vector<128x32xf32> to vector<32xf32>
    %405 = vector.shape_cast %404 : vector<32xf32> to vector<1x32xf32>
    %cst_287 = arith.constant 0.000000e+00 : f32
    %406 = vector.broadcast %cst_287 : f32 to vector<1x32xf32>
    %407 = arith.maximumf %405, %406 : vector<1x32xf32>
    %c0_288 = arith.constant 0 : index
    %c0_289 = arith.constant 0 : index
    %408 = vector.load %arg22[%c0_288, %c0_289] : memref<32x5xf32, #tpu.memory_space<vmem>>, vector<32x5xf32>
    %cst_290 = arith.constant dense<0.000000e+00> : vector<1x5xf32>
    %409 = tpu.matmul %407, %408, %cst_290 {dimension_numbers = #tpu.dot_dimension_numbers<[1], [0], [0], [1], [0, 0, 1, 1], [], []>} : vector<1x32xf32>, vector<32x5xf32>, vector<1x5xf32> -> vector<1x5xf32>
    %cst_291 = arith.constant 0.000000e+00 : f32
    %410 = vector.broadcast %cst_291 : f32 to vector<1x5xf32>
    %411 = arith.maximumf %409, %410 : vector<1x5xf32>
    %cst_292 = arith.constant dense<0xFF800000> : vector<1xf32>
    %412 = vector.multi_reduction <maximumf>, %411, %cst_292 [1] : vector<1x5xf32> to vector<1xf32>
    %413 = vector.shape_cast %412 : vector<1xf32> to vector<1x1xf32>
    %414 = vector.broadcast %413 : vector<1x1xf32> to vector<1x5xf32>
    %415 = arith.subf %411, %414 : vector<1x5xf32>
    %416 = math.exp %415 : vector<1x5xf32>
    %cst_293 = arith.constant dense<0.000000e+00> : vector<1xf32>
    %417 = vector.multi_reduction <add>, %416, %cst_293 [1] : vector<1x5xf32> to vector<1xf32>
    %418 = vector.shape_cast %417 : vector<1xf32> to vector<1x1xf32>
    %419 = vector.broadcast %418 : vector<1x1xf32> to vector<1x5xf32>
    %420 = arith.divf %416, %419 : vector<1x5xf32>
    %c0_294 = arith.constant 0 : index
    %c0_295 = arith.constant 0 : index
    %421 = vector.load %arg12[%c0_294, %c0_295] : memref<1x5xf32, #tpu.memory_space<vmem>>, vector<1x5xf32>
    tpu.vector_store %arg12[%c0_294, %c0_295], %420 {strides = array<i32>} : memref<1x5xf32, #tpu.memory_space<vmem>>, vector<1x5xf32>,
    return
  }
}

</mosaic_0001>

<llo_original>
// kernel: p4_cnn_forward.1
$region0: #{p4_cnn_forward.1}
  #allocation0 [shape = 'u32[]', space=smem, size = 0x4, offset = 0x4, fixed_abs, tag = 'smem constant byte address 0x4 - core index']
  #allocation1 [shape = 'u32[144,128]{1,0:T(1,128)}', space=vmem, size = 0x12000, scoped, tag = 'internal scratch']
  #allocation2 [shape = 'bf16[10,96,104]{2,1,0:T(8,128)(2,1)}', space=vmem, size = 0x3c000, scoped, tag = 'scratch operand']
  #allocation3 [shape = 'bf16[10,88,96]{2,1,0:T(8,128)(2,1)}', space=vmem, size = 0x37000, scoped, tag = 'scratch operand']
  #allocation4 [shape = 'bf16[10,80,88]{2,1,0:T(8,128)(2,1)}', space=vmem, size = 0x32000, scoped, tag = 'scratch operand']
  #allocation5 [shape = 'bf16[10,64,80]{2,1,0:T(8,128)(2,1)}', space=vmem, size = 0x28000, scoped, tag = 'scratch operand']
  #allocation6 [shape = 'bf16[10,56,64]{2,1,0:T(8,128)(2,1)}', space=vmem, size = 0x23000, scoped, tag = 'scratch operand']
  #allocation7 [shape = 'bf16[6,56,56]{2,1,0:T(8,128)(2,1)}', space=vmem, size = 0x15000, scoped, tag = 'scratch operand']
  #allocation8 [shape = 'f32[128,56]{1,0:T(8,128)}', space=vmem, size = 0x10000, scoped, tag = 'scratch operand']
  #allocation9 [shape = 'f32[128,128]{1,0:T(8,128)}', space=vmem, size = 0x10000, scoped, tag = 'scratch operand']
  #allocation10 [shape = 'f32[128,32]{1,0:T(8,128)}', space=vmem, size = 0x10000, scoped, tag = 'scratch operand']
  #allocation11 [shape = 'f32[32,5]{1,0:T(8,128)}', space=vmem, size = 0x4000, scoped, tag = 'scratch operand']
  #allocation12 [shape = 's32[10]{0}', space=sflag, size = 0x28, scoped, tag = 'scratch operand']
  #allocation17 [shape = 's32[]', space=sflag, size = 0x4, offset = 0, fixed_abs, tag = 'sflag constant byte address 0x0 - dummy sync flag']
  #allocation18 [shape = 's32[]', space=sflag, size = 0x4, offset = 0, fixed_abs, tag = 'sflag constant byte address 0x0 - dummy sync flag']
  #allocation19 [shape = 's32[]', space=sflag, size = 0x4, offset = 0, fixed_abs, tag = 'sflag constant byte address 0x0 - dummy sync flag']
  #allocation20 [shape = 'u32[]', space=smem, size = 0x4, offset = 0x44, fixed_abs, tag = 'smem constant byte address 0x44 - assertion arg 0']
  #allocation21 [shape = 'u32[]', space=smem, size = 0x4, offset = 0x48, fixed_abs, tag = 'smem constant byte address 0x48 - assertion arg 1']
  #allocation22 [shape = 's32[]', space=sflag, size = 0x4, offset = 0, fixed_abs, tag = 'sflag constant byte address 0x0 - dummy sync flag']
  #allocation23 [shape = 's32[]', space=sflag, size = 0x4, offset = 0, fixed_abs, tag = 'sflag constant byte address 0x0 - dummy sync flag']
  #allocation24 [shape = 's32[]', space=sflag, size = 0x4, offset = 0, fixed_abs, tag = 'sflag constant byte address 0x0 - dummy sync flag']
  #allocation25 [shape = 's32[]', space=sflag, size = 0x4, offset = 0, fixed_abs, tag = 'sflag constant byte address 0x0 - dummy sync flag']
  #allocation26 [shape = 's32[]', space=sflag, size = 0x4, offset = 0, fixed_abs, tag = 'sflag constant byte address 0x0 - dummy sync flag']
  #allocation27 [shape = 's32[]', space=sflag, size = 0x4, offset = 0, fixed_abs, tag = 'sflag constant byte address 0x0 - dummy sync flag']
  #allocation28 [shape = 's32[]', space=sflag, size = 0x4, offset = 0, fixed_abs, tag = 'sflag constant byte address 0x0 - dummy sync flag']
  #allocation29 [shape = 's32[]', space=sflag, size = 0x4, offset = 0, fixed_abs, tag = 'sflag constant byte address 0x0 - dummy sync flag']
  #allocation30 [shape = 's32[]', space=sflag, size = 0x4, offset = 0, fixed_abs, tag = 'sflag constant byte address 0x0 - dummy sync flag']
  #allocation31 [shape = 's32[]', space=sflag, size = 0x4, offset = 0, fixed_abs, tag = 'sflag constant byte address 0x0 - dummy sync flag']
  #allocation32 [shape = 's32[]', space=sflag, size = 0x4, offset = 0, fixed_abs, tag = 'sflag constant byte address 0x0 - dummy sync flag']
  #allocation33 [shape = 's32[]', space=sflag, size = 0x4, offset = 0, fixed_abs, tag = 'sflag constant byte address 0x0 - dummy sync flag']
  %s0 = inlined_call_operand.vmem [shape: f32[104,128], index: 0, kind: input, shape index: {}]
  %s1 = inlined_call_operand.vmem [shape: f32[6], index: 1, kind: input, shape index: {}]
  %s2 = inlined_call_operand.vmem [shape: bf16[10,96,104], index: 2, kind: input, shape index: {}]
  %s3 = inlined_call_operand.hbm [shape: bf16[10,88,96], index: 3, kind: input, shape index: {}]
  %s4 = inlined_call_operand.hbm [shape: bf16[10,80,88], index: 4, kind: input, shape index: {}]
  %s5 = inlined_call_operand.vmem [shape: bf16[10,64,80], index: 5, kind: input, shape index: {}]
  %s6 = inlined_call_operand.hbm [shape: bf16[10,56,64], index: 6, kind: input, shape index: {}]
  %s7 = inlined_call_operand.hbm [shape: bf16[6,56,56], index: 7, kind: input, shape index: {}]
  %s8 = inlined_call_operand.vmem [shape: f32[128,56], index: 8, kind: input, shape index: {}]
  %s9 = inlined_call_operand.hbm [shape: f32[128,128], index: 9, kind: input, shape index: {}]
  %s10 = inlined_call_operand.vmem [shape: f32[128,32], index: 10, kind: input, shape index: {}]
  %s11 = inlined_call_operand.vmem [shape: f32[32,5], index: 11, kind: input, shape index: {}]
  %s12 = inlined_call_operand.hbm [shape: f32[1,5], index: 12, kind: output, shape index: {}]
  %s13 = sld [smem:[#allocation0]]
  $region212: #{p4_cnn_forward.1} parent=0
    _
  %s15 = ssub.s32 1, %s13
  %s16 = scalar_select 0, %s15, %s13
  $region1: #{p4_cnn_forward.1} parent=0
    #allocation13 [shape = 'u8[512]{0}', space=smem, size = 0x200, scoped, tag = 'input window, operand 1, single buffered']
    #allocation14 [shape = 's32[1]{0}', space=sflag, size = 0x4, scoped, tag = 'scoped memory for p4_cnn_forward.1']
    #allocation15 [shape = 's32[1]{0}', space=sflag, size = 0x4, scoped, tag = 'scoped memory for p4_cnn_forward.1']
    #allocation16 [shape = 'u8[512]{0}', space=vmem, size = 0x400, scoped, tag = 'output window, operand 0, single buffered']
    %17 = vsyncpa [#allocation15], 0
    %18 = vsyncpa [#allocation14], 0
    // Predicated region
    $region2: #{p4_cnn_forward.1} parent=1 // pred_check
      _
    $region3: #{p4_cnn_forward.1} parent=1 // pred_check_branch
      %20 = sbr.rel (0) target = $region5
    $region4: #{p4_cnn_forward.1} parent=1 // pred_region
      _
    $region5: #{p4_cnn_forward.1} parent=1 // pred_fallthru
      _
    // Predicated region
    $region6: #{p4_cnn_forward.1} parent=1 // pred_check
      _
    $region7: #{p4_cnn_forward.1} parent=1 // pred_check_branch
      %22 = sbr.rel (0) target = $region9
    $region8: #{p4_cnn_forward.1} parent=1 // pred_region
      %s24 = ssub.s32 16, 16
      %25 = vsyncadd [#allocation15], %s24
      %s27 = sshll.u32 %s1, 4
      %s28 = int_to_ptr.vmem [resolvable:$true] %s27
      %30 = dma.vmem_to_smem %s28, 16, [#allocation13], [#allocation15]
    $region9: #{p4_cnn_forward.1} parent=1 // pred_fallthru
      _
    // Predicated region
    $region10: #{p4_cnn_forward.1} parent=1 // pred_check
      _
    $region11: #{p4_cnn_forward.1} parent=1 // pred_check_branch
      %32 = sbr.rel (0) target = $region13
    $region12: #{p4_cnn_forward.1} parent=1 // pred_region
      %33 = dma.done [#allocation15], 16
    $region13: #{p4_cnn_forward.1} parent=1 // pred_fallthru
      _
    %34 = sfence
    %s36 = sld [smem:[#allocation13]]
    %s37 = sld [smem:[#allocation13 + $0x1]]
    %s38 = sld [smem:[#allocation13 + $0x2]]
    %s39 = sld [smem:[#allocation13 + $0x3]]
    %s40 = sld [smem:[#allocation13 + $0x4]]
    %s41 = sld [smem:[#allocation13 + $0x5]]
    %p43 = scmp.lt.u32.totalorder 480, 8
    %p44 = pneg %p43
    // Predicated region
    $region14: #{p4_cnn_forward.1} parent=1 // pred_check
      _
    $region15: #{p4_cnn_forward.1} parent=1 // pred_check_branch
      %46 = sbr.rel (%p43) target = $region17
    $region16: #{p4_cnn_forward.1} parent=1 // pred_region
      %s62 = sand.u32 480, 7
      %p63 = scmp.eq.s32.totalorder %s62, 0
      // Predicated region
      $region29: #{p4_cnn_forward.1} parent=16 // pred_check
        %p64 = pneg %p63
      $region30: #{p4_cnn_forward.1} parent=16 // pred_check_branch
        %66 = sbr.rel (%p64) target = $region32
      $region31: #{p4_cnn_forward.1} parent=16 // pred_region
        loop: start=0, step=1, limit=1
        $region33: #{p4_cnn_forward.1} parent=31 // loop_pre_header
          _
        $region34: #{p4_cnn_forward.1} parent=31 // loop_header
          %s68 = sphi 0, %s72
          %p69 = scmp.ge.s32.totalorder %s68, 1
          %s73 = sphi %s2, %s2
          %s74 = sphi [#allocation2], [#allocation2]
        $region35: #{p4_cnn_forward.1} parent=31 // loop_header_branch
          %71 = sbr.rel (%p69) target = $region39
        $region36: #{p4_cnn_forward.1} parent=31 // loop_body
          %v75 = vld [vmem:[%s73] sm:$0xff]
          %76 = vst [vmem:[%s74] sm:$0xff] %v75
          %v77 = vld [vmem:[%s73 + $0x8] sm:$0xff]
          %78 = vst [vmem:[%s74 + $0x8] sm:$0xff] %v77
          %v79 = vld [vmem:[%s73 + $0x10] sm:$0xff]
          %80 = vst [vmem:[%s74 + $0x10] sm:$0xff] %v79
          %v81 = vld [vmem:[%s73 + $0x18] sm:$0xff]
          %82 = vst [vmem:[%s74 + $0x18] sm:$0xff] %v81
          %v83 = vld [vmem:[%s73 + $0x20] sm:$0xff]
          %84 = vst [vmem:[%s74 + $0x20] sm:$0xff] %v83
          %v85 = vld [vmem:[%s73 + $0x28] sm:$0xff]
          %86 = vst [vmem:[%s74 + $0x28] sm:$0xff] %v85
          %v87 = vld [vmem:[%s73 + $0x30] sm:$0xff]
          %88 = vst [vmem:[%s74 + $0x30] sm:$0xff] %v87
          %v89 = vld [vmem:[%s73 + $0x38] sm:$0xff]
          %90 = vst [vmem:[%s74 + $0x38] sm:$0xff] %v89
          %v91 = vld [vmem:[%s73 + $0x40] sm:$0xff]
          %92 = vst [vmem:[%s74 + $0x40] sm:$0xff] %v91
          %v93 = vld [vmem:[%s73 + $0x48] sm:$0xff]
          %94 = vst [vmem:[%s74 + $0x48] sm:$0xff] %v93
          %v95 = vld [vmem:[%s73 + $0x50] sm:$0xff]
          %96 = vst [vmem:[%s74 + $0x50] sm:$0xff] %v95
          %v97 = vld [vmem:[%s73 + $0x58] sm:$0xff]
          %98 = vst [vmem:[%s74 + $0x58] sm:$0xff] %v97
          %v99 = vld [vmem:[%s73 + $0x60] sm:$0xff]
          %100 = vst [vmem:[%s74 + $0x60] sm:$0xff] %v99
          %v101 = vld [vmem:[%s73 + $0x68] sm:$0xff]
          %102 = vst [vmem:[%s74 + $0x68] sm:$0xff] %v101
          %v103 = vld [vmem:[%s73 + $0x70] sm:$0xff]
          %104 = vst [vmem:[%s74 + $0x70] sm:$0xff] %v103
          %v105 = vld [vmem:[%s73 + $0x78] sm:$0xff]
          %106 = vst [vmem:[%s74 + $0x78] sm:$0xff] %v105
          %v107 = vld [vmem:[%s73 + $0x80] sm:$0xff]
          %108 = vst [vmem:[%s74 + $0x80] sm:$0xff] %v107
          %v109 = vld [vmem:[%s73 + $0x88] sm:$0xff]
          %110 = vst [vmem:[%s74 + $0x88] sm:$0xff] %v109
          %v111 = vld [vmem:[%s73 + $0x90] sm:$0xff]
          %112 = vst [vmem:[%s74 + $0x90] sm:$0xff] %v111
          %v113 = vld [vmem:[%s73 + $0x98] sm:$0xff]
          %114 = vst [vmem:[%s74 + $0x98] sm:$0xff] %v113
          %v115 = vld [vmem:[%s73 + $0xa0] sm:$0xff]
          %116 = vst [vmem:[%s74 + $0xa0] sm:$0xff] %v115
          %v117 = vld [vmem:[%s73 + $0xa8] sm:$0xff]
          %118 = vst [vmem:[%s74 + $0xa8] sm:$0xff] %v117
          %v119 = vld [vmem:[%s73 + $0xb0] sm:$0xff]
          %120 = vst [vmem:[%s74 + $0xb0] sm:$0xff] %v119
          %v121 = vld [vmem:[%s73 + $0xb8] sm:$0xff]
          %122 = vst [vmem:[%s74 + $0xb8] sm:$0xff] %v121
          %v123 = vld [vmem:[%s73 + $0xc0] sm:$0xff]
          %124 = vst [vmem:[%s74 + $0xc0] sm:$0xff] %v123
          %v125 = vld [vmem:[%s73 + $0xc8] sm:$0xff]
          %126 = vst [vmem:[%s74 + $0xc8] sm:$0xff] %v125
          %v127 = vld [vmem:[%s73 + $0xd0] sm:$0xff]
          %128 = vst [vmem:[%s74 + $0xd0] sm:$0xff] %v127
          %v129 = vld [vmem:[%s73 + $0xd8] sm:$0xff]
          %130 = vst [vmem:[%s74 + $0xd8] sm:$0xff] %v129
          %v131 = vld [vmem:[%s73 + $0xe0] sm:$0xff]
          %132 = vst [vmem:[%s74 + $0xe0] sm:$0xff] %v131
          %v133 = vld [vmem:[%s73 + $0xe8] sm:$0xff]
          %134 = vst [vmem:[%s74 + $0xe8] sm:$0xff] %v133
          %v135 = vld [vmem:[%s73 + $0xf0] sm:$0xff]
          %136 = vst [vmem:[%s74 + $0xf0] sm:$0xff] %v135
          %v137 = vld [vmem:[%s73 + $0xf8] sm:$0xff]
          %138 = vst [vmem:[%s74 + $0xf8] sm:$0xff] %v137
          %v139 = vld [vmem:[%s73 + $0x100] sm:$0xff]
          %140 = vst [vmem:[%s74 + $0x100] sm:$0xff] %v139
          %v141 = vld [vmem:[%s73 + $0x108] sm:$0xff]
          %142 = vst [vmem:[%s74 + $0x108] sm:$0xff] %v141
          %v143 = vld [vmem:[%s73 + $0x110] sm:$0xff]
          %144 = vst [vmem:[%s74 + $0x110] sm:$0xff] %v143
          %v145 = vld [vmem:[%s73 + $0x118] sm:$0xff]
          %146 = vst [vmem:[%s74 + $0x118] sm:$0xff] %v145
          %v147 = vld [vmem:[%s73 + $0x120] sm:$0xff]
          %148 = vst [vmem:[%s74 + $0x120] sm:$0xff] %v147
          %v149 = vld [vmem:[%s73 + $0x128] sm:$0xff]
          %150 = vst [vmem:[%s74 + $0x128] sm:$0xff] %v149
          %v151 = vld [vmem:[%s73 + $0x130] sm:$0xff]
          %152 = vst [vmem:[%s74 + $0x130] sm:$0xff] %v151
          %v153 = vld [vmem:[%s73 + $0x138] sm:$0xff]
          %154 = vst [vmem:[%s74 + $0x138] sm:$0xff] %v153
          %v155 = vld [vmem:[%s73 + $0x140] sm:$0xff]
          %156 = vst [vmem:[%s74 + $0x140] sm:$0xff] %v155
          %v157 = vld [vmem:[%s73 + $0x148] sm:$0xff]
          %158 = vst [vmem:[%s74 + $0x148] sm:$0xff] %v157
          %v159 = vld [vmem:[%s73 + $0x150] sm:$0xff]
          %160 = vst [vmem:[%s74 + $0x150] sm:$0xff] %v159
          %v161 = vld [vmem:[%s73 + $0x158] sm:$0xff]
          %162 = vst [vmem:[%s74 + $0x158] sm:$0xff] %v161
          %v163 = vld [vmem:[%s73 + $0x160] sm:$0xff]
          %164 = vst [vmem:[%s74 + $0x160] sm:$0xff] %v163
          %v165 = vld [vmem:[%s73 + $0x168] sm:$0xff]
          %166 = vst [vmem:[%s74 + $0x168] sm:$0xff] %v165
          %v167 = vld [vmem:[%s73 + $0x170] sm:$0xff]
          %168 = vst [vmem:[%s74 + $0x170] sm:$0xff] %v167
          %v169 = vld [vmem:[%s73 + $0x178] sm:$0xff]
          %170 = vst [vmem:[%s74 + $0x178] sm:$0xff] %v169
          %v171 = vld [vmem:[%s73 + $0x180] sm:$0xff]
          %172 = vst [vmem:[%s74 + $0x180] sm:$0xff] %v171
          %v173 = vld [vmem:[%s73 + $0x188] sm:$0xff]
          %174 = vst [vmem:[%s74 + $0x188] sm:$0xff] %v173
          %v175 = vld [vmem:[%s73 + $0x190] sm:$0xff]
          %176 = vst [vmem:[%s74 + $0x190] sm:$0xff] %v175
          %v177 = vld [vmem:[%s73 + $0x198] sm:$0xff]
          %178 = vst [vmem:[%s74 + $0x198] sm:$0xff] %v177
          %v179 = vld [vmem:[%s73 + $0x1a0] sm:$0xff]
          %180 = vst [vmem:[%s74 + $0x1a0] sm:$0xff] %v179
          %v181 = vld [vmem:[%s73 + $0x1a8] sm:$0xff]
          %182 = vst [vmem:[%s74 + $0x1a8] sm:$0xff] %v181
          %v183 = vld [vmem:[%s73 + $0x1b0] sm:$0xff]
          %184 = vst [vmem:[%s74 + $0x1b0] sm:$0xff] %v183
          %v185 = vld [vmem:[%s73 + $0x1b8] sm:$0xff]
          %186 = vst [vmem:[%s74 + $0x1b8] sm:$0xff] %v185
          %v187 = vld [vmem:[%s73 + $0x1c0] sm:$0xff]
          %188 = vst [vmem:[%s74 + $0x1c0] sm:$0xff] %v187
          %v189 = vld [vmem:[%s73 + $0x1c8] sm:$0xff]
          %190 = vst [vmem:[%s74 + $0x1c8] sm:$0xff] %v189
          %v191 = vld [vmem:[%s73 + $0x1d0] sm:$0xff]
          %192 = vst [vmem:[%s74 + $0x1d0] sm:$0xff] %v191
          %v193 = vld [vmem:[%s73 + $0x1d8] sm:$0xff]
          %194 = vst [vmem:[%s74 + $0x1d8] sm:$0xff] %v193
        $region37: #{p4_cnn_forward.1} parent=31 // loop_footer
          %s72 = sadd.s32 1, %s68
        $region38: #{p4_cnn_forward.1} parent=31 // loop_footer_branch
          %67 = sbr.rel target = $region34
        $region39: #{p4_cnn_forward.1} parent=31 // loop_exit
          _
      $region32: #{p4_cnn_forward.1} parent=16 // pred_fallthru
        _
      %p195 = pneg %p63
      // Predicated region
      $region40: #{p4_cnn_forward.1} parent=16 // pred_check
        _
      $region41: #{p4_cnn_forward.1} parent=16 // pred_check_branch
        %197 = sbr.rel (%p63) target = $region43
      $region42: #{p4_cnn_forward.1} parent=16 // pred_region
        %s198 = sand.u32 480, 7
      $region43: #{p4_cnn_forward.1} parent=16 // pred_fallthru
        _
    $region17: #{p4_cnn_forward.1} parent=1 // pred_fallthru
      _
    // Predicated region
    $region18: #{p4_cnn_forward.1} parent=1 // pred_check
      %p47 = pneg %p43
    $region19: #{p4_cnn_forward.1} parent=1 // pred_check_branch
      %49 = sbr.rel (%p47) target = $region21
    $region20: #{p4_cnn_forward.1} parent=1 // pred_region
      %s50 = sshll.u32 1, 480
      %s51 = ssub.s32 %s50, 1
      loop: start=0, step=1, limit=1
      $region22: #{p4_cnn_forward.1} parent=20 // loop_pre_header
        _
      $region23: #{p4_cnn_forward.1} parent=20 // loop_header
        %s53 = sphi 0, %s57
        %p54 = scmp.ge.s32.totalorder %s53, 1
        %s58 = sphi %s2, %s2
        %s59 = sphi [#allocation2], [#allocation2]
      $region24: #{p4_cnn_forward.1} parent=20 // loop_header_branch
        %56 = sbr.rel (%p54) target = $region28
      $region25: #{p4_cnn_forward.1} parent=20 // loop_body
        %v60 = vld [vmem:[%s58] sm:%s51]
        %61 = vst [vmem:[%s59] sm:%s51] %v60
      $region26: #{p4_cnn_forward.1} parent=20 // loop_footer
        %s57 = sadd.s32 1, %s53
      $region27: #{p4_cnn_forward.1} parent=20 // loop_footer_branch
        %52 = sbr.rel target = $region23
      $region28: #{p4_cnn_forward.1} parent=20 // loop_exit
        _
    $region21: #{p4_cnn_forward.1} parent=1 // pred_fallthru
      _
    // Predicated region
    $region44: #{p4_cnn_forward.1} parent=1 // pred_check
      _
    $region45: #{p4_cnn_forward.1} parent=1 // pred_check_branch
      %201 = sbr.rel (0) target = $region47
    $region46: #{p4_cnn_forward.1} parent=1 // pred_region
      %202 = vsyncadd [#allocation12], 7680
    $region47: #{p4_cnn_forward.1} parent=1 // pred_fallthru
      _
    %s203 = scalar_lea.sflag [#allocation12], 1
    // Predicated region
    $region48: #{p4_cnn_forward.1} parent=1 // pred_check
      _
    $region49: #{p4_cnn_forward.1} parent=1 // pred_check_branch
      %205 = sbr.rel target = $region51
    $region50: #{p4_cnn_forward.1} parent=1 // pred_region
      %206 = sst [smem:[#allocation20]] [#allocation19]
      %207 = sst [smem:[#allocation21]] [#allocation18]
    $region51: #{p4_cnn_forward.1} parent=1 // pred_fallthru
      _
    %209 = shalt.err (0)
    %s211 = sshll.u32 [#allocation3], 4
    %s212 = int_to_ptr.vmem [resolvable:$true] %s211
    %214 = dma.hbm_to_vmem [thread:$0]  %s3, 7040, %s212, %s203
    %s215 = scalar_lea.sflag [#allocation12], 2
    // Predicated region
    $region52: #{p4_cnn_forward.1} parent=1 // pred_check
      _
    $region53: #{p4_cnn_forward.1} parent=1 // pred_check_branch
      %217 = sbr.rel target = $region55
    $region54: #{p4_cnn_forward.1} parent=1 // pred_region
      %218 = sst [smem:[#allocation20]] [#allocation23]
      %219 = sst [smem:[#allocation21]] [#allocation22]
    $region55: #{p4_cnn_forward.1} parent=1 // pred_fallthru
      _
    %221 = shalt.err (0)
    %s223 = sshll.u32 [#allocation4], 4
    %s224 = int_to_ptr.vmem [resolvable:$true] %s223
    %226 = dma.hbm_to_vmem [thread:$0]  %s4, 6400, %s224, %s215
    %s227 = scalar_lea.sflag [#allocation12], 3
    %p229 = scmp.lt.u32.totalorder 320, 8
    %p230 = pneg %p229
    // Predicated region
    $region56: #{p4_cnn_forward.1} parent=1 // pred_check
      _
    $region57: #{p4_cnn_forward.1} parent=1 // pred_check_branch
      %232 = sbr.rel (%p229) target = $region59
    $region58: #{p4_cnn_forward.1} parent=1 // pred_region
      %s248 = sand.u32 320, 7
      %p249 = scmp.eq.s32.totalorder %s248, 0
      // Predicated region
      $region71: #{p4_cnn_forward.1} parent=58 // pred_check
        %p250 = pneg %p249
      $region72: #{p4_cnn_forward.1} parent=58 // pred_check_branch
        %252 = sbr.rel (%p250) target = $region74
      $region73: #{p4_cnn_forward.1} parent=58 // pred_region
        loop: start=0, step=1, limit=1
        $region75: #{p4_cnn_forward.1} parent=73 // loop_pre_header
          _
        $region76: #{p4_cnn_forward.1} parent=73 // loop_header
          %s254 = sphi 0, %s258
          %p255 = scmp.ge.s32.totalorder %s254, 1
          %s259 = sphi %s5, %s5
          %s260 = sphi [#allocation5], [#allocation5]
        $region77: #{p4_cnn_forward.1} parent=73 // loop_header_branch
          %257 = sbr.rel (%p255) target = $region81
        $region78: #{p4_cnn_forward.1} parent=73 // loop_body
          %v261 = vld [vmem:[%s259] sm:$0xff]
          %262 = vst [vmem:[%s260] sm:$0xff] %v261
          %v263 = vld [vmem:[%s259 + $0x8] sm:$0xff]
          %264 = vst [vmem:[%s260 + $0x8] sm:$0xff] %v263
          %v265 = vld [vmem:[%s259 + $0x10] sm:$0xff]
          %266 = vst [vmem:[%s260 + $0x10] sm:$0xff] %v265
          %v267 = vld [vmem:[%s259 + $0x18] sm:$0xff]
          %268 = vst [vmem:[%s260 + $0x18] sm:$0xff] %v267
          %v269 = vld [vmem:[%s259 + $0x20] sm:$0xff]
          %270 = vst [vmem:[%s260 + $0x20] sm:$0xff] %v269
          %v271 = vld [vmem:[%s259 + $0x28] sm:$0xff]
          %272 = vst [vmem:[%s260 + $0x28] sm:$0xff] %v271
          %v273 = vld [vmem:[%s259 + $0x30] sm:$0xff]
          %274 = vst [vmem:[%s260 + $0x30] sm:$0xff] %v273
          %v275 = vld [vmem:[%s259 + $0x38] sm:$0xff]
          %276 = vst [vmem:[%s260 + $0x38] sm:$0xff] %v275
          %v277 = vld [vmem:[%s259 + $0x40] sm:$0xff]
          %278 = vst [vmem:[%s260 + $0x40] sm:$0xff] %v277
          %v279 = vld [vmem:[%s259 + $0x48] sm:$0xff]
          %280 = vst [vmem:[%s260 + $0x48] sm:$0xff] %v279
          %v281 = vld [vmem:[%s259 + $0x50] sm:$0xff]
          %282 = vst [vmem:[%s260 + $0x50] sm:$0xff] %v281
          %v283 = vld [vmem:[%s259 + $0x58] sm:$0xff]
          %284 = vst [vmem:[%s260 + $0x58] sm:$0xff] %v283
          %v285 = vld [vmem:[%s259 + $0x60] sm:$0xff]
          %286 = vst [vmem:[%s260 + $0x60] sm:$0xff] %v285
          %v287 = vld [vmem:[%s259 + $0x68] sm:$0xff]
          %288 = vst [vmem:[%s260 + $0x68] sm:$0xff] %v287
          %v289 = vld [vmem:[%s259 + $0x70] sm:$0xff]
          %290 = vst [vmem:[%s260 + $0x70] sm:$0xff] %v289
          %v291 = vld [vmem:[%s259 + $0x78] sm:$0xff]
          %292 = vst [vmem:[%s260 + $0x78] sm:$0xff] %v291
          %v293 = vld [vmem:[%s259 + $0x80] sm:$0xff]
          %294 = vst [vmem:[%s260 + $0x80] sm:$0xff] %v293
          %v295 = vld [vmem:[%s259 + $0x88] sm:$0xff]
          %296 = vst [vmem:[%s260 + $0x88] sm:$0xff] %v295
          %v297 = vld [vmem:[%s259 + $0x90] sm:$0xff]
          %298 = vst [vmem:[%s260 + $0x90] sm:$0xff] %v297
          %v299 = vld [vmem:[%s259 + $0x98] sm:$0xff]
          %300 = vst [vmem:[%s260 + $0x98] sm:$0xff] %v299
          %v301 = vld [vmem:[%s259 + $0xa0] sm:$0xff]
          %302 = vst [vmem:[%s260 + $0xa0] sm:$0xff] %v301
          %v303 = vld [vmem:[%s259 + $0xa8] sm:$0xff]
          %304 = vst [vmem:[%s260 + $0xa8] sm:$0xff] %v303
          %v305 = vld [vmem:[%s259 + $0xb0] sm:$0xff]
          %306 = vst [vmem:[%s260 + $0xb0] sm:$0xff] %v305
          %v307 = vld [vmem:[%s259 + $0xb8] sm:$0xff]
          %308 = vst [vmem:[%s260 + $0xb8] sm:$0xff] %v307
          %v309 = vld [vmem:[%s259 + $0xc0] sm:$0xff]
          %310 = vst [vmem:[%s260 + $0xc0] sm:$0xff] %v309
          %v311 = vld [vmem:[%s259 + $0xc8] sm:$0xff]
          %312 = vst [vmem:[%s260 + $0xc8] sm:$0xff] %v311
          %v313 = vld [vmem:[%s259 + $0xd0] sm:$0xff]
          %314 = vst [vmem:[%s260 + $0xd0] sm:$0xff] %v313
          %v315 = vld [vmem:[%s259 + $0xd8] sm:$0xff]
          %316 = vst [vmem:[%s260 + $0xd8] sm:$0xff] %v315
          %v317 = vld [vmem:[%s259 + $0xe0] sm:$0xff]
          %318 = vst [vmem:[%s260 + $0xe0] sm:$0xff] %v317
          %v319 = vld [vmem:[%s259 + $0xe8] sm:$0xff]
          %320 = vst [vmem:[%s260 + $0xe8] sm:$0xff] %v319
          %v321 = vld [vmem:[%s259 + $0xf0] sm:$0xff]
          %322 = vst [vmem:[%s260 + $0xf0] sm:$0xff] %v321
          %v323 = vld [vmem:[%s259 + $0xf8] sm:$0xff]
          %324 = vst [vmem:[%s260 + $0xf8] sm:$0xff] %v323
          %v325 = vld [vmem:[%s259 + $0x100] sm:$0xff]
          %326 = vst [vmem:[%s260 + $0x100] sm:$0xff] %v325
          %v327 = vld [vmem:[%s259 + $0x108] sm:$0xff]
          %328 = vst [vmem:[%s260 + $0x108] sm:$0xff] %v327
          %v329 = vld [vmem:[%s259 + $0x110] sm:$0xff]
          %330 = vst [vmem:[%s260 + $0x110] sm:$0xff] %v329
          %v331 = vld [vmem:[%s259 + $0x118] sm:$0xff]
          %332 = vst [vmem:[%s260 + $0x118] sm:$0xff] %v331
          %v333 = vld [vmem:[%s259 + $0x120] sm:$0xff]
          %334 = vst [vmem:[%s260 + $0x120] sm:$0xff] %v333
          %v335 = vld [vmem:[%s259 + $0x128] sm:$0xff]
          %336 = vst [vmem:[%s260 + $0x128] sm:$0xff] %v335
          %v337 = vld [vmem:[%s259 + $0x130] sm:$0xff]
          %338 = vst [vmem:[%s260 + $0x130] sm:$0xff] %v337
          %v339 = vld [vmem:[%s259 + $0x138] sm:$0xff]
          %340 = vst [vmem:[%s260 + $0x138] sm:$0xff] %v339
        $region79: #{p4_cnn_forward.1} parent=73 // loop_footer
          %s258 = sadd.s32 1, %s254
        $region80: #{p4_cnn_forward.1} parent=73 // loop_footer_branch
          %253 = sbr.rel target = $region76
        $region81: #{p4_cnn_forward.1} parent=73 // loop_exit
          _
      $region74: #{p4_cnn_forward.1} parent=58 // pred_fallthru
        _
      %p341 = pneg %p249
      // Predicated region
      $region82: #{p4_cnn_forward.1} parent=58 // pred_check
        _
      $region83: #{p4_cnn_forward.1} parent=58 // pred_check_branch
        %343 = sbr.rel (%p249) target = $region85
      $region84: #{p4_cnn_forward.1} parent=58 // pred_region
        %s344 = sand.u32 320, 7
      $region85: #{p4_cnn_forward.1} parent=58 // pred_fallthru
        _
    $region59: #{p4_cnn_forward.1} parent=1 // pred_fallthru
      _
    // Predicated region
    $region60: #{p4_cnn_forward.1} parent=1 // pred_check
      %p233 = pneg %p229
    $region61: #{p4_cnn_forward.1} parent=1 // pred_check_branch
      %235 = sbr.rel (%p233) target = $region63
    $region62: #{p4_cnn_forward.1} parent=1 // pred_region
      %s236 = sshll.u32 1, 320
      %s237 = ssub.s32 %s236, 1
      loop: start=0, step=1, limit=1
      $region64: #{p4_cnn_forward.1} parent=62 // loop_pre_header
        _
      $region65: #{p4_cnn_forward.1} parent=62 // loop_header
        %s239 = sphi 0, %s243
        %p240 = scmp.ge.s32.totalorder %s239, 1
        %s244 = sphi %s5, %s5
        %s245 = sphi [#allocation5], [#allocation5]
      $region66: #{p4_cnn_forward.1} parent=62 // loop_header_branch
        %242 = sbr.rel (%p240) target = $region70
      $region67: #{p4_cnn_forward.1} parent=62 // loop_body
        %v246 = vld [vmem:[%s244] sm:%s237]
        %247 = vst [vmem:[%s245] sm:%s237] %v246
      $region68: #{p4_cnn_forward.1} parent=62 // loop_footer
        %s243 = sadd.s32 1, %s239
      $region69: #{p4_cnn_forward.1} parent=62 // loop_footer_branch
        %238 = sbr.rel target = $region65
      $region70: #{p4_cnn_forward.1} parent=62 // loop_exit
        _
    $region63: #{p4_cnn_forward.1} parent=1 // pred_fallthru
      _
    // Predicated region
    $region86: #{p4_cnn_forward.1} parent=1 // pred_check
      _
    $region87: #{p4_cnn_forward.1} parent=1 // pred_check_branch
      %347 = sbr.rel (0) target = $region89
    $region88: #{p4_cnn_forward.1} parent=1 // pred_region
      %348 = vsyncadd %s227, 5120
    $region89: #{p4_cnn_forward.1} parent=1 // pred_fallthru
      _
    %s349 = scalar_lea.sflag [#allocation12], 4
    // Predicated region
    $region90: #{p4_cnn_forward.1} parent=1 // pred_check
      _
    $region91: #{p4_cnn_forward.1} parent=1 // pred_check_branch
      %351 = sbr.rel target = $region93
    $region92: #{p4_cnn_forward.1} parent=1 // pred_region
      %352 = sst [smem:[#allocation20]] [#allocation26]
      %353 = sst [smem:[#allocation21]] [#allocation25]
    $region93: #{p4_cnn_forward.1} parent=1 // pred_fallthru
      _
    %355 = shalt.err (0)
    %s357 = sshll.u32 [#allocation6], 4
    %s358 = int_to_ptr.vmem [resolvable:$true] %s357
    %360 = dma.hbm_to_vmem [thread:$0]  %s6, 4480, %s358, %s349
    %s361 = scalar_lea.sflag [#allocation12], 5
    // Predicated region
    $region94: #{p4_cnn_forward.1} parent=1 // pred_check
      _
    $region95: #{p4_cnn_forward.1} parent=1 // pred_check_branch
      %363 = sbr.rel target = $region97
    $region96: #{p4_cnn_forward.1} parent=1 // pred_region
      %364 = sst [smem:[#allocation20]] [#allocation28]
      %365 = sst [smem:[#allocation21]] [#allocation27]
    $region97: #{p4_cnn_forward.1} parent=1 // pred_fallthru
      _
    %367 = shalt.err (0)
    %s369 = sshll.u32 [#allocation7], 4
    %s370 = int_to_ptr.vmem [resolvable:$true] %s369
    %372 = dma.hbm_to_vmem [thread:$0]  %s7, 2688, %s370, %s361
    %s373 = scalar_lea.sflag [#allocation12], 6
    %p375 = scmp.lt.u32.totalorder 128, 8
    %p376 = pneg %p375
    // Predicated region
    $region98: #{p4_cnn_forward.1} parent=1 // pred_check
      _
    $region99: #{p4_cnn_forward.1} parent=1 // pred_check_branch
      %378 = sbr.rel (%p375) target = $region101
    $region100: #{p4_cnn_forward.1} parent=1 // pred_region
      %s394 = sand.u32 128, 7
      %p395 = scmp.eq.s32.totalorder %s394, 0
      // Predicated region
      $region113: #{p4_cnn_forward.1} parent=100 // pred_check
        %p396 = pneg %p395
      $region114: #{p4_cnn_forward.1} parent=100 // pred_check_branch
        %398 = sbr.rel (%p396) target = $region116
      $region115: #{p4_cnn_forward.1} parent=100 // pred_region
        loop: start=0, step=1, limit=1
        $region117: #{p4_cnn_forward.1} parent=115 // loop_pre_header
          _
        $region118: #{p4_cnn_forward.1} parent=115 // loop_header
          %s400 = sphi 0, %s404
          %p401 = scmp.ge.s32.totalorder %s400, 1
          %s405 = sphi %s8, %s8
          %s406 = sphi [#allocation8], [#allocation8]
        $region119: #{p4_cnn_forward.1} parent=115 // loop_header_branch
          %403 = sbr.rel (%p401) target = $region123
        $region120: #{p4_cnn_forward.1} parent=115 // loop_body
          %v407 = vld [vmem:[%s405] sm:$0xff]
          %408 = vst [vmem:[%s406] sm:$0xff] %v407
          %v409 = vld [vmem:[%s405 + $0x8] sm:$0xff]
          %410 = vst [vmem:[%s406 + $0x8] sm:$0xff] %v409
          %v411 = vld [vmem:[%s405 + $0x10] sm:$0xff]
          %412 = vst [vmem:[%s406 + $0x10] sm:$0xff] %v411
          %v413 = vld [vmem:[%s405 + $0x18] sm:$0xff]
          %414 = vst [vmem:[%s406 + $0x18] sm:$0xff] %v413
          %v415 = vld [vmem:[%s405 + $0x20] sm:$0xff]
          %416 = vst [vmem:[%s406 + $0x20] sm:$0xff] %v415
          %v417 = vld [vmem:[%s405 + $0x28] sm:$0xff]
          %418 = vst [vmem:[%s406 + $0x28] sm:$0xff] %v417
          %v419 = vld [vmem:[%s405 + $0x30] sm:$0xff]
          %420 = vst [vmem:[%s406 + $0x30] sm:$0xff] %v419
          %v421 = vld [vmem:[%s405 + $0x38] sm:$0xff]
          %422 = vst [vmem:[%s406 + $0x38] sm:$0xff] %v421
          %v423 = vld [vmem:[%s405 + $0x40] sm:$0xff]
          %424 = vst [vmem:[%s406 + $0x40] sm:$0xff] %v423
          %v425 = vld [vmem:[%s405 + $0x48] sm:$0xff]
          %426 = vst [vmem:[%s406 + $0x48] sm:$0xff] %v425
          %v427 = vld [vmem:[%s405 + $0x50] sm:$0xff]
          %428 = vst [vmem:[%s406 + $0x50] sm:$0xff] %v427
          %v429 = vld [vmem:[%s405 + $0x58] sm:$0xff]
          %430 = vst [vmem:[%s406 + $0x58] sm:$0xff] %v429
          %v431 = vld [vmem:[%s405 + $0x60] sm:$0xff]
          %432 = vst [vmem:[%s406 + $0x60] sm:$0xff] %v431
          %v433 = vld [vmem:[%s405 + $0x68] sm:$0xff]
          %434 = vst [vmem:[%s406 + $0x68] sm:$0xff] %v433
          %v435 = vld [vmem:[%s405 + $0x70] sm:$0xff]
          %436 = vst [vmem:[%s406 + $0x70] sm:$0xff] %v435
          %v437 = vld [vmem:[%s405 + $0x78] sm:$0xff]
          %438 = vst [vmem:[%s406 + $0x78] sm:$0xff] %v437
        $region121: #{p4_cnn_forward.1} parent=115 // loop_footer
          %s404 = sadd.s32 1, %s400
        $region122: #{p4_cnn_forward.1} parent=115 // loop_footer_branch
          %399 = sbr.rel target = $region118
        $region123: #{p4_cnn_forward.1} parent=115 // loop_exit
          _
      $region116: #{p4_cnn_forward.1} parent=100 // pred_fallthru
        _
      %p439 = pneg %p395
      // Predicated region
      $region124: #{p4_cnn_forward.1} parent=100 // pred_check
        _
      $region125: #{p4_cnn_forward.1} parent=100 // pred_check_branch
        %441 = sbr.rel (%p395) target = $region127
      $region126: #{p4_cnn_forward.1} parent=100 // pred_region
        %s442 = sand.u32 128, 7
      $region127: #{p4_cnn_forward.1} parent=100 // pred_fallthru
        _
    $region101: #{p4_cnn_forward.1} parent=1 // pred_fallthru
      _
    // Predicated region
    $region102: #{p4_cnn_forward.1} parent=1 // pred_check
      %p379 = pneg %p375
    $region103: #{p4_cnn_forward.1} parent=1 // pred_check_branch
      %381 = sbr.rel (%p379) target = $region105
    $region104: #{p4_cnn_forward.1} parent=1 // pred_region
      %s382 = sshll.u32 1, 128
      %s383 = ssub.s32 %s382, 1
      loop: start=0, step=1, limit=1
      $region106: #{p4_cnn_forward.1} parent=104 // loop_pre_header
        _
      $region107: #{p4_cnn_forward.1} parent=104 // loop_header
        %s385 = sphi 0, %s389
        %p386 = scmp.ge.s32.totalorder %s385, 1
        %s390 = sphi %s8, %s8
        %s391 = sphi [#allocation8], [#allocation8]
      $region108: #{p4_cnn_forward.1} parent=104 // loop_header_branch
        %388 = sbr.rel (%p386) target = $region112
      $region109: #{p4_cnn_forward.1} parent=104 // loop_body
        %v392 = vld [vmem:[%s390] sm:%s383]
        %393 = vst [vmem:[%s391] sm:%s383] %v392
      $region110: #{p4_cnn_forward.1} parent=104 // loop_footer
        %s389 = sadd.s32 1, %s385
      $region111: #{p4_cnn_forward.1} parent=104 // loop_footer_branch
        %384 = sbr.rel target = $region107
      $region112: #{p4_cnn_forward.1} parent=104 // loop_exit
        _
    $region105: #{p4_cnn_forward.1} parent=1 // pred_fallthru
      _
    // Predicated region
    $region128: #{p4_cnn_forward.1} parent=1 // pred_check
      _
    $region129: #{p4_cnn_forward.1} parent=1 // pred_check_branch
      %445 = sbr.rel (0) target = $region131
    $region130: #{p4_cnn_forward.1} parent=1 // pred_region
      %446 = vsyncadd %s373, 2048
    $region131: #{p4_cnn_forward.1} parent=1 // pred_fallthru
      _
    %s447 = scalar_lea.sflag [#allocation12], 7
    // Predicated region
    $region132: #{p4_cnn_forward.1} parent=1 // pred_check
      _
    $region133: #{p4_cnn_forward.1} parent=1 // pred_check_branch
      %449 = sbr.rel target = $region135
    $region134: #{p4_cnn_forward.1} parent=1 // pred_region
      %450 = sst [smem:[#allocation20]] [#allocation31]
      %451 = sst [smem:[#allocation21]] [#allocation30]
    $region135: #{p4_cnn_forward.1} parent=1 // pred_fallthru
      _
    %453 = shalt.err (0)
    %s455 = sshll.u32 [#allocation9], 4
    %s456 = int_to_ptr.vmem [resolvable:$true] %s455
    %458 = dma.hbm_to_vmem [thread:$0]  %s9, 2048, %s456, %s447
    %s459 = scalar_lea.sflag [#allocation12], 8
    %p461 = scmp.lt.u32.totalorder 128, 8
    %p462 = pneg %p461
    // Predicated region
    $region136: #{p4_cnn_forward.1} parent=1 // pred_check
      _
    $region137: #{p4_cnn_forward.1} parent=1 // pred_check_branch
      %464 = sbr.rel (%p461) target = $region139
    $region138: #{p4_cnn_forward.1} parent=1 // pred_region
      %s480 = sand.u32 128, 7
      %p481 = scmp.eq.s32.totalorder %s480, 0
      // Predicated region
      $region151: #{p4_cnn_forward.1} parent=138 // pred_check
        %p482 = pneg %p481
      $region152: #{p4_cnn_forward.1} parent=138 // pred_check_branch
        %484 = sbr.rel (%p482) target = $region154
      $region153: #{p4_cnn_forward.1} parent=138 // pred_region
        loop: start=0, step=1, limit=1
        $region155: #{p4_cnn_forward.1} parent=153 // loop_pre_header
          _
        $region156: #{p4_cnn_forward.1} parent=153 // loop_header
          %s486 = sphi 0, %s490
          %p487 = scmp.ge.s32.totalorder %s486, 1
          %s491 = sphi %s10, %s10
          %s492 = sphi [#allocation10], [#allocation10]
        $region157: #{p4_cnn_forward.1} parent=153 // loop_header_branch
          %489 = sbr.rel (%p487) target = $region161
        $region158: #{p4_cnn_forward.1} parent=153 // loop_body
          %v493 = vld [vmem:[%s491] sm:$0xff]
          %494 = vst [vmem:[%s492] sm:$0xff] %v493
          %v495 = vld [vmem:[%s491 + $0x8] sm:$0xff]
          %496 = vst [vmem:[%s492 + $0x8] sm:$0xff] %v495
          %v497 = vld [vmem:[%s491 + $0x10] sm:$0xff]
          %498 = vst [vmem:[%s492 + $0x10] sm:$0xff] %v497
          %v499 = vld [vmem:[%s491 + $0x18] sm:$0xff]
          %500 = vst [vmem:[%s492 + $0x18] sm:$0xff] %v499
          %v501 = vld [vmem:[%s491 + $0x20] sm:$0xff]
          %502 = vst [vmem:[%s492 + $0x20] sm:$0xff] %v501
          %v503 = vld [vmem:[%s491 + $0x28] sm:$0xff]
          %504 = vst [vmem:[%s492 + $0x28] sm:$0xff] %v503
          %v505 = vld [vmem:[%s491 + $0x30] sm:$0xff]
          %506 = vst [vmem:[%s492 + $0x30] sm:$0xff] %v505
          %v507 = vld [vmem:[%s491 + $0x38] sm:$0xff]
          %508 = vst [vmem:[%s492 + $0x38] sm:$0xff] %v507
          %v509 = vld [vmem:[%s491 + $0x40] sm:$0xff]
          %510 = vst [vmem:[%s492 + $0x40] sm:$0xff] %v509
          %v511 = vld [vmem:[%s491 + $0x48] sm:$0xff]
          %512 = vst [vmem:[%s492 + $0x48] sm:$0xff] %v511
          %v513 = vld [vmem:[%s491 + $0x50] sm:$0xff]
          %514 = vst [vmem:[%s492 + $0x50] sm:$0xff] %v513
          %v515 = vld [vmem:[%s491 + $0x58] sm:$0xff]
          %516 = vst [vmem:[%s492 + $0x58] sm:$0xff] %v515
          %v517 = vld [vmem:[%s491 + $0x60] sm:$0xff]
          %518 = vst [vmem:[%s492 + $0x60] sm:$0xff] %v517
          %v519 = vld [vmem:[%s491 + $0x68] sm:$0xff]
          %520 = vst [vmem:[%s492 + $0x68] sm:$0xff] %v519
          %v521 = vld [vmem:[%s491 + $0x70] sm:$0xff]
          %522 = vst [vmem:[%s492 + $0x70] sm:$0xff] %v521
          %v523 = vld [vmem:[%s491 + $0x78] sm:$0xff]
          %524 = vst [vmem:[%s492 + $0x78] sm:$0xff] %v523
        $region159: #{p4_cnn_forward.1} parent=153 // loop_footer
          %s490 = sadd.s32 1, %s486
        $region160: #{p4_cnn_forward.1} parent=153 // loop_footer_branch
          %485 = sbr.rel target = $region156
        $region161: #{p4_cnn_forward.1} parent=153 // loop_exit
          _
      $region154: #{p4_cnn_forward.1} parent=138 // pred_fallthru
        _
      %p525 = pneg %p481
      // Predicated region
      $region162: #{p4_cnn_forward.1} parent=138 // pred_check
        _
      $region163: #{p4_cnn_forward.1} parent=138 // pred_check_branch
        %527 = sbr.rel (%p481) target = $region165
      $region164: #{p4_cnn_forward.1} parent=138 // pred_region
        %s528 = sand.u32 128, 7
      $region165: #{p4_cnn_forward.1} parent=138 // pred_fallthru
        _
    $region139: #{p4_cnn_forward.1} parent=1 // pred_fallthru
      _
    // Predicated region
    $region140: #{p4_cnn_forward.1} parent=1 // pred_check
      %p465 = pneg %p461
    $region141: #{p4_cnn_forward.1} parent=1 // pred_check_branch
      %467 = sbr.rel (%p465) target = $region143
    $region142: #{p4_cnn_forward.1} parent=1 // pred_region
      %s468 = sshll.u32 1, 128
      %s469 = ssub.s32 %s468, 1
      loop: start=0, step=1, limit=1
      $region144: #{p4_cnn_forward.1} parent=142 // loop_pre_header
        _
      $region145: #{p4_cnn_forward.1} parent=142 // loop_header
        %s471 = sphi 0, %s475
        %p472 = scmp.ge.s32.totalorder %s471, 1
        %s476 = sphi %s10, %s10
        %s477 = sphi [#allocation10], [#allocation10]
      $region146: #{p4_cnn_forward.1} parent=142 // loop_header_branch
        %474 = sbr.rel (%p472) target = $region150
      $region147: #{p4_cnn_forward.1} parent=142 // loop_body
        %v478 = vld [vmem:[%s476] sm:%s469]
        %479 = vst [vmem:[%s477] sm:%s469] %v478
      $region148: #{p4_cnn_forward.1} parent=142 // loop_footer
        %s475 = sadd.s32 1, %s471
      $region149: #{p4_cnn_forward.1} parent=142 // loop_footer_branch
        %470 = sbr.rel target = $region145
      $region150: #{p4_cnn_forward.1} parent=142 // loop_exit
        _
    $region143: #{p4_cnn_forward.1} parent=1 // pred_fallthru
      _
    // Predicated region
    $region166: #{p4_cnn_forward.1} parent=1 // pred_check
      _
    $region167: #{p4_cnn_forward.1} parent=1 // pred_check_branch
      %531 = sbr.rel (0) target = $region169
    $region168: #{p4_cnn_forward.1} parent=1 // pred_region
      %532 = vsyncadd %s459, 2048
    $region169: #{p4_cnn_forward.1} parent=1 // pred_fallthru
      _
    %s533 = scalar_lea.sflag [#allocation12], 9
    %p535 = scmp.lt.u32.totalorder 32, 8
    %p536 = pneg %p535
    // Predicated region
    $region170: #{p4_cnn_forward.1} parent=1 // pred_check
      _
    $region171: #{p4_cnn_forward.1} parent=1 // pred_check_branch
      %538 = sbr.rel (%p535) target = $region173
    $region172: #{p4_cnn_forward.1} parent=1 // pred_region
      %s554 = sand.u32 32, 7
      %p555 = scmp.eq.s32.totalorder %s554, 0
      // Predicated region
      $region185: #{p4_cnn_forward.1} parent=172 // pred_check
        %p556 = pneg %p555
      $region186: #{p4_cnn_forward.1} parent=172 // pred_check_branch
        %558 = sbr.rel (%p556) target = $region188
      $region187: #{p4_cnn_forward.1} parent=172 // pred_region
        loop: start=0, step=1, limit=1
        $region189: #{p4_cnn_forward.1} parent=187 // loop_pre_header
          _
        $region190: #{p4_cnn_forward.1} parent=187 // loop_header
          %s560 = sphi 0, %s564
          %p561 = scmp.ge.s32.totalorder %s560, 1
          %s565 = sphi %s11, %s11
          %s566 = sphi [#allocation11], [#allocation11]
        $region191: #{p4_cnn_forward.1} parent=187 // loop_header_branch
          %563 = sbr.rel (%p561) target = $region195
        $region192: #{p4_cnn_forward.1} parent=187 // loop_body
          %v567 = vld [vmem:[%s565] sm:$0xff]
          %568 = vst [vmem:[%s566] sm:$0xff] %v567
          %v569 = vld [vmem:[%s565 + $0x8] sm:$0xff]
          %570 = vst [vmem:[%s566 + $0x8] sm:$0xff] %v569
          %v571 = vld [vmem:[%s565 + $0x10] sm:$0xff]
          %572 = vst [vmem:[%s566 + $0x10] sm:$0xff] %v571
          %v573 = vld [vmem:[%s565 + $0x18] sm:$0xff]
          %574 = vst [vmem:[%s566 + $0x18] sm:$0xff] %v573
        $region193: #{p4_cnn_forward.1} parent=187 // loop_footer
          %s564 = sadd.s32 1, %s560
        $region194: #{p4_cnn_forward.1} parent=187 // loop_footer_branch
          %559 = sbr.rel target = $region190
        $region195: #{p4_cnn_forward.1} parent=187 // loop_exit
          _
      $region188: #{p4_cnn_forward.1} parent=172 // pred_fallthru
        _
      %p575 = pneg %p555
      // Predicated region
      $region196: #{p4_cnn_forward.1} parent=172 // pred_check
        _
      $region197: #{p4_cnn_forward.1} parent=172 // pred_check_branch
        %577 = sbr.rel (%p555) target = $region199
      $region198: #{p4_cnn_forward.1} parent=172 // pred_region
        %s578 = sand.u32 32, 7
      $region199: #{p4_cnn_forward.1} parent=172 // pred_fallthru
        _
    $region173: #{p4_cnn_forward.1} parent=1 // pred_fallthru
      _
    // Predicated region
    $region174: #{p4_cnn_forward.1} parent=1 // pred_check
      %p539 = pneg %p535
    $region175: #{p4_cnn_forward.1} parent=1 // pred_check_branch
      %541 = sbr.rel (%p539) target = $region177
    $region176: #{p4_cnn_forward.1} parent=1 // pred_region
      %s542 = sshll.u32 1, 32
      %s543 = ssub.s32 %s542, 1
      loop: start=0, step=1, limit=1
      $region178: #{p4_cnn_forward.1} parent=176 // loop_pre_header
        _
      $region179: #{p4_cnn_forward.1} parent=176 // loop_header
        %s545 = sphi 0, %s549
        %p546 = scmp.ge.s32.totalorder %s545, 1
        %s550 = sphi %s11, %s11
        %s551 = sphi [#allocation11], [#allocation11]
      $region180: #{p4_cnn_forward.1} parent=176 // loop_header_branch
        %548 = sbr.rel (%p546) target = $region184
      $region181: #{p4_cnn_forward.1} parent=176 // loop_body
        %v552 = vld [vmem:[%s550] sm:%s543]
        %553 = vst [vmem:[%s551] sm:%s543] %v552
      $region182: #{p4_cnn_forward.1} parent=176 // loop_footer
        %s549 = sadd.s32 1, %s545
      $region183: #{p4_cnn_forward.1} parent=176 // loop_footer_branch
        %544 = sbr.rel target = $region179
      $region184: #{p4_cnn_forward.1} parent=176 // loop_exit
        _
    $region177: #{p4_cnn_forward.1} parent=1 // pred_fallthru
      _
    // Predicated region
    $region200: #{p4_cnn_forward.1} parent=1 // pred_check
      _
    $region201: #{p4_cnn_forward.1} parent=1 // pred_check_branch
      %581 = sbr.rel (0) target = $region203
    $region202: #{p4_cnn_forward.1} parent=1 // pred_region
      %582 = vsyncadd %s533, 512
    $region203: #{p4_cnn_forward.1} parent=1 // pred_fallthru
      _
    %v583 = vld [vmem:[%s0] sm:$0xff]
    %v584 = vld [vmem:[%s0 + $0x8] sm:$0xff]
    %v585 = vld [vmem:[%s0 + $0x10] sm:$0xff]
    %v586 = vld [vmem:[%s0 + $0x18] sm:$0xff]
    %v587 = vld [vmem:[%s0 + $0x20] sm:$0xff]
    %v588 = vld [vmem:[%s0 + $0x28] sm:$0xff]
    %v589 = vld [vmem:[%s0 + $0x30] sm:$0xff]
    %v590 = vld [vmem:[%s0 + $0x38] sm:$0xff]
    %v591 = vld [vmem:[%s0 + $0x40] sm:$0xff]
    %v592 = vld [vmem:[%s0 + $0x48] sm:$0xff]
    %v593 = vld [vmem:[%s0 + $0x50] sm:$0xff]
    %v594 = vld [vmem:[%s0 + $0x58] sm:$0xff]
    %v595 = vld [vmem:[%s0 + $0x60] sm:$0xff]
    %v596 = vpack.c.bf16 %v584, %v583
    %v597 = vpack.c.bf16 %v586, %v585
    %v598 = vpack.c.bf16 %v588, %v587
    %v599 = vpack.c.bf16 %v590, %v589
    %v600 = vpack.c.bf16 %v592, %v591
    %v601 = vpack.c.bf16 %v594, %v593
    %v602 = vpack.c.bf16 %v595, %v595
    %603 = vrot.lane.b32.xlu0 %v583, 127
    %v604 = vpop.permute.xlu0 %603
    %605 = vrot.lane.b32.xlu0 %v584, 127
    %v606 = vpop.permute.xlu0 %605
    %607 = vrot.lane.b32.xlu0 %v585, 127
    %v608 = vpop.permute.xlu0 %607
    %609 = vrot.lane.b32.xlu0 %v586, 127
    %v610 = vpop.permute.xlu0 %609
    %611 = vrot.lane.b32.xlu0 %v587, 127
    %v612 = vpop.permute.xlu0 %611
    %613 = vrot.lane.b32.xlu0 %v588, 127
    %v614 = vpop.permute.xlu0 %613
    %615 = vrot.lane.b32.xlu0 %v589, 127
    %v616 = vpop.permute.xlu0 %615
    %617 = vrot.lane.b32.xlu0 %v590, 127
    %v618 = vpop.permute.xlu0 %617
    %619 = vrot.lane.b32.xlu0 %v591, 127
    %v620 = vpop.permute.xlu0 %619
    %621 = vrot.lane.b32.xlu0 %v592, 127
    %v622 = vpop.permute.xlu0 %621
    %623 = vrot.lane.b32.xlu0 %v593, 127
    %v624 = vpop.permute.xlu0 %623
    %625 = vrot.lane.b32.xlu0 %v594, 127
    %v626 = vpop.permute.xlu0 %625
    %627 = vrot.lane.b32.xlu0 %v595, 127
    %v628 = vpop.permute.xlu0 %627
    %v629 = vpack.c.bf16 %v606, %v604
    %v630 = vpack.c.bf16 %v610, %v608
    %v631 = vpack.c.bf16 %v614, %v612
    %v632 = vpack.c.bf16 %v618, %v616
    %v633 = vpack.c.bf16 %v622, %v620
    %v634 = vpack.c.bf16 %v626, %v624
    %v635 = vpack.c.bf16 %v628, %v628
    %636 = vrot.lane.b32.xlu0 %v583, 126
    %v637 = vpop.permute.xlu0 %636
    %638 = vrot.lane.b32.xlu0 %v584, 126
    %v639 = vpop.permute.xlu0 %638
    %640 = vrot.lane.b32.xlu0 %v585, 126
    %v641 = vpop.permute.xlu0 %640
    %642 = vrot.lane.b32.xlu0 %v586, 126
    %v643 = vpop.permute.xlu0 %642
    %644 = vrot.lane.b32.xlu0 %v587, 126
    %v645 = vpop.permute.xlu0 %644
    %646 = vrot.lane.b32.xlu0 %v588, 126
    %v647 = vpop.permute.xlu0 %646
    %648 = vrot.lane.b32.xlu0 %v589, 126
    %v649 = vpop.permute.xlu0 %648
    %650 = vrot.lane.b32.xlu0 %v590, 126
    %v651 = vpop.permute.xlu0 %650
    %652 = vrot.lane.b32.xlu0 %v591, 126
    %v653 = vpop.permute.xlu0 %652
    %654 = vrot.lane.b32.xlu0 %v592, 126
    %v655 = vpop.permute.xlu0 %654
    %656 = vrot.lane.b32.xlu0 %v593, 126
    %v657 = vpop.permute.xlu0 %656
    %658 = vrot.lane.b32.xlu0 %v594, 126
    %v659 = vpop.permute.xlu0 %658
    %660 = vrot.lane.b32.xlu0 %v595, 126
    %v661 = vpop.permute.xlu0 %660
    %v662 = vpack.c.bf16 %v639, %v637
    %v663 = vpack.c.bf16 %v643, %v641
    %v664 = vpack.c.bf16 %v647, %v645
    %v665 = vpack.c.bf16 %v651, %v649
    %v666 = vpack.c.bf16 %v655, %v653
    %v667 = vpack.c.bf16 %v659, %v657
    %v668 = vpack.c.bf16 %v661, %v661
    %669 = vrot.lane.b32.xlu0 %v583, 125
    %v670 = vpop.permute.xlu0 %669
    %671 = vrot.lane.b32.xlu0 %v584, 125
    %v672 = vpop.permute.xlu0 %671
    %673 = vrot.lane.b32.xlu0 %v585, 125
    %v674 = vpop.permute.xlu0 %673
    %675 = vrot.lane.b32.xlu0 %v586, 125
    %v676 = vpop.permute.xlu0 %675
    %677 = vrot.lane.b32.xlu0 %v587, 125
    %v678 = vpop.permute.xlu0 %677
    %679 = vrot.lane.b32.xlu0 %v588, 125
    %v680 = vpop.permute.xlu0 %679
    %681 = vrot.lane.b32.xlu0 %v589, 125
    %v682 = vpop.permute.xlu0 %681
    %683 = vrot.lane.b32.xlu0 %v590, 125
    %v684 = vpop.permute.xlu0 %683
    %685 = vrot.lane.b32.xlu0 %v591, 125
    %v686 = vpop.permute.xlu0 %685
    %687 = vrot.lane.b32.xlu0 %v592, 125
    %v688 = vpop.permute.xlu0 %687
    %689 = vrot.lane.b32.xlu0 %v593, 125
    %v690 = vpop.permute.xlu0 %689
    %691 = vrot.lane.b32.xlu0 %v594, 125
    %v692 = vpop.permute.xlu0 %691
    %693 = vrot.lane.b32.xlu0 %v595, 125
    %v694 = vpop.permute.xlu0 %693
    %v695 = vpack.c.bf16 %v672, %v670
    %v696 = vpack.c.bf16 %v676, %v674
    %v697 = vpack.c.bf16 %v680, %v678
    %v698 = vpack.c.bf16 %v684, %v682
    %v699 = vpack.c.bf16 %v688, %v686
    %v700 = vpack.c.bf16 %v692, %v690
    %v701 = vpack.c.bf16 %v694, %v694
    %702 = vrot.lane.b32.xlu0 %v583, 124
    %v703 = vpop.permute.xlu0 %702
    %704 = vrot.lane.b32.xlu0 %v584, 124
    %v705 = vpop.permute.xlu0 %704
    %706 = vrot.lane.b32.xlu0 %v585, 124
    %v707 = vpop.permute.xlu0 %706
    %708 = vrot.lane.b32.xlu0 %v586, 124
    %v709 = vpop.permute.xlu0 %708
    %710 = vrot.lane.b32.xlu0 %v587, 124
    %v711 = vpop.permute.xlu0 %710
    %712 = vrot.lane.b32.xlu0 %v588, 124
    %v713 = vpop.permute.xlu0 %712
    %714 = vrot.lane.b32.xlu0 %v589, 124
    %v715 = vpop.permute.xlu0 %714
    %716 = vrot.lane.b32.xlu0 %v590, 124
    %v717 = vpop.permute.xlu0 %716
    %718 = vrot.lane.b32.xlu0 %v591, 124
    %v719 = vpop.permute.xlu0 %718
    %720 = vrot.lane.b32.xlu0 %v592, 124
    %v721 = vpop.permute.xlu0 %720
    %722 = vrot.lane.b32.xlu0 %v593, 124
    %v723 = vpop.permute.xlu0 %722
    %724 = vrot.lane.b32.xlu0 %v594, 124
    %v725 = vpop.permute.xlu0 %724
    %726 = vrot.lane.b32.xlu0 %v595, 124
    %v727 = vpop.permute.xlu0 %726
    %v728 = vpack.c.bf16 %v705, %v703
    %v729 = vpack.c.bf16 %v709, %v707
    %v730 = vpack.c.bf16 %v713, %v711
    %v731 = vpack.c.bf16 %v717, %v715
    %v732 = vpack.c.bf16 %v721, %v719
    %v733 = vpack.c.bf16 %v725, %v723
    %v734 = vpack.c.bf16 %v727, %v727
    %735 = vrot.lane.b32.xlu0 %v583, 123
    %v736 = vpop.permute.xlu0 %735
    %737 = vrot.lane.b32.xlu0 %v584, 123
    %v738 = vpop.permute.xlu0 %737
    %739 = vrot.lane.b32.xlu0 %v585, 123
    %v740 = vpop.permute.xlu0 %739
    %741 = vrot.lane.b32.xlu0 %v586, 123
    %v742 = vpop.permute.xlu0 %741
    %743 = vrot.lane.b32.xlu0 %v587, 123
    %v744 = vpop.permute.xlu0 %743
    %745 = vrot.lane.b32.xlu0 %v588, 123
    %v746 = vpop.permute.xlu0 %745
    %747 = vrot.lane.b32.xlu0 %v589, 123
    %v748 = vpop.permute.xlu0 %747
    %749 = vrot.lane.b32.xlu0 %v590, 123
    %v750 = vpop.permute.xlu0 %749
    %751 = vrot.lane.b32.xlu0 %v591, 123
    %v752 = vpop.permute.xlu0 %751
    %753 = vrot.lane.b32.xlu0 %v592, 123
    %v754 = vpop.permute.xlu0 %753
    %755 = vrot.lane.b32.xlu0 %v593, 123
    %v756 = vpop.permute.xlu0 %755
    %757 = vrot.lane.b32.xlu0 %v594, 123
    %v758 = vpop.permute.xlu0 %757
    %759 = vrot.lane.b32.xlu0 %v595, 123
    %v760 = vpop.permute.xlu0 %759
    %v761 = vpack.c.bf16 %v738, %v736
    %v762 = vpack.c.bf16 %v742, %v740
    %v763 = vpack.c.bf16 %v746, %v744
    %v764 = vpack.c.bf16 %v750, %v748
    %v765 = vpack.c.bf16 %v754, %v752
    %v766 = vpack.c.bf16 %v758, %v756
    %v767 = vpack.c.bf16 %v760, %v760
    %768 = vrot.lane.b32.xlu0 %v583, 122
    %v769 = vpop.permute.xlu0 %768
    %770 = vrot.lane.b32.xlu0 %v584, 122
    %v771 = vpop.permute.xlu0 %770
    %772 = vrot.lane.b32.xlu0 %v585, 122
    %v773 = vpop.permute.xlu0 %772
    %774 = vrot.lane.b32.xlu0 %v586, 122
    %v775 = vpop.permute.xlu0 %774
    %776 = vrot.lane.b32.xlu0 %v587, 122
    %v777 = vpop.permute.xlu0 %776
    %778 = vrot.lane.b32.xlu0 %v588, 122
    %v779 = vpop.permute.xlu0 %778
    %780 = vrot.lane.b32.xlu0 %v589, 122
    %v781 = vpop.permute.xlu0 %780
    %782 = vrot.lane.b32.xlu0 %v590, 122
    %v783 = vpop.permute.xlu0 %782
    %784 = vrot.lane.b32.xlu0 %v591, 122
    %v785 = vpop.permute.xlu0 %784
    %786 = vrot.lane.b32.xlu0 %v592, 122
    %v787 = vpop.permute.xlu0 %786
    %788 = vrot.lane.b32.xlu0 %v593, 122
    %v789 = vpop.permute.xlu0 %788
    %790 = vrot.lane.b32.xlu0 %v594, 122
    %v791 = vpop.permute.xlu0 %790
    %792 = vrot.lane.b32.xlu0 %v595, 122
    %v793 = vpop.permute.xlu0 %792
    %v794 = vpack.c.bf16 %v771, %v769
    %v795 = vpack.c.bf16 %v775, %v773
    %v796 = vpack.c.bf16 %v779, %v777
    %v797 = vpack.c.bf16 %v783, %v781
    %v798 = vpack.c.bf16 %v787, %v785
    %v799 = vpack.c.bf16 %v791, %v789
    %v800 = vpack.c.bf16 %v793, %v793
    %801 = vrot.lane.b32.xlu0 %v583, 121
    %v802 = vpop.permute.xlu0 %801
    %803 = vrot.lane.b32.xlu0 %v584, 121
    %v804 = vpop.permute.xlu0 %803
    %805 = vrot.lane.b32.xlu0 %v585, 121
    %v806 = vpop.permute.xlu0 %805
    %807 = vrot.lane.b32.xlu0 %v586, 121
    %v808 = vpop.permute.xlu0 %807
    %809 = vrot.lane.b32.xlu0 %v587, 121
    %v810 = vpop.permute.xlu0 %809
    %811 = vrot.lane.b32.xlu0 %v588, 121
    %v812 = vpop.permute.xlu0 %811
    %813 = vrot.lane.b32.xlu0 %v589, 121
    %v814 = vpop.permute.xlu0 %813
    %815 = vrot.lane.b32.xlu0 %v590, 121
    %v816 = vpop.permute.xlu0 %815
    %817 = vrot.lane.b32.xlu0 %v591, 121
    %v818 = vpop.permute.xlu0 %817
    %819 = vrot.lane.b32.xlu0 %v592, 121
    %v820 = vpop.permute.xlu0 %819
    %821 = vrot.lane.b32.xlu0 %v593, 121
    %v822 = vpop.permute.xlu0 %821
    %823 = vrot.lane.b32.xlu0 %v594, 121
    %v824 = vpop.permute.xlu0 %823
    %825 = vrot.lane.b32.xlu0 %v595, 121
    %v826 = vpop.permute.xlu0 %825
    %v827 = vpack.c.bf16 %v804, %v802
    %v828 = vpack.c.bf16 %v808, %v806
    %v829 = vpack.c.bf16 %v812, %v810
    %v830 = vpack.c.bf16 %v816, %v814
    %v831 = vpack.c.bf16 %v820, %v818
    %v832 = vpack.c.bf16 %v824, %v822
    %v833 = vpack.c.bf16 %v826, %v826
    %834 = vrot.lane.b32.xlu0 %v583, 120
    %v835 = vpop.permute.xlu0 %834
    %836 = vrot.lane.b32.xlu0 %v584, 120
    %v837 = vpop.permute.xlu0 %836
    %838 = vrot.lane.b32.xlu0 %v585, 120
    %v839 = vpop.permute.xlu0 %838
    %840 = vrot.lane.b32.xlu0 %v586, 120
    %v841 = vpop.permute.xlu0 %840
    %842 = vrot.lane.b32.xlu0 %v587, 120
    %v843 = vpop.permute.xlu0 %842
    %844 = vrot.lane.b32.xlu0 %v588, 120
    %v845 = vpop.permute.xlu0 %844
    %846 = vrot.lane.b32.xlu0 %v589, 120
    %v847 = vpop.permute.xlu0 %846
    %848 = vrot.lane.b32.xlu0 %v590, 120
    %v849 = vpop.permute.xlu0 %848
    %850 = vrot.lane.b32.xlu0 %v591, 120
    %v851 = vpop.permute.xlu0 %850
    %852 = vrot.lane.b32.xlu0 %v592, 120
    %v853 = vpop.permute.xlu0 %852
    %854 = vrot.lane.b32.xlu0 %v593, 120
    %v855 = vpop.permute.xlu0 %854
    %856 = vrot.lane.b32.xlu0 %v594, 120
    %v857 = vpop.permute.xlu0 %856
    %858 = vrot.lane.b32.xlu0 %v595, 120
    %v859 = vpop.permute.xlu0 %858
    %v860 = vpack.c.bf16 %v837, %v835
    %v861 = vpack.c.bf16 %v841, %v839
    %v862 = vpack.c.bf16 %v845, %v843
    %v863 = vpack.c.bf16 %v849, %v847
    %v864 = vpack.c.bf16 %v853, %v851
    %v865 = vpack.c.bf16 %v857, %v855
    %v866 = vpack.c.bf16 %v859, %v859
    %867 = vrot.lane.b32.xlu0 %v583, 119
    %v868 = vpop.permute.xlu0 %867
    %869 = vrot.lane.b32.xlu0 %v584, 119
    %v870 = vpop.permute.xlu0 %869
    %871 = vrot.lane.b32.xlu0 %v585, 119
    %v872 = vpop.permute.xlu0 %871
    %873 = vrot.lane.b32.xlu0 %v586, 119
    %v874 = vpop.permute.xlu0 %873
    %875 = vrot.lane.b32.xlu0 %v587, 119
    %v876 = vpop.permute.xlu0 %875
    %877 = vrot.lane.b32.xlu0 %v588, 119
    %v878 = vpop.permute.xlu0 %877
    %879 = vrot.lane.b32.xlu0 %v589, 119
    %v880 = vpop.permute.xlu0 %879
    %881 = vrot.lane.b32.xlu0 %v590, 119
    %v882 = vpop.permute.xlu0 %881
    %883 = vrot.lane.b32.xlu0 %v591, 119
    %v884 = vpop.permute.xlu0 %883
    %885 = vrot.lane.b32.xlu0 %v592, 119
    %v886 = vpop.permute.xlu0 %885
    %887 = vrot.lane.b32.xlu0 %v593, 119
    %v888 = vpop.permute.xlu0 %887
    %889 = vrot.lane.b32.xlu0 %v594, 119
    %v890 = vpop.permute.xlu0 %889
    %891 = vrot.lane.b32.xlu0 %v595, 119
    %v892 = vpop.permute.xlu0 %891
    %v893 = vpack.c.bf16 %v870, %v868
    %v894 = vpack.c.bf16 %v874, %v872
    %v895 = vpack.c.bf16 %v878, %v876
    %v896 = vpack.c.bf16 %v882, %v880
    %v897 = vpack.c.bf16 %v886, %v884
    %v898 = vpack.c.bf16 %v890, %v888
    %v899 = vpack.c.bf16 %v892, %v892
    %s900 = smul.u32 4, 10
    %s901 = smul.u32 %s900, 12
    %s902 = smul.u32 %s901, 1
    %s903 = sshll.u32 %s902, 4
    %904 = dma.done [#allocation12], %s903
    %v905 = vld [vmem:[#allocation2] sm:$0xf]
    %v906 = vld [vmem:[#allocation2 + $0x4] sm:$0xf]
    %v907 = vld [vmem:[#allocation2 + $0x8] sm:$0xf]
    %v908 = vld [vmem:[#allocation2 + $0xc] sm:$0xf]
    %v909 = vld [vmem:[#allocation2 + $0x10] sm:$0xf]
    %v910 = vld [vmem:[#allocation2 + $0x14] sm:$0xf]
    %v911 = vld [vmem:[#allocation2 + $0x18] sm:$0xf]
    %v912 = vld [vmem:[#allocation2 + $0x1c] sm:$0xf]
    %v913 = vld [vmem:[#allocation2 + $0x20] sm:$0xf]
    %v914 = vld [vmem:[#allocation2 + $0x24] sm:$0xf]
    %v915 = vld [vmem:[#allocation2 + $0x28] sm:$0xf]
    %v916 = vld [vmem:[#allocation2 + $0x2c] sm:$0xf]
    %s917 = scalar_lea.vmem [#allocation2], 48
    %v918 = vld [vmem:[%s917] sm:$0xf]
    %v919 = vld [vmem:[%s917 + $0x4] sm:$0xf]
    %v920 = vld [vmem:[%s917 + $0x8] sm:$0xf]
    %v921 = vld [vmem:[%s917 + $0xc] sm:$0xf]
    %v922 = vld [vmem:[%s917 + $0x10] sm:$0xf]
    %v923 = vld [vmem:[%s917 + $0x14] sm:$0xf]
    %v924 = vld [vmem:[%s917 + $0x18] sm:$0xf]
    %v925 = vld [vmem:[%s917 + $0x1c] sm:$0xf]
    %v926 = vld [vmem:[%s917 + $0x20] sm:$0xf]
    %v927 = vld [vmem:[%s917 + $0x24] sm:$0xf]
    %v928 = vld [vmem:[%s917 + $0x28] sm:$0xf]
    %v929 = vld [vmem:[%s917 + $0x2c] sm:$0xf]
    %v942 = vunpack.c.l.b16 %v918
    %v943 = vunpack.c.l.b16 %v919
    %v944 = vunpack.c.l.b16 %v920
    %v945 = vunpack.c.l.b16 %v921
    %v946 = vunpack.c.l.b16 %v922
    %v947 = vunpack.c.l.b16 %v923
    %v948 = vunpack.c.l.b16 %v924
    %v949 = vunpack.c.l.b16 %v925
    %v950 = vunpack.c.l.b16 %v926
    %v951 = vunpack.c.l.b16 %v927
    %v952 = vunpack.c.l.b16 %v928
    %v953 = vunpack.c.l.b16 %v929
    %v954 = vpack.c.b16 %v943, %v942
    %v955 = vpack.c.b16 %v945, %v944
    %v956 = vpack.c.b16 %v947, %v946
    %v957 = vpack.c.b16 %v949, %v948
    %v958 = vpack.c.b16 %v951, %v950
    %v959 = vpack.c.b16 %v953, %v952
    %vm960 = vcmask 850944
    %v962 = vsel %vm960, %v954, 0
    %v965 = vsel %vm960, %v955, 0
    %v968 = vsel %vm960, %v956, 0
    %v971 = vsel %vm960, %v957, 0
    %v974 = vsel %vm960, %v958, 0
    %v977 = vsel %vm960, %v959, 0
    %vm979 = vcmask 1043456
    %v981 = vsel %vm979, %v635, 0
    %983 = vmatprep.subr.bf16.mxu0 0
    %984 = vmatpush1.bf16.msra.mxu0 0
    %985 = vmatprep.subr.bf16.mxu0 0
    %986 = vmatpush1.bf16.msra.mxu0 %v981
    %987 = vmatprep.subr.bf16.mxu0 0
    %988 = vmatpush1.bf16.msra.mxu0 %v634
    %989 = vmatprep.subr.bf16.mxu0 0
    %990 = vmatpush1.bf16.msra.mxu0 %v633
    %991 = vmatprep.subr.bf16.mxu0 0
    %992 = vmatpush1.bf16.msra.mxu0 %v632
    %993 = vmatprep.subr.bf16.mxu0 0
    %994 = vmatpush1.bf16.msra.mxu0 %v631
    %995 = vmatprep.subr.bf16.mxu0 0
    %996 = vmatpush1.bf16.msra.mxu0 %v630
    %997 = vmatprep.subr.bf16.mxu0 0
    %998 = vmatpush1.bf16.msra.mxu0 %v629
    %999 = vmatprep.subr.bf16.mxu0 0
    %1000 = vmatpush2.bf16.msra.mxu0 0
    %1001 = vmatprep.subr.bf16.mxu0 0
    %1002 = vmatpush2.bf16.msra.mxu0 0
    %1003 = vmatprep.subr.bf16.mxu0 0
    %1004 = vmatpush2.bf16.msra.mxu0 0
    %1005 = vmatprep.subr.bf16.mxu0 0
    %1006 = vmatpush2.bf16.msra.mxu0 0
    %1007 = vmatprep.subr.bf16.mxu0 0
    %1008 = vmatpush2.bf16.msra.mxu0 0
    %1009 = vmatprep.subr.bf16.mxu0 0
    %1010 = vmatpush2.bf16.msra.mxu0 0
    %1011 = vmatprep.subr.bf16.mxu0 0
    %1012 = vmatpush2.bf16.msra.mxu0 0
    %1013 = vmatprep.subr.bf16.mxu0 0
    %1014 = vmatpush2.bf16.msra.mxu0 0
    %1015 = vmatprep.mubr.bf16.mxu0 0
    %1016 = vmatmul.mubr.bf16.gmra.mxu0 %v962
    %v1017 = vpop.f32.mrf.mxu0
    %v1018 = vadd.f32 0.0, %v1017
    %v1019 = vpop.f32.mrf.mxu0
    %v1020 = vpop.f32.mrf.mxu0
    %v1021 = vadd.f32 0.0, %v1020
    %v1022 = vpop.f32.mrf.mxu0
    %1023 = vmatprep.mubr.bf16.mxu0 0
    %1024 = vmatmul.mubr.bf16.gmra.mxu0 %v965
    %v1025 = vpop.f32.mrf.mxu0
    %v1026 = vadd.f32 0.0, %v1025
    %v1027 = vpop.f32.mrf.mxu0
    %v1028 = vpop.f32.mrf.mxu0
    %v1029 = vadd.f32 0.0, %v1028
    %v1030 = vpop.f32.mrf.mxu0
    %1031 = vmatprep.mubr.bf16.mxu0 0
    %1032 = vmatmul.mubr.bf16.gmra.mxu0 %v968
    %v1033 = vpop.f32.mrf.mxu0
    %v1034 = vadd.f32 0.0, %v1033
    %v1035 = vpop.f32.mrf.mxu0
    %v1036 = vpop.f32.mrf.mxu0
    %v1037 = vadd.f32 0.0, %v1036
    %v1038 = vpop.f32.mrf.mxu0
    %1039 = vmatprep.mubr.bf16.mxu0 0
    %1040 = vmatmul.mubr.bf16.gmra.mxu0 %v971
    %v1041 = vpop.f32.mrf.mxu0
    %v1042 = vadd.f32 0.0, %v1041
    %v1043 = vpop.f32.mrf.mxu0
    %v1044 = vpop.f32.mrf.mxu0
    %v1045 = vadd.f32 0.0, %v1044
    %v1046 = vpop.f32.mrf.mxu0
    %1047 = vmatprep.mubr.bf16.mxu0 0
    %1048 = vmatmul.mubr.bf16.gmra.mxu0 %v974
    %v1049 = vpop.f32.mrf.mxu0
    %v1050 = vadd.f32 0.0, %v1049
    %v1051 = vpop.f32.mrf.mxu0
    %v1052 = vpop.f32.mrf.mxu0
    %v1053 = vadd.f32 0.0, %v1052
    %v1054 = vpop.f32.mrf.mxu0
    %1055 = vmatprep.mubr.bf16.mxu0 0
    %1056 = vmatmul.mubr.bf16.gmra.mxu0 %v977
    %v1057 = vpop.f32.mrf.mxu0
    %v1058 = vadd.f32 0.0, %v1057
    %v1059 = vpop.f32.mrf.mxu0
    %v1060 = vpop.f32.mrf.mxu0
    %v1061 = vadd.f32 0.0, %v1060
    %v1062 = vpop.f32.mrf.mxu0
    %1063 = vdwg.mxu0
    %v1076 = vunpack.c.l.b16 %v905
    %v1077 = vunpack.c.l.b16 %v906
    %v1078 = vunpack.c.l.b16 %v907
    %v1079 = vunpack.c.l.b16 %v908
    %v1080 = vunpack.c.l.b16 %v909
    %v1081 = vunpack.c.l.b16 %v910
    %v1082 = vunpack.c.l.b16 %v911
    %v1083 = vunpack.c.l.b16 %v912
    %v1084 = vunpack.c.l.b16 %v913
    %v1085 = vunpack.c.l.b16 %v914
    %v1086 = vunpack.c.l.b16 %v915
    %v1087 = vunpack.c.l.b16 %v916
    %v1088 = vpack.c.b16 %v1077, %v1076
    %v1089 = vpack.c.b16 %v1079, %v1078
    %v1090 = vpack.c.b16 %v1081, %v1080
    %v1091 = vpack.c.b16 %v1083, %v1082
    %v1092 = vpack.c.b16 %v1085, %v1084
    %v1093 = vpack.c.b16 %v1087, %v1086
    %v1095 = vsel %vm960, %v1088, 0
    %v1098 = vsel %vm960, %v1089, 0
    %v1101 = vsel %vm960, %v1090, 0
    %v1104 = vsel %vm960, %v1091, 0
    %v1107 = vsel %vm960, %v1092, 0
    %v1110 = vsel %vm960, %v1093, 0
    %v1113 = vsel %vm979, %v602, 0
    %1115 = vmatprep.subr.bf16.mxu0 0
    %1116 = vmatpush1.bf16.msra.mxu0 0
    %1117 = vmatprep.subr.bf16.mxu0 0
    %1118 = vmatpush1.bf16.msra.mxu0 %v1113
    %1119 = vmatprep.subr.bf16.mxu0 0
    %1120 = vmatpush1.bf16.msra.mxu0 %v601
    %1121 = vmatprep.subr.bf16.mxu0 0
    %1122 = vmatpush1.bf16.msra.mxu0 %v600
    %1123 = vmatprep.subr.bf16.mxu0 0
    %1124 = vmatpush1.bf16.msra.mxu0 %v599
    %1125 = vmatprep.subr.bf16.mxu0 0
    %1126 = vmatpush1.bf16.msra.mxu0 %v598
    %1127 = vmatprep.subr.bf16.mxu0 0
    %1128 = vmatpush1.bf16.msra.mxu0 %v597
    %1129 = vmatprep.subr.bf16.mxu0 0
    %1130 = vmatpush1.bf16.msra.mxu0 %v596
    %1131 = vmatprep.subr.bf16.mxu0 0
    %1132 = vmatpush2.bf16.msra.mxu0 0
    %1133 = vmatprep.subr.bf16.mxu0 0
    %1134 = vmatpush2.bf16.msra.mxu0 0
    %1135 = vmatprep.subr.bf16.mxu0 0
    %1136 = vmatpush2.bf16.msra.mxu0 0
    %1137 = vmatprep.subr.bf16.mxu0 0
    %1138 = vmatpush2.bf16.msra.mxu0 0
    %1139 = vmatprep.subr.bf16.mxu0 0
    %1140 = vmatpush2.bf16.msra.mxu0 0
    %1141 = vmatprep.subr.bf16.mxu0 0
    %1142 = vmatpush2.bf16.msra.mxu0 0
    %1143 = vmatprep.subr.bf16.mxu0 0
    %1144 = vmatpush2.bf16.msra.mxu0 0
    %1145 = vmatprep.subr.bf16.mxu0 0
    %1146 = vmatpush2.bf16.msra.mxu0 0
    %1147 = vmatprep.mubr.bf16.mxu0 0
    %1148 = vmatmul.mubr.bf16.gmra.mxu0 %v1095
    %v1149 = vpop.f32.mrf.mxu0
    %v1150 = vadd.f32 %v1018, %v1149
    %v1151 = vpop.f32.mrf.mxu0
    %v1152 = vpop.f32.mrf.mxu0
    %v1153 = vadd.f32 %v1021, %v1152
    %v1154 = vpop.f32.mrf.mxu0
    %1155 = vmatprep.mubr.bf16.mxu0 0
    %1156 = vmatmul.mubr.bf16.gmra.mxu0 %v1098
    %v1157 = vpop.f32.mrf.mxu0
    %v1158 = vadd.f32 %v1026, %v1157
    %v1159 = vpop.f32.mrf.mxu0
    %v1160 = vpop.f32.mrf.mxu0
    %v1161 = vadd.f32 %v1029, %v1160
    %v1162 = vpop.f32.mrf.mxu0
    %1163 = vmatprep.mubr.bf16.mxu0 0
    %1164 = vmatmul.mubr.bf16.gmra.mxu0 %v1101
    %v1165 = vpop.f32.mrf.mxu0
    %v1166 = vadd.f32 %v1034, %v1165
    %v1167 = vpop.f32.mrf.mxu0
    %v1168 = vpop.f32.mrf.mxu0
    %v1169 = vadd.f32 %v1037, %v1168
    %v1170 = vpop.f32.mrf.mxu0
    %1171 = vmatprep.mubr.bf16.mxu0 0
    %1172 = vmatmul.mubr.bf16.gmra.mxu0 %v1104
    %v1173 = vpop.f32.mrf.mxu0
    %v1174 = vadd.f32 %v1042, %v1173
    %v1175 = vpop.f32.mrf.mxu0
    %v1176 = vpop.f32.mrf.mxu0
    %v1177 = vadd.f32 %v1045, %v1176
    %v1178 = vpop.f32.mrf.mxu0
    %1179 = vmatprep.mubr.bf16.mxu0 0
    %1180 = vmatmul.mubr.bf16.gmra.mxu0 %v1107
    %v1181 = vpop.f32.mrf.mxu0
    %v1182 = vadd.f32 %v1050, %v1181
    %v1183 = vpop.f32.mrf.mxu0
    %v1184 = vpop.f32.mrf.mxu0
    %v1185 = vadd.f32 %v1053, %v1184
    %v1186 = vpop.f32.mrf.mxu0
    %1187 = vmatprep.mubr.bf16.mxu0 0
    %1188 = vmatmul.mubr.bf16.gmra.mxu0 %v1110
    %v1189 = vpop.f32.mrf.mxu0
    %v1190 = vadd.f32 %v1058, %v1189
    %v1191 = vpop.f32.mrf.mxu0
    %v1192 = vpop.f32.mrf.mxu0
    %v1193 = vadd.f32 %v1061, %v1192
    %v1194 = vpop.f32.mrf.mxu0
    %1195 = vdwg.mxu0
    %s1196 = scalar_lea.vmem [#allocation2], 96
    %v1197 = vld [vmem:[%s1196] sm:$0xf]
    %v1198 = vld [vmem:[%s1196 + $0x4] sm:$0xf]
    %v1199 = vld [vmem:[%s1196 + $0x8] sm:$0xf]
    %v1200 = vld [vmem:[%s1196 + $0xc] sm:$0xf]
    %v1201 = vld [vmem:[%s1196 + $0x10] sm:$0xf]
    %v1202 = vld [vmem:[%s1196 + $0x14] sm:$0xf]
    %v1203 = vld [vmem:[%s1196 + $0x18] sm:$0xf]
    %v1204 = vld [vmem:[%s1196 + $0x1c] sm:$0xf]
    %v1205 = vld [vmem:[%s1196 + $0x20] sm:$0xf]
    %v1206 = vld [vmem:[%s1196 + $0x24] sm:$0xf]
    %v1207 = vld [vmem:[%s1196 + $0x28] sm:$0xf]
    %v1208 = vld [vmem:[%s1196 + $0x2c] sm:$0xf]
    %v1221 = vunpack.c.l.b16 %v1197
    %v1222 = vunpack.c.l.b16 %v1198
    %v1223 = vunpack.c.l.b16 %v1199
    %v1224 = vunpack.c.l.b16 %v1200
    %v1225 = vunpack.c.l.b16 %v1201
    %v1226 = vunpack.c.l.b16 %v1202
    %v1227 = vunpack.c.l.b16 %v1203
    %v1228 = vunpack.c.l.b16 %v1204
    %v1229 = vunpack.c.l.b16 %v1205
    %v1230 = vunpack.c.l.b16 %v1206
    %v1231 = vunpack.c.l.b16 %v1207
    %v1232 = vunpack.c.l.b16 %v1208
    %v1233 = vpack.c.b16 %v1222, %v1221
    %v1234 = vpack.c.b16 %v1224, %v1223
    %v1235 = vpack.c.b16 %v1226, %v1225
    %v1236 = vpack.c.b16 %v1228, %v1227
    %v1237 = vpack.c.b16 %v1230, %v1229
    %v1238 = vpack.c.b16 %v1232, %v1231
    %v1240 = vsel %vm960, %v1233, 0
    %v1243 = vsel %vm960, %v1234, 0
    %v1246 = vsel %vm960, %v1235, 0
    %v1249 = vsel %vm960, %v1236, 0
    %v1252 = vsel %vm960, %v1237, 0
    %v1255 = vsel %vm960, %v1238, 0
    %v1258 = vsel %vm979, %v668, 0
    %1260 = vmatprep.subr.bf16.mxu0 0
    %1261 = vmatpush1.bf16.msra.mxu0 0
    %1262 = vmatprep.subr.bf16.mxu0 0
    %1263 = vmatpush1.bf16.msra.mxu0 %v1258
    %1264 = vmatprep.subr.bf16.mxu0 0
    %1265 = vmatpush1.bf16.msra.mxu0 %v667
    %1266 = vmatprep.subr.bf16.mxu0 0
    %1267 = vmatpush1.bf16.msra.mxu0 %v666
    %1268 = vmatprep.subr.bf16.mxu0 0
    %1269 = vmatpush1.bf16.msra.mxu0 %v665
    %1270 = vmatprep.subr.bf16.mxu0 0
    %1271 = vmatpush1.bf16.msra.mxu0 %v664
    %1272 = vmatprep.subr.bf16.mxu0 0
    %1273 = vmatpush1.bf16.msra.mxu0 %v663
    %1274 = vmatprep.subr.bf16.mxu0 0
    %1275 = vmatpush1.bf16.msra.mxu0 %v662
    %1276 = vmatprep.subr.bf16.mxu0 0
    %1277 = vmatpush2.bf16.msra.mxu0 0
    %1278 = vmatprep.subr.bf16.mxu0 0
    %1279 = vmatpush2.bf16.msra.mxu0 0
    %1280 = vmatprep.subr.bf16.mxu0 0
    %1281 = vmatpush2.bf16.msra.mxu0 0
    %1282 = vmatprep.subr.bf16.mxu0 0
    %1283 = vmatpush2.bf16.msra.mxu0 0
    %1284 = vmatprep.subr.bf16.mxu0 0
    %1285 = vmatpush2.bf16.msra.mxu0 0
    %1286 = vmatprep.subr.bf16.mxu0 0
    %1287 = vmatpush2.bf16.msra.mxu0 0
    %1288 = vmatprep.subr.bf16.mxu0 0
    %1289 = vmatpush2.bf16.msra.mxu0 0
    %1290 = vmatprep.subr.bf16.mxu0 0
    %1291 = vmatpush2.bf16.msra.mxu0 0
    %1292 = vmatprep.mubr.bf16.mxu0 0
    %1293 = vmatmul.mubr.bf16.gmra.mxu0 %v1240
    %v1294 = vpop.f32.mrf.mxu0
    %v1295 = vadd.f32 0.0, %v1294
    %v1296 = vpop.f32.mrf.mxu0
    %v1297 = vpop.f32.mrf.mxu0
    %v1298 = vadd.f32 0.0, %v1297
    %v1299 = vpop.f32.mrf.mxu0
    %1300 = vmatprep.mubr.bf16.mxu0 0
    %1301 = vmatmul.mubr.bf16.gmra.mxu0 %v1243
    %v1302 = vpop.f32.mrf.mxu0
    %v1303 = vadd.f32 0.0, %v1302
    %v1304 = vpop.f32.mrf.mxu0
    %v1305 = vpop.f32.mrf.mxu0
    %v1306 = vadd.f32 0.0, %v1305
    %v1307 = vpop.f32.mrf.mxu0
    %1308 = vmatprep.mubr.bf16.mxu0 0
    %1309 = vmatmul.mubr.bf16.gmra.mxu0 %v1246
    %v1310 = vpop.f32.mrf.mxu0
    %v1311 = vadd.f32 0.0, %v1310
    %v1312 = vpop.f32.mrf.mxu0
    %v1313 = vpop.f32.mrf.mxu0
    %v1314 = vadd.f32 0.0, %v1313
    %v1315 = vpop.f32.mrf.mxu0
    %1316 = vmatprep.mubr.bf16.mxu0 0
    %1317 = vmatmul.mubr.bf16.gmra.mxu0 %v1249
    %v1318 = vpop.f32.mrf.mxu0
    %v1319 = vadd.f32 0.0, %v1318
    %v1320 = vpop.f32.mrf.mxu0
    %v1321 = vpop.f32.mrf.mxu0
    %v1322 = vadd.f32 0.0, %v1321
    %v1323 = vpop.f32.mrf.mxu0
    %1324 = vmatprep.mubr.bf16.mxu0 0
    %1325 = vmatmul.mubr.bf16.gmra.mxu0 %v1252
    %v1326 = vpop.f32.mrf.mxu0
    %v1327 = vadd.f32 0.0, %v1326
    %v1328 = vpop.f32.mrf.mxu0
    %v1329 = vpop.f32.mrf.mxu0
    %v1330 = vadd.f32 0.0, %v1329
    %v1331 = vpop.f32.mrf.mxu0
    %1332 = vmatprep.mubr.bf16.mxu0 0
    %1333 = vmatmul.mubr.bf16.gmra.mxu0 %v1255
    %v1334 = vpop.f32.mrf.mxu0
    %v1335 = vadd.f32 0.0, %v1334
    %v1336 = vpop.f32.mrf.mxu0
    %v1337 = vpop.f32.mrf.mxu0
    %v1338 = vadd.f32 0.0, %v1337
    %v1339 = vpop.f32.mrf.mxu0
    %1340 = vdwg.mxu0
    %v1341 = vadd.f32 %v1150, %v1295
    %v1342 = vadd.f32 %v1153, %v1298
    %v1343 = vadd.f32 %v1158, %v1303
    %v1344 = vadd.f32 %v1161, %v1306
    %v1345 = vadd.f32 %v1166, %v1311
    %v1346 = vadd.f32 %v1169, %v1314
    %v1347 = vadd.f32 %v1174, %v1319
    %v1348 = vadd.f32 %v1177, %v1322
    %v1349 = vadd.f32 %v1182, %v1327
    %v1350 = vadd.f32 %v1185, %v1330
    %v1351 = vadd.f32 %v1190, %v1335
    %v1352 = vadd.f32 %v1193, %v1338
    %s1353 = scalar_lea.vmem [#allocation2], 144
    %v1354 = vld [vmem:[%s1353] sm:$0xf]
    %v1355 = vld [vmem:[%s1353 + $0x4] sm:$0xf]
    %v1356 = vld [vmem:[%s1353 + $0x8] sm:$0xf]
    %v1357 = vld [vmem:[%s1353 + $0xc] sm:$0xf]
    %v1358 = vld [vmem:[%s1353 + $0x10] sm:$0xf]
    %v1359 = vld [vmem:[%s1353 + $0x14] sm:$0xf]
    %v1360 = vld [vmem:[%s1353 + $0x18] sm:$0xf]
    %v1361 = vld [vmem:[%s1353 + $0x1c] sm:$0xf]
    %v1362 = vld [vmem:[%s1353 + $0x20] sm:$0xf]
    %v1363 = vld [vmem:[%s1353 + $0x24] sm:$0xf]
    %v1364 = vld [vmem:[%s1353 + $0x28] sm:$0xf]
    %v1365 = vld [vmem:[%s1353 + $0x2c] sm:$0xf]
    %v1378 = vunpack.c.l.b16 %v1354
    %v1379 = vunpack.c.l.b16 %v1355
    %v1380 = vunpack.c.l.b16 %v1356
    %v1381 = vunpack.c.l.b16 %v1357
    %v1382 = vunpack.c.l.b16 %v1358
    %v1383 = vunpack.c.l.b16 %v1359
    %v1384 = vunpack.c.l.b16 %v1360
    %v1385 = vunpack.c.l.b16 %v1361
    %v1386 = vunpack.c.l.b16 %v1362
    %v1387 = vunpack.c.l.b16 %v1363
    %v1388 = vunpack.c.l.b16 %v1364
    %v1389 = vunpack.c.l.b16 %v1365
    %v1390 = vpack.c.b16 %v1379, %v1378
    %v1391 = vpack.c.b16 %v1381, %v1380
    %v1392 = vpack.c.b16 %v1383, %v1382
    %v1393 = vpack.c.b16 %v1385, %v1384
    %v1394 = vpack.c.b16 %v1387, %v1386
    %v1395 = vpack.c.b16 %v1389, %v1388
    %v1397 = vsel %vm960, %v1390, 0
    %v1400 = vsel %vm960, %v1391, 0
    %v1403 = vsel %vm960, %v1392, 0
    %v1406 = vsel %vm960, %v1393, 0
    %v1409 = vsel %vm960, %v1394, 0
    %v1412 = vsel %vm960, %v1395, 0
    %v1415 = vsel %vm979, %v701, 0
    %1417 = vmatprep.subr.bf16.mxu0 0
    %1418 = vmatpush1.bf16.msra.mxu0 0
    %1419 = vmatprep.subr.bf16.mxu0 0
    %1420 = vmatpush1.bf16.msra.mxu0 %v1415
    %1421 = vmatprep.subr.bf16.mxu0 0
    %1422 = vmatpush1.bf16.msra.mxu0 %v700
    %1423 = vmatprep.subr.bf16.mxu0 0
    %1424 = vmatpush1.bf16.msra.mxu0 %v699
    %1425 = vmatprep.subr.bf16.mxu0 0
    %1426 = vmatpush1.bf16.msra.mxu0 %v698
    %1427 = vmatprep.subr.bf16.mxu0 0
    %1428 = vmatpush1.bf16.msra.mxu0 %v697
    %1429 = vmatprep.subr.bf16.mxu0 0
    %1430 = vmatpush1.bf16.msra.mxu0 %v696
    %1431 = vmatprep.subr.bf16.mxu0 0
    %1432 = vmatpush1.bf16.msra.mxu0 %v695
    %1433 = vmatprep.subr.bf16.mxu0 0
    %1434 = vmatpush2.bf16.msra.mxu0 0
    %1435 = vmatprep.subr.bf16.mxu0 0
    %1436 = vmatpush2.bf16.msra.mxu0 0
    %1437 = vmatprep.subr.bf16.mxu0 0
    %1438 = vmatpush2.bf16.msra.mxu0 0
    %1439 = vmatprep.subr.bf16.mxu0 0
    %1440 = vmatpush2.bf16.msra.mxu0 0
    %1441 = vmatprep.subr.bf16.mxu0 0
    %1442 = vmatpush2.bf16.msra.mxu0 0
    %1443 = vmatprep.subr.bf16.mxu0 0
    %1444 = vmatpush2.bf16.msra.mxu0 0
    %1445 = vmatprep.subr.bf16.mxu0 0
    %1446 = vmatpush2.bf16.msra.mxu0 0
    %1447 = vmatprep.subr.bf16.mxu0 0
    %1448 = vmatpush2.bf16.msra.mxu0 0
    %1449 = vmatprep.mubr.bf16.mxu0 0
    %1450 = vmatmul.mubr.bf16.gmra.mxu0 %v1397
    %v1451 = vpop.f32.mrf.mxu0
    %v1452 = vadd.f32 0.0, %v1451
    %v1453 = vpop.f32.mrf.mxu0
    %v1454 = vpop.f32.mrf.mxu0
    %v1455 = vadd.f32 0.0, %v1454
    %v1456 = vpop.f32.mrf.mxu0
    %1457 = vmatprep.mubr.bf16.mxu0 0
    %1458 = vmatmul.mubr.bf16.gmra.mxu0 %v1400
    %v1459 = vpop.f32.mrf.mxu0
    %v1460 = vadd.f32 0.0, %v1459
    %v1461 = vpop.f32.mrf.mxu0
    %v1462 = vpop.f32.mrf.mxu0
    %v1463 = vadd.f32 0.0, %v1462
    %v1464 = vpop.f32.mrf.mxu0
    %1465 = vmatprep.mubr.bf16.mxu0 0
    %1466 = vmatmul.mubr.bf16.gmra.mxu0 %v1403
    %v1467 = vpop.f32.mrf.mxu0
    %v1468 = vadd.f32 0.0, %v1467
    %v1469 = vpop.f32.mrf.mxu0
    %v1470 = vpop.f32.mrf.mxu0
    %v1471 = vadd.f32 0.0, %v1470
    %v1472 = vpop.f32.mrf.mxu0
    %1473 = vmatprep.mubr.bf16.mxu0 0
    %1474 = vmatmul.mubr.bf16.gmra.mxu0 %v1406
    %v1475 = vpop.f32.mrf.mxu0
    %v1476 = vadd.f32 0.0, %v1475
    %v1477 = vpop.f32.mrf.mxu0
    %v1478 = vpop.f32.mrf.mxu0
    %v1479 = vadd.f32 0.0, %v1478
    %v1480 = vpop.f32.mrf.mxu0
    %1481 = vmatprep.mubr.bf16.mxu0 0
    %1482 = vmatmul.mubr.bf16.gmra.mxu0 %v1409
    %v1483 = vpop.f32.mrf.mxu0
    %v1484 = vadd.f32 0.0, %v1483
    %v1485 = vpop.f32.mrf.mxu0
    %v1486 = vpop.f32.mrf.mxu0
    %v1487 = vadd.f32 0.0, %v1486
    %v1488 = vpop.f32.mrf.mxu0
    %1489 = vmatprep.mubr.bf16.mxu0 0
    %1490 = vmatmul.mubr.bf16.gmra.mxu0 %v1412
    %v1491 = vpop.f32.mrf.mxu0
    %v1492 = vadd.f32 0.0, %v1491
    %v1493 = vpop.f32.mrf.mxu0
    %v1494 = vpop.f32.mrf.mxu0
    %v1495 = vadd.f32 0.0, %v1494
    %v1496 = vpop.f32.mrf.mxu0
    %1497 = vdwg.mxu0
    %v1498 = vadd.f32 %v1341, %v1452
    %v1499 = vadd.f32 %v1342, %v1455
    %v1500 = vadd.f32 %v1343, %v1460
    %v1501 = vadd.f32 %v1344, %v1463
    %v1502 = vadd.f32 %v1345, %v1468
    %v1503 = vadd.f32 %v1346, %v1471
    %v1504 = vadd.f32 %v1347, %v1476
    %v1505 = vadd.f32 %v1348, %v1479
    %v1506 = vadd.f32 %v1349, %v1484
    %v1507 = vadd.f32 %v1350, %v1487
    %v1508 = vadd.f32 %v1351, %v1492
    %v1509 = vadd.f32 %v1352, %v1495
    %s1510 = scalar_lea.vmem [#allocation2], 192
    %v1511 = vld [vmem:[%s1510] sm:$0xf]
    %v1512 = vld [vmem:[%s1510 + $0x4] sm:$0xf]
    %v1513 = vld [vmem:[%s1510 + $0x8] sm:$0xf]
    %v1514 = vld [vmem:[%s1510 + $0xc] sm:$0xf]
    %v1515 = vld [vmem:[%s1510 + $0x10] sm:$0xf]
    %v1516 = vld [vmem:[%s1510 + $0x14] sm:$0xf]
    %v1517 = vld [vmem:[%s1510 + $0x18] sm:$0xf]
    %v1518 = vld [vmem:[%s1510 + $0x1c] sm:$0xf]
    %v1519 = vld [vmem:[%s1510 + $0x20] sm:$0xf]
    %v1520 = vld [vmem:[%s1510 + $0x24] sm:$0xf]
    %v1521 = vld [vmem:[%s1510 + $0x28] sm:$0xf]
    %v1522 = vld [vmem:[%s1510 + $0x2c] sm:$0xf]
    %v1535 = vunpack.c.l.b16 %v1511
    %v1536 = vunpack.c.l.b16 %v1512
    %v1537 = vunpack.c.l.b16 %v1513
    %v1538 = vunpack.c.l.b16 %v1514
    %v1539 = vunpack.c.l.b16 %v1515
    %v1540 = vunpack.c.l.b16 %v1516
    %v1541 = vunpack.c.l.b16 %v1517
    %v1542 = vunpack.c.l.b16 %v1518
    %v1543 = vunpack.c.l.b16 %v1519
    %v1544 = vunpack.c.l.b16 %v1520
    %v1545 = vunpack.c.l.b16 %v1521
    %v1546 = vunpack.c.l.b16 %v1522
    %v1547 = vpack.c.b16 %v1536, %v1535
    %v1548 = vpack.c.b16 %v1538, %v1537
    %v1549 = vpack.c.b16 %v1540, %v1539
    %v1550 = vpack.c.b16 %v1542, %v1541
    %v1551 = vpack.c.b16 %v1544, %v1543
    %v1552 = vpack.c.b16 %v1546, %v1545
    %v1554 = vsel %vm960, %v1547, 0
    %v1557 = vsel %vm960, %v1548, 0
    %v1560 = vsel %vm960, %v1549, 0
    %v1563 = vsel %vm960, %v1550, 0
    %v1566 = vsel %vm960, %v1551, 0
    %v1569 = vsel %vm960, %v1552, 0
    %v1572 = vsel %vm979, %v734, 0
    %1574 = vmatprep.subr.bf16.mxu0 0
    %1575 = vmatpush1.bf16.msra.mxu0 0
    %1576 = vmatprep.subr.bf16.mxu0 0
    %1577 = vmatpush1.bf16.msra.mxu0 %v1572
    %1578 = vmatprep.subr.bf16.mxu0 0
    %1579 = vmatpush1.bf16.msra.mxu0 %v733
    %1580 = vmatprep.subr.bf16.mxu0 0
    %1581 = vmatpush1.bf16.msra.mxu0 %v732
    %1582 = vmatprep.subr.bf16.mxu0 0
    %1583 = vmatpush1.bf16.msra.mxu0 %v731
    %1584 = vmatprep.subr.bf16.mxu0 0
    %1585 = vmatpush1.bf16.msra.mxu0 %v730
    %1586 = vmatprep.subr.bf16.mxu0 0
    %1587 = vmatpush1.bf16.msra.mxu0 %v729
    %1588 = vmatprep.subr.bf16.mxu0 0
    %1589 = vmatpush1.bf16.msra.mxu0 %v728
    %1590 = vmatprep.subr.bf16.mxu0 0
    %1591 = vmatpush2.bf16.msra.mxu0 0
    %1592 = vmatprep.subr.bf16.mxu0 0
    %1593 = vmatpush2.bf16.msra.mxu0 0
    %1594 = vmatprep.subr.bf16.mxu0 0
    %1595 = vmatpush2.bf16.msra.mxu0 0
    %1596 = vmatprep.subr.bf16.mxu0 0
    %1597 = vmatpush2.bf16.msra.mxu0 0
    %1598 = vmatprep.subr.bf16.mxu0 0
    %1599 = vmatpush2.bf16.msra.mxu0 0
    %1600 = vmatprep.subr.bf16.mxu0 0
    %1601 = vmatpush2.bf16.msra.mxu0 0
    %1602 = vmatprep.subr.bf16.mxu0 0
    %1603 = vmatpush2.bf16.msra.mxu0 0
    %1604 = vmatprep.subr.bf16.mxu0 0
    %1605 = vmatpush2.bf16.msra.mxu0 0
    %1606 = vmatprep.mubr.bf16.mxu0 0
    %1607 = vmatmul.mubr.bf16.gmra.mxu0 %v1554
    %v1608 = vpop.f32.mrf.mxu0
    %v1609 = vadd.f32 0.0, %v1608
    %v1610 = vpop.f32.mrf.mxu0
    %v1611 = vpop.f32.mrf.mxu0
    %v1612 = vadd.f32 0.0, %v1611
    %v1613 = vpop.f32.mrf.mxu0
    %1614 = vmatprep.mubr.bf16.mxu0 0
    %1615 = vmatmul.mubr.bf16.gmra.mxu0 %v1557
    %v1616 = vpop.f32.mrf.mxu0
    %v1617 = vadd.f32 0.0, %v1616
    %v1618 = vpop.f32.mrf.mxu0
    %v1619 = vpop.f32.mrf.mxu0
    %v1620 = vadd.f32 0.0, %v1619
    %v1621 = vpop.f32.mrf.mxu0
    %1622 = vmatprep.mubr.bf16.mxu0 0
    %1623 = vmatmul.mubr.bf16.gmra.mxu0 %v1560
    %v1624 = vpop.f32.mrf.mxu0
    %v1625 = vadd.f32 0.0, %v1624
    %v1626 = vpop.f32.mrf.mxu0
    %v1627 = vpop.f32.mrf.mxu0
    %v1628 = vadd.f32 0.0, %v1627
    %v1629 = vpop.f32.mrf.mxu0
    %1630 = vmatprep.mubr.bf16.mxu0 0
    %1631 = vmatmul.mubr.bf16.gmra.mxu0 %v1563
    %v1632 = vpop.f32.mrf.mxu0
    %v1633 = vadd.f32 0.0, %v1632
    %v1634 = vpop.f32.mrf.mxu0
    %v1635 = vpop.f32.mrf.mxu0
    %v1636 = vadd.f32 0.0, %v1635
    %v1637 = vpop.f32.mrf.mxu0
    %1638 = vmatprep.mubr.bf16.mxu0 0
    %1639 = vmatmul.mubr.bf16.gmra.mxu0 %v1566
    %v1640 = vpop.f32.mrf.mxu0
    %v1641 = vadd.f32 0.0, %v1640
    %v1642 = vpop.f32.mrf.mxu0
    %v1643 = vpop.f32.mrf.mxu0
    %v1644 = vadd.f32 0.0, %v1643
    %v1645 = vpop.f32.mrf.mxu0
    %1646 = vmatprep.mubr.bf16.mxu0 0
    %1647 = vmatmul.mubr.bf16.gmra.mxu0 %v1569
    %v1648 = vpop.f32.mrf.mxu0
    %v1649 = vadd.f32 0.0, %v1648
    %v1650 = vpop.f32.mrf.mxu0
    %v1651 = vpop.f32.mrf.mxu0
    %v1652 = vadd.f32 0.0, %v1651
    %v1653 = vpop.f32.mrf.mxu0
    %1654 = vdwg.mxu0
    %v1655 = vadd.f32 %v1498, %v1609
    %v1656 = vadd.f32 %v1499, %v1612
    %v1657 = vadd.f32 %v1500, %v1617
    %v1658 = vadd.f32 %v1501, %v1620
    %v1659 = vadd.f32 %v1502, %v1625
    %v1660 = vadd.f32 %v1503, %v1628
    %v1661 = vadd.f32 %v1504, %v1633
    %v1662 = vadd.f32 %v1505, %v1636
    %v1663 = vadd.f32 %v1506, %v1641
    %v1664 = vadd.f32 %v1507, %v1644
    %v1665 = vadd.f32 %v1508, %v1649
    %v1666 = vadd.f32 %v1509, %v1652
    %s1667 = scalar_lea.vmem [#allocation2], 240
    %v1668 = vld [vmem:[%s1667] sm:$0xf]
    %v1669 = vld [vmem:[%s1667 + $0x4] sm:$0xf]
    %v1670 = vld [vmem:[%s1667 + $0x8] sm:$0xf]
    %v1671 = vld [vmem:[%s1667 + $0xc] sm:$0xf]
    %v1672 = vld [vmem:[%s1667 + $0x10] sm:$0xf]
    %v1673 = vld [vmem:[%s1667 + $0x14] sm:$0xf]
    %v1674 = vld [vmem:[%s1667 + $0x18] sm:$0xf]
    %v1675 = vld [vmem:[%s1667 + $0x1c] sm:$0xf]
    %v1676 = vld [vmem:[%s1667 + $0x20] sm:$0xf]
    %v1677 = vld [vmem:[%s1667 + $0x24] sm:$0xf]
    %v1678 = vld [vmem:[%s1667 + $0x28] sm:$0xf]
    %v1679 = vld [vmem:[%s1667 + $0x2c] sm:$0xf]
    %v1692 = vunpack.c.l.b16 %v1668
    %v1693 = vunpack.c.l.b16 %v1669
    %v1694 = vunpack.c.l.b16 %v1670
    %v1695 = vunpack.c.l.b16 %v1671
    %v1696 = vunpack.c.l.b16 %v1672
    %v1697 = vunpack.c.l.b16 %v1673
    %v1698 = vunpack.c.l.b16 %v1674
    %v1699 = vunpack.c.l.b16 %v1675
    %v1700 = vunpack.c.l.b16 %v1676
    %v1701 = vunpack.c.l.b16 %v1677
    %v1702 = vunpack.c.l.b16 %v1678
    %v1703 = vunpack.c.l.b16 %v1679
    %v1704 = vpack.c.b16 %v1693, %v1692
    %v1705 = vpack.c.b16 %v1695, %v1694
    %v1706 = vpack.c.b16 %v1697, %v1696
    %v1707 = vpack.c.b16 %v1699, %v1698
    %v1708 = vpack.c.b16 %v1701, %v1700
    %v1709 = vpack.c.b16 %v1703, %v1702
    %v1711 = vsel %vm960, %v1704, 0
    %v1714 = vsel %vm960, %v1705, 0
    %v1717 = vsel %vm960, %v1706, 0
    %v1720 = vsel %vm960, %v1707, 0
    %v1723 = vsel %vm960, %v1708, 0
    %v1726 = vsel %vm960, %v1709, 0
    %v1729 = vsel %vm979, %v767, 0
    %1731 = vmatprep.subr.bf16.mxu0 0
    %1732 = vmatpush1.bf16.msra.mxu0 0
    %1733 = vmatprep.subr.bf16.mxu0 0
    %1734 = vmatpush1.bf16.msra.mxu0 %v1729
    %1735 = vmatprep.subr.bf16.mxu0 0
    %1736 = vmatpush1.bf16.msra.mxu0 %v766
    %1737 = vmatprep.subr.bf16.mxu0 0
    %1738 = vmatpush1.bf16.msra.mxu0 %v765
    %1739 = vmatprep.subr.bf16.mxu0 0
    %1740 = vmatpush1.bf16.msra.mxu0 %v764
    %1741 = vmatprep.subr.bf16.mxu0 0
    %1742 = vmatpush1.bf16.msra.mxu0 %v763
    %1743 = vmatprep.subr.bf16.mxu0 0
    %1744 = vmatpush1.bf16.msra.mxu0 %v762
    %1745 = vmatprep.subr.bf16.mxu0 0
    %1746 = vmatpush1.bf16.msra.mxu0 %v761
    %1747 = vmatprep.subr.bf16.mxu0 0
    %1748 = vmatpush2.bf16.msra.mxu0 0
    %1749 = vmatprep.subr.bf16.mxu0 0
    %1750 = vmatpush2.bf16.msra.mxu0 0
    %1751 = vmatprep.subr.bf16.mxu0 0
    %1752 = vmatpush2.bf16.msra.mxu0 0
    %1753 = vmatprep.subr.bf16.mxu0 0
    %1754 = vmatpush2.bf16.msra.mxu0 0
    %1755 = vmatprep.subr.bf16.mxu0 0
    %1756 = vmatpush2.bf16.msra.mxu0 0
    %1757 = vmatprep.subr.bf16.mxu0 0
    %1758 = vmatpush2.bf16.msra.mxu0 0
    %1759 = vmatprep.subr.bf16.mxu0 0
    %1760 = vmatpush2.bf16.msra.mxu0 0
    %1761 = vmatprep.subr.bf16.mxu0 0
    %1762 = vmatpush2.bf16.msra.mxu0 0
    %1763 = vmatprep.mubr.bf16.mxu0 0
    %1764 = vmatmul.mubr.bf16.gmra.mxu0 %v1711
    %v1765 = vpop.f32.mrf.mxu0
    %v1766 = vadd.f32 0.0, %v1765
    %v1767 = vpop.f32.mrf.mxu0
    %v1768 = vpop.f32.mrf.mxu0
    %v1769 = vadd.f32 0.0, %v1768
    %v1770 = vpop.f32.mrf.mxu0
    %1771 = vmatprep.mubr.bf16.mxu0 0
    %1772 = vmatmul.mubr.bf16.gmra.mxu0 %v1714
    %v1773 = vpop.f32.mrf.mxu0
    %v1774 = vadd.f32 0.0, %v1773
    %v1775 = vpop.f32.mrf.mxu0
    %v1776 = vpop.f32.mrf.mxu0
    %v1777 = vadd.f32 0.0, %v1776
    %v1778 = vpop.f32.mrf.mxu0
    %1779 = vmatprep.mubr.bf16.mxu0 0
    %1780 = vmatmul.mubr.bf16.gmra.mxu0 %v1717
    %v1781 = vpop.f32.mrf.mxu0
    %v1782 = vadd.f32 0.0, %v1781
    %v1783 = vpop.f32.mrf.mxu0
    %v1784 = vpop.f32.mrf.mxu0
    %v1785 = vadd.f32 0.0, %v1784
    %v1786 = vpop.f32.mrf.mxu0
    %1787 = vmatprep.mubr.bf16.mxu0 0
    %1788 = vmatmul.mubr.bf16.gmra.mxu0 %v1720
    %v1789 = vpop.f32.mrf.mxu0
    %v1790 = vadd.f32 0.0, %v1789
    %v1791 = vpop.f32.mrf.mxu0
    %v1792 = vpop.f32.mrf.mxu0
    %v1793 = vadd.f32 0.0, %v1792
    %v1794 = vpop.f32.mrf.mxu0
    %1795 = vmatprep.mubr.bf16.mxu0 0
    %1796 = vmatmul.mubr.bf16.gmra.mxu0 %v1723
    %v1797 = vpop.f32.mrf.mxu0
    %v1798 = vadd.f32 0.0, %v1797
    %v1799 = vpop.f32.mrf.mxu0
    %v1800 = vpop.f32.mrf.mxu0
    %v1801 = vadd.f32 0.0, %v1800
    %v1802 = vpop.f32.mrf.mxu0
    %1803 = vmatprep.mubr.bf16.mxu0 0
    %1804 = vmatmul.mubr.bf16.gmra.mxu0 %v1726
    %v1805 = vpop.f32.mrf.mxu0
    %v1806 = vadd.f32 0.0, %v1805
    %v1807 = vpop.f32.mrf.mxu0
    %v1808 = vpop.f32.mrf.mxu0
    %v1809 = vadd.f32 0.0, %v1808
    %v1810 = vpop.f32.mrf.mxu0
    %1811 = vdwg.mxu0
    %v1812 = vadd.f32 %v1655, %v1766
    %v1813 = vadd.f32 %v1656, %v1769
    %v1814 = vadd.f32 %v1657, %v1774
    %v1815 = vadd.f32 %v1658, %v1777
    %v1816 = vadd.f32 %v1659, %v1782
    %v1817 = vadd.f32 %v1660, %v1785
    %v1818 = vadd.f32 %v1661, %v1790
    %v1819 = vadd.f32 %v1662, %v1793
    %v1820 = vadd.f32 %v1663, %v1798
    %v1821 = vadd.f32 %v1664, %v1801
    %v1822 = vadd.f32 %v1665, %v1806
    %v1823 = vadd.f32 %v1666, %v1809
    %s1824 = scalar_lea.vmem [#allocation2], 288
    %v1825 = vld [vmem:[%s1824] sm:$0xf]
    %v1826 = vld [vmem:[%s1824 + $0x4] sm:$0xf]
    %v1827 = vld [vmem:[%s1824 + $0x8] sm:$0xf]
    %v1828 = vld [vmem:[%s1824 + $0xc] sm:$0xf]
    %v1829 = vld [vmem:[%s1824 + $0x10] sm:$0xf]
    %v1830 = vld [vmem:[%s1824 + $0x14] sm:$0xf]
    %v1831 = vld [vmem:[%s1824 + $0x18] sm:$0xf]
    %v1832 = vld [vmem:[%s1824 + $0x1c] sm:$0xf]
    %v1833 = vld [vmem:[%s1824 + $0x20] sm:$0xf]
    %v1834 = vld [vmem:[%s1824 + $0x24] sm:$0xf]
    %v1835 = vld [vmem:[%s1824 + $0x28] sm:$0xf]
    %v1836 = vld [vmem:[%s1824 + $0x2c] sm:$0xf]
    %v1849 = vunpack.c.l.b16 %v1825
    %v1850 = vunpack.c.l.b16 %v1826
    %v1851 = vunpack.c.l.b16 %v1827
    %v1852 = vunpack.c.l.b16 %v1828
    %v1853 = vunpack.c.l.b16 %v1829
    %v1854 = vunpack.c.l.b16 %v1830
    %v1855 = vunpack.c.l.b16 %v1831
    %v1856 = vunpack.c.l.b16 %v1832
    %v1857 = vunpack.c.l.b16 %v1833
    %v1858 = vunpack.c.l.b16 %v1834
    %v1859 = vunpack.c.l.b16 %v1835
    %v1860 = vunpack.c.l.b16 %v1836
    %v1861 = vpack.c.b16 %v1850, %v1849
    %v1862 = vpack.c.b16 %v1852, %v1851
    %v1863 = vpack.c.b16 %v1854, %v1853
    %v1864 = vpack.c.b16 %v1856, %v1855
    %v1865 = vpack.c.b16 %v1858, %v1857
    %v1866 = vpack.c.b16 %v1860, %v1859
    %v1868 = vsel %vm960, %v1861, 0
    %v1871 = vsel %vm960, %v1862, 0
    %v1874 = vsel %vm960, %v1863, 0
    %v1877 = vsel %vm960, %v1864, 0
    %v1880 = vsel %vm960, %v1865, 0
    %v1883 = vsel %vm960, %v1866, 0
    %v1886 = vsel %vm979, %v800, 0
    %1888 = vmatprep.subr.bf16.mxu0 0
    %1889 = vmatpush1.bf16.msra.mxu0 0
    %1890 = vmatprep.subr.bf16.mxu0 0
    %1891 = vmatpush1.bf16.msra.mxu0 %v1886
    %1892 = vmatprep.subr.bf16.mxu0 0
    %1893 = vmatpush1.bf16.msra.mxu0 %v799
    %1894 = vmatprep.subr.bf16.mxu0 0
    %1895 = vmatpush1.bf16.msra.mxu0 %v798
    %1896 = vmatprep.subr.bf16.mxu0 0
    %1897 = vmatpush1.bf16.msra.mxu0 %v797
    %1898 = vmatprep.subr.bf16.mxu0 0
    %1899 = vmatpush1.bf16.msra.mxu0 %v796
    %1900 = vmatprep.subr.bf16.mxu0 0
    %1901 = vmatpush1.bf16.msra.mxu0 %v795
    %1902 = vmatprep.subr.bf16.mxu0 0
    %1903 = vmatpush1.bf16.msra.mxu0 %v794
    %1904 = vmatprep.subr.bf16.mxu0 0
    %1905 = vmatpush2.bf16.msra.mxu0 0
    %1906 = vmatprep.subr.bf16.mxu0 0
    %1907 = vmatpush2.bf16.msra.mxu0 0
    %1908 = vmatprep.subr.bf16.mxu0 0
    %1909 = vmatpush2.bf16.msra.mxu0 0
    %1910 = vmatprep.subr.bf16.mxu0 0
    %1911 = vmatpush2.bf16.msra.mxu0 0
    %1912 = vmatprep.subr.bf16.mxu0 0
    %1913 = vmatpush2.bf16.msra.mxu0 0
    %1914 = vmatprep.subr.bf16.mxu0 0
    %1915 = vmatpush2.bf16.msra.mxu0 0
    %1916 = vmatprep.subr.bf16.mxu0 0
    %1917 = vmatpush2.bf16.msra.mxu0 0
    %1918 = vmatprep.subr.bf16.mxu0 0
    %1919 = vmatpush2.bf16.msra.mxu0 0
    %1920 = vmatprep.mubr.bf16.mxu0 0
    %1921 = vmatmul.mubr.bf16.gmra.mxu0 %v1868
    %v1922 = vpop.f32.mrf.mxu0
    %v1923 = vadd.f32 0.0, %v1922
    %v1924 = vpop.f32.mrf.mxu0
    %v1925 = vpop.f32.mrf.mxu0
    %v1926 = vadd.f32 0.0, %v1925
    %v1927 = vpop.f32.mrf.mxu0
    %1928 = vmatprep.mubr.bf16.mxu0 0
    %1929 = vmatmul.mubr.bf16.gmra.mxu0 %v1871
    %v1930 = vpop.f32.mrf.mxu0
    %v1931 = vadd.f32 0.0, %v1930
    %v1932 = vpop.f32.mrf.mxu0
    %v1933 = vpop.f32.mrf.mxu0
    %v1934 = vadd.f32 0.0, %v1933
    %v1935 = vpop.f32.mrf.mxu0
    %1936 = vmatprep.mubr.bf16.mxu0 0
    %1937 = vmatmul.mubr.bf16.gmra.mxu0 %v1874
    %v1938 = vpop.f32.mrf.mxu0
    %v1939 = vadd.f32 0.0, %v1938
    %v1940 = vpop.f32.mrf.mxu0
    %v1941 = vpop.f32.mrf.mxu0
    %v1942 = vadd.f32 0.0, %v1941
    %v1943 = vpop.f32.mrf.mxu0
    %1944 = vmatprep.mubr.bf16.mxu0 0
    %1945 = vmatmul.mubr.bf16.gmra.mxu0 %v1877
    %v1946 = vpop.f32.mrf.mxu0
    %v1947 = vadd.f32 0.0, %v1946
    %v1948 = vpop.f32.mrf.mxu0
    %v1949 = vpop.f32.mrf.mxu0
    %v1950 = vadd.f32 0.0, %v1949
    %v1951 = vpop.f32.mrf.mxu0
    %1952 = vmatprep.mubr.bf16.mxu0 0
    %1953 = vmatmul.mubr.bf16.gmra.mxu0 %v1880
    %v1954 = vpop.f32.mrf.mxu0
    %v1955 = vadd.f32 0.0, %v1954
    %v1956 = vpop.f32.mrf.mxu0
    %v1957 = vpop.f32.mrf.mxu0
    %v1958 = vadd.f32 0.0, %v1957
    %v1959 = vpop.f32.mrf.mxu0
    %1960 = vmatprep.mubr.bf16.mxu0 0
    %1961 = vmatmul.mubr.bf16.gmra.mxu0 %v1883
    %v1962 = vpop.f32.mrf.mxu0
    %v1963 = vadd.f32 0.0, %v1962
    %v1964 = vpop.f32.mrf.mxu0
    %v1965 = vpop.f32.mrf.mxu0
    %v1966 = vadd.f32 0.0, %v1965
    %v1967 = vpop.f32.mrf.mxu0
    %1968 = vdwg.mxu0
    %v1969 = vadd.f32 %v1812, %v1923
    %v1970 = vadd.f32 %v1813, %v1926
    %v1971 = vadd.f32 %v1814, %v1931
    %v1972 = vadd.f32 %v1815, %v1934
    %v1973 = vadd.f32 %v1816, %v1939
    %v1974 = vadd.f32 %v1817, %v1942
    %v1975 = vadd.f32 %v1818, %v1947
    %v1976 = vadd.f32 %v1819, %v1950
    %v1977 = vadd.f32 %v1820, %v1955
    %v1978 = vadd.f32 %v1821, %v1958
    %v1979 = vadd.f32 %v1822, %v1963
    %v1980 = vadd.f32 %v1823, %v1966
    %s1981 = scalar_lea.vmem [#allocation2], 336
    %v1982 = vld [vmem:[%s1981] sm:$0xf]
    %v1983 = vld [vmem:[%s1981 + $0x4] sm:$0xf]
    %v1984 = vld [vmem:[%s1981 + $0x8] sm:$0xf]
    %v1985 = vld [vmem:[%s1981 + $0xc] sm:$0xf]
    %v1986 = vld [vmem:[%s1981 + $0x10] sm:$0xf]
    %v1987 = vld [vmem:[%s1981 + $0x14] sm:$0xf]
    %v1988 = vld [vmem:[%s1981 + $0x18] sm:$0xf]
    %v1989 = vld [vmem:[%s1981 + $0x1c] sm:$0xf]
    %v1990 = vld [vmem:[%s1981 + $0x20] sm:$0xf]
    %v1991 = vld [vmem:[%s1981 + $0x24] sm:$0xf]
    %v1992 = vld [vmem:[%s1981 + $0x28] sm:$0xf]
    %v1993 = vld [vmem:[%s1981 + $0x2c] sm:$0xf]
    %v2006 = vunpack.c.l.b16 %v1982
    %v2007 = vunpack.c.l.b16 %v1983
    %v2008 = vunpack.c.l.b16 %v1984
    %v2009 = vunpack.c.l.b16 %v1985
    %v2010 = vunpack.c.l.b16 %v1986
    %v2011 = vunpack.c.l.b16 %v1987
    %v2012 = vunpack.c.l.b16 %v1988
    %v2013 = vunpack.c.l.b16 %v1989
    %v2014 = vunpack.c.l.b16 %v1990
    %v2015 = vunpack.c.l.b16 %v1991
    %v2016 = vunpack.c.l.b16 %v1992
    %v2017 = vunpack.c.l.b16 %v1993
    %v2018 = vpack.c.b16 %v2007, %v2006
    %v2019 = vpack.c.b16 %v2009, %v2008
    %v2020 = vpack.c.b16 %v2011, %v2010
    %v2021 = vpack.c.b16 %v2013, %v2012
    %v2022 = vpack.c.b16 %v2015, %v2014
    %v2023 = vpack.c.b16 %v2017, %v2016
    %v2025 = vsel %vm960, %v2018, 0
    %v2028 = vsel %vm960, %v2019, 0
    %v2031 = vsel %vm960, %v2020, 0
    %v2034 = vsel %vm960, %v2021, 0
    %v2037 = vsel %vm960, %v2022, 0
    %v2040 = vsel %vm960, %v2023, 0
    %v2043 = vsel %vm979, %v833, 0
    %2045 = vmatprep.subr.bf16.mxu0 0
    %2046 = vmatpush1.bf16.msra.mxu0 0
    %2047 = vmatprep.subr.bf16.mxu0 0
    %2048 = vmatpush1.bf16.msra.mxu0 %v2043
    %2049 = vmatprep.subr.bf16.mxu0 0
    %2050 = vmatpush1.bf16.msra.mxu0 %v832
    %2051 = vmatprep.subr.bf16.mxu0 0
    %2052 = vmatpush1.bf16.msra.mxu0 %v831
    %2053 = vmatprep.subr.bf16.mxu0 0
    %2054 = vmatpush1.bf16.msra.mxu0 %v830
    %2055 = vmatprep.subr.bf16.mxu0 0
    %2056 = vmatpush1.bf16.msra.mxu0 %v829
    %2057 = vmatprep.subr.bf16.mxu0 0
    %2058 = vmatpush1.bf16.msra.mxu0 %v828
    %2059 = vmatprep.subr.bf16.mxu0 0
    %2060 = vmatpush1.bf16.msra.mxu0 %v827
    %2061 = vmatprep.subr.bf16.mxu0 0
    %2062 = vmatpush2.bf16.msra.mxu0 0
    %2063 = vmatprep.subr.bf16.mxu0 0
    %2064 = vmatpush2.bf16.msra.mxu0 0
    %2065 = vmatprep.subr.bf16.mxu0 0
    %2066 = vmatpush2.bf16.msra.mxu0 0
    %2067 = vmatprep.subr.bf16.mxu0 0
    %2068 = vmatpush2.bf16.msra.mxu0 0
    %2069 = vmatprep.subr.bf16.mxu0 0
    %2070 = vmatpush2.bf16.msra.mxu0 0
    %2071 = vmatprep.subr.bf16.mxu0 0
    %2072 = vmatpush2.bf16.msra.mxu0 0
    %2073 = vmatprep.subr.bf16.mxu0 0
    %2074 = vmatpush2.bf16.msra.mxu0 0
    %2075 = vmatprep.subr.bf16.mxu0 0
    %2076 = vmatpush2.bf16.msra.mxu0 0
    %2077 = vmatprep.mubr.bf16.mxu0 0
    %2078 = vmatmul.mubr.bf16.gmra.mxu0 %v2025
    %v2079 = vpop.f32.mrf.mxu0
    %v2080 = vadd.f32 0.0, %v2079
    %v2081 = vpop.f32.mrf.mxu0
    %v2082 = vpop.f32.mrf.mxu0
    %v2083 = vadd.f32 0.0, %v2082
    %v2084 = vpop.f32.mrf.mxu0
    %2085 = vmatprep.mubr.bf16.mxu0 0
    %2086 = vmatmul.mubr.bf16.gmra.mxu0 %v2028
    %v2087 = vpop.f32.mrf.mxu0
    %v2088 = vadd.f32 0.0, %v2087
    %v2089 = vpop.f32.mrf.mxu0
    %v2090 = vpop.f32.mrf.mxu0
    %v2091 = vadd.f32 0.0, %v2090
    %v2092 = vpop.f32.mrf.mxu0
    %2093 = vmatprep.mubr.bf16.mxu0 0
    %2094 = vmatmul.mubr.bf16.gmra.mxu0 %v2031
    %v2095 = vpop.f32.mrf.mxu0
    %v2096 = vadd.f32 0.0, %v2095
    %v2097 = vpop.f32.mrf.mxu0
    %v2098 = vpop.f32.mrf.mxu0
    %v2099 = vadd.f32 0.0, %v2098
    %v2100 = vpop.f32.mrf.mxu0
    %2101 = vmatprep.mubr.bf16.mxu0 0
    %2102 = vmatmul.mubr.bf16.gmra.mxu0 %v2034
    %v2103 = vpop.f32.mrf.mxu0
    %v2104 = vadd.f32 0.0, %v2103
    %v2105 = vpop.f32.mrf.mxu0
    %v2106 = vpop.f32.mrf.mxu0
    %v2107 = vadd.f32 0.0, %v2106
    %v2108 = vpop.f32.mrf.mxu0
    %2109 = vmatprep.mubr.bf16.mxu0 0
    %2110 = vmatmul.mubr.bf16.gmra.mxu0 %v2037
    %v2111 = vpop.f32.mrf.mxu0
    %v2112 = vadd.f32 0.0, %v2111
    %v2113 = vpop.f32.mrf.mxu0
    %v2114 = vpop.f32.mrf.mxu0
    %v2115 = vadd.f32 0.0, %v2114
    %v2116 = vpop.f32.mrf.mxu0
    %2117 = vmatprep.mubr.bf16.mxu0 0
    %2118 = vmatmul.mubr.bf16.gmra.mxu0 %v2040
    %v2119 = vpop.f32.mrf.mxu0
    %v2120 = vadd.f32 0.0, %v2119
    %v2121 = vpop.f32.mrf.mxu0
    %v2122 = vpop.f32.mrf.mxu0
    %v2123 = vadd.f32 0.0, %v2122
    %v2124 = vpop.f32.mrf.mxu0
    %2125 = vdwg.mxu0
    %v2126 = vadd.f32 %v1969, %v2080
    %v2127 = vadd.f32 %v1970, %v2083
    %v2128 = vadd.f32 %v1971, %v2088
    %v2129 = vadd.f32 %v1972, %v2091
    %v2130 = vadd.f32 %v1973, %v2096
    %v2131 = vadd.f32 %v1974, %v2099
    %v2132 = vadd.f32 %v1975, %v2104
    %v2133 = vadd.f32 %v1976, %v2107
    %v2134 = vadd.f32 %v1977, %v2112
    %v2135 = vadd.f32 %v1978, %v2115
    %v2136 = vadd.f32 %v1979, %v2120
    %v2137 = vadd.f32 %v1980, %v2123
    %s2138 = scalar_lea.vmem [#allocation2], 384
    %v2139 = vld [vmem:[%s2138] sm:$0xf]
    %v2140 = vld [vmem:[%s2138 + $0x4] sm:$0xf]
    %v2141 = vld [vmem:[%s2138 + $0x8] sm:$0xf]
    %v2142 = vld [vmem:[%s2138 + $0xc] sm:$0xf]
    %v2143 = vld [vmem:[%s2138 + $0x10] sm:$0xf]
    %v2144 = vld [vmem:[%s2138 + $0x14] sm:$0xf]
    %v2145 = vld [vmem:[%s2138 + $0x18] sm:$0xf]
    %v2146 = vld [vmem:[%s2138 + $0x1c] sm:$0xf]
    %v2147 = vld [vmem:[%s2138 + $0x20] sm:$0xf]
    %v2148 = vld [vmem:[%s2138 + $0x24] sm:$0xf]
    %v2149 = vld [vmem:[%s2138 + $0x28] sm:$0xf]
    %v2150 = vld [vmem:[%s2138 + $0x2c] sm:$0xf]
    %v2163 = vunpack.c.l.b16 %v2139
    %v2164 = vunpack.c.l.b16 %v2140
    %v2165 = vunpack.c.l.b16 %v2141
    %v2166 = vunpack.c.l.b16 %v2142
    %v2167 = vunpack.c.l.b16 %v2143
    %v2168 = vunpack.c.l.b16 %v2144
    %v2169 = vunpack.c.l.b16 %v2145
    %v2170 = vunpack.c.l.b16 %v2146
    %v2171 = vunpack.c.l.b16 %v2147
    %v2172 = vunpack.c.l.b16 %v2148
    %v2173 = vunpack.c.l.b16 %v2149
    %v2174 = vunpack.c.l.b16 %v2150
    %v2175 = vpack.c.b16 %v2164, %v2163
    %v2176 = vpack.c.b16 %v2166, %v2165
    %v2177 = vpack.c.b16 %v2168, %v2167
    %v2178 = vpack.c.b16 %v2170, %v2169
    %v2179 = vpack.c.b16 %v2172, %v2171
    %v2180 = vpack.c.b16 %v2174, %v2173
    %v2182 = vsel %vm960, %v2175, 0
    %v2185 = vsel %vm960, %v2176, 0
    %v2188 = vsel %vm960, %v2177, 0
    %v2191 = vsel %vm960, %v2178, 0
    %v2194 = vsel %vm960, %v2179, 0
    %v2197 = vsel %vm960, %v2180, 0
    %v2200 = vsel %vm979, %v866, 0
    %2202 = vmatprep.subr.bf16.mxu0 0
    %2203 = vmatpush1.bf16.msra.mxu0 0
    %2204 = vmatprep.subr.bf16.mxu0 0
    %2205 = vmatpush1.bf16.msra.mxu0 %v2200
    %2206 = vmatprep.subr.bf16.mxu0 0
    %2207 = vmatpush1.bf16.msra.mxu0 %v865
    %2208 = vmatprep.subr.bf16.mxu0 0
    %2209 = vmatpush1.bf16.msra.mxu0 %v864
    %2210 = vmatprep.subr.bf16.mxu0 0
    %2211 = vmatpush1.bf16.msra.mxu0 %v863
    %2212 = vmatprep.subr.bf16.mxu0 0
    %2213 = vmatpush1.bf16.msra.mxu0 %v862
    %2214 = vmatprep.subr.bf16.mxu0 0
    %2215 = vmatpush1.bf16.msra.mxu0 %v861
    %2216 = vmatprep.subr.bf16.mxu0 0
    %2217 = vmatpush1.bf16.msra.mxu0 %v860
    %2218 = vmatprep.subr.bf16.mxu0 0
    %2219 = vmatpush2.bf16.msra.mxu0 0
    %2220 = vmatprep.subr.bf16.mxu0 0
    %2221 = vmatpush2.bf16.msra.mxu0 0
    %2222 = vmatprep.subr.bf16.mxu0 0
    %2223 = vmatpush2.bf16.msra.mxu0 0
    %2224 = vmatprep.subr.bf16.mxu0 0
    %2225 = vmatpush2.bf16.msra.mxu0 0
    %2226 = vmatprep.subr.bf16.mxu0 0
    %2227 = vmatpush2.bf16.msra.mxu0 0
    %2228 = vmatprep.subr.bf16.mxu0 0
    %2229 = vmatpush2.bf16.msra.mxu0 0
    %2230 = vmatprep.subr.bf16.mxu0 0
    %2231 = vmatpush2.bf16.msra.mxu0 0
    %2232 = vmatprep.subr.bf16.mxu0 0
    %2233 = vmatpush2.bf16.msra.mxu0 0
    %2234 = vmatprep.mubr.bf16.mxu0 0
    %2235 = vmatmul.mubr.bf16.gmra.mxu0 %v2182
    %v2236 = vpop.f32.mrf.mxu0
    %v2237 = vadd.f32 0.0, %v2236
    %v2238 = vpop.f32.mrf.mxu0
    %v2239 = vpop.f32.mrf.mxu0
    %v2240 = vadd.f32 0.0, %v2239
    %v2241 = vpop.f32.mrf.mxu0
    %2242 = vmatprep.mubr.bf16.mxu0 0
    %2243 = vmatmul.mubr.bf16.gmra.mxu0 %v2185
    %v2244 = vpop.f32.mrf.mxu0
    %v2245 = vadd.f32 0.0, %v2244
    %v2246 = vpop.f32.mrf.mxu0
    %v2247 = vpop.f32.mrf.mxu0
    %v2248 = vadd.f32 0.0, %v2247
    %v2249 = vpop.f32.mrf.mxu0
    %2250 = vmatprep.mubr.bf16.mxu0 0
    %2251 = vmatmul.mubr.bf16.gmra.mxu0 %v2188
    %v2252 = vpop.f32.mrf.mxu0
    %v2253 = vadd.f32 0.0, %v2252
    %v2254 = vpop.f32.mrf.mxu0
    %v2255 = vpop.f32.mrf.mxu0
    %v2256 = vadd.f32 0.0, %v2255
    %v2257 = vpop.f32.mrf.mxu0
    %2258 = vmatprep.mubr.bf16.mxu0 0
    %2259 = vmatmul.mubr.bf16.gmra.mxu0 %v2191
    %v2260 = vpop.f32.mrf.mxu0
    %v2261 = vadd.f32 0.0, %v2260
    %v2262 = vpop.f32.mrf.mxu0
    %v2263 = vpop.f32.mrf.mxu0
    %v2264 = vadd.f32 0.0, %v2263
    %v2265 = vpop.f32.mrf.mxu0
    %2266 = vmatprep.mubr.bf16.mxu0 0
    %2267 = vmatmul.mubr.bf16.gmra.mxu0 %v2194
    %v2268 = vpop.f32.mrf.mxu0
    %v2269 = vadd.f32 0.0, %v2268
    %v2270 = vpop.f32.mrf.mxu0
    %v2271 = vpop.f32.mrf.mxu0
    %v2272 = vadd.f32 0.0, %v2271
    %v2273 = vpop.f32.mrf.mxu0
    %2274 = vmatprep.mubr.bf16.mxu0 0
    %2275 = vmatmul.mubr.bf16.gmra.mxu0 %v2197
    %v2276 = vpop.f32.mrf.mxu0
    %v2277 = vadd.f32 0.0, %v2276
    %v2278 = vpop.f32.mrf.mxu0
    %v2279 = vpop.f32.mrf.mxu0
    %v2280 = vadd.f32 0.0, %v2279
    %v2281 = vpop.f32.mrf.mxu0
    %2282 = vdwg.mxu0
    %v2283 = vadd.f32 %v2126, %v2237
    %v2284 = vadd.f32 %v2127, %v2240
    %v2285 = vadd.f32 %v2128, %v2245
    %v2286 = vadd.f32 %v2129, %v2248
    %v2287 = vadd.f32 %v2130, %v2253
    %v2288 = vadd.f32 %v2131, %v2256
    %v2289 = vadd.f32 %v2132, %v2261
    %v2290 = vadd.f32 %v2133, %v2264
    %v2291 = vadd.f32 %v2134, %v2269
    %v2292 = vadd.f32 %v2135, %v2272
    %v2293 = vadd.f32 %v2136, %v2277
    %v2294 = vadd.f32 %v2137, %v2280
    %s2295 = scalar_lea.vmem [#allocation2], 432
    %v2296 = vld [vmem:[%s2295] sm:$0xf]
    %v2297 = vld [vmem:[%s2295 + $0x4] sm:$0xf]
    %v2298 = vld [vmem:[%s2295 + $0x8] sm:$0xf]
    %v2299 = vld [vmem:[%s2295 + $0xc] sm:$0xf]
    %v2300 = vld [vmem:[%s2295 + $0x10] sm:$0xf]
    %v2301 = vld [vmem:[%s2295 + $0x14] sm:$0xf]
    %v2302 = vld [vmem:[%s2295 + $0x18] sm:$0xf]
    %v2303 = vld [vmem:[%s2295 + $0x1c] sm:$0xf]
    %v2304 = vld [vmem:[%s2295 + $0x20] sm:$0xf]
    %v2305 = vld [vmem:[%s2295 + $0x24] sm:$0xf]
    %v2306 = vld [vmem:[%s2295 + $0x28] sm:$0xf]
    %v2307 = vld [vmem:[%s2295 + $0x2c] sm:$0xf]
    %v2320 = vunpack.c.l.b16 %v2296
    %v2321 = vunpack.c.l.b16 %v2297
    %v2322 = vunpack.c.l.b16 %v2298
    %v2323 = vunpack.c.l.b16 %v2299
    %v2324 = vunpack.c.l.b16 %v2300
    %v2325 = vunpack.c.l.b16 %v2301
    %v2326 = vunpack.c.l.b16 %v2302
    %v2327 = vunpack.c.l.b16 %v2303
    %v2328 = vunpack.c.l.b16 %v2304
    %v2329 = vunpack.c.l.b16 %v2305
    %v2330 = vunpack.c.l.b16 %v2306
    %v2331 = vunpack.c.l.b16 %v2307
    %v2332 = vpack.c.b16 %v2321, %v2320
    %v2333 = vpack.c.b16 %v2323, %v2322
    %v2334 = vpack.c.b16 %v2325, %v2324
    %v2335 = vpack.c.b16 %v2327, %v2326
    %v2336 = vpack.c.b16 %v2329, %v2328
    %v2337 = vpack.c.b16 %v2331, %v2330
    %v2339 = vsel %vm960, %v2332, 0
    %v2342 = vsel %vm960, %v2333, 0
    %v2345 = vsel %vm960, %v2334, 0
    %v2348 = vsel %vm960, %v2335, 0
    %v2351 = vsel %vm960, %v2336, 0
    %v2354 = vsel %vm960, %v2337, 0
    %v2357 = vsel %vm979, %v899, 0
    %2359 = vmatprep.subr.bf16.mxu0 0
    %2360 = vmatpush1.bf16.msra.mxu0 0
    %2361 = vmatprep.subr.bf16.mxu0 0
    %2362 = vmatpush1.bf16.msra.mxu0 %v2357
    %2363 = vmatprep.subr.bf16.mxu0 0
    %2364 = vmatpush1.bf16.msra.mxu0 %v898
    %2365 = vmatprep.subr.bf16.mxu0 0
    %2366 = vmatpush1.bf16.msra.mxu0 %v897
    %2367 = vmatprep.subr.bf16.mxu0 0
    %2368 = vmatpush1.bf16.msra.mxu0 %v896
    %2369 = vmatprep.subr.bf16.mxu0 0
    %2370 = vmatpush1.bf16.msra.mxu0 %v895
    %2371 = vmatprep.subr.bf16.mxu0 0
    %2372 = vmatpush1.bf16.msra.mxu0 %v894
    %2373 = vmatprep.subr.bf16.mxu0 0
    %2374 = vmatpush1.bf16.msra.mxu0 %v893
    %2375 = vmatprep.subr.bf16.mxu0 0
    %2376 = vmatpush2.bf16.msra.mxu0 0
    %2377 = vmatprep.subr.bf16.mxu0 0
    %2378 = vmatpush2.bf16.msra.mxu0 0
    %2379 = vmatprep.subr.bf16.mxu0 0
    %2380 = vmatpush2.bf16.msra.mxu0 0
    %2381 = vmatprep.subr.bf16.mxu0 0
    %2382 = vmatpush2.bf16.msra.mxu0 0
    %2383 = vmatprep.subr.bf16.mxu0 0
    %2384 = vmatpush2.bf16.msra.mxu0 0
    %2385 = vmatprep.subr.bf16.mxu0 0
    %2386 = vmatpush2.bf16.msra.mxu0 0
    %2387 = vmatprep.subr.bf16.mxu0 0
    %2388 = vmatpush2.bf16.msra.mxu0 0
    %2389 = vmatprep.subr.bf16.mxu0 0
    %2390 = vmatpush2.bf16.msra.mxu0 0
    %2391 = vmatprep.mubr.bf16.mxu0 0
    %2392 = vmatmul.mubr.bf16.gmra.mxu0 %v2339
    %v2393 = vpop.f32.mrf.mxu0
    %v2394 = vadd.f32 0.0, %v2393
    %v2395 = vpop.f32.mrf.mxu0
    %v2396 = vpop.f32.mrf.mxu0
    %v2397 = vadd.f32 0.0, %v2396
    %v2398 = vpop.f32.mrf.mxu0
    %2399 = vmatprep.mubr.bf16.mxu0 0
    %2400 = vmatmul.mubr.bf16.gmra.mxu0 %v2342
    %v2401 = vpop.f32.mrf.mxu0
    %v2402 = vadd.f32 0.0, %v2401
    %v2403 = vpop.f32.mrf.mxu0
    %v2404 = vpop.f32.mrf.mxu0
    %v2405 = vadd.f32 0.0, %v2404
    %v2406 = vpop.f32.mrf.mxu0
    %2407 = vmatprep.mubr.bf16.mxu0 0
    %2408 = vmatmul.mubr.bf16.gmra.mxu0 %v2345
    %v2409 = vpop.f32.mrf.mxu0
    %v2410 = vadd.f32 0.0, %v2409
    %v2411 = vpop.f32.mrf.mxu0
    %v2412 = vpop.f32.mrf.mxu0
    %v2413 = vadd.f32 0.0, %v2412
    %v2414 = vpop.f32.mrf.mxu0
    %2415 = vmatprep.mubr.bf16.mxu0 0
    %2416 = vmatmul.mubr.bf16.gmra.mxu0 %v2348
    %v2417 = vpop.f32.mrf.mxu0
    %v2418 = vadd.f32 0.0, %v2417
    %v2419 = vpop.f32.mrf.mxu0
    %v2420 = vpop.f32.mrf.mxu0
    %v2421 = vadd.f32 0.0, %v2420
    %v2422 = vpop.f32.mrf.mxu0
    %2423 = vmatprep.mubr.bf16.mxu0 0
    %2424 = vmatmul.mubr.bf16.gmra.mxu0 %v2351
    %v2425 = vpop.f32.mrf.mxu0
    %v2426 = vadd.f32 0.0, %v2425
    %v2427 = vpop.f32.mrf.mxu0
    %v2428 = vpop.f32.mrf.mxu0
    %v2429 = vadd.f32 0.0, %v2428
    %v2430 = vpop.f32.mrf.mxu0
    %2431 = vmatprep.mubr.bf16.mxu0 0
    %2432 = vmatmul.mubr.bf16.gmra.mxu0 %v2354
    %v2433 = vpop.f32.mrf.mxu0
    %v2434 = vadd.f32 0.0, %v2433
    %v2435 = vpop.f32.mrf.mxu0
    %v2436 = vpop.f32.mrf.mxu0
    %v2437 = vadd.f32 0.0, %v2436
    %v2438 = vpop.f32.mrf.mxu0
    %2439 = vdwg.mxu0
    %v2440 = vadd.f32 %v2283, %v2394
    %v2441 = vadd.f32 %v2284, %v2397
    %v2442 = vadd.f32 %v2285, %v2402
    %v2443 = vadd.f32 %v2286, %v2405
    %v2444 = vadd.f32 %v2287, %v2410
    %v2445 = vadd.f32 %v2288, %v2413
    %v2446 = vadd.f32 %v2289, %v2418
    %v2447 = vadd.f32 %v2290, %v2421
    %v2448 = vadd.f32 %v2291, %v2426
    %v2449 = vadd.f32 %v2292, %v2429
    %v2450 = vadd.f32 %v2293, %v2434
    %v2451 = vadd.f32 %v2294, %v2437
    %v2452 = vstv %s36
    %v2453 = vadd.f32 %v2440, %v2452
    %v2454 = vadd.f32 %v2441, %v2452
    %v2455 = vadd.f32 %v2442, %v2452
    %v2456 = vadd.f32 %v2443, %v2452
    %v2457 = vadd.f32 %v2444, %v2452
    %v2458 = vadd.f32 %v2445, %v2452
    %v2459 = vadd.f32 %v2446, %v2452
    %v2460 = vadd.f32 %v2447, %v2452
    %v2461 = vadd.f32 %v2448, %v2452
    %v2462 = vadd.f32 %v2449, %v2452
    %v2463 = vadd.f32 %v2450, %v2452
    %v2464 = vadd.f32 %v2451, %v2452
    %v2465 = vmax.f32 %v2453, 0.0
    %v2466 = vmax.f32 %v2454, 0.0
    %v2467 = vmax.f32 %v2455, 0.0
    %v2468 = vmax.f32 %v2456, 0.0
    %v2469 = vmax.f32 %v2457, 0.0
    %v2470 = vmax.f32 %v2458, 0.0
    %v2471 = vmax.f32 %v2459, 0.0
    %v2472 = vmax.f32 %v2460, 0.0
    %v2473 = vmax.f32 %v2461, 0.0
    %v2474 = vmax.f32 %v2462, 0.0
    %v2475 = vmax.f32 %v2463, 0.0
    %v2476 = vmax.f32 %v2464, 0.0
    %s2477 = smul.u32 %s900, 11
    %s2478 = smul.u32 %s2477, 1
    %s2479 = sshll.u32 %s2478, 4
    %2480 = dma.done %s203, %s2479
    %v2481 = vpack.c.bf16 %v2466, %v2465
    %v2482 = vpack.c.bf16 %v2468, %v2467
    %v2483 = vpack.c.bf16 %v2470, %v2469
    %v2484 = vpack.c.bf16 %v2472, %v2471
    %v2485 = vpack.c.bf16 %v2474, %v2473
    %v2486 = vpack.c.bf16 %v2476, %v2475
    %v2487 = vld [vmem:[#allocation3] sm:$0xf]
    %v2488 = vld [vmem:[#allocation3 + $0x4] sm:$0xf]
    %v2489 = vld [vmem:[#allocation3 + $0x8] sm:$0xf]
    %v2490 = vld [vmem:[#allocation3 + $0xc] sm:$0xf]
    %v2491 = vld [vmem:[#allocation3 + $0x10] sm:$0xf]
    %v2492 = vld [vmem:[#allocation3 + $0x14] sm:$0xf]
    %v2493 = vld [vmem:[#allocation3 + $0x18] sm:$0xf]
    %v2494 = vld [vmem:[#allocation3 + $0x1c] sm:$0xf]
    %v2495 = vld [vmem:[#allocation3 + $0x20] sm:$0xf]
    %v2496 = vld [vmem:[#allocation3 + $0x24] sm:$0xf]
    %v2497 = vld [vmem:[#allocation3 + $0x28] sm:$0xf]
    %2498 = vrot.lane.b32.xlu0 %v2465, 127
    %v2499 = vpop.permute.xlu0 %2498
    %2500 = vrot.lane.b32.xlu0 %v2466, 127
    %v2501 = vpop.permute.xlu0 %2500
    %2502 = vrot.lane.b32.xlu0 %v2467, 127
    %v2503 = vpop.permute.xlu0 %2502
    %2504 = vrot.lane.b32.xlu0 %v2468, 127
    %v2505 = vpop.permute.xlu0 %2504
    %2506 = vrot.lane.b32.xlu0 %v2469, 127
    %v2507 = vpop.permute.xlu0 %2506
    %2508 = vrot.lane.b32.xlu0 %v2470, 127
    %v2509 = vpop.permute.xlu0 %2508
    %2510 = vrot.lane.b32.xlu0 %v2471, 127
    %v2511 = vpop.permute.xlu0 %2510
    %2512 = vrot.lane.b32.xlu0 %v2472, 127
    %v2513 = vpop.permute.xlu0 %2512
    %2514 = vrot.lane.b32.xlu0 %v2473, 127
    %v2515 = vpop.permute.xlu0 %2514
    %2516 = vrot.lane.b32.xlu0 %v2474, 127
    %v2517 = vpop.permute.xlu0 %2516
    %2518 = vrot.lane.b32.xlu0 %v2475, 127
    %v2519 = vpop.permute.xlu0 %2518
    %2520 = vrot.lane.b32.xlu0 %v2476, 127
    %v2521 = vpop.permute.xlu0 %2520
    %v2522 = vpack.c.bf16 %v2501, %v2499
    %v2523 = vpack.c.bf16 %v2505, %v2503
    %v2524 = vpack.c.bf16 %v2509, %v2507
    %v2525 = vpack.c.bf16 %v2513, %v2511
    %v2526 = vpack.c.bf16 %v2517, %v2515
    %v2527 = vpack.c.bf16 %v2521, %v2519
    %s2528 = scalar_lea.vmem [#allocation3], 44
    %v2529 = vld [vmem:[%s2528] sm:$0xf]
    %v2530 = vld [vmem:[%s2528 + $0x4] sm:$0xf]
    %v2531 = vld [vmem:[%s2528 + $0x8] sm:$0xf]
    %v2532 = vld [vmem:[%s2528 + $0xc] sm:$0xf]
    %v2533 = vld [vmem:[%s2528 + $0x10] sm:$0xf]
    %v2534 = vld [vmem:[%s2528 + $0x14] sm:$0xf]
    %v2535 = vld [vmem:[%s2528 + $0x18] sm:$0xf]
    %v2536 = vld [vmem:[%s2528 + $0x1c] sm:$0xf]
    %v2537 = vld [vmem:[%s2528 + $0x20] sm:$0xf]
    %v2538 = vld [vmem:[%s2528 + $0x24] sm:$0xf]
    %v2539 = vld [vmem:[%s2528 + $0x28] sm:$0xf]
    %v2551 = vunpack.c.l.b16 %v2529
    %v2552 = vunpack.c.l.b16 %v2530
    %v2553 = vunpack.c.l.b16 %v2531
    %v2554 = vunpack.c.l.b16 %v2532
    %v2555 = vunpack.c.l.b16 %v2533
    %v2556 = vunpack.c.l.b16 %v2534
    %v2557 = vunpack.c.l.b16 %v2535
    %v2558 = vunpack.c.l.b16 %v2536
    %v2559 = vunpack.c.l.b16 %v2537
    %v2560 = vunpack.c.l.b16 %v2538
    %v2561 = vunpack.c.l.b16 %v2539
    %v2562 = vpack.c.b16 %v2552, %v2551
    %v2563 = vpack.c.b16 %v2554, %v2553
    %v2564 = vpack.c.b16 %v2556, %v2555
    %v2565 = vpack.c.b16 %v2558, %v2557
    %v2566 = vpack.c.b16 %v2560, %v2559
    %v2567 = vpack.c.b16 %v2561, %v2561
    %vm2568 = vcmask 785408
    %v2570 = vsel %vm2568, %v2562, 0
    %v2573 = vsel %vm2568, %v2563, 0
    %v2576 = vsel %vm2568, %v2564, 0
    %v2579 = vsel %vm2568, %v2565, 0
    %v2582 = vsel %vm2568, %v2566, 0
    %v2585 = vsel %vm2568, %v2567, 0
    %2587 = vmatprep.subr.bf16.mxu0 0
    %2588 = vmatpush1.bf16.msra.mxu0 0
    %2589 = vmatprep.subr.bf16.mxu0 0
    %2590 = vmatpush1.bf16.msra.mxu0 0
    %2591 = vmatprep.subr.bf16.mxu0 0
    %2592 = vmatpush1.bf16.msra.mxu0 %v2527
    %2593 = vmatprep.subr.bf16.mxu0 0
    %2594 = vmatpush1.bf16.msra.mxu0 %v2526
    %2595 = vmatprep.subr.bf16.mxu0 0
    %2596 = vmatpush1.bf16.msra.mxu0 %v2525
    %2597 = vmatprep.subr.bf16.mxu0 0
    %2598 = vmatpush1.bf16.msra.mxu0 %v2524
    %2599 = vmatprep.subr.bf16.mxu0 0
    %2600 = vmatpush1.bf16.msra.mxu0 %v2523
    %2601 = vmatprep.subr.bf16.mxu0 0
    %2602 = vmatpush1.bf16.msra.mxu0 %v2522
    %2603 = vmatprep.subr.bf16.mxu0 0
    %2604 = vmatpush2.bf16.msra.mxu0 0
    %2605 = vmatprep.subr.bf16.mxu0 0
    %2606 = vmatpush2.bf16.msra.mxu0 0
    %2607 = vmatprep.subr.bf16.mxu0 0
    %2608 = vmatpush2.bf16.msra.mxu0 0
    %2609 = vmatprep.subr.bf16.mxu0 0
    %2610 = vmatpush2.bf16.msra.mxu0 0
    %2611 = vmatprep.subr.bf16.mxu0 0
    %2612 = vmatpush2.bf16.msra.mxu0 0
    %2613 = vmatprep.subr.bf16.mxu0 0
    %2614 = vmatpush2.bf16.msra.mxu0 0
    %2615 = vmatprep.subr.bf16.mxu0 0
    %2616 = vmatpush2.bf16.msra.mxu0 0
    %2617 = vmatprep.subr.bf16.mxu0 0
    %2618 = vmatpush2.bf16.msra.mxu0 0
    %2619 = vmatprep.mubr.bf16.mxu0 0
    %2620 = vmatmul.mubr.bf16.gmra.mxu0 %v2570
    %v2621 = vpop.f32.mrf.mxu0
    %v2622 = vadd.f32 0.0, %v2621
    %v2623 = vpop.f32.mrf.mxu0
    %v2624 = vpop.f32.mrf.mxu0
    %v2625 = vadd.f32 0.0, %v2624
    %v2626 = vpop.f32.mrf.mxu0
    %2627 = vmatprep.mubr.bf16.mxu0 0
    %2628 = vmatmul.mubr.bf16.gmra.mxu0 %v2573
    %v2629 = vpop.f32.mrf.mxu0
    %v2630 = vadd.f32 0.0, %v2629
    %v2631 = vpop.f32.mrf.mxu0
    %v2632 = vpop.f32.mrf.mxu0
    %v2633 = vadd.f32 0.0, %v2632
    %v2634 = vpop.f32.mrf.mxu0
    %2635 = vmatprep.mubr.bf16.mxu0 0
    %2636 = vmatmul.mubr.bf16.gmra.mxu0 %v2576
    %v2637 = vpop.f32.mrf.mxu0
    %v2638 = vadd.f32 0.0, %v2637
    %v2639 = vpop.f32.mrf.mxu0
    %v2640 = vpop.f32.mrf.mxu0
    %v2641 = vadd.f32 0.0, %v2640
    %v2642 = vpop.f32.mrf.mxu0
    %2643 = vmatprep.mubr.bf16.mxu0 0
    %2644 = vmatmul.mubr.bf16.gmra.mxu0 %v2579
    %v2645 = vpop.f32.mrf.mxu0
    %v2646 = vadd.f32 0.0, %v2645
    %v2647 = vpop.f32.mrf.mxu0
    %v2648 = vpop.f32.mrf.mxu0
    %v2649 = vadd.f32 0.0, %v2648
    %v2650 = vpop.f32.mrf.mxu0
    %2651 = vmatprep.mubr.bf16.mxu0 0
    %2652 = vmatmul.mubr.bf16.gmra.mxu0 %v2582
    %v2653 = vpop.f32.mrf.mxu0
    %v2654 = vadd.f32 0.0, %v2653
    %v2655 = vpop.f32.mrf.mxu0
    %v2656 = vpop.f32.mrf.mxu0
    %v2657 = vadd.f32 0.0, %v2656
    %v2658 = vpop.f32.mrf.mxu0
    %2659 = vmatprep.mubr.bf16.mxu0 0
    %2660 = vmatmul.mubr.bf16.gmra.mxu0 %v2585
    %v2661 = vpop.f32.mrf.mxu0
    %v2662 = vadd.f32 0.0, %v2661
    %v2663 = vpop.f32.mrf.mxu0
    %v2664 = vpop.f32.mrf.mxu0
    %v2665 = vpop.f32.mrf.mxu0
    %2666 = vdwg.mxu0
    %v2678 = vunpack.c.l.b16 %v2487
    %v2679 = vunpack.c.l.b16 %v2488
    %v2680 = vunpack.c.l.b16 %v2489
    %v2681 = vunpack.c.l.b16 %v2490
    %v2682 = vunpack.c.l.b16 %v2491
    %v2683 = vunpack.c.l.b16 %v2492
    %v2684 = vunpack.c.l.b16 %v2493
    %v2685 = vunpack.c.l.b16 %v2494
    %v2686 = vunpack.c.l.b16 %v2495
    %v2687 = vunpack.c.l.b16 %v2496
    %v2688 = vunpack.c.l.b16 %v2497
    %v2689 = vpack.c.b16 %v2679, %v2678
    %v2690 = vpack.c.b16 %v2681, %v2680
    %v2691 = vpack.c.b16 %v2683, %v2682
    %v2692 = vpack.c.b16 %v2685, %v2684
    %v2693 = vpack.c.b16 %v2687, %v2686
    %v2694 = vpack.c.b16 %v2688, %v2688
    %v2696 = vsel %vm2568, %v2689, 0
    %v2699 = vsel %vm2568, %v2690, 0
    %v2702 = vsel %vm2568, %v2691, 0
    %v2705 = vsel %vm2568, %v2692, 0
    %v2708 = vsel %vm2568, %v2693, 0
    %v2711 = vsel %vm2568, %v2694, 0
    %2713 = vmatprep.subr.bf16.mxu0 0
    %2714 = vmatpush1.bf16.msra.mxu0 0
    %2715 = vmatprep.subr.bf16.mxu0 0
    %2716 = vmatpush1.bf16.msra.mxu0 0
    %2717 = vmatprep.subr.bf16.mxu0 0
    %2718 = vmatpush1.bf16.msra.mxu0 %v2486
    %2719 = vmatprep.subr.bf16.mxu0 0
    %2720 = vmatpush1.bf16.msra.mxu0 %v2485
    %2721 = vmatprep.subr.bf16.mxu0 0
    %2722 = vmatpush1.bf16.msra.mxu0 %v2484
    %2723 = vmatprep.subr.bf16.mxu0 0
    %2724 = vmatpush1.bf16.msra.mxu0 %v2483
    %2725 = vmatprep.subr.bf16.mxu0 0
    %2726 = vmatpush1.bf16.msra.mxu0 %v2482
    %2727 = vmatprep.subr.bf16.mxu0 0
    %2728 = vmatpush1.bf16.msra.mxu0 %v2481
    %2729 = vmatprep.subr.bf16.mxu0 0
    %2730 = vmatpush2.bf16.msra.mxu0 0
    %2731 = vmatprep.subr.bf16.mxu0 0
    %2732 = vmatpush2.bf16.msra.mxu0 0
    %2733 = vmatprep.subr.bf16.mxu0 0
    %2734 = vmatpush2.bf16.msra.mxu0 0
    %2735 = vmatprep.subr.bf16.mxu0 0
    %2736 = vmatpush2.bf16.msra.mxu0 0
    %2737 = vmatprep.subr.bf16.mxu0 0
    %2738 = vmatpush2.bf16.msra.mxu0 0
    %2739 = vmatprep.subr.bf16.mxu0 0
    %2740 = vmatpush2.bf16.msra.mxu0 0
    %2741 = vmatprep.subr.bf16.mxu0 0
    %2742 = vmatpush2.bf16.msra.mxu0 0
    %2743 = vmatprep.subr.bf16.mxu0 0
    %2744 = vmatpush2.bf16.msra.mxu0 0
    %2745 = vmatprep.mubr.bf16.mxu0 0
    %2746 = vmatmul.mubr.bf16.gmra.mxu0 %v2696
    %v2747 = vpop.f32.mrf.mxu0
    %v2748 = vadd.f32 %v2622, %v2747
    %v2749 = vpop.f32.mrf.mxu0
    %v2750 = vpop.f32.mrf.mxu0
    %v2751 = vadd.f32 %v2625, %v2750
    %v2752 = vpop.f32.mrf.mxu0
    %2753 = vmatprep.mubr.bf16.mxu0 0
    %2754 = vmatmul.mubr.bf16.gmra.mxu0 %v2699
    %v2755 = vpop.f32.mrf.mxu0
    %v2756 = vadd.f32 %v2630, %v2755
    %v2757 = vpop.f32.mrf.mxu0
    %v2758 = vpop.f32.mrf.mxu0
    %v2759 = vadd.f32 %v2633, %v2758
    %v2760 = vpop.f32.mrf.mxu0
    %2761 = vmatprep.mubr.bf16.mxu0 0
    %2762 = vmatmul.mubr.bf16.gmra.mxu0 %v2702
    %v2763 = vpop.f32.mrf.mxu0
    %v2764 = vadd.f32 %v2638, %v2763
    %v2765 = vpop.f32.mrf.mxu0
    %v2766 = vpop.f32.mrf.mxu0
    %v2767 = vadd.f32 %v2641, %v2766
    %v2768 = vpop.f32.mrf.mxu0
    %2769 = vmatprep.mubr.bf16.mxu0 0
    %2770 = vmatmul.mubr.bf16.gmra.mxu0 %v2705
    %v2771 = vpop.f32.mrf.mxu0
    %v2772 = vadd.f32 %v2646, %v2771
    %v2773 = vpop.f32.mrf.mxu0
    %v2774 = vpop.f32.mrf.mxu0
    %v2775 = vadd.f32 %v2649, %v2774
    %v2776 = vpop.f32.mrf.mxu0
    %2777 = vmatprep.mubr.bf16.mxu0 0
    %2778 = vmatmul.mubr.bf16.gmra.mxu0 %v2708
    %v2779 = vpop.f32.mrf.mxu0
    %v2780 = vadd.f32 %v2654, %v2779
    %v2781 = vpop.f32.mrf.mxu0
    %v2782 = vpop.f32.mrf.mxu0
    %v2783 = vadd.f32 %v2657, %v2782
    %v2784 = vpop.f32.mrf.mxu0
    %2785 = vmatprep.mubr.bf16.mxu0 0
    %2786 = vmatmul.mubr.bf16.gmra.mxu0 %v2711
    %v2787 = vpop.f32.mrf.mxu0
    %v2788 = vadd.f32 %v2662, %v2787
    %v2789 = vpop.f32.mrf.mxu0
    %v2790 = vpop.f32.mrf.mxu0
    %v2791 = vpop.f32.mrf.mxu0
    %2792 = vdwg.mxu0
    %2793 = vrot.lane.b32.xlu0 %v2465, 126
    %v2794 = vpop.permute.xlu0 %2793
    %2795 = vrot.lane.b32.xlu0 %v2466, 126
    %v2796 = vpop.permute.xlu0 %2795
    %2797 = vrot.lane.b32.xlu0 %v2467, 126
    %v2798 = vpop.permute.xlu0 %2797
    %2799 = vrot.lane.b32.xlu0 %v2468, 126
    %v2800 = vpop.permute.xlu0 %2799
    %2801 = vrot.lane.b32.xlu0 %v2469, 126
    %v2802 = vpop.permute.xlu0 %2801
    %2803 = vrot.lane.b32.xlu0 %v2470, 126
    %v2804 = vpop.permute.xlu0 %2803
    %2805 = vrot.lane.b32.xlu0 %v2471, 126
    %v2806 = vpop.permute.xlu0 %2805
    %2807 = vrot.lane.b32.xlu0 %v2472, 126
    %v2808 = vpop.permute.xlu0 %2807
    %2809 = vrot.lane.b32.xlu0 %v2473, 126
    %v2810 = vpop.permute.xlu0 %2809
    %2811 = vrot.lane.b32.xlu0 %v2474, 126
    %v2812 = vpop.permute.xlu0 %2811
    %2813 = vrot.lane.b32.xlu0 %v2475, 126
    %v2814 = vpop.permute.xlu0 %2813
    %2815 = vrot.lane.b32.xlu0 %v2476, 126
    %v2816 = vpop.permute.xlu0 %2815
    %v2817 = vpack.c.bf16 %v2796, %v2794
    %v2818 = vpack.c.bf16 %v2800, %v2798
    %v2819 = vpack.c.bf16 %v2804, %v2802
    %v2820 = vpack.c.bf16 %v2808, %v2806
    %v2821 = vpack.c.bf16 %v2812, %v2810
    %v2822 = vpack.c.bf16 %v2816, %v2814
    %s2823 = scalar_lea.vmem [#allocation3], 88
    %v2824 = vld [vmem:[%s2823] sm:$0xf]
    %v2825 = vld [vmem:[%s2823 + $0x4] sm:$0xf]
    %v2826 = vld [vmem:[%s2823 + $0x8] sm:$0xf]
    %v2827 = vld [vmem:[%s2823 + $0xc] sm:$0xf]
    %v2828 = vld [vmem:[%s2823 + $0x10] sm:$0xf]
    %v2829 = vld [vmem:[%s2823 + $0x14] sm:$0xf]
    %v2830 = vld [vmem:[%s2823 + $0x18] sm:$0xf]
    %v2831 = vld [vmem:[%s2823 + $0x1c] sm:$0xf]
    %v2832 = vld [vmem:[%s2823 + $0x20] sm:$0xf]
    %v2833 = vld [vmem:[%s2823 + $0x24] sm:$0xf]
    %v2834 = vld [vmem:[%s2823 + $0x28] sm:$0xf]
    %v2846 = vunpack.c.l.b16 %v2824
    %v2847 = vunpack.c.l.b16 %v2825
    %v2848 = vunpack.c.l.b16 %v2826
    %v2849 = vunpack.c.l.b16 %v2827
    %v2850 = vunpack.c.l.b16 %v2828
    %v2851 = vunpack.c.l.b16 %v2829
    %v2852 = vunpack.c.l.b16 %v2830
    %v2853 = vunpack.c.l.b16 %v2831
    %v2854 = vunpack.c.l.b16 %v2832
    %v2855 = vunpack.c.l.b16 %v2833
    %v2856 = vunpack.c.l.b16 %v2834
    %v2857 = vpack.c.b16 %v2847, %v2846
    %v2858 = vpack.c.b16 %v2849, %v2848
    %v2859 = vpack.c.b16 %v2851, %v2850
    %v2860 = vpack.c.b16 %v2853, %v2852
    %v2861 = vpack.c.b16 %v2855, %v2854
    %v2862 = vpack.c.b16 %v2856, %v2856
    %v2864 = vsel %vm2568, %v2857, 0
    %v2867 = vsel %vm2568, %v2858, 0
    %v2870 = vsel %vm2568, %v2859, 0
    %v2873 = vsel %vm2568, %v2860, 0
    %v2876 = vsel %vm2568, %v2861, 0
    %v2879 = vsel %vm2568, %v2862, 0
    %2881 = vmatprep.subr.bf16.mxu0 0
    %2882 = vmatpush1.bf16.msra.mxu0 0
    %2883 = vmatprep.subr.bf16.mxu0 0
    %2884 = vmatpush1.bf16.msra.mxu0 0
    %2885 = vmatprep.subr.bf16.mxu0 0
    %2886 = vmatpush1.bf16.msra.mxu0 %v2822
    %2887 = vmatprep.subr.bf16.mxu0 0
    %2888 = vmatpush1.bf16.msra.mxu0 %v2821
    %2889 = vmatprep.subr.bf16.mxu0 0
    %2890 = vmatpush1.bf16.msra.mxu0 %v2820
    %2891 = vmatprep.subr.bf16.mxu0 0
    %2892 = vmatpush1.bf16.msra.mxu0 %v2819
    %2893 = vmatprep.subr.bf16.mxu0 0
    %2894 = vmatpush1.bf16.msra.mxu0 %v2818
    %2895 = vmatprep.subr.bf16.mxu0 0
    %2896 = vmatpush1.bf16.msra.mxu0 %v2817
    %2897 = vmatprep.subr.bf16.mxu0 0
    %2898 = vmatpush2.bf16.msra.mxu0 0
    %2899 = vmatprep.subr.bf16.mxu0 0
    %2900 = vmatpush2.bf16.msra.mxu0 0
    %2901 = vmatprep.subr.bf16.mxu0 0
    %2902 = vmatpush2.bf16.msra.mxu0 0
    %2903 = vmatprep.subr.bf16.mxu0 0
    %2904 = vmatpush2.bf16.msra.mxu0 0
    %2905 = vmatprep.subr.bf16.mxu0 0
    %2906 = vmatpush2.bf16.msra.mxu0 0
    %2907 = vmatprep.subr.bf16.mxu0 0
    %2908 = vmatpush2.bf16.msra.mxu0 0
    %2909 = vmatprep.subr.bf16.mxu0 0
    %2910 = vmatpush2.bf16.msra.mxu0 0
    %2911 = vmatprep.subr.bf16.mxu0 0
    %2912 = vmatpush2.bf16.msra.mxu0 0
    %2913 = vmatprep.mubr.bf16.mxu0 0
    %2914 = vmatmul.mubr.bf16.gmra.mxu0 %v2864
    %v2915 = vpop.f32.mrf.mxu0
    %v2916 = vadd.f32 0.0, %v2915
    %v2917 = vpop.f32.mrf.mxu0
    %v2918 = vpop.f32.mrf.mxu0
    %v2919 = vadd.f32 0.0, %v2918
    %v2920 = vpop.f32.mrf.mxu0
    %2921 = vmatprep.mubr.bf16.mxu0 0
    %2922 = vmatmul.mubr.bf16.gmra.mxu0 %v2867
    %v2923 = vpop.f32.mrf.mxu0
    %v2924 = vadd.f32 0.0, %v2923
    %v2925 = vpop.f32.mrf.mxu0
    %v2926 = vpop.f32.mrf.mxu0
    %v2927 = vadd.f32 0.0, %v2926
    %v2928 = vpop.f32.mrf.mxu0
    %2929 = vmatprep.mubr.bf16.mxu0 0
    %2930 = vmatmul.mubr.bf16.gmra.mxu0 %v2870
    %v2931 = vpop.f32.mrf.mxu0
    %v2932 = vadd.f32 0.0, %v2931
    %v2933 = vpop.f32.mrf.mxu0
    %v2934 = vpop.f32.mrf.mxu0
    %v2935 = vadd.f32 0.0, %v2934
    %v2936 = vpop.f32.mrf.mxu0
    %2937 = vmatprep.mubr.bf16.mxu0 0
    %2938 = vmatmul.mubr.bf16.gmra.mxu0 %v2873
    %v2939 = vpop.f32.mrf.mxu0
    %v2940 = vadd.f32 0.0, %v2939
    %v2941 = vpop.f32.mrf.mxu0
    %v2942 = vpop.f32.mrf.mxu0
    %v2943 = vadd.f32 0.0, %v2942
    %v2944 = vpop.f32.mrf.mxu0
    %2945 = vmatprep.mubr.bf16.mxu0 0
    %2946 = vmatmul.mubr.bf16.gmra.mxu0 %v2876
    %v2947 = vpop.f32.mrf.mxu0
    %v2948 = vadd.f32 0.0, %v2947
    %v2949 = vpop.f32.mrf.mxu0
    %v2950 = vpop.f32.mrf.mxu0
    %v2951 = vadd.f32 0.0, %v2950
    %v2952 = vpop.f32.mrf.mxu0
    %2953 = vmatprep.mubr.bf16.mxu0 0
    %2954 = vmatmul.mubr.bf16.gmra.mxu0 %v2879
    %v2955 = vpop.f32.mrf.mxu0
    %v2956 = vadd.f32 0.0, %v2955
    %v2957 = vpop.f32.mrf.mxu0
    %v2958 = vpop.f32.mrf.mxu0
    %v2959 = vpop.f32.mrf.mxu0
    %2960 = vdwg.mxu0
    %v2961 = vadd.f32 %v2748, %v2916
    %v2962 = vadd.f32 %v2751, %v2919
    %v2963 = vadd.f32 %v2756, %v2924
    %v2964 = vadd.f32 %v2759, %v2927
    %v2965 = vadd.f32 %v2764, %v2932
    %v2966 = vadd.f32 %v2767, %v2935
    %v2967 = vadd.f32 %v2772, %v2940
    %v2968 = vadd.f32 %v2775, %v2943
    %v2969 = vadd.f32 %v2780, %v2948
    %v2970 = vadd.f32 %v2783, %v2951
    %v2971 = vadd.f32 %v2788, %v2956
    %2972 = vrot.lane.b32.xlu0 %v2465, 125
    %v2973 = vpop.permute.xlu0 %2972
    %2974 = vrot.lane.b32.xlu0 %v2466, 125
    %v2975 = vpop.permute.xlu0 %2974
    %2976 = vrot.lane.b32.xlu0 %v2467, 125
    %v2977 = vpop.permute.xlu0 %2976
    %2978 = vrot.lane.b32.xlu0 %v2468, 125
    %v2979 = vpop.permute.xlu0 %2978
    %2980 = vrot.lane.b32.xlu0 %v2469, 125
    %v2981 = vpop.permute.xlu0 %2980
    %2982 = vrot.lane.b32.xlu0 %v2470, 125
    %v2983 = vpop.permute.xlu0 %2982
    %2984 = vrot.lane.b32.xlu0 %v2471, 125
    %v2985 = vpop.permute.xlu0 %2984
    %2986 = vrot.lane.b32.xlu0 %v2472, 125
    %v2987 = vpop.permute.xlu0 %2986
    %2988 = vrot.lane.b32.xlu0 %v2473, 125
    %v2989 = vpop.permute.xlu0 %2988
    %2990 = vrot.lane.b32.xlu0 %v2474, 125
    %v2991 = vpop.permute.xlu0 %2990
    %2992 = vrot.lane.b32.xlu0 %v2475, 125
    %v2993 = vpop.permute.xlu0 %2992
    %2994 = vrot.lane.b32.xlu0 %v2476, 125
    %v2995 = vpop.permute.xlu0 %2994
    %v2996 = vpack.c.bf16 %v2975, %v2973
    %v2997 = vpack.c.bf16 %v2979, %v2977
    %v2998 = vpack.c.bf16 %v2983, %v2981
    %v2999 = vpack.c.bf16 %v2987, %v2985
    %v3000 = vpack.c.bf16 %v2991, %v2989
    %v3001 = vpack.c.bf16 %v2995, %v2993
    %s3002 = scalar_lea.vmem [#allocation3], 132
    %v3003 = vld [vmem:[%s3002] sm:$0xf]
    %v3004 = vld [vmem:[%s3002 + $0x4] sm:$0xf]
    %v3005 = vld [vmem:[%s3002 + $0x8] sm:$0xf]
    %v3006 = vld [vmem:[%s3002 + $0xc] sm:$0xf]
    %v3007 = vld [vmem:[%s3002 + $0x10] sm:$0xf]
    %v3008 = vld [vmem:[%s3002 + $0x14] sm:$0xf]
    %v3009 = vld [vmem:[%s3002 + $0x18] sm:$0xf]
    %v3010 = vld [vmem:[%s3002 + $0x1c] sm:$0xf]
    %v3011 = vld [vmem:[%s3002 + $0x20] sm:$0xf]
    %v3012 = vld [vmem:[%s3002 + $0x24] sm:$0xf]
    %v3013 = vld [vmem:[%s3002 + $0x28] sm:$0xf]
    %v3025 = vunpack.c.l.b16 %v3003
    %v3026 = vunpack.c.l.b16 %v3004
    %v3027 = vunpack.c.l.b16 %v3005
    %v3028 = vunpack.c.l.b16 %v3006
    %v3029 = vunpack.c.l.b16 %v3007
    %v3030 = vunpack.c.l.b16 %v3008
    %v3031 = vunpack.c.l.b16 %v3009
    %v3032 = vunpack.c.l.b16 %v3010
    %v3033 = vunpack.c.l.b16 %v3011
    %v3034 = vunpack.c.l.b16 %v3012
    %v3035 = vunpack.c.l.b16 %v3013
    %v3036 = vpack.c.b16 %v3026, %v3025
    %v3037 = vpack.c.b16 %v3028, %v3027
    %v3038 = vpack.c.b16 %v3030, %v3029
    %v3039 = vpack.c.b16 %v3032, %v3031
    %v3040 = vpack.c.b16 %v3034, %v3033
    %v3041 = vpack.c.b16 %v3035, %v3035
    %v3043 = vsel %vm2568, %v3036, 0
    %v3046 = vsel %vm2568, %v3037, 0
    %v3049 = vsel %vm2568, %v3038, 0
    %v3052 = vsel %vm2568, %v3039, 0
    %v3055 = vsel %vm2568, %v3040, 0
    %v3058 = vsel %vm2568, %v3041, 0
    %3060 = vmatprep.subr.bf16.mxu0 0
    %3061 = vmatpush1.bf16.msra.mxu0 0
    %3062 = vmatprep.subr.bf16.mxu0 0
    %3063 = vmatpush1.bf16.msra.mxu0 0
    %3064 = vmatprep.subr.bf16.mxu0 0
    %3065 = vmatpush1.bf16.msra.mxu0 %v3001
    %3066 = vmatprep.subr.bf16.mxu0 0
    %3067 = vmatpush1.bf16.msra.mxu0 %v3000
    %3068 = vmatprep.subr.bf16.mxu0 0
    %3069 = vmatpush1.bf16.msra.mxu0 %v2999
    %3070 = vmatprep.subr.bf16.mxu0 0
    %3071 = vmatpush1.bf16.msra.mxu0 %v2998
    %3072 = vmatprep.subr.bf16.mxu0 0
    %3073 = vmatpush1.bf16.msra.mxu0 %v2997
    %3074 = vmatprep.subr.bf16.mxu0 0
    %3075 = vmatpush1.bf16.msra.mxu0 %v2996
    %3076 = vmatprep.subr.bf16.mxu0 0
    %3077 = vmatpush2.bf16.msra.mxu0 0
    %3078 = vmatprep.subr.bf16.mxu0 0
    %3079 = vmatpush2.bf16.msra.mxu0 0
    %3080 = vmatprep.subr.bf16.mxu0 0
    %3081 = vmatpush2.bf16.msra.mxu0 0
    %3082 = vmatprep.subr.bf16.mxu0 0
    %3083 = vmatpush2.bf16.msra.mxu0 0
    %3084 = vmatprep.subr.bf16.mxu0 0
    %3085 = vmatpush2.bf16.msra.mxu0 0
    %3086 = vmatprep.subr.bf16.mxu0 0
    %3087 = vmatpush2.bf16.msra.mxu0 0
    %3088 = vmatprep.subr.bf16.mxu0 0
    %3089 = vmatpush2.bf16.msra.mxu0 0
    %3090 = vmatprep.subr.bf16.mxu0 0
    %3091 = vmatpush2.bf16.msra.mxu0 0
    %3092 = vmatprep.mubr.bf16.mxu0 0
    %3093 = vmatmul.mubr.bf16.gmra.mxu0 %v3043
    %v3094 = vpop.f32.mrf.mxu0
    %v3095 = vadd.f32 0.0, %v3094
    %v3096 = vpop.f32.mrf.mxu0
    %v3097 = vpop.f32.mrf.mxu0
    %v3098 = vadd.f32 0.0, %v3097
    %v3099 = vpop.f32.mrf.mxu0
    %3100 = vmatprep.mubr.bf16.mxu0 0
    %3101 = vmatmul.mubr.bf16.gmra.mxu0 %v3046
    %v3102 = vpop.f32.mrf.mxu0
    %v3103 = vadd.f32 0.0, %v3102
    %v3104 = vpop.f32.mrf.mxu0
    %v3105 = vpop.f32.mrf.mxu0
    %v3106 = vadd.f32 0.0, %v3105
    %v3107 = vpop.f32.mrf.mxu0
    %3108 = vmatprep.mubr.bf16.mxu0 0
    %3109 = vmatmul.mubr.bf16.gmra.mxu0 %v3049
    %v3110 = vpop.f32.mrf.mxu0
    %v3111 = vadd.f32 0.0, %v3110
    %v3112 = vpop.f32.mrf.mxu0
    %v3113 = vpop.f32.mrf.mxu0
    %v3114 = vadd.f32 0.0, %v3113
    %v3115 = vpop.f32.mrf.mxu0
    %3116 = vmatprep.mubr.bf16.mxu0 0
    %3117 = vmatmul.mubr.bf16.gmra.mxu0 %v3052
    %v3118 = vpop.f32.mrf.mxu0
    %v3119 = vadd.f32 0.0, %v3118
    %v3120 = vpop.f32.mrf.mxu0
    %v3121 = vpop.f32.mrf.mxu0
    %v3122 = vadd.f32 0.0, %v3121
    %v3123 = vpop.f32.mrf.mxu0
    %3124 = vmatprep.mubr.bf16.mxu0 0
    %3125 = vmatmul.mubr.bf16.gmra.mxu0 %v3055
    %v3126 = vpop.f32.mrf.mxu0
    %v3127 = vadd.f32 0.0, %v3126
    %v3128 = vpop.f32.mrf.mxu0
    %v3129 = vpop.f32.mrf.mxu0
    %v3130 = vadd.f32 0.0, %v3129
    %v3131 = vpop.f32.mrf.mxu0
    %3132 = vmatprep.mubr.bf16.mxu0 0
    %3133 = vmatmul.mubr.bf16.gmra.mxu0 %v3058
    %v3134 = vpop.f32.mrf.mxu0
    %v3135 = vadd.f32 0.0, %v3134
    %v3136 = vpop.f32.mrf.mxu0
    %v3137 = vpop.f32.mrf.mxu0
    %v3138 = vpop.f32.mrf.mxu0
    %3139 = vdwg.mxu0
    %v3140 = vadd.f32 %v2961, %v3095
    %v3141 = vadd.f32 %v2962, %v3098
    %v3142 = vadd.f32 %v2963, %v3103
    %v3143 = vadd.f32 %v2964, %v3106
    %v3144 = vadd.f32 %v2965, %v3111
    %v3145 = vadd.f32 %v2966, %v3114
    %v3146 = vadd.f32 %v2967, %v3119
    %v3147 = vadd.f32 %v2968, %v3122
    %v3148 = vadd.f32 %v2969, %v3127
    %v3149 = vadd.f32 %v2970, %v3130
    %v3150 = vadd.f32 %v2971, %v3135
    %3151 = vrot.lane.b32.xlu0 %v2465, 124
    %v3152 = vpop.permute.xlu0 %3151
    %3153 = vrot.lane.b32.xlu0 %v2466, 124
    %v3154 = vpop.permute.xlu0 %3153
    %3155 = vrot.lane.b32.xlu0 %v2467, 124
    %v3156 = vpop.permute.xlu0 %3155
    %3157 = vrot.lane.b32.xlu0 %v2468, 124
    %v3158 = vpop.permute.xlu0 %3157
    %3159 = vrot.lane.b32.xlu0 %v2469, 124
    %v3160 = vpop.permute.xlu0 %3159
    %3161 = vrot.lane.b32.xlu0 %v2470, 124
    %v3162 = vpop.permute.xlu0 %3161
    %3163 = vrot.lane.b32.xlu0 %v2471, 124
    %v3164 = vpop.permute.xlu0 %3163
    %3165 = vrot.lane.b32.xlu0 %v2472, 124
    %v3166 = vpop.permute.xlu0 %3165
    %3167 = vrot.lane.b32.xlu0 %v2473, 124
    %v3168 = vpop.permute.xlu0 %3167
    %3169 = vrot.lane.b32.xlu0 %v2474, 124
    %v3170 = vpop.permute.xlu0 %3169
    %3171 = vrot.lane.b32.xlu0 %v2475, 124
    %v3172 = vpop.permute.xlu0 %3171
    %3173 = vrot.lane.b32.xlu0 %v2476, 124
    %v3174 = vpop.permute.xlu0 %3173
    %v3175 = vpack.c.bf16 %v3154, %v3152
    %v3176 = vpack.c.bf16 %v3158, %v3156
    %v3177 = vpack.c.bf16 %v3162, %v3160
    %v3178 = vpack.c.bf16 %v3166, %v3164
    %v3179 = vpack.c.bf16 %v3170, %v3168
    %v3180 = vpack.c.bf16 %v3174, %v3172
    %s3181 = scalar_lea.vmem [#allocation3], 176
    %v3182 = vld [vmem:[%s3181] sm:$0xf]
    %v3183 = vld [vmem:[%s3181 + $0x4] sm:$0xf]
    %v3184 = vld [vmem:[%s3181 + $0x8] sm:$0xf]
    %v3185 = vld [vmem:[%s3181 + $0xc] sm:$0xf]
    %v3186 = vld [vmem:[%s3181 + $0x10] sm:$0xf]
    %v3187 = vld [vmem:[%s3181 + $0x14] sm:$0xf]
    %v3188 = vld [vmem:[%s3181 + $0x18] sm:$0xf]
    %v3189 = vld [vmem:[%s3181 + $0x1c] sm:$0xf]
    %v3190 = vld [vmem:[%s3181 + $0x20] sm:$0xf]
    %v3191 = vld [vmem:[%s3181 + $0x24] sm:$0xf]
    %v3192 = vld [vmem:[%s3181 + $0x28] sm:$0xf]
    %v3204 = vunpack.c.l.b16 %v3182
    %v3205 = vunpack.c.l.b16 %v3183
    %v3206 = vunpack.c.l.b16 %v3184
    %v3207 = vunpack.c.l.b16 %v3185
    %v3208 = vunpack.c.l.b16 %v3186
    %v3209 = vunpack.c.l.b16 %v3187
    %v3210 = vunpack.c.l.b16 %v3188
    %v3211 = vunpack.c.l.b16 %v3189
    %v3212 = vunpack.c.l.b16 %v3190
    %v3213 = vunpack.c.l.b16 %v3191
    %v3214 = vunpack.c.l.b16 %v3192
    %v3215 = vpack.c.b16 %v3205, %v3204
    %v3216 = vpack.c.b16 %v3207, %v3206
    %v3217 = vpack.c.b16 %v3209, %v3208
    %v3218 = vpack.c.b16 %v3211, %v3210
    %v3219 = vpack.c.b16 %v3213, %v3212
    %v3220 = vpack.c.b16 %v3214, %v3214
    %v3222 = vsel %vm2568, %v3215, 0
    %v3225 = vsel %vm2568, %v3216, 0
    %v3228 = vsel %vm2568, %v3217, 0
    %v3231 = vsel %vm2568, %v3218, 0
    %v3234 = vsel %vm2568, %v3219, 0
    %v3237 = vsel %vm2568, %v3220, 0
    %3239 = vmatprep.subr.bf16.mxu0 0
    %3240 = vmatpush1.bf16.msra.mxu0 0
    %3241 = vmatprep.subr.bf16.mxu0 0
    %3242 = vmatpush1.bf16.msra.mxu0 0
    %3243 = vmatprep.subr.bf16.mxu0 0
    %3244 = vmatpush1.bf16.msra.mxu0 %v3180
    %3245 = vmatprep.subr.bf16.mxu0 0
    %3246 = vmatpush1.bf16.msra.mxu0 %v3179
    %3247 = vmatprep.subr.bf16.mxu0 0
    %3248 = vmatpush1.bf16.msra.mxu0 %v3178
    %3249 = vmatprep.subr.bf16.mxu0 0
    %3250 = vmatpush1.bf16.msra.mxu0 %v3177
    %3251 = vmatprep.subr.bf16.mxu0 0
    %3252 = vmatpush1.bf16.msra.mxu0 %v3176
    %3253 = vmatprep.subr.bf16.mxu0 0
    %3254 = vmatpush1.bf16.msra.mxu0 %v3175
    %3255 = vmatprep.subr.bf16.mxu0 0
    %3256 = vmatpush2.bf16.msra.mxu0 0
    %3257 = vmatprep.subr.bf16.mxu0 0
    %3258 = vmatpush2.bf16.msra.mxu0 0
    %3259 = vmatprep.subr.bf16.mxu0 0
    %3260 = vmatpush2.bf16.msra.mxu0 0
    %3261 = vmatprep.subr.bf16.mxu0 0
    %3262 = vmatpush2.bf16.msra.mxu0 0
    %3263 = vmatprep.subr.bf16.mxu0 0
    %3264 = vmatpush2.bf16.msra.mxu0 0
    %3265 = vmatprep.subr.bf16.mxu0 0
    %3266 = vmatpush2.bf16.msra.mxu0 0
    %3267 = vmatprep.subr.bf16.mxu0 0
    %3268 = vmatpush2.bf16.msra.mxu0 0
    %3269 = vmatprep.subr.bf16.mxu0 0
    %3270 = vmatpush2.bf16.msra.mxu0 0
    %3271 = vmatprep.mubr.bf16.mxu0 0
    %3272 = vmatmul.mubr.bf16.gmra.mxu0 %v3222
    %v3273 = vpop.f32.mrf.mxu0
    %v3274 = vadd.f32 0.0, %v3273
    %v3275 = vpop.f32.mrf.mxu0
    %v3276 = vpop.f32.mrf.mxu0
    %v3277 = vadd.f32 0.0, %v3276
    %v3278 = vpop.f32.mrf.mxu0
    %3279 = vmatprep.mubr.bf16.mxu0 0
    %3280 = vmatmul.mubr.bf16.gmra.mxu0 %v3225
    %v3281 = vpop.f32.mrf.mxu0
    %v3282 = vadd.f32 0.0, %v3281
    %v3283 = vpop.f32.mrf.mxu0
    %v3284 = vpop.f32.mrf.mxu0
    %v3285 = vadd.f32 0.0, %v3284
    %v3286 = vpop.f32.mrf.mxu0
    %3287 = vmatprep.mubr.bf16.mxu0 0
    %3288 = vmatmul.mubr.bf16.gmra.mxu0 %v3228
    %v3289 = vpop.f32.mrf.mxu0
    %v3290 = vadd.f32 0.0, %v3289
    %v3291 = vpop.f32.mrf.mxu0
    %v3292 = vpop.f32.mrf.mxu0
    %v3293 = vadd.f32 0.0, %v3292
    %v3294 = vpop.f32.mrf.mxu0
    %3295 = vmatprep.mubr.bf16.mxu0 0
    %3296 = vmatmul.mubr.bf16.gmra.mxu0 %v3231
    %v3297 = vpop.f32.mrf.mxu0
    %v3298 = vadd.f32 0.0, %v3297
    %v3299 = vpop.f32.mrf.mxu0
    %v3300 = vpop.f32.mrf.mxu0
    %v3301 = vadd.f32 0.0, %v3300
    %v3302 = vpop.f32.mrf.mxu0
    %3303 = vmatprep.mubr.bf16.mxu0 0
    %3304 = vmatmul.mubr.bf16.gmra.mxu0 %v3234
    %v3305 = vpop.f32.mrf.mxu0
    %v3306 = vadd.f32 0.0, %v3305
    %v3307 = vpop.f32.mrf.mxu0
    %v3308 = vpop.f32.mrf.mxu0
    %v3309 = vadd.f32 0.0, %v3308
    %v3310 = vpop.f32.mrf.mxu0
    %3311 = vmatprep.mubr.bf16.mxu0 0
    %3312 = vmatmul.mubr.bf16.gmra.mxu0 %v3237
    %v3313 = vpop.f32.mrf.mxu0
    %v3314 = vadd.f32 0.0, %v3313
    %v3315 = vpop.f32.mrf.mxu0
    %v3316 = vpop.f32.mrf.mxu0
    %v3317 = vpop.f32.mrf.mxu0
    %3318 = vdwg.mxu0
    %v3319 = vadd.f32 %v3140, %v3274
    %v3320 = vadd.f32 %v3141, %v3277
    %v3321 = vadd.f32 %v3142, %v3282
    %v3322 = vadd.f32 %v3143, %v3285
    %v3323 = vadd.f32 %v3144, %v3290
    %v3324 = vadd.f32 %v3145, %v3293
    %v3325 = vadd.f32 %v3146, %v3298
    %v3326 = vadd.f32 %v3147, %v3301
    %v3327 = vadd.f32 %v3148, %v3306
    %v3328 = vadd.f32 %v3149, %v3309
    %v3329 = vadd.f32 %v3150, %v3314
    %3330 = vrot.lane.b32.xlu0 %v2465, 123
    %v3331 = vpop.permute.xlu0 %3330
    %3332 = vrot.lane.b32.xlu0 %v2466, 123
    %v3333 = vpop.permute.xlu0 %3332
    %3334 = vrot.lane.b32.xlu0 %v2467, 123
    %v3335 = vpop.permute.xlu0 %3334
    %3336 = vrot.lane.b32.xlu0 %v2468, 123
    %v3337 = vpop.permute.xlu0 %3336
    %3338 = vrot.lane.b32.xlu0 %v2469, 123
    %v3339 = vpop.permute.xlu0 %3338
    %3340 = vrot.lane.b32.xlu0 %v2470, 123
    %v3341 = vpop.permute.xlu0 %3340
    %3342 = vrot.lane.b32.xlu0 %v2471, 123
    %v3343 = vpop.permute.xlu0 %3342
    %3344 = vrot.lane.b32.xlu0 %v2472, 123
    %v3345 = vpop.permute.xlu0 %3344
    %3346 = vrot.lane.b32.xlu0 %v2473, 123
    %v3347 = vpop.permute.xlu0 %3346
    %3348 = vrot.lane.b32.xlu0 %v2474, 123
    %v3349 = vpop.permute.xlu0 %3348
    %3350 = vrot.lane.b32.xlu0 %v2475, 123
    %v3351 = vpop.permute.xlu0 %3350
    %3352 = vrot.lane.b32.xlu0 %v2476, 123
    %v3353 = vpop.permute.xlu0 %3352
    %v3354 = vpack.c.bf16 %v3333, %v3331
    %v3355 = vpack.c.bf16 %v3337, %v3335
    %v3356 = vpack.c.bf16 %v3341, %v3339
    %v3357 = vpack.c.bf16 %v3345, %v3343
    %v3358 = vpack.c.bf16 %v3349, %v3347
    %v3359 = vpack.c.bf16 %v3353, %v3351
    %s3360 = scalar_lea.vmem [#allocation3], 220
    %v3361 = vld [vmem:[%s3360] sm:$0xf]
    %v3362 = vld [vmem:[%s3360 + $0x4] sm:$0xf]
    %v3363 = vld [vmem:[%s3360 + $0x8] sm:$0xf]
    %v3364 = vld [vmem:[%s3360 + $0xc] sm:$0xf]
    %v3365 = vld [vmem:[%s3360 + $0x10] sm:$0xf]
    %v3366 = vld [vmem:[%s3360 + $0x14] sm:$0xf]
    %v3367 = vld [vmem:[%s3360 + $0x18] sm:$0xf]
    %v3368 = vld [vmem:[%s3360 + $0x1c] sm:$0xf]
    %v3369 = vld [vmem:[%s3360 + $0x20] sm:$0xf]
    %v3370 = vld [vmem:[%s3360 + $0x24] sm:$0xf]
    %v3371 = vld [vmem:[%s3360 + $0x28] sm:$0xf]
    %v3383 = vunpack.c.l.b16 %v3361
    %v3384 = vunpack.c.l.b16 %v3362
    %v3385 = vunpack.c.l.b16 %v3363
    %v3386 = vunpack.c.l.b16 %v3364
    %v3387 = vunpack.c.l.b16 %v3365
    %v3388 = vunpack.c.l.b16 %v3366
    %v3389 = vunpack.c.l.b16 %v3367
    %v3390 = vunpack.c.l.b16 %v3368
    %v3391 = vunpack.c.l.b16 %v3369
    %v3392 = vunpack.c.l.b16 %v3370
    %v3393 = vunpack.c.l.b16 %v3371
    %v3394 = vpack.c.b16 %v3384, %v3383
    %v3395 = vpack.c.b16 %v3386, %v3385
    %v3396 = vpack.c.b16 %v3388, %v3387
    %v3397 = vpack.c.b16 %v3390, %v3389
    %v3398 = vpack.c.b16 %v3392, %v3391
    %v3399 = vpack.c.b16 %v3393, %v3393
    %v3401 = vsel %vm2568, %v3394, 0
    %v3404 = vsel %vm2568, %v3395, 0
    %v3407 = vsel %vm2568, %v3396, 0
    %v3410 = vsel %vm2568, %v3397, 0
    %v3413 = vsel %vm2568, %v3398, 0
    %v3416 = vsel %vm2568, %v3399, 0
    %3418 = vmatprep.subr.bf16.mxu0 0
    %3419 = vmatpush1.bf16.msra.mxu0 0
    %3420 = vmatprep.subr.bf16.mxu0 0
    %3421 = vmatpush1.bf16.msra.mxu0 0
    %3422 = vmatprep.subr.bf16.mxu0 0
    %3423 = vmatpush1.bf16.msra.mxu0 %v3359
    %3424 = vmatprep.subr.bf16.mxu0 0
    %3425 = vmatpush1.bf16.msra.mxu0 %v3358
    %3426 = vmatprep.subr.bf16.mxu0 0
    %3427 = vmatpush1.bf16.msra.mxu0 %v3357
    %3428 = vmatprep.subr.bf16.mxu0 0
    %3429 = vmatpush1.bf16.msra.mxu0 %v3356
    %3430 = vmatprep.subr.bf16.mxu0 0
    %3431 = vmatpush1.bf16.msra.mxu0 %v3355
    %3432 = vmatprep.subr.bf16.mxu0 0
    %3433 = vmatpush1.bf16.msra.mxu0 %v3354
    %3434 = vmatprep.subr.bf16.mxu0 0
    %3435 = vmatpush2.bf16.msra.mxu0 0
    %3436 = vmatprep.subr.bf16.mxu0 0
    %3437 = vmatpush2.bf16.msra.mxu0 0
    %3438 = vmatprep.subr.bf16.mxu0 0
    %3439 = vmatpush2.bf16.msra.mxu0 0
    %3440 = vmatprep.subr.bf16.mxu0 0
    %3441 = vmatpush2.bf16.msra.mxu0 0
    %3442 = vmatprep.subr.bf16.mxu0 0
    %3443 = vmatpush2.bf16.msra.mxu0 0
    %3444 = vmatprep.subr.bf16.mxu0 0
    %3445 = vmatpush2.bf16.msra.mxu0 0
    %3446 = vmatprep.subr.bf16.mxu0 0
    %3447 = vmatpush2.bf16.msra.mxu0 0
    %3448 = vmatprep.subr.bf16.mxu0 0
    %3449 = vmatpush2.bf16.msra.mxu0 0
    %3450 = vmatprep.mubr.bf16.mxu0 0
    %3451 = vmatmul.mubr.bf16.gmra.mxu0 %v3401
    %v3452 = vpop.f32.mrf.mxu0
    %v3453 = vadd.f32 0.0, %v3452
    %v3454 = vpop.f32.mrf.mxu0
    %v3455 = vpop.f32.mrf.mxu0
    %v3456 = vadd.f32 0.0, %v3455
    %v3457 = vpop.f32.mrf.mxu0
    %3458 = vmatprep.mubr.bf16.mxu0 0
    %3459 = vmatmul.mubr.bf16.gmra.mxu0 %v3404
    %v3460 = vpop.f32.mrf.mxu0
    %v3461 = vadd.f32 0.0, %v3460
    %v3462 = vpop.f32.mrf.mxu0
    %v3463 = vpop.f32.mrf.mxu0
    %v3464 = vadd.f32 0.0, %v3463
    %v3465 = vpop.f32.mrf.mxu0
    %3466 = vmatprep.mubr.bf16.mxu0 0
    %3467 = vmatmul.mubr.bf16.gmra.mxu0 %v3407
    %v3468 = vpop.f32.mrf.mxu0
    %v3469 = vadd.f32 0.0, %v3468
    %v3470 = vpop.f32.mrf.mxu0
    %v3471 = vpop.f32.mrf.mxu0
    %v3472 = vadd.f32 0.0, %v3471
    %v3473 = vpop.f32.mrf.mxu0
    %3474 = vmatprep.mubr.bf16.mxu0 0
    %3475 = vmatmul.mubr.bf16.gmra.mxu0 %v3410
    %v3476 = vpop.f32.mrf.mxu0
    %v3477 = vadd.f32 0.0, %v3476
    %v3478 = vpop.f32.mrf.mxu0
    %v3479 = vpop.f32.mrf.mxu0
    %v3480 = vadd.f32 0.0, %v3479
    %v3481 = vpop.f32.mrf.mxu0
    %3482 = vmatprep.mubr.bf16.mxu0 0
    %3483 = vmatmul.mubr.bf16.gmra.mxu0 %v3413
    %v3484 = vpop.f32.mrf.mxu0
    %v3485 = vadd.f32 0.0, %v3484
    %v3486 = vpop.f32.mrf.mxu0
    %v3487 = vpop.f32.mrf.mxu0
    %v3488 = vadd.f32 0.0, %v3487
    %v3489 = vpop.f32.mrf.mxu0
    %3490 = vmatprep.mubr.bf16.mxu0 0
    %3491 = vmatmul.mubr.bf16.gmra.mxu0 %v3416
    %v3492 = vpop.f32.mrf.mxu0
    %v3493 = vadd.f32 0.0, %v3492
    %v3494 = vpop.f32.mrf.mxu0
    %v3495 = vpop.f32.mrf.mxu0
    %v3496 = vpop.f32.mrf.mxu0
    %3497 = vdwg.mxu0
    %v3498 = vadd.f32 %v3319, %v3453
    %v3499 = vadd.f32 %v3320, %v3456
    %v3500 = vadd.f32 %v3321, %v3461
    %v3501 = vadd.f32 %v3322, %v3464
    %v3502 = vadd.f32 %v3323, %v3469
    %v3503 = vadd.f32 %v3324, %v3472
    %v3504 = vadd.f32 %v3325, %v3477
    %v3505 = vadd.f32 %v3326, %v3480
    %v3506 = vadd.f32 %v3327, %v3485
    %v3507 = vadd.f32 %v3328, %v3488
    %v3508 = vadd.f32 %v3329, %v3493
    %3509 = vrot.lane.b32.xlu0 %v2465, 122
    %v3510 = vpop.permute.xlu0 %3509
    %3511 = vrot.lane.b32.xlu0 %v2466, 122
    %v3512 = vpop.permute.xlu0 %3511
    %3513 = vrot.lane.b32.xlu0 %v2467, 122
    %v3514 = vpop.permute.xlu0 %3513
    %3515 = vrot.lane.b32.xlu0 %v2468, 122
    %v3516 = vpop.permute.xlu0 %3515
    %3517 = vrot.lane.b32.xlu0 %v2469, 122
    %v3518 = vpop.permute.xlu0 %3517
    %3519 = vrot.lane.b32.xlu0 %v2470, 122
    %v3520 = vpop.permute.xlu0 %3519
    %3521 = vrot.lane.b32.xlu0 %v2471, 122
    %v3522 = vpop.permute.xlu0 %3521
    %3523 = vrot.lane.b32.xlu0 %v2472, 122
    %v3524 = vpop.permute.xlu0 %3523
    %3525 = vrot.lane.b32.xlu0 %v2473, 122
    %v3526 = vpop.permute.xlu0 %3525
    %3527 = vrot.lane.b32.xlu0 %v2474, 122
    %v3528 = vpop.permute.xlu0 %3527
    %3529 = vrot.lane.b32.xlu0 %v2475, 122
    %v3530 = vpop.permute.xlu0 %3529
    %3531 = vrot.lane.b32.xlu0 %v2476, 122
    %v3532 = vpop.permute.xlu0 %3531
    %v3533 = vpack.c.bf16 %v3512, %v3510
    %v3534 = vpack.c.bf16 %v3516, %v3514
    %v3535 = vpack.c.bf16 %v3520, %v3518
    %v3536 = vpack.c.bf16 %v3524, %v3522
    %v3537 = vpack.c.bf16 %v3528, %v3526
    %v3538 = vpack.c.bf16 %v3532, %v3530
    %s3539 = scalar_lea.vmem [#allocation3], 264
    %v3540 = vld [vmem:[%s3539] sm:$0xf]
    %v3541 = vld [vmem:[%s3539 + $0x4] sm:$0xf]
    %v3542 = vld [vmem:[%s3539 + $0x8] sm:$0xf]
    %v3543 = vld [vmem:[%s3539 + $0xc] sm:$0xf]
    %v3544 = vld [vmem:[%s3539 + $0x10] sm:$0xf]
    %v3545 = vld [vmem:[%s3539 + $0x14] sm:$0xf]
    %v3546 = vld [vmem:[%s3539 + $0x18] sm:$0xf]
    %v3547 = vld [vmem:[%s3539 + $0x1c] sm:$0xf]
    %v3548 = vld [vmem:[%s3539 + $0x20] sm:$0xf]
    %v3549 = vld [vmem:[%s3539 + $0x24] sm:$0xf]
    %v3550 = vld [vmem:[%s3539 + $0x28] sm:$0xf]
    %v3562 = vunpack.c.l.b16 %v3540
    %v3563 = vunpack.c.l.b16 %v3541
    %v3564 = vunpack.c.l.b16 %v3542
    %v3565 = vunpack.c.l.b16 %v3543
    %v3566 = vunpack.c.l.b16 %v3544
    %v3567 = vunpack.c.l.b16 %v3545
    %v3568 = vunpack.c.l.b16 %v3546
    %v3569 = vunpack.c.l.b16 %v3547
    %v3570 = vunpack.c.l.b16 %v3548
    %v3571 = vunpack.c.l.b16 %v3549
    %v3572 = vunpack.c.l.b16 %v3550
    %v3573 = vpack.c.b16 %v3563, %v3562
    %v3574 = vpack.c.b16 %v3565, %v3564
    %v3575 = vpack.c.b16 %v3567, %v3566
    %v3576 = vpack.c.b16 %v3569, %v3568
    %v3577 = vpack.c.b16 %v3571, %v3570
    %v3578 = vpack.c.b16 %v3572, %v3572
    %v3580 = vsel %vm2568, %v3573, 0
    %v3583 = vsel %vm2568, %v3574, 0
    %v3586 = vsel %vm2568, %v3575, 0
    %v3589 = vsel %vm2568, %v3576, 0
    %v3592 = vsel %vm2568, %v3577, 0
    %v3595 = vsel %vm2568, %v3578, 0
    %3597 = vmatprep.subr.bf16.mxu0 0
    %3598 = vmatpush1.bf16.msra.mxu0 0
    %3599 = vmatprep.subr.bf16.mxu0 0
    %3600 = vmatpush1.bf16.msra.mxu0 0
    %3601 = vmatprep.subr.bf16.mxu0 0
    %3602 = vmatpush1.bf16.msra.mxu0 %v3538
    %3603 = vmatprep.subr.bf16.mxu0 0
    %3604 = vmatpush1.bf16.msra.mxu0 %v3537
    %3605 = vmatprep.subr.bf16.mxu0 0
    %3606 = vmatpush1.bf16.msra.mxu0 %v3536
    %3607 = vmatprep.subr.bf16.mxu0 0
    %3608 = vmatpush1.bf16.msra.mxu0 %v3535
    %3609 = vmatprep.subr.bf16.mxu0 0
    %3610 = vmatpush1.bf16.msra.mxu0 %v3534
    %3611 = vmatprep.subr.bf16.mxu0 0
    %3612 = vmatpush1.bf16.msra.mxu0 %v3533
    %3613 = vmatprep.subr.bf16.mxu0 0
    %3614 = vmatpush2.bf16.msra.mxu0 0
    %3615 = vmatprep.subr.bf16.mxu0 0
    %3616 = vmatpush2.bf16.msra.mxu0 0
    %3617 = vmatprep.subr.bf16.mxu0 0
    %3618 = vmatpush2.bf16.msra.mxu0 0
    %3619 = vmatprep.subr.bf16.mxu0 0
    %3620 = vmatpush2.bf16.msra.mxu0 0
    %3621 = vmatprep.subr.bf16.mxu0 0
    %3622 = vmatpush2.bf16.msra.mxu0 0
    %3623 = vmatprep.subr.bf16.mxu0 0
    %3624 = vmatpush2.bf16.msra.mxu0 0
    %3625 = vmatprep.subr.bf16.mxu0 0
    %3626 = vmatpush2.bf16.msra.mxu0 0
    %3627 = vmatprep.subr.bf16.mxu0 0
    %3628 = vmatpush2.bf16.msra.mxu0 0
    %3629 = vmatprep.mubr.bf16.mxu0 0
    %3630 = vmatmul.mubr.bf16.gmra.mxu0 %v3580
    %v3631 = vpop.f32.mrf.mxu0
    %v3632 = vadd.f32 0.0, %v3631
    %v3633 = vpop.f32.mrf.mxu0
    %v3634 = vpop.f32.mrf.mxu0
    %v3635 = vadd.f32 0.0, %v3634
    %v3636 = vpop.f32.mrf.mxu0
    %3637 = vmatprep.mubr.bf16.mxu0 0
    %3638 = vmatmul.mubr.bf16.gmra.mxu0 %v3583
    %v3639 = vpop.f32.mrf.mxu0
    %v3640 = vadd.f32 0.0, %v3639
    %v3641 = vpop.f32.mrf.mxu0
    %v3642 = vpop.f32.mrf.mxu0
    %v3643 = vadd.f32 0.0, %v3642
    %v3644 = vpop.f32.mrf.mxu0
    %3645 = vmatprep.mubr.bf16.mxu0 0
    %3646 = vmatmul.mubr.bf16.gmra.mxu0 %v3586
    %v3647 = vpop.f32.mrf.mxu0
    %v3648 = vadd.f32 0.0, %v3647
    %v3649 = vpop.f32.mrf.mxu0
    %v3650 = vpop.f32.mrf.mxu0
    %v3651 = vadd.f32 0.0, %v3650
    %v3652 = vpop.f32.mrf.mxu0
    %3653 = vmatprep.mubr.bf16.mxu0 0
    %3654 = vmatmul.mubr.bf16.gmra.mxu0 %v3589
    %v3655 = vpop.f32.mrf.mxu0
    %v3656 = vadd.f32 0.0, %v3655
    %v3657 = vpop.f32.mrf.mxu0
    %v3658 = vpop.f32.mrf.mxu0
    %v3659 = vadd.f32 0.0, %v3658
    %v3660 = vpop.f32.mrf.mxu0
    %3661 = vmatprep.mubr.bf16.mxu0 0
    %3662 = vmatmul.mubr.bf16.gmra.mxu0 %v3592
    %v3663 = vpop.f32.mrf.mxu0
    %v3664 = vadd.f32 0.0, %v3663
    %v3665 = vpop.f32.mrf.mxu0
    %v3666 = vpop.f32.mrf.mxu0
    %v3667 = vadd.f32 0.0, %v3666
    %v3668 = vpop.f32.mrf.mxu0
    %3669 = vmatprep.mubr.bf16.mxu0 0
    %3670 = vmatmul.mubr.bf16.gmra.mxu0 %v3595
    %v3671 = vpop.f32.mrf.mxu0
    %v3672 = vadd.f32 0.0, %v3671
    %v3673 = vpop.f32.mrf.mxu0
    %v3674 = vpop.f32.mrf.mxu0
    %v3675 = vpop.f32.mrf.mxu0
    %3676 = vdwg.mxu0
    %v3677 = vadd.f32 %v3498, %v3632
    %v3678 = vadd.f32 %v3499, %v3635
    %v3679 = vadd.f32 %v3500, %v3640
    %v3680 = vadd.f32 %v3501, %v3643
    %v3681 = vadd.f32 %v3502, %v3648
    %v3682 = vadd.f32 %v3503, %v3651
    %v3683 = vadd.f32 %v3504, %v3656
    %v3684 = vadd.f32 %v3505, %v3659
    %v3685 = vadd.f32 %v3506, %v3664
    %v3686 = vadd.f32 %v3507, %v3667
    %v3687 = vadd.f32 %v3508, %v3672
    %3688 = vrot.lane.b32.xlu0 %v2465, 121
    %v3689 = vpop.permute.xlu0 %3688
    %3690 = vrot.lane.b32.xlu0 %v2466, 121
    %v3691 = vpop.permute.xlu0 %3690
    %3692 = vrot.lane.b32.xlu0 %v2467, 121
    %v3693 = vpop.permute.xlu0 %3692
    %3694 = vrot.lane.b32.xlu0 %v2468, 121
    %v3695 = vpop.permute.xlu0 %3694
    %3696 = vrot.lane.b32.xlu0 %v2469, 121
    %v3697 = vpop.permute.xlu0 %3696
    %3698 = vrot.lane.b32.xlu0 %v2470, 121
    %v3699 = vpop.permute.xlu0 %3698
    %3700 = vrot.lane.b32.xlu0 %v2471, 121
    %v3701 = vpop.permute.xlu0 %3700
    %3702 = vrot.lane.b32.xlu0 %v2472, 121
    %v3703 = vpop.permute.xlu0 %3702
    %3704 = vrot.lane.b32.xlu0 %v2473, 121
    %v3705 = vpop.permute.xlu0 %3704
    %3706 = vrot.lane.b32.xlu0 %v2474, 121
    %v3707 = vpop.permute.xlu0 %3706
    %3708 = vrot.lane.b32.xlu0 %v2475, 121
    %v3709 = vpop.permute.xlu0 %3708
    %3710 = vrot.lane.b32.xlu0 %v2476, 121
    %v3711 = vpop.permute.xlu0 %3710
    %v3712 = vpack.c.bf16 %v3691, %v3689
    %v3713 = vpack.c.bf16 %v3695, %v3693
    %v3714 = vpack.c.bf16 %v3699, %v3697
    %v3715 = vpack.c.bf16 %v3703, %v3701
    %v3716 = vpack.c.bf16 %v3707, %v3705
    %v3717 = vpack.c.bf16 %v3711, %v3709
    %s3718 = scalar_lea.vmem [#allocation3], 308
    %v3719 = vld [vmem:[%s3718] sm:$0xf]
    %v3720 = vld [vmem:[%s3718 + $0x4] sm:$0xf]
    %v3721 = vld [vmem:[%s3718 + $0x8] sm:$0xf]
    %v3722 = vld [vmem:[%s3718 + $0xc] sm:$0xf]
    %v3723 = vld [vmem:[%s3718 + $0x10] sm:$0xf]
    %v3724 = vld [vmem:[%s3718 + $0x14] sm:$0xf]
    %v3725 = vld [vmem:[%s3718 + $0x18] sm:$0xf]
    %v3726 = vld [vmem:[%s3718 + $0x1c] sm:$0xf]
    %v3727 = vld [vmem:[%s3718 + $0x20] sm:$0xf]
    %v3728 = vld [vmem:[%s3718 + $0x24] sm:$0xf]
    %v3729 = vld [vmem:[%s3718 + $0x28] sm:$0xf]
    %v3741 = vunpack.c.l.b16 %v3719
    %v3742 = vunpack.c.l.b16 %v3720
    %v3743 = vunpack.c.l.b16 %v3721
    %v3744 = vunpack.c.l.b16 %v3722
    %v3745 = vunpack.c.l.b16 %v3723
    %v3746 = vunpack.c.l.b16 %v3724
    %v3747 = vunpack.c.l.b16 %v3725
    %v3748 = vunpack.c.l.b16 %v3726
    %v3749 = vunpack.c.l.b16 %v3727
    %v3750 = vunpack.c.l.b16 %v3728
    %v3751 = vunpack.c.l.b16 %v3729
    %v3752 = vpack.c.b16 %v3742, %v3741
    %v3753 = vpack.c.b16 %v3744, %v3743
    %v3754 = vpack.c.b16 %v3746, %v3745
    %v3755 = vpack.c.b16 %v3748, %v3747
    %v3756 = vpack.c.b16 %v3750, %v3749
    %v3757 = vpack.c.b16 %v3751, %v3751
    %v3759 = vsel %vm2568, %v3752, 0
    %v3762 = vsel %vm2568, %v3753, 0
    %v3765 = vsel %vm2568, %v3754, 0
    %v3768 = vsel %vm2568, %v3755, 0
    %v3771 = vsel %vm2568, %v3756, 0
    %v3774 = vsel %vm2568, %v3757, 0
    %3776 = vmatprep.subr.bf16.mxu0 0
    %3777 = vmatpush1.bf16.msra.mxu0 0
    %3778 = vmatprep.subr.bf16.mxu0 0
    %3779 = vmatpush1.bf16.msra.mxu0 0
    %3780 = vmatprep.subr.bf16.mxu0 0
    %3781 = vmatpush1.bf16.msra.mxu0 %v3717
    %3782 = vmatprep.subr.bf16.mxu0 0
    %3783 = vmatpush1.bf16.msra.mxu0 %v3716
    %3784 = vmatprep.subr.bf16.mxu0 0
    %3785 = vmatpush1.bf16.msra.mxu0 %v3715
    %3786 = vmatprep.subr.bf16.mxu0 0
    %3787 = vmatpush1.bf16.msra.mxu0 %v3714
    %3788 = vmatprep.subr.bf16.mxu0 0
    %3789 = vmatpush1.bf16.msra.mxu0 %v3713
    %3790 = vmatprep.subr.bf16.mxu0 0
    %3791 = vmatpush1.bf16.msra.mxu0 %v3712
    %3792 = vmatprep.subr.bf16.mxu0 0
    %3793 = vmatpush2.bf16.msra.mxu0 0
    %3794 = vmatprep.subr.bf16.mxu0 0
    %3795 = vmatpush2.bf16.msra.mxu0 0
    %3796 = vmatprep.subr.bf16.mxu0 0
    %3797 = vmatpush2.bf16.msra.mxu0 0
    %3798 = vmatprep.subr.bf16.mxu0 0
    %3799 = vmatpush2.bf16.msra.mxu0 0
    %3800 = vmatprep.subr.bf16.mxu0 0
    %3801 = vmatpush2.bf16.msra.mxu0 0
    %3802 = vmatprep.subr.bf16.mxu0 0
    %3803 = vmatpush2.bf16.msra.mxu0 0
    %3804 = vmatprep.subr.bf16.mxu0 0
    %3805 = vmatpush2.bf16.msra.mxu0 0
    %3806 = vmatprep.subr.bf16.mxu0 0
    %3807 = vmatpush2.bf16.msra.mxu0 0
    %3808 = vmatprep.mubr.bf16.mxu0 0
    %3809 = vmatmul.mubr.bf16.gmra.mxu0 %v3759
    %v3810 = vpop.f32.mrf.mxu0
    %v3811 = vadd.f32 0.0, %v3810
    %v3812 = vpop.f32.mrf.mxu0
    %v3813 = vpop.f32.mrf.mxu0
    %v3814 = vadd.f32 0.0, %v3813
    %v3815 = vpop.f32.mrf.mxu0
    %3816 = vmatprep.mubr.bf16.mxu0 0
    %3817 = vmatmul.mubr.bf16.gmra.mxu0 %v3762
    %v3818 = vpop.f32.mrf.mxu0
    %v3819 = vadd.f32 0.0, %v3818
    %v3820 = vpop.f32.mrf.mxu0
    %v3821 = vpop.f32.mrf.mxu0
    %v3822 = vadd.f32 0.0, %v3821
    %v3823 = vpop.f32.mrf.mxu0
    %3824 = vmatprep.mubr.bf16.mxu0 0
    %3825 = vmatmul.mubr.bf16.gmra.mxu0 %v3765
    %v3826 = vpop.f32.mrf.mxu0
    %v3827 = vadd.f32 0.0, %v3826
    %v3828 = vpop.f32.mrf.mxu0
    %v3829 = vpop.f32.mrf.mxu0
    %v3830 = vadd.f32 0.0, %v3829
    %v3831 = vpop.f32.mrf.mxu0
    %3832 = vmatprep.mubr.bf16.mxu0 0
    %3833 = vmatmul.mubr.bf16.gmra.mxu0 %v3768
    %v3834 = vpop.f32.mrf.mxu0
    %v3835 = vadd.f32 0.0, %v3834
    %v3836 = vpop.f32.mrf.mxu0
    %v3837 = vpop.f32.mrf.mxu0
    %v3838 = vadd.f32 0.0, %v3837
    %v3839 = vpop.f32.mrf.mxu0
    %3840 = vmatprep.mubr.bf16.mxu0 0
    %3841 = vmatmul.mubr.bf16.gmra.mxu0 %v3771
    %v3842 = vpop.f32.mrf.mxu0
    %v3843 = vadd.f32 0.0, %v3842
    %v3844 = vpop.f32.mrf.mxu0
    %v3845 = vpop.f32.mrf.mxu0
    %v3846 = vadd.f32 0.0, %v3845
    %v3847 = vpop.f32.mrf.mxu0
    %3848 = vmatprep.mubr.bf16.mxu0 0
    %3849 = vmatmul.mubr.bf16.gmra.mxu0 %v3774
    %v3850 = vpop.f32.mrf.mxu0
    %v3851 = vadd.f32 0.0, %v3850
    %v3852 = vpop.f32.mrf.mxu0
    %v3853 = vpop.f32.mrf.mxu0
    %v3854 = vpop.f32.mrf.mxu0
    %3855 = vdwg.mxu0
    %v3856 = vadd.f32 %v3677, %v3811
    %v3857 = vadd.f32 %v3678, %v3814
    %v3858 = vadd.f32 %v3679, %v3819
    %v3859 = vadd.f32 %v3680, %v3822
    %v3860 = vadd.f32 %v3681, %v3827
    %v3861 = vadd.f32 %v3682, %v3830
    %v3862 = vadd.f32 %v3683, %v3835
    %v3863 = vadd.f32 %v3684, %v3838
    %v3864 = vadd.f32 %v3685, %v3843
    %v3865 = vadd.f32 %v3686, %v3846
    %v3866 = vadd.f32 %v3687, %v3851
    %3867 = vrot.lane.b32.xlu0 %v2465, 120
    %v3868 = vpop.permute.xlu0 %3867
    %3869 = vrot.lane.b32.xlu0 %v2466, 120
    %v3870 = vpop.permute.xlu0 %3869
    %3871 = vrot.lane.b32.xlu0 %v2467, 120
    %v3872 = vpop.permute.xlu0 %3871
    %3873 = vrot.lane.b32.xlu0 %v2468, 120
    %v3874 = vpop.permute.xlu0 %3873
    %3875 = vrot.lane.b32.xlu0 %v2469, 120
    %v3876 = vpop.permute.xlu0 %3875
    %3877 = vrot.lane.b32.xlu0 %v2470, 120
    %v3878 = vpop.permute.xlu0 %3877
    %3879 = vrot.lane.b32.xlu0 %v2471, 120
    %v3880 = vpop.permute.xlu0 %3879
    %3881 = vrot.lane.b32.xlu0 %v2472, 120
    %v3882 = vpop.permute.xlu0 %3881
    %3883 = vrot.lane.b32.xlu0 %v2473, 120
    %v3884 = vpop.permute.xlu0 %3883
    %3885 = vrot.lane.b32.xlu0 %v2474, 120
    %v3886 = vpop.permute.xlu0 %3885
    %3887 = vrot.lane.b32.xlu0 %v2475, 120
    %v3888 = vpop.permute.xlu0 %3887
    %3889 = vrot.lane.b32.xlu0 %v2476, 120
    %v3890 = vpop.permute.xlu0 %3889
    %v3891 = vpack.c.bf16 %v3870, %v3868
    %v3892 = vpack.c.bf16 %v3874, %v3872
    %v3893 = vpack.c.bf16 %v3878, %v3876
    %v3894 = vpack.c.bf16 %v3882, %v3880
    %v3895 = vpack.c.bf16 %v3886, %v3884
    %v3896 = vpack.c.bf16 %v3890, %v3888
    %s3897 = scalar_lea.vmem [#allocation3], 352
    %v3898 = vld [vmem:[%s3897] sm:$0xf]
    %v3899 = vld [vmem:[%s3897 + $0x4] sm:$0xf]
    %v3900 = vld [vmem:[%s3897 + $0x8] sm:$0xf]
    %v3901 = vld [vmem:[%s3897 + $0xc] sm:$0xf]
    %v3902 = vld [vmem:[%s3897 + $0x10] sm:$0xf]
    %v3903 = vld [vmem:[%s3897 + $0x14] sm:$0xf]
    %v3904 = vld [vmem:[%s3897 + $0x18] sm:$0xf]
    %v3905 = vld [vmem:[%s3897 + $0x1c] sm:$0xf]
    %v3906 = vld [vmem:[%s3897 + $0x20] sm:$0xf]
    %v3907 = vld [vmem:[%s3897 + $0x24] sm:$0xf]
    %v3908 = vld [vmem:[%s3897 + $0x28] sm:$0xf]
    %v3920 = vunpack.c.l.b16 %v3898
    %v3921 = vunpack.c.l.b16 %v3899
    %v3922 = vunpack.c.l.b16 %v3900
    %v3923 = vunpack.c.l.b16 %v3901
    %v3924 = vunpack.c.l.b16 %v3902
    %v3925 = vunpack.c.l.b16 %v3903
    %v3926 = vunpack.c.l.b16 %v3904
    %v3927 = vunpack.c.l.b16 %v3905
    %v3928 = vunpack.c.l.b16 %v3906
    %v3929 = vunpack.c.l.b16 %v3907
    %v3930 = vunpack.c.l.b16 %v3908
    %v3931 = vpack.c.b16 %v3921, %v3920
    %v3932 = vpack.c.b16 %v3923, %v3922
    %v3933 = vpack.c.b16 %v3925, %v3924
    %v3934 = vpack.c.b16 %v3927, %v3926
    %v3935 = vpack.c.b16 %v3929, %v3928
    %v3936 = vpack.c.b16 %v3930, %v3930
    %v3938 = vsel %vm2568, %v3931, 0
    %v3941 = vsel %vm2568, %v3932, 0
    %v3944 = vsel %vm2568, %v3933, 0
    %v3947 = vsel %vm2568, %v3934, 0
    %v3950 = vsel %vm2568, %v3935, 0
    %v3953 = vsel %vm2568, %v3936, 0
    %3955 = vmatprep.subr.bf16.mxu0 0
    %3956 = vmatpush1.bf16.msra.mxu0 0
    %3957 = vmatprep.subr.bf16.mxu0 0
    %3958 = vmatpush1.bf16.msra.mxu0 0
    %3959 = vmatprep.subr.bf16.mxu0 0
    %3960 = vmatpush1.bf16.msra.mxu0 %v3896
    %3961 = vmatprep.subr.bf16.mxu0 0
    %3962 = vmatpush1.bf16.msra.mxu0 %v3895
    %3963 = vmatprep.subr.bf16.mxu0 0
    %3964 = vmatpush1.bf16.msra.mxu0 %v3894
    %3965 = vmatprep.subr.bf16.mxu0 0
    %3966 = vmatpush1.bf16.msra.mxu0 %v3893
    %3967 = vmatprep.subr.bf16.mxu0 0
    %3968 = vmatpush1.bf16.msra.mxu0 %v3892
    %3969 = vmatprep.subr.bf16.mxu0 0
    %3970 = vmatpush1.bf16.msra.mxu0 %v3891
    %3971 = vmatprep.subr.bf16.mxu0 0
    %3972 = vmatpush2.bf16.msra.mxu0 0
    %3973 = vmatprep.subr.bf16.mxu0 0
    %3974 = vmatpush2.bf16.msra.mxu0 0
    %3975 = vmatprep.subr.bf16.mxu0 0
    %3976 = vmatpush2.bf16.msra.mxu0 0
    %3977 = vmatprep.subr.bf16.mxu0 0
    %3978 = vmatpush2.bf16.msra.mxu0 0
    %3979 = vmatprep.subr.bf16.mxu0 0
    %3980 = vmatpush2.bf16.msra.mxu0 0
    %3981 = vmatprep.subr.bf16.mxu0 0
    %3982 = vmatpush2.bf16.msra.mxu0 0
    %3983 = vmatprep.subr.bf16.mxu0 0
    %3984 = vmatpush2.bf16.msra.mxu0 0
    %3985 = vmatprep.subr.bf16.mxu0 0
    %3986 = vmatpush2.bf16.msra.mxu0 0
    %3987 = vmatprep.mubr.bf16.mxu0 0
    %3988 = vmatmul.mubr.bf16.gmra.mxu0 %v3938
    %v3989 = vpop.f32.mrf.mxu0
    %v3990 = vadd.f32 0.0, %v3989
    %v3991 = vpop.f32.mrf.mxu0
    %v3992 = vpop.f32.mrf.mxu0
    %v3993 = vadd.f32 0.0, %v3992
    %v3994 = vpop.f32.mrf.mxu0
    %3995 = vmatprep.mubr.bf16.mxu0 0
    %3996 = vmatmul.mubr.bf16.gmra.mxu0 %v3941
    %v3997 = vpop.f32.mrf.mxu0
    %v3998 = vadd.f32 0.0, %v3997
    %v3999 = vpop.f32.mrf.mxu0
    %v4000 = vpop.f32.mrf.mxu0
    %v4001 = vadd.f32 0.0, %v4000
    %v4002 = vpop.f32.mrf.mxu0
    %4003 = vmatprep.mubr.bf16.mxu0 0
    %4004 = vmatmul.mubr.bf16.gmra.mxu0 %v3944
    %v4005 = vpop.f32.mrf.mxu0
    %v4006 = vadd.f32 0.0, %v4005
    %v4007 = vpop.f32.mrf.mxu0
    %v4008 = vpop.f32.mrf.mxu0
    %v4009 = vadd.f32 0.0, %v4008
    %v4010 = vpop.f32.mrf.mxu0
    %4011 = vmatprep.mubr.bf16.mxu0 0
    %4012 = vmatmul.mubr.bf16.gmra.mxu0 %v3947
    %v4013 = vpop.f32.mrf.mxu0
    %v4014 = vadd.f32 0.0, %v4013
    %v4015 = vpop.f32.mrf.mxu0
    %v4016 = vpop.f32.mrf.mxu0
    %v4017 = vadd.f32 0.0, %v4016
    %v4018 = vpop.f32.mrf.mxu0
    %4019 = vmatprep.mubr.bf16.mxu0 0
    %4020 = vmatmul.mubr.bf16.gmra.mxu0 %v3950
    %v4021 = vpop.f32.mrf.mxu0
    %v4022 = vadd.f32 0.0, %v4021
    %v4023 = vpop.f32.mrf.mxu0
    %v4024 = vpop.f32.mrf.mxu0
    %v4025 = vadd.f32 0.0, %v4024
    %v4026 = vpop.f32.mrf.mxu0
    %4027 = vmatprep.mubr.bf16.mxu0 0
    %4028 = vmatmul.mubr.bf16.gmra.mxu0 %v3953
    %v4029 = vpop.f32.mrf.mxu0
    %v4030 = vadd.f32 0.0, %v4029
    %v4031 = vpop.f32.mrf.mxu0
    %v4032 = vpop.f32.mrf.mxu0
    %v4033 = vpop.f32.mrf.mxu0
    %4034 = vdwg.mxu0
    %v4035 = vadd.f32 %v3856, %v3990
    %v4036 = vadd.f32 %v3857, %v3993
    %v4037 = vadd.f32 %v3858, %v3998
    %v4038 = vadd.f32 %v3859, %v4001
    %v4039 = vadd.f32 %v3860, %v4006
    %v4040 = vadd.f32 %v3861, %v4009
    %v4041 = vadd.f32 %v3862, %v4014
    %v4042 = vadd.f32 %v3863, %v4017
    %v4043 = vadd.f32 %v3864, %v4022
    %v4044 = vadd.f32 %v3865, %v4025
    %v4045 = vadd.f32 %v3866, %v4030
    %4046 = vrot.lane.b32.xlu0 %v2465, 119
    %v4047 = vpop.permute.xlu0 %4046
    %4048 = vrot.lane.b32.xlu0 %v2466, 119
    %v4049 = vpop.permute.xlu0 %4048
    %4050 = vrot.lane.b32.xlu0 %v2467, 119
    %v4051 = vpop.permute.xlu0 %4050
    %4052 = vrot.lane.b32.xlu0 %v2468, 119
    %v4053 = vpop.permute.xlu0 %4052
    %4054 = vrot.lane.b32.xlu0 %v2469, 119
    %v4055 = vpop.permute.xlu0 %4054
    %4056 = vrot.lane.b32.xlu0 %v2470, 119
    %v4057 = vpop.permute.xlu0 %4056
    %4058 = vrot.lane.b32.xlu0 %v2471, 119
    %v4059 = vpop.permute.xlu0 %4058
    %4060 = vrot.lane.b32.xlu0 %v2472, 119
    %v4061 = vpop.permute.xlu0 %4060
    %4062 = vrot.lane.b32.xlu0 %v2473, 119
    %v4063 = vpop.permute.xlu0 %4062
    %4064 = vrot.lane.b32.xlu0 %v2474, 119
    %v4065 = vpop.permute.xlu0 %4064
    %4066 = vrot.lane.b32.xlu0 %v2475, 119
    %v4067 = vpop.permute.xlu0 %4066
    %4068 = vrot.lane.b32.xlu0 %v2476, 119
    %v4069 = vpop.permute.xlu0 %4068
    %v4070 = vpack.c.bf16 %v4049, %v4047
    %v4071 = vpack.c.bf16 %v4053, %v4051
    %v4072 = vpack.c.bf16 %v4057, %v4055
    %v4073 = vpack.c.bf16 %v4061, %v4059
    %v4074 = vpack.c.bf16 %v4065, %v4063
    %v4075 = vpack.c.bf16 %v4069, %v4067
    %s4076 = scalar_lea.vmem [#allocation3], 396
    %v4077 = vld [vmem:[%s4076] sm:$0xf]
    %v4078 = vld [vmem:[%s4076 + $0x4] sm:$0xf]
    %v4079 = vld [vmem:[%s4076 + $0x8] sm:$0xf]
    %v4080 = vld [vmem:[%s4076 + $0xc] sm:$0xf]
    %v4081 = vld [vmem:[%s4076 + $0x10] sm:$0xf]
    %v4082 = vld [vmem:[%s4076 + $0x14] sm:$0xf]
    %v4083 = vld [vmem:[%s4076 + $0x18] sm:$0xf]
    %v4084 = vld [vmem:[%s4076 + $0x1c] sm:$0xf]
    %v4085 = vld [vmem:[%s4076 + $0x20] sm:$0xf]
    %v4086 = vld [vmem:[%s4076 + $0x24] sm:$0xf]
    %v4087 = vld [vmem:[%s4076 + $0x28] sm:$0xf]
    %v4099 = vunpack.c.l.b16 %v4077
    %v4100 = vunpack.c.l.b16 %v4078
    %v4101 = vunpack.c.l.b16 %v4079
    %v4102 = vunpack.c.l.b16 %v4080
    %v4103 = vunpack.c.l.b16 %v4081
    %v4104 = vunpack.c.l.b16 %v4082
    %v4105 = vunpack.c.l.b16 %v4083
    %v4106 = vunpack.c.l.b16 %v4084
    %v4107 = vunpack.c.l.b16 %v4085
    %v4108 = vunpack.c.l.b16 %v4086
    %v4109 = vunpack.c.l.b16 %v4087
    %v4110 = vpack.c.b16 %v4100, %v4099
    %v4111 = vpack.c.b16 %v4102, %v4101
    %v4112 = vpack.c.b16 %v4104, %v4103
    %v4113 = vpack.c.b16 %v4106, %v4105
    %v4114 = vpack.c.b16 %v4108, %v4107
    %v4115 = vpack.c.b16 %v4109, %v4109
    %v4117 = vsel %vm2568, %v4110, 0
    %v4120 = vsel %vm2568, %v4111, 0
    %v4123 = vsel %vm2568, %v4112, 0
    %v4126 = vsel %vm2568, %v4113, 0
    %v4129 = vsel %vm2568, %v4114, 0
    %v4132 = vsel %vm2568, %v4115, 0
    %4134 = vmatprep.subr.bf16.mxu0 0
    %4135 = vmatpush1.bf16.msra.mxu0 0
    %4136 = vmatprep.subr.bf16.mxu0 0
    %4137 = vmatpush1.bf16.msra.mxu0 0
    %4138 = vmatprep.subr.bf16.mxu0 0
    %4139 = vmatpush1.bf16.msra.mxu0 %v4075
    %4140 = vmatprep.subr.bf16.mxu0 0
    %4141 = vmatpush1.bf16.msra.mxu0 %v4074
    %4142 = vmatprep.subr.bf16.mxu0 0
    %4143 = vmatpush1.bf16.msra.mxu0 %v4073
    %4144 = vmatprep.subr.bf16.mxu0 0
    %4145 = vmatpush1.bf16.msra.mxu0 %v4072
    %4146 = vmatprep.subr.bf16.mxu0 0
    %4147 = vmatpush1.bf16.msra.mxu0 %v4071
    %4148 = vmatprep.subr.bf16.mxu0 0
    %4149 = vmatpush1.bf16.msra.mxu0 %v4070
    %4150 = vmatprep.subr.bf16.mxu0 0
    %4151 = vmatpush2.bf16.msra.mxu0 0
    %4152 = vmatprep.subr.bf16.mxu0 0
    %4153 = vmatpush2.bf16.msra.mxu0 0
    %4154 = vmatprep.subr.bf16.mxu0 0
    %4155 = vmatpush2.bf16.msra.mxu0 0
    %4156 = vmatprep.subr.bf16.mxu0 0
    %4157 = vmatpush2.bf16.msra.mxu0 0
    %4158 = vmatprep.subr.bf16.mxu0 0
    %4159 = vmatpush2.bf16.msra.mxu0 0
    %4160 = vmatprep.subr.bf16.mxu0 0
    %4161 = vmatpush2.bf16.msra.mxu0 0
    %4162 = vmatprep.subr.bf16.mxu0 0
    %4163 = vmatpush2.bf16.msra.mxu0 0
    %4164 = vmatprep.subr.bf16.mxu0 0
    %4165 = vmatpush2.bf16.msra.mxu0 0
    %4166 = vmatprep.mubr.bf16.mxu0 0
    %4167 = vmatmul.mubr.bf16.gmra.mxu0 %v4117
    %v4168 = vpop.f32.mrf.mxu0
    %v4169 = vadd.f32 0.0, %v4168
    %v4170 = vpop.f32.mrf.mxu0
    %v4171 = vpop.f32.mrf.mxu0
    %v4172 = vadd.f32 0.0, %v4171
    %v4173 = vpop.f32.mrf.mxu0
    %4174 = vmatprep.mubr.bf16.mxu0 0
    %4175 = vmatmul.mubr.bf16.gmra.mxu0 %v4120
    %v4176 = vpop.f32.mrf.mxu0
    %v4177 = vadd.f32 0.0, %v4176
    %v4178 = vpop.f32.mrf.mxu0
    %v4179 = vpop.f32.mrf.mxu0
    %v4180 = vadd.f32 0.0, %v4179
    %v4181 = vpop.f32.mrf.mxu0
    %4182 = vmatprep.mubr.bf16.mxu0 0
    %4183 = vmatmul.mubr.bf16.gmra.mxu0 %v4123
    %v4184 = vpop.f32.mrf.mxu0
    %v4185 = vadd.f32 0.0, %v4184
    %v4186 = vpop.f32.mrf.mxu0
    %v4187 = vpop.f32.mrf.mxu0
    %v4188 = vadd.f32 0.0, %v4187
    %v4189 = vpop.f32.mrf.mxu0
    %4190 = vmatprep.mubr.bf16.mxu0 0
    %4191 = vmatmul.mubr.bf16.gmra.mxu0 %v4126
    %v4192 = vpop.f32.mrf.mxu0
    %v4193 = vadd.f32 0.0, %v4192
    %v4194 = vpop.f32.mrf.mxu0
    %v4195 = vpop.f32.mrf.mxu0
    %v4196 = vadd.f32 0.0, %v4195
    %v4197 = vpop.f32.mrf.mxu0
    %4198 = vmatprep.mubr.bf16.mxu0 0
    %4199 = vmatmul.mubr.bf16.gmra.mxu0 %v4129
    %v4200 = vpop.f32.mrf.mxu0
    %v4201 = vadd.f32 0.0, %v4200
    %v4202 = vpop.f32.mrf.mxu0
    %v4203 = vpop.f32.mrf.mxu0
    %v4204 = vadd.f32 0.0, %v4203
    %v4205 = vpop.f32.mrf.mxu0
    %4206 = vmatprep.mubr.bf16.mxu0 0
    %4207 = vmatmul.mubr.bf16.gmra.mxu0 %v4132
    %v4208 = vpop.f32.mrf.mxu0
    %v4209 = vadd.f32 0.0, %v4208
    %v4210 = vpop.f32.mrf.mxu0
    %v4211 = vpop.f32.mrf.mxu0
    %v4212 = vpop.f32.mrf.mxu0
    %4213 = vdwg.mxu0
    %v4214 = vadd.f32 %v4035, %v4169
    %v4215 = vadd.f32 %v4036, %v4172
    %v4216 = vadd.f32 %v4037, %v4177
    %v4217 = vadd.f32 %v4038, %v4180
    %v4218 = vadd.f32 %v4039, %v4185
    %v4219 = vadd.f32 %v4040, %v4188
    %v4220 = vadd.f32 %v4041, %v4193
    %v4221 = vadd.f32 %v4042, %v4196
    %v4222 = vadd.f32 %v4043, %v4201
    %v4223 = vadd.f32 %v4044, %v4204
    %v4224 = vadd.f32 %v4045, %v4209
    %v4225 = vstv %s37
    %v4226 = vadd.f32 %v4214, %v4225
    %v4227 = vadd.f32 %v4215, %v4225
    %v4228 = vadd.f32 %v4216, %v4225
    %v4229 = vadd.f32 %v4217, %v4225
    %v4230 = vadd.f32 %v4218, %v4225
    %v4231 = vadd.f32 %v4219, %v4225
    %v4232 = vadd.f32 %v4220, %v4225
    %v4233 = vadd.f32 %v4221, %v4225
    %v4234 = vadd.f32 %v4222, %v4225
    %v4235 = vadd.f32 %v4223, %v4225
    %v4236 = vadd.f32 %v4224, %v4225
    %v4237 = vmax.f32 %v4226, 0.0
    %v4238 = vmax.f32 %v4227, 0.0
    %v4239 = vmax.f32 %v4228, 0.0
    %v4240 = vmax.f32 %v4229, 0.0
    %v4241 = vmax.f32 %v4230, 0.0
    %v4242 = vmax.f32 %v4231, 0.0
    %v4243 = vmax.f32 %v4232, 0.0
    %v4244 = vmax.f32 %v4233, 0.0
    %v4245 = vmax.f32 %v4234, 0.0
    %v4246 = vmax.f32 %v4235, 0.0
    %v4247 = vmax.f32 %v4236, 0.0
    %s4248 = smul.u32 %s900, 10
    %s4249 = smul.u32 %s4248, 1
    %s4250 = sshll.u32 %s4249, 4
    %4251 = dma.done %s215, %s4250
    %v4252 = vpack.c.bf16 %v4238, %v4237
    %v4253 = vpack.c.bf16 %v4240, %v4239
    %v4254 = vpack.c.bf16 %v4242, %v4241
    %v4255 = vpack.c.bf16 %v4244, %v4243
    %v4256 = vpack.c.bf16 %v4246, %v4245
    %v4257 = vpack.c.bf16 %v4247, %v4247
    %v4258 = vld [vmem:[#allocation4] sm:$0xf]
    %v4259 = vld [vmem:[#allocation4 + $0x4] sm:$0xf]
    %v4260 = vld [vmem:[#allocation4 + $0x8] sm:$0xf]
    %v4261 = vld [vmem:[#allocation4 + $0xc] sm:$0xf]
    %v4262 = vld [vmem:[#allocation4 + $0x10] sm:$0xf]
    %v4263 = vld [vmem:[#allocation4 + $0x14] sm:$0xf]
    %v4264 = vld [vmem:[#allocation4 + $0x18] sm:$0xf]
    %v4265 = vld [vmem:[#allocation4 + $0x1c] sm:$0xf]
    %v4266 = vld [vmem:[#allocation4 + $0x20] sm:$0xf]
    %v4267 = vld [vmem:[#allocation4 + $0x24] sm:$0xf]
    %4268 = vrot.lane.b32.xlu0 %v4237, 127
    %v4269 = vpop.permute.xlu0 %4268
    %4270 = vrot.lane.b32.xlu0 %v4238, 127
    %v4271 = vpop.permute.xlu0 %4270
    %4272 = vrot.lane.b32.xlu0 %v4239, 127
    %v4273 = vpop.permute.xlu0 %4272
    %4274 = vrot.lane.b32.xlu0 %v4240, 127
    %v4275 = vpop.permute.xlu0 %4274
    %4276 = vrot.lane.b32.xlu0 %v4241, 127
    %v4277 = vpop.permute.xlu0 %4276
    %4278 = vrot.lane.b32.xlu0 %v4242, 127
    %v4279 = vpop.permute.xlu0 %4278
    %4280 = vrot.lane.b32.xlu0 %v4243, 127
    %v4281 = vpop.permute.xlu0 %4280
    %4282 = vrot.lane.b32.xlu0 %v4244, 127
    %v4283 = vpop.permute.xlu0 %4282
    %4284 = vrot.lane.b32.xlu0 %v4245, 127
    %v4285 = vpop.permute.xlu0 %4284
    %4286 = vrot.lane.b32.xlu0 %v4246, 127
    %v4287 = vpop.permute.xlu0 %4286
    %4288 = vrot.lane.b32.xlu0 %v4247, 127
    %v4289 = vpop.permute.xlu0 %4288
    %v4290 = vpack.c.bf16 %v4271, %v4269
    %v4291 = vpack.c.bf16 %v4275, %v4273
    %v4292 = vpack.c.bf16 %v4279, %v4277
    %v4293 = vpack.c.bf16 %v4283, %v4281
    %v4294 = vpack.c.bf16 %v4287, %v4285
    %v4295 = vpack.c.bf16 %v4289, %v4289
    %s4296 = scalar_lea.vmem [#allocation4], 40
    %v4297 = vld [vmem:[%s4296] sm:$0xf]
    %v4298 = vld [vmem:[%s4296 + $0x4] sm:$0xf]
    %v4299 = vld [vmem:[%s4296 + $0x8] sm:$0xf]
    %v4300 = vld [vmem:[%s4296 + $0xc] sm:$0xf]
    %v4301 = vld [vmem:[%s4296 + $0x10] sm:$0xf]
    %v4302 = vld [vmem:[%s4296 + $0x14] sm:$0xf]
    %v4303 = vld [vmem:[%s4296 + $0x18] sm:$0xf]
    %v4304 = vld [vmem:[%s4296 + $0x1c] sm:$0xf]
    %v4305 = vld [vmem:[%s4296 + $0x20] sm:$0xf]
    %v4306 = vld [vmem:[%s4296 + $0x24] sm:$0xf]
    %v4317 = vunpack.c.l.b16 %v4297
    %v4318 = vunpack.c.l.b16 %v4298
    %v4319 = vunpack.c.l.b16 %v4299
    %v4320 = vunpack.c.l.b16 %v4300
    %v4321 = vunpack.c.l.b16 %v4301
    %v4322 = vunpack.c.l.b16 %v4302
    %v4323 = vunpack.c.l.b16 %v4303
    %v4324 = vunpack.c.l.b16 %v4304
    %v4325 = vunpack.c.l.b16 %v4305
    %v4326 = vunpack.c.l.b16 %v4306
    %v4327 = vpack.c.b16 %v4318, %v4317
    %v4328 = vpack.c.b16 %v4320, %v4319
    %v4329 = vpack.c.b16 %v4322, %v4321
    %v4330 = vpack.c.b16 %v4324, %v4323
    %v4331 = vpack.c.b16 %v4326, %v4325
    %vm4332 = vcmask 719872
    %v4334 = vsel %vm4332, %v4327, 0
    %v4337 = vsel %vm4332, %v4328, 0
    %v4340 = vsel %vm4332, %v4329, 0
    %v4343 = vsel %vm4332, %v4330, 0
    %v4346 = vsel %vm4332, %v4331, 0
    %v4349 = vsel %vm979, %v4295, 0
    %4351 = vmatprep.subr.bf16.mxu0 0
    %4352 = vmatpush1.bf16.msra.mxu0 0
    %4353 = vmatprep.subr.bf16.mxu0 0
    %4354 = vmatpush1.bf16.msra.mxu0 0
    %4355 = vmatprep.subr.bf16.mxu0 0
    %4356 = vmatpush1.bf16.msra.mxu0 %v4349
    %4357 = vmatprep.subr.bf16.mxu0 0
    %4358 = vmatpush1.bf16.msra.mxu0 %v4294
    %4359 = vmatprep.subr.bf16.mxu0 0
    %4360 = vmatpush1.bf16.msra.mxu0 %v4293
    %4361 = vmatprep.subr.bf16.mxu0 0
    %4362 = vmatpush1.bf16.msra.mxu0 %v4292
    %4363 = vmatprep.subr.bf16.mxu0 0
    %4364 = vmatpush1.bf16.msra.mxu0 %v4291
    %4365 = vmatprep.subr.bf16.mxu0 0
    %4366 = vmatpush1.bf16.msra.mxu0 %v4290
    %4367 = vmatprep.subr.bf16.mxu0 0
    %4368 = vmatpush2.bf16.msra.mxu0 0
    %4369 = vmatprep.subr.bf16.mxu0 0
    %4370 = vmatpush2.bf16.msra.mxu0 0
    %4371 = vmatprep.subr.bf16.mxu0 0
    %4372 = vmatpush2.bf16.msra.mxu0 0
    %4373 = vmatprep.subr.bf16.mxu0 0
    %4374 = vmatpush2.bf16.msra.mxu0 0
    %4375 = vmatprep.subr.bf16.mxu0 0
    %4376 = vmatpush2.bf16.msra.mxu0 0
    %4377 = vmatprep.subr.bf16.mxu0 0
    %4378 = vmatpush2.bf16.msra.mxu0 0
    %4379 = vmatprep.subr.bf16.mxu0 0
    %4380 = vmatpush2.bf16.msra.mxu0 0
    %4381 = vmatprep.subr.bf16.mxu0 0
    %4382 = vmatpush2.bf16.msra.mxu0 0
    %4383 = vmatprep.mubr.bf16.mxu0 0
    %4384 = vmatmul.mubr.bf16.gmra.mxu0 %v4334
    %v4385 = vpop.f32.mrf.mxu0
    %v4386 = vadd.f32 0.0, %v4385
    %v4387 = vpop.f32.mrf.mxu0
    %v4388 = vpop.f32.mrf.mxu0
    %v4389 = vadd.f32 0.0, %v4388
    %v4390 = vpop.f32.mrf.mxu0
    %4391 = vmatprep.mubr.bf16.mxu0 0
    %4392 = vmatmul.mubr.bf16.gmra.mxu0 %v4337
    %v4393 = vpop.f32.mrf.mxu0
    %v4394 = vadd.f32 0.0, %v4393
    %v4395 = vpop.f32.mrf.mxu0
    %v4396 = vpop.f32.mrf.mxu0
    %v4397 = vadd.f32 0.0, %v4396
    %v4398 = vpop.f32.mrf.mxu0
    %4399 = vmatprep.mubr.bf16.mxu0 0
    %4400 = vmatmul.mubr.bf16.gmra.mxu0 %v4340
    %v4401 = vpop.f32.mrf.mxu0
    %v4402 = vadd.f32 0.0, %v4401
    %v4403 = vpop.f32.mrf.mxu0
    %v4404 = vpop.f32.mrf.mxu0
    %v4405 = vadd.f32 0.0, %v4404
    %v4406 = vpop.f32.mrf.mxu0
    %4407 = vmatprep.mubr.bf16.mxu0 0
    %4408 = vmatmul.mubr.bf16.gmra.mxu0 %v4343
    %v4409 = vpop.f32.mrf.mxu0
    %v4410 = vadd.f32 0.0, %v4409
    %v4411 = vpop.f32.mrf.mxu0
    %v4412 = vpop.f32.mrf.mxu0
    %v4413 = vadd.f32 0.0, %v4412
    %v4414 = vpop.f32.mrf.mxu0
    %4415 = vmatprep.mubr.bf16.mxu0 0
    %4416 = vmatmul.mubr.bf16.gmra.mxu0 %v4346
    %v4417 = vpop.f32.mrf.mxu0
    %v4418 = vadd.f32 0.0, %v4417
    %v4419 = vpop.f32.mrf.mxu0
    %v4420 = vpop.f32.mrf.mxu0
    %v4421 = vadd.f32 0.0, %v4420
    %v4422 = vpop.f32.mrf.mxu0
    %4423 = vdwg.mxu0
    %v4434 = vunpack.c.l.b16 %v4258
    %v4435 = vunpack.c.l.b16 %v4259
    %v4436 = vunpack.c.l.b16 %v4260
    %v4437 = vunpack.c.l.b16 %v4261
    %v4438 = vunpack.c.l.b16 %v4262
    %v4439 = vunpack.c.l.b16 %v4263
    %v4440 = vunpack.c.l.b16 %v4264
    %v4441 = vunpack.c.l.b16 %v4265
    %v4442 = vunpack.c.l.b16 %v4266
    %v4443 = vunpack.c.l.b16 %v4267
    %v4444 = vpack.c.b16 %v4435, %v4434
    %v4445 = vpack.c.b16 %v4437, %v4436
    %v4446 = vpack.c.b16 %v4439, %v4438
    %v4447 = vpack.c.b16 %v4441, %v4440
    %v4448 = vpack.c.b16 %v4443, %v4442
    %v4450 = vsel %vm4332, %v4444, 0
    %v4453 = vsel %vm4332, %v4445, 0
    %v4456 = vsel %vm4332, %v4446, 0
    %v4459 = vsel %vm4332, %v4447, 0
    %v4462 = vsel %vm4332, %v4448, 0
    %v4465 = vsel %vm979, %v4257, 0
    %4467 = vmatprep.subr.bf16.mxu0 0
    %4468 = vmatpush1.bf16.msra.mxu0 0
    %4469 = vmatprep.subr.bf16.mxu0 0
    %4470 = vmatpush1.bf16.msra.mxu0 0
    %4471 = vmatprep.subr.bf16.mxu0 0
    %4472 = vmatpush1.bf16.msra.mxu0 %v4465
    %4473 = vmatprep.subr.bf16.mxu0 0
    %4474 = vmatpush1.bf16.msra.mxu0 %v4256
    %4475 = vmatprep.subr.bf16.mxu0 0
    %4476 = vmatpush1.bf16.msra.mxu0 %v4255
    %4477 = vmatprep.subr.bf16.mxu0 0
    %4478 = vmatpush1.bf16.msra.mxu0 %v4254
    %4479 = vmatprep.subr.bf16.mxu0 0
    %4480 = vmatpush1.bf16.msra.mxu0 %v4253
    %4481 = vmatprep.subr.bf16.mxu0 0
    %4482 = vmatpush1.bf16.msra.mxu0 %v4252
    %4483 = vmatprep.subr.bf16.mxu0 0
    %4484 = vmatpush2.bf16.msra.mxu0 0
    %4485 = vmatprep.subr.bf16.mxu0 0
    %4486 = vmatpush2.bf16.msra.mxu0 0
    %4487 = vmatprep.subr.bf16.mxu0 0
    %4488 = vmatpush2.bf16.msra.mxu0 0
    %4489 = vmatprep.subr.bf16.mxu0 0
    %4490 = vmatpush2.bf16.msra.mxu0 0
    %4491 = vmatprep.subr.bf16.mxu0 0
    %4492 = vmatpush2.bf16.msra.mxu0 0
    %4493 = vmatprep.subr.bf16.mxu0 0
    %4494 = vmatpush2.bf16.msra.mxu0 0
    %4495 = vmatprep.subr.bf16.mxu0 0
    %4496 = vmatpush2.bf16.msra.mxu0 0
    %4497 = vmatprep.subr.bf16.mxu0 0
    %4498 = vmatpush2.bf16.msra.mxu0 0
    %4499 = vmatprep.mubr.bf16.mxu0 0
    %4500 = vmatmul.mubr.bf16.gmra.mxu0 %v4450
    %v4501 = vpop.f32.mrf.mxu0
    %v4502 = vadd.f32 %v4386, %v4501
    %v4503 = vpop.f32.mrf.mxu0
    %v4504 = vpop.f32.mrf.mxu0
    %v4505 = vadd.f32 %v4389, %v4504
    %v4506 = vpop.f32.mrf.mxu0
    %4507 = vmatprep.mubr.bf16.mxu0 0
    %4508 = vmatmul.mubr.bf16.gmra.mxu0 %v4453
    %v4509 = vpop.f32.mrf.mxu0
    %v4510 = vadd.f32 %v4394, %v4509
    %v4511 = vpop.f32.mrf.mxu0
    %v4512 = vpop.f32.mrf.mxu0
    %v4513 = vadd.f32 %v4397, %v4512
    %v4514 = vpop.f32.mrf.mxu0
    %4515 = vmatprep.mubr.bf16.mxu0 0
    %4516 = vmatmul.mubr.bf16.gmra.mxu0 %v4456
    %v4517 = vpop.f32.mrf.mxu0
    %v4518 = vadd.f32 %v4402, %v4517
    %v4519 = vpop.f32.mrf.mxu0
    %v4520 = vpop.f32.mrf.mxu0
    %v4521 = vadd.f32 %v4405, %v4520
    %v4522 = vpop.f32.mrf.mxu0
    %4523 = vmatprep.mubr.bf16.mxu0 0
    %4524 = vmatmul.mubr.bf16.gmra.mxu0 %v4459
    %v4525 = vpop.f32.mrf.mxu0
    %v4526 = vadd.f32 %v4410, %v4525
    %v4527 = vpop.f32.mrf.mxu0
    %v4528 = vpop.f32.mrf.mxu0
    %v4529 = vadd.f32 %v4413, %v4528
    %v4530 = vpop.f32.mrf.mxu0
    %4531 = vmatprep.mubr.bf16.mxu0 0
    %4532 = vmatmul.mubr.bf16.gmra.mxu0 %v4462
    %v4533 = vpop.f32.mrf.mxu0
    %v4534 = vadd.f32 %v4418, %v4533
    %v4535 = vpop.f32.mrf.mxu0
    %v4536 = vpop.f32.mrf.mxu0
    %v4537 = vadd.f32 %v4421, %v4536
    %v4538 = vpop.f32.mrf.mxu0
    %4539 = vdwg.mxu0
    %4540 = vrot.lane.b32.xlu0 %v4237, 126
    %v4541 = vpop.permute.xlu0 %4540
    %4542 = vrot.lane.b32.xlu0 %v4238, 126
    %v4543 = vpop.permute.xlu0 %4542
    %4544 = vrot.lane.b32.xlu0 %v4239, 126
    %v4545 = vpop.permute.xlu0 %4544
    %4546 = vrot.lane.b32.xlu0 %v4240, 126
    %v4547 = vpop.permute.xlu0 %4546
    %4548 = vrot.lane.b32.xlu0 %v4241, 126
    %v4549 = vpop.permute.xlu0 %4548
    %4550 = vrot.lane.b32.xlu0 %v4242, 126
    %v4551 = vpop.permute.xlu0 %4550
    %4552 = vrot.lane.b32.xlu0 %v4243, 126
    %v4553 = vpop.permute.xlu0 %4552
    %4554 = vrot.lane.b32.xlu0 %v4244, 126
    %v4555 = vpop.permute.xlu0 %4554
    %4556 = vrot.lane.b32.xlu0 %v4245, 126
    %v4557 = vpop.permute.xlu0 %4556
    %4558 = vrot.lane.b32.xlu0 %v4246, 126
    %v4559 = vpop.permute.xlu0 %4558
    %4560 = vrot.lane.b32.xlu0 %v4247, 126
    %v4561 = vpop.permute.xlu0 %4560
    %v4562 = vpack.c.bf16 %v4543, %v4541
    %v4563 = vpack.c.bf16 %v4547, %v4545
    %v4564 = vpack.c.bf16 %v4551, %v4549
    %v4565 = vpack.c.bf16 %v4555, %v4553
    %v4566 = vpack.c.bf16 %v4559, %v4557
    %v4567 = vpack.c.bf16 %v4561, %v4561
    %s4568 = scalar_lea.vmem [#allocation4], 80
    %v4569 = vld [vmem:[%s4568] sm:$0xf]
    %v4570 = vld [vmem:[%s4568 + $0x4] sm:$0xf]
    %v4571 = vld [vmem:[%s4568 + $0x8] sm:$0xf]
    %v4572 = vld [vmem:[%s4568 + $0xc] sm:$0xf]
    %v4573 = vld [vmem:[%s4568 + $0x10] sm:$0xf]
    %v4574 = vld [vmem:[%s4568 + $0x14] sm:$0xf]
    %v4575 = vld [vmem:[%s4568 + $0x18] sm:$0xf]
    %v4576 = vld [vmem:[%s4568 + $0x1c] sm:$0xf]
    %v4577 = vld [vmem:[%s4568 + $0x20] sm:$0xf]
    %v4578 = vld [vmem:[%s4568 + $0x24] sm:$0xf]
    %v4589 = vunpack.c.l.b16 %v4569
    %v4590 = vunpack.c.l.b16 %v4570
    %v4591 = vunpack.c.l.b16 %v4571
    %v4592 = vunpack.c.l.b16 %v4572
    %v4593 = vunpack.c.l.b16 %v4573
    %v4594 = vunpack.c.l.b16 %v4574
    %v4595 = vunpack.c.l.b16 %v4575
    %v4596 = vunpack.c.l.b16 %v4576
    %v4597 = vunpack.c.l.b16 %v4577
    %v4598 = vunpack.c.l.b16 %v4578
    %v4599 = vpack.c.b16 %v4590, %v4589
    %v4600 = vpack.c.b16 %v4592, %v4591
    %v4601 = vpack.c.b16 %v4594, %v4593
    %v4602 = vpack.c.b16 %v4596, %v4595
    %v4603 = vpack.c.b16 %v4598, %v4597
    %v4605 = vsel %vm4332, %v4599, 0
    %v4608 = vsel %vm4332, %v4600, 0
    %v4611 = vsel %vm4332, %v4601, 0
    %v4614 = vsel %vm4332, %v4602, 0
    %v4617 = vsel %vm4332, %v4603, 0
    %v4620 = vsel %vm979, %v4567, 0
    %4622 = vmatprep.subr.bf16.mxu0 0
    %4623 = vmatpush1.bf16.msra.mxu0 0
    %4624 = vmatprep.subr.bf16.mxu0 0
    %4625 = vmatpush1.bf16.msra.mxu0 0
    %4626 = vmatprep.subr.bf16.mxu0 0
    %4627 = vmatpush1.bf16.msra.mxu0 %v4620
    %4628 = vmatprep.subr.bf16.mxu0 0
    %4629 = vmatpush1.bf16.msra.mxu0 %v4566
    %4630 = vmatprep.subr.bf16.mxu0 0
    %4631 = vmatpush1.bf16.msra.mxu0 %v4565
    %4632 = vmatprep.subr.bf16.mxu0 0
    %4633 = vmatpush1.bf16.msra.mxu0 %v4564
    %4634 = vmatprep.subr.bf16.mxu0 0
    %4635 = vmatpush1.bf16.msra.mxu0 %v4563
    %4636 = vmatprep.subr.bf16.mxu0 0
    %4637 = vmatpush1.bf16.msra.mxu0 %v4562
    %4638 = vmatprep.subr.bf16.mxu0 0
    %4639 = vmatpush2.bf16.msra.mxu0 0
    %4640 = vmatprep.subr.bf16.mxu0 0
    %4641 = vmatpush2.bf16.msra.mxu0 0
    %4642 = vmatprep.subr.bf16.mxu0 0
    %4643 = vmatpush2.bf16.msra.mxu0 0
    %4644 = vmatprep.subr.bf16.mxu0 0
    %4645 = vmatpush2.bf16.msra.mxu0 0
    %4646 = vmatprep.subr.bf16.mxu0 0
    %4647 = vmatpush2.bf16.msra.mxu0 0
    %4648 = vmatprep.subr.bf16.mxu0 0
    %4649 = vmatpush2.bf16.msra.mxu0 0
    %4650 = vmatprep.subr.bf16.mxu0 0
    %4651 = vmatpush2.bf16.msra.mxu0 0
    %4652 = vmatprep.subr.bf16.mxu0 0
    %4653 = vmatpush2.bf16.msra.mxu0 0
    %4654 = vmatprep.mubr.bf16.mxu0 0
    %4655 = vmatmul.mubr.bf16.gmra.mxu0 %v4605
    %v4656 = vpop.f32.mrf.mxu0
    %v4657 = vadd.f32 0.0, %v4656
    %v4658 = vpop.f32.mrf.mxu0
    %v4659 = vpop.f32.mrf.mxu0
    %v4660 = vadd.f32 0.0, %v4659
    %v4661 = vpop.f32.mrf.mxu0
    %4662 = vmatprep.mubr.bf16.mxu0 0
    %4663 = vmatmul.mubr.bf16.gmra.mxu0 %v4608
    %v4664 = vpop.f32.mrf.mxu0
    %v4665 = vadd.f32 0.0, %v4664
    %v4666 = vpop.f32.mrf.mxu0
    %v4667 = vpop.f32.mrf.mxu0
    %v4668 = vadd.f32 0.0, %v4667
    %v4669 = vpop.f32.mrf.mxu0
    %4670 = vmatprep.mubr.bf16.mxu0 0
    %4671 = vmatmul.mubr.bf16.gmra.mxu0 %v4611
    %v4672 = vpop.f32.mrf.mxu0
    %v4673 = vadd.f32 0.0, %v4672
    %v4674 = vpop.f32.mrf.mxu0
    %v4675 = vpop.f32.mrf.mxu0
    %v4676 = vadd.f32 0.0, %v4675
    %v4677 = vpop.f32.mrf.mxu0
    %4678 = vmatprep.mubr.bf16.mxu0 0
    %4679 = vmatmul.mubr.bf16.gmra.mxu0 %v4614
    %v4680 = vpop.f32.mrf.mxu0
    %v4681 = vadd.f32 0.0, %v4680
    %v4682 = vpop.f32.mrf.mxu0
    %v4683 = vpop.f32.mrf.mxu0
    %v4684 = vadd.f32 0.0, %v4683
    %v4685 = vpop.f32.mrf.mxu0
    %4686 = vmatprep.mubr.bf16.mxu0 0
    %4687 = vmatmul.mubr.bf16.gmra.mxu0 %v4617
    %v4688 = vpop.f32.mrf.mxu0
    %v4689 = vadd.f32 0.0, %v4688
    %v4690 = vpop.f32.mrf.mxu0
    %v4691 = vpop.f32.mrf.mxu0
    %v4692 = vadd.f32 0.0, %v4691
    %v4693 = vpop.f32.mrf.mxu0
    %4694 = vdwg.mxu0
    %v4695 = vadd.f32 %v4502, %v4657
    %v4696 = vadd.f32 %v4505, %v4660
    %v4697 = vadd.f32 %v4510, %v4665
    %v4698 = vadd.f32 %v4513, %v4668
    %v4699 = vadd.f32 %v4518, %v4673
    %v4700 = vadd.f32 %v4521, %v4676
    %v4701 = vadd.f32 %v4526, %v4681
    %v4702 = vadd.f32 %v4529, %v4684
    %v4703 = vadd.f32 %v4534, %v4689
    %v4704 = vadd.f32 %v4537, %v4692
    %4705 = vrot.lane.b32.xlu0 %v4237, 125
    %v4706 = vpop.permute.xlu0 %4705
    %4707 = vrot.lane.b32.xlu0 %v4238, 125
    %v4708 = vpop.permute.xlu0 %4707
    %4709 = vrot.lane.b32.xlu0 %v4239, 125
    %v4710 = vpop.permute.xlu0 %4709
    %4711 = vrot.lane.b32.xlu0 %v4240, 125
    %v4712 = vpop.permute.xlu0 %4711
    %4713 = vrot.lane.b32.xlu0 %v4241, 125
    %v4714 = vpop.permute.xlu0 %4713
    %4715 = vrot.lane.b32.xlu0 %v4242, 125
    %v4716 = vpop.permute.xlu0 %4715
    %4717 = vrot.lane.b32.xlu0 %v4243, 125
    %v4718 = vpop.permute.xlu0 %4717
    %4719 = vrot.lane.b32.xlu0 %v4244, 125
    %v4720 = vpop.permute.xlu0 %4719
    %4721 = vrot.lane.b32.xlu0 %v4245, 125
    %v4722 = vpop.permute.xlu0 %4721
    %4723 = vrot.lane.b32.xlu0 %v4246, 125
    %v4724 = vpop.permute.xlu0 %4723
    %4725 = vrot.lane.b32.xlu0 %v4247, 125
    %v4726 = vpop.permute.xlu0 %4725
    %v4727 = vpack.c.bf16 %v4708, %v4706
    %v4728 = vpack.c.bf16 %v4712, %v4710
    %v4729 = vpack.c.bf16 %v4716, %v4714
    %v4730 = vpack.c.bf16 %v4720, %v4718
    %v4731 = vpack.c.bf16 %v4724, %v4722
    %v4732 = vpack.c.bf16 %v4726, %v4726
    %s4733 = scalar_lea.vmem [#allocation4], 120
    %v4734 = vld [vmem:[%s4733] sm:$0xf]
    %v4735 = vld [vmem:[%s4733 + $0x4] sm:$0xf]
    %v4736 = vld [vmem:[%s4733 + $0x8] sm:$0xf]
    %v4737 = vld [vmem:[%s4733 + $0xc] sm:$0xf]
    %v4738 = vld [vmem:[%s4733 + $0x10] sm:$0xf]
    %v4739 = vld [vmem:[%s4733 + $0x14] sm:$0xf]
    %v4740 = vld [vmem:[%s4733 + $0x18] sm:$0xf]
    %v4741 = vld [vmem:[%s4733 + $0x1c] sm:$0xf]
    %v4742 = vld [vmem:[%s4733 + $0x20] sm:$0xf]
    %v4743 = vld [vmem:[%s4733 + $0x24] sm:$0xf]
    %v4754 = vunpack.c.l.b16 %v4734
    %v4755 = vunpack.c.l.b16 %v4735
    %v4756 = vunpack.c.l.b16 %v4736
    %v4757 = vunpack.c.l.b16 %v4737
    %v4758 = vunpack.c.l.b16 %v4738
    %v4759 = vunpack.c.l.b16 %v4739
    %v4760 = vunpack.c.l.b16 %v4740
    %v4761 = vunpack.c.l.b16 %v4741
    %v4762 = vunpack.c.l.b16 %v4742
    %v4763 = vunpack.c.l.b16 %v4743
    %v4764 = vpack.c.b16 %v4755, %v4754
    %v4765 = vpack.c.b16 %v4757, %v4756
    %v4766 = vpack.c.b16 %v4759, %v4758
    %v4767 = vpack.c.b16 %v4761, %v4760
    %v4768 = vpack.c.b16 %v4763, %v4762
    %v4770 = vsel %vm4332, %v4764, 0
    %v4773 = vsel %vm4332, %v4765, 0
    %v4776 = vsel %vm4332, %v4766, 0
    %v4779 = vsel %vm4332, %v4767, 0
    %v4782 = vsel %vm4332, %v4768, 0
    %v4785 = vsel %vm979, %v4732, 0
    %4787 = vmatprep.subr.bf16.mxu0 0
    %4788 = vmatpush1.bf16.msra.mxu0 0
    %4789 = vmatprep.subr.bf16.mxu0 0
    %4790 = vmatpush1.bf16.msra.mxu0 0
    %4791 = vmatprep.subr.bf16.mxu0 0
    %4792 = vmatpush1.bf16.msra.mxu0 %v4785
    %4793 = vmatprep.subr.bf16.mxu0 0
    %4794 = vmatpush1.bf16.msra.mxu0 %v4731
    %4795 = vmatprep.subr.bf16.mxu0 0
    %4796 = vmatpush1.bf16.msra.mxu0 %v4730
    %4797 = vmatprep.subr.bf16.mxu0 0
    %4798 = vmatpush1.bf16.msra.mxu0 %v4729
    %4799 = vmatprep.subr.bf16.mxu0 0
    %4800 = vmatpush1.bf16.msra.mxu0 %v4728
    %4801 = vmatprep.subr.bf16.mxu0 0
    %4802 = vmatpush1.bf16.msra.mxu0 %v4727
    %4803 = vmatprep.subr.bf16.mxu0 0
    %4804 = vmatpush2.bf16.msra.mxu0 0
    %4805 = vmatprep.subr.bf16.mxu0 0
    %4806 = vmatpush2.bf16.msra.mxu0 0
    %4807 = vmatprep.subr.bf16.mxu0 0
    %4808 = vmatpush2.bf16.msra.mxu0 0
    %4809 = vmatprep.subr.bf16.mxu0 0
    %4810 = vmatpush2.bf16.msra.mxu0 0
    %4811 = vmatprep.subr.bf16.mxu0 0
    %4812 = vmatpush2.bf16.msra.mxu0 0
    %4813 = vmatprep.subr.bf16.mxu0 0
    %4814 = vmatpush2.bf16.msra.mxu0 0
    %4815 = vmatprep.subr.bf16.mxu0 0
    %4816 = vmatpush2.bf16.msra.mxu0 0
    %4817 = vmatprep.subr.bf16.mxu0 0
    %4818 = vmatpush2.bf16.msra.mxu0 0
    %4819 = vmatprep.mubr.bf16.mxu0 0
    %4820 = vmatmul.mubr.bf16.gmra.mxu0 %v4770
    %v4821 = vpop.f32.mrf.mxu0
    %v4822 = vadd.f32 0.0, %v4821
    %v4823 = vpop.f32.mrf.mxu0
    %v4824 = vpop.f32.mrf.mxu0
    %v4825 = vadd.f32 0.0, %v4824
    %v4826 = vpop.f32.mrf.mxu0
    %4827 = vmatprep.mubr.bf16.mxu0 0
    %4828 = vmatmul.mubr.bf16.gmra.mxu0 %v4773
    %v4829 = vpop.f32.mrf.mxu0
    %v4830 = vadd.f32 0.0, %v4829
    %v4831 = vpop.f32.mrf.mxu0
    %v4832 = vpop.f32.mrf.mxu0
    %v4833 = vadd.f32 0.0, %v4832
    %v4834 = vpop.f32.mrf.mxu0
    %4835 = vmatprep.mubr.bf16.mxu0 0
    %4836 = vmatmul.mubr.bf16.gmra.mxu0 %v4776
    %v4837 = vpop.f32.mrf.mxu0
    %v4838 = vadd.f32 0.0, %v4837
    %v4839 = vpop.f32.mrf.mxu0
    %v4840 = vpop.f32.mrf.mxu0
    %v4841 = vadd.f32 0.0, %v4840
    %v4842 = vpop.f32.mrf.mxu0
    %4843 = vmatprep.mubr.bf16.mxu0 0
    %4844 = vmatmul.mubr.bf16.gmra.mxu0 %v4779
    %v4845 = vpop.f32.mrf.mxu0
    %v4846 = vadd.f32 0.0, %v4845
    %v4847 = vpop.f32.mrf.mxu0
    %v4848 = vpop.f32.mrf.mxu0
    %v4849 = vadd.f32 0.0, %v4848
    %v4850 = vpop.f32.mrf.mxu0
    %4851 = vmatprep.mubr.bf16.mxu0 0
    %4852 = vmatmul.mubr.bf16.gmra.mxu0 %v4782
    %v4853 = vpop.f32.mrf.mxu0
    %v4854 = vadd.f32 0.0, %v4853
    %v4855 = vpop.f32.mrf.mxu0
    %v4856 = vpop.f32.mrf.mxu0
    %v4857 = vadd.f32 0.0, %v4856
    %v4858 = vpop.f32.mrf.mxu0
    %4859 = vdwg.mxu0
    %v4860 = vadd.f32 %v4695, %v4822
    %v4861 = vadd.f32 %v4696, %v4825
    %v4862 = vadd.f32 %v4697, %v4830
    %v4863 = vadd.f32 %v4698, %v4833
    %v4864 = vadd.f32 %v4699, %v4838
    %v4865 = vadd.f32 %v4700, %v4841
    %v4866 = vadd.f32 %v4701, %v4846
    %v4867 = vadd.f32 %v4702, %v4849
    %v4868 = vadd.f32 %v4703, %v4854
    %v4869 = vadd.f32 %v4704, %v4857
    %4870 = vrot.lane.b32.xlu0 %v4237, 124
    %v4871 = vpop.permute.xlu0 %4870
    %4872 = vrot.lane.b32.xlu0 %v4238, 124
    %v4873 = vpop.permute.xlu0 %4872
    %4874 = vrot.lane.b32.xlu0 %v4239, 124
    %v4875 = vpop.permute.xlu0 %4874
    %4876 = vrot.lane.b32.xlu0 %v4240, 124
    %v4877 = vpop.permute.xlu0 %4876
    %4878 = vrot.lane.b32.xlu0 %v4241, 124
    %v4879 = vpop.permute.xlu0 %4878
    %4880 = vrot.lane.b32.xlu0 %v4242, 124
    %v4881 = vpop.permute.xlu0 %4880
    %4882 = vrot.lane.b32.xlu0 %v4243, 124
    %v4883 = vpop.permute.xlu0 %4882
    %4884 = vrot.lane.b32.xlu0 %v4244, 124
    %v4885 = vpop.permute.xlu0 %4884
    %4886 = vrot.lane.b32.xlu0 %v4245, 124
    %v4887 = vpop.permute.xlu0 %4886
    %4888 = vrot.lane.b32.xlu0 %v4246, 124
    %v4889 = vpop.permute.xlu0 %4888
    %4890 = vrot.lane.b32.xlu0 %v4247, 124
    %v4891 = vpop.permute.xlu0 %4890
    %v4892 = vpack.c.bf16 %v4873, %v4871
    %v4893 = vpack.c.bf16 %v4877, %v4875
    %v4894 = vpack.c.bf16 %v4881, %v4879
    %v4895 = vpack.c.bf16 %v4885, %v4883
    %v4896 = vpack.c.bf16 %v4889, %v4887
    %v4897 = vpack.c.bf16 %v4891, %v4891
    %s4898 = scalar_lea.vmem [#allocation4], 160
    %v4899 = vld [vmem:[%s4898] sm:$0xf]
    %v4900 = vld [vmem:[%s4898 + $0x4] sm:$0xf]
    %v4901 = vld [vmem:[%s4898 + $0x8] sm:$0xf]
    %v4902 = vld [vmem:[%s4898 + $0xc] sm:$0xf]
    %v4903 = vld [vmem:[%s4898 + $0x10] sm:$0xf]
    %v4904 = vld [vmem:[%s4898 + $0x14] sm:$0xf]
    %v4905 = vld [vmem:[%s4898 + $0x18] sm:$0xf]
    %v4906 = vld [vmem:[%s4898 + $0x1c] sm:$0xf]
    %v4907 = vld [vmem:[%s4898 + $0x20] sm:$0xf]
    %v4908 = vld [vmem:[%s4898 + $0x24] sm:$0xf]
    %v4919 = vunpack.c.l.b16 %v4899
    %v4920 = vunpack.c.l.b16 %v4900
    %v4921 = vunpack.c.l.b16 %v4901
    %v4922 = vunpack.c.l.b16 %v4902
    %v4923 = vunpack.c.l.b16 %v4903
    %v4924 = vunpack.c.l.b16 %v4904
    %v4925 = vunpack.c.l.b16 %v4905
    %v4926 = vunpack.c.l.b16 %v4906
    %v4927 = vunpack.c.l.b16 %v4907
    %v4928 = vunpack.c.l.b16 %v4908
    %v4929 = vpack.c.b16 %v4920, %v4919
    %v4930 = vpack.c.b16 %v4922, %v4921
    %v4931 = vpack.c.b16 %v4924, %v4923
    %v4932 = vpack.c.b16 %v4926, %v4925
    %v4933 = vpack.c.b16 %v4928, %v4927
    %v4935 = vsel %vm4332, %v4929, 0
    %v4938 = vsel %vm4332, %v4930, 0
    %v4941 = vsel %vm4332, %v4931, 0
    %v4944 = vsel %vm4332, %v4932, 0
    %v4947 = vsel %vm4332, %v4933, 0
    %v4950 = vsel %vm979, %v4897, 0
    %4952 = vmatprep.subr.bf16.mxu0 0
    %4953 = vmatpush1.bf16.msra.mxu0 0
    %4954 = vmatprep.subr.bf16.mxu0 0
    %4955 = vmatpush1.bf16.msra.mxu0 0
    %4956 = vmatprep.subr.bf16.mxu0 0
    %4957 = vmatpush1.bf16.msra.mxu0 %v4950
    %4958 = vmatprep.subr.bf16.mxu0 0
    %4959 = vmatpush1.bf16.msra.mxu0 %v4896
    %4960 = vmatprep.subr.bf16.mxu0 0
    %4961 = vmatpush1.bf16.msra.mxu0 %v4895
    %4962 = vmatprep.subr.bf16.mxu0 0
    %4963 = vmatpush1.bf16.msra.mxu0 %v4894
    %4964 = vmatprep.subr.bf16.mxu0 0
    %4965 = vmatpush1.bf16.msra.mxu0 %v4893
    %4966 = vmatprep.subr.bf16.mxu0 0
    %4967 = vmatpush1.bf16.msra.mxu0 %v4892
    %4968 = vmatprep.subr.bf16.mxu0 0
    %4969 = vmatpush2.bf16.msra.mxu0 0
    %4970 = vmatprep.subr.bf16.mxu0 0
    %4971 = vmatpush2.bf16.msra.mxu0 0
    %4972 = vmatprep.subr.bf16.mxu0 0
    %4973 = vmatpush2.bf16.msra.mxu0 0
    %4974 = vmatprep.subr.bf16.mxu0 0
    %4975 = vmatpush2.bf16.msra.mxu0 0
    %4976 = vmatprep.subr.bf16.mxu0 0
    %4977 = vmatpush2.bf16.msra.mxu0 0
    %4978 = vmatprep.subr.bf16.mxu0 0
    %4979 = vmatpush2.bf16.msra.mxu0 0
    %4980 = vmatprep.subr.bf16.mxu0 0
    %4981 = vmatpush2.bf16.msra.mxu0 0
    %4982 = vmatprep.subr.bf16.mxu0 0
    %4983 = vmatpush2.bf16.msra.mxu0 0
    %4984 = vmatprep.mubr.bf16.mxu0 0
    %4985 = vmatmul.mubr.bf16.gmra.mxu0 %v4935
    %v4986 = vpop.f32.mrf.mxu0
    %v4987 = vadd.f32 0.0, %v4986
    %v4988 = vpop.f32.mrf.mxu0
    %v4989 = vpop.f32.mrf.mxu0
    %v4990 = vadd.f32 0.0, %v4989
    %v4991 = vpop.f32.mrf.mxu0
    %4992 = vmatprep.mubr.bf16.mxu0 0
    %4993 = vmatmul.mubr.bf16.gmra.mxu0 %v4938
    %v4994 = vpop.f32.mrf.mxu0
    %v4995 = vadd.f32 0.0, %v4994
    %v4996 = vpop.f32.mrf.mxu0
    %v4997 = vpop.f32.mrf.mxu0
    %v4998 = vadd.f32 0.0, %v4997
    %v4999 = vpop.f32.mrf.mxu0
    %5000 = vmatprep.mubr.bf16.mxu0 0
    %5001 = vmatmul.mubr.bf16.gmra.mxu0 %v4941
    %v5002 = vpop.f32.mrf.mxu0
    %v5003 = vadd.f32 0.0, %v5002
    %v5004 = vpop.f32.mrf.mxu0
    %v5005 = vpop.f32.mrf.mxu0
    %v5006 = vadd.f32 0.0, %v5005
    %v5007 = vpop.f32.mrf.mxu0
    %5008 = vmatprep.mubr.bf16.mxu0 0
    %5009 = vmatmul.mubr.bf16.gmra.mxu0 %v4944
    %v5010 = vpop.f32.mrf.mxu0
    %v5011 = vadd.f32 0.0, %v5010
    %v5012 = vpop.f32.mrf.mxu0
    %v5013 = vpop.f32.mrf.mxu0
    %v5014 = vadd.f32 0.0, %v5013
    %v5015 = vpop.f32.mrf.mxu0
    %5016 = vmatprep.mubr.bf16.mxu0 0
    %5017 = vmatmul.mubr.bf16.gmra.mxu0 %v4947
    %v5018 = vpop.f32.mrf.mxu0
    %v5019 = vadd.f32 0.0, %v5018
    %v5020 = vpop.f32.mrf.mxu0
    %v5021 = vpop.f32.mrf.mxu0
    %v5022 = vadd.f32 0.0, %v5021
    %v5023 = vpop.f32.mrf.mxu0
    %5024 = vdwg.mxu0
    %v5025 = vadd.f32 %v4860, %v4987
    %v5026 = vadd.f32 %v4861, %v4990
    %v5027 = vadd.f32 %v4862, %v4995
    %v5028 = vadd.f32 %v4863, %v4998
    %v5029 = vadd.f32 %v4864, %v5003
    %v5030 = vadd.f32 %v4865, %v5006
    %v5031 = vadd.f32 %v4866, %v5011
    %v5032 = vadd.f32 %v4867, %v5014
    %v5033 = vadd.f32 %v4868, %v5019
    %v5034 = vadd.f32 %v4869, %v5022
    %5035 = vrot.lane.b32.xlu0 %v4237, 123
    %v5036 = vpop.permute.xlu0 %5035
    %5037 = vrot.lane.b32.xlu0 %v4238, 123
    %v5038 = vpop.permute.xlu0 %5037
    %5039 = vrot.lane.b32.xlu0 %v4239, 123
    %v5040 = vpop.permute.xlu0 %5039
    %5041 = vrot.lane.b32.xlu0 %v4240, 123
    %v5042 = vpop.permute.xlu0 %5041
    %5043 = vrot.lane.b32.xlu0 %v4241, 123
    %v5044 = vpop.permute.xlu0 %5043
    %5045 = vrot.lane.b32.xlu0 %v4242, 123
    %v5046 = vpop.permute.xlu0 %5045
    %5047 = vrot.lane.b32.xlu0 %v4243, 123
    %v5048 = vpop.permute.xlu0 %5047
    %5049 = vrot.lane.b32.xlu0 %v4244, 123
    %v5050 = vpop.permute.xlu0 %5049
    %5051 = vrot.lane.b32.xlu0 %v4245, 123
    %v5052 = vpop.permute.xlu0 %5051
    %5053 = vrot.lane.b32.xlu0 %v4246, 123
    %v5054 = vpop.permute.xlu0 %5053
    %5055 = vrot.lane.b32.xlu0 %v4247, 123
    %v5056 = vpop.permute.xlu0 %5055
    %v5057 = vpack.c.bf16 %v5038, %v5036
    %v5058 = vpack.c.bf16 %v5042, %v5040
    %v5059 = vpack.c.bf16 %v5046, %v5044
    %v5060 = vpack.c.bf16 %v5050, %v5048
    %v5061 = vpack.c.bf16 %v5054, %v5052
    %v5062 = vpack.c.bf16 %v5056, %v5056
    %s5063 = scalar_lea.vmem [#allocation4], 200
    %v5064 = vld [vmem:[%s5063] sm:$0xf]
    %v5065 = vld [vmem:[%s5063 + $0x4] sm:$0xf]
    %v5066 = vld [vmem:[%s5063 + $0x8] sm:$0xf]
    %v5067 = vld [vmem:[%s5063 + $0xc] sm:$0xf]
    %v5068 = vld [vmem:[%s5063 + $0x10] sm:$0xf]
    %v5069 = vld [vmem:[%s5063 + $0x14] sm:$0xf]
    %v5070 = vld [vmem:[%s5063 + $0x18] sm:$0xf]
    %v5071 = vld [vmem:[%s5063 + $0x1c] sm:$0xf]
    %v5072 = vld [vmem:[%s5063 + $0x20] sm:$0xf]
    %v5073 = vld [vmem:[%s5063 + $0x24] sm:$0xf]
    %v5084 = vunpack.c.l.b16 %v5064
    %v5085 = vunpack.c.l.b16 %v5065
    %v5086 = vunpack.c.l.b16 %v5066
    %v5087 = vunpack.c.l.b16 %v5067
    %v5088 = vunpack.c.l.b16 %v5068
    %v5089 = vunpack.c.l.b16 %v5069
    %v5090 = vunpack.c.l.b16 %v5070
    %v5091 = vunpack.c.l.b16 %v5071
    %v5092 = vunpack.c.l.b16 %v5072
    %v5093 = vunpack.c.l.b16 %v5073
    %v5094 = vpack.c.b16 %v5085, %v5084
    %v5095 = vpack.c.b16 %v5087, %v5086
    %v5096 = vpack.c.b16 %v5089, %v5088
    %v5097 = vpack.c.b16 %v5091, %v5090
    %v5098 = vpack.c.b16 %v5093, %v5092
    %v5100 = vsel %vm4332, %v5094, 0
    %v5103 = vsel %vm4332, %v5095, 0
    %v5106 = vsel %vm4332, %v5096, 0
    %v5109 = vsel %vm4332, %v5097, 0
    %v5112 = vsel %vm4332, %v5098, 0
    %v5115 = vsel %vm979, %v5062, 0
    %5117 = vmatprep.subr.bf16.mxu0 0
    %5118 = vmatpush1.bf16.msra.mxu0 0
    %5119 = vmatprep.subr.bf16.mxu0 0
    %5120 = vmatpush1.bf16.msra.mxu0 0
    %5121 = vmatprep.subr.bf16.mxu0 0
    %5122 = vmatpush1.bf16.msra.mxu0 %v5115
    %5123 = vmatprep.subr.bf16.mxu0 0
    %5124 = vmatpush1.bf16.msra.mxu0 %v5061
    %5125 = vmatprep.subr.bf16.mxu0 0
    %5126 = vmatpush1.bf16.msra.mxu0 %v5060
    %5127 = vmatprep.subr.bf16.mxu0 0
    %5128 = vmatpush1.bf16.msra.mxu0 %v5059
    %5129 = vmatprep.subr.bf16.mxu0 0
    %5130 = vmatpush1.bf16.msra.mxu0 %v5058
    %5131 = vmatprep.subr.bf16.mxu0 0
    %5132 = vmatpush1.bf16.msra.mxu0 %v5057
    %5133 = vmatprep.subr.bf16.mxu0 0
    %5134 = vmatpush2.bf16.msra.mxu0 0
    %5135 = vmatprep.subr.bf16.mxu0 0
    %5136 = vmatpush2.bf16.msra.mxu0 0
    %5137 = vmatprep.subr.bf16.mxu0 0
    %5138 = vmatpush2.bf16.msra.mxu0 0
    %5139 = vmatprep.subr.bf16.mxu0 0
    %5140 = vmatpush2.bf16.msra.mxu0 0
    %5141 = vmatprep.subr.bf16.mxu0 0
    %5142 = vmatpush2.bf16.msra.mxu0 0
    %5143 = vmatprep.subr.bf16.mxu0 0
    %5144 = vmatpush2.bf16.msra.mxu0 0
    %5145 = vmatprep.subr.bf16.mxu0 0
    %5146 = vmatpush2.bf16.msra.mxu0 0
    %5147 = vmatprep.subr.bf16.mxu0 0
    %5148 = vmatpush2.bf16.msra.mxu0 0
    %5149 = vmatprep.mubr.bf16.mxu0 0
    %5150 = vmatmul.mubr.bf16.gmra.mxu0 %v5100
    %v5151 = vpop.f32.mrf.mxu0
    %v5152 = vadd.f32 0.0, %v5151
    %v5153 = vpop.f32.mrf.mxu0
    %v5154 = vpop.f32.mrf.mxu0
    %v5155 = vadd.f32 0.0, %v5154
    %v5156 = vpop.f32.mrf.mxu0
    %5157 = vmatprep.mubr.bf16.mxu0 0
    %5158 = vmatmul.mubr.bf16.gmra.mxu0 %v5103
    %v5159 = vpop.f32.mrf.mxu0
    %v5160 = vadd.f32 0.0, %v5159
    %v5161 = vpop.f32.mrf.mxu0
    %v5162 = vpop.f32.mrf.mxu0
    %v5163 = vadd.f32 0.0, %v5162
    %v5164 = vpop.f32.mrf.mxu0
    %5165 = vmatprep.mubr.bf16.mxu0 0
    %5166 = vmatmul.mubr.bf16.gmra.mxu0 %v5106
    %v5167 = vpop.f32.mrf.mxu0
    %v5168 = vadd.f32 0.0, %v5167
    %v5169 = vpop.f32.mrf.mxu0
    %v5170 = vpop.f32.mrf.mxu0
    %v5171 = vadd.f32 0.0, %v5170
    %v5172 = vpop.f32.mrf.mxu0
    %5173 = vmatprep.mubr.bf16.mxu0 0
    %5174 = vmatmul.mubr.bf16.gmra.mxu0 %v5109
    %v5175 = vpop.f32.mrf.mxu0
    %v5176 = vadd.f32 0.0, %v5175
    %v5177 = vpop.f32.mrf.mxu0
    %v5178 = vpop.f32.mrf.mxu0
    %v5179 = vadd.f32 0.0, %v5178
    %v5180 = vpop.f32.mrf.mxu0
    %5181 = vmatprep.mubr.bf16.mxu0 0
    %5182 = vmatmul.mubr.bf16.gmra.mxu0 %v5112
    %v5183 = vpop.f32.mrf.mxu0
    %v5184 = vadd.f32 0.0, %v5183
    %v5185 = vpop.f32.mrf.mxu0
    %v5186 = vpop.f32.mrf.mxu0
    %v5187 = vadd.f32 0.0, %v5186
    %v5188 = vpop.f32.mrf.mxu0
    %5189 = vdwg.mxu0
    %v5190 = vadd.f32 %v5025, %v5152
    %v5191 = vadd.f32 %v5026, %v5155
    %v5192 = vadd.f32 %v5027, %v5160
    %v5193 = vadd.f32 %v5028, %v5163
    %v5194 = vadd.f32 %v5029, %v5168
    %v5195 = vadd.f32 %v5030, %v5171
    %v5196 = vadd.f32 %v5031, %v5176
    %v5197 = vadd.f32 %v5032, %v5179
    %v5198 = vadd.f32 %v5033, %v5184
    %v5199 = vadd.f32 %v5034, %v5187
    %5200 = vrot.lane.b32.xlu0 %v4237, 122
    %v5201 = vpop.permute.xlu0 %5200
    %5202 = vrot.lane.b32.xlu0 %v4238, 122
    %v5203 = vpop.permute.xlu0 %5202
    %5204 = vrot.lane.b32.xlu0 %v4239, 122
    %v5205 = vpop.permute.xlu0 %5204
    %5206 = vrot.lane.b32.xlu0 %v4240, 122
    %v5207 = vpop.permute.xlu0 %5206
    %5208 = vrot.lane.b32.xlu0 %v4241, 122
    %v5209 = vpop.permute.xlu0 %5208
    %5210 = vrot.lane.b32.xlu0 %v4242, 122
    %v5211 = vpop.permute.xlu0 %5210
    %5212 = vrot.lane.b32.xlu0 %v4243, 122
    %v5213 = vpop.permute.xlu0 %5212
    %5214 = vrot.lane.b32.xlu0 %v4244, 122
    %v5215 = vpop.permute.xlu0 %5214
    %5216 = vrot.lane.b32.xlu0 %v4245, 122
    %v5217 = vpop.permute.xlu0 %5216
    %5218 = vrot.lane.b32.xlu0 %v4246, 122
    %v5219 = vpop.permute.xlu0 %5218
    %5220 = vrot.lane.b32.xlu0 %v4247, 122
    %v5221 = vpop.permute.xlu0 %5220
    %v5222 = vpack.c.bf16 %v5203, %v5201
    %v5223 = vpack.c.bf16 %v5207, %v5205
    %v5224 = vpack.c.bf16 %v5211, %v5209
    %v5225 = vpack.c.bf16 %v5215, %v5213
    %v5226 = vpack.c.bf16 %v5219, %v5217
    %v5227 = vpack.c.bf16 %v5221, %v5221
    %s5228 = scalar_lea.vmem [#allocation4], 240
    %v5229 = vld [vmem:[%s5228] sm:$0xf]
    %v5230 = vld [vmem:[%s5228 + $0x4] sm:$0xf]
    %v5231 = vld [vmem:[%s5228 + $0x8] sm:$0xf]
    %v5232 = vld [vmem:[%s5228 + $0xc] sm:$0xf]
    %v5233 = vld [vmem:[%s5228 + $0x10] sm:$0xf]
    %v5234 = vld [vmem:[%s5228 + $0x14] sm:$0xf]
    %v5235 = vld [vmem:[%s5228 + $0x18] sm:$0xf]
    %v5236 = vld [vmem:[%s5228 + $0x1c] sm:$0xf]
    %v5237 = vld [vmem:[%s5228 + $0x20] sm:$0xf]
    %v5238 = vld [vmem:[%s5228 + $0x24] sm:$0xf]
    %v5249 = vunpack.c.l.b16 %v5229
    %v5250 = vunpack.c.l.b16 %v5230
    %v5251 = vunpack.c.l.b16 %v5231
    %v5252 = vunpack.c.l.b16 %v5232
    %v5253 = vunpack.c.l.b16 %v5233
    %v5254 = vunpack.c.l.b16 %v5234
    %v5255 = vunpack.c.l.b16 %v5235
    %v5256 = vunpack.c.l.b16 %v5236
    %v5257 = vunpack.c.l.b16 %v5237
    %v5258 = vunpack.c.l.b16 %v5238
    %v5259 = vpack.c.b16 %v5250, %v5249
    %v5260 = vpack.c.b16 %v5252, %v5251
    %v5261 = vpack.c.b16 %v5254, %v5253
    %v5262 = vpack.c.b16 %v5256, %v5255
    %v5263 = vpack.c.b16 %v5258, %v5257
    %v5265 = vsel %vm4332, %v5259, 0
    %v5268 = vsel %vm4332, %v5260, 0
    %v5271 = vsel %vm4332, %v5261, 0
    %v5274 = vsel %vm4332, %v5262, 0
    %v5277 = vsel %vm4332, %v5263, 0
    %v5280 = vsel %vm979, %v5227, 0
    %5282 = vmatprep.subr.bf16.mxu0 0
    %5283 = vmatpush1.bf16.msra.mxu0 0
    %5284 = vmatprep.subr.bf16.mxu0 0
    %5285 = vmatpush1.bf16.msra.mxu0 0
    %5286 = vmatprep.subr.bf16.mxu0 0
    %5287 = vmatpush1.bf16.msra.mxu0 %v5280
    %5288 = vmatprep.subr.bf16.mxu0 0
    %5289 = vmatpush1.bf16.msra.mxu0 %v5226
    %5290 = vmatprep.subr.bf16.mxu0 0
    %5291 = vmatpush1.bf16.msra.mxu0 %v5225
    %5292 = vmatprep.subr.bf16.mxu0 0
    %5293 = vmatpush1.bf16.msra.mxu0 %v5224
    %5294 = vmatprep.subr.bf16.mxu0 0
    %5295 = vmatpush1.bf16.msra.mxu0 %v5223
    %5296 = vmatprep.subr.bf16.mxu0 0
    %5297 = vmatpush1.bf16.msra.mxu0 %v5222
    %5298 = vmatprep.subr.bf16.mxu0 0
    %5299 = vmatpush2.bf16.msra.mxu0 0
    %5300 = vmatprep.subr.bf16.mxu0 0
    %5301 = vmatpush2.bf16.msra.mxu0 0
    %5302 = vmatprep.subr.bf16.mxu0 0
    %5303 = vmatpush2.bf16.msra.mxu0 0
    %5304 = vmatprep.subr.bf16.mxu0 0
    %5305 = vmatpush2.bf16.msra.mxu0 0
    %5306 = vmatprep.subr.bf16.mxu0 0
    %5307 = vmatpush2.bf16.msra.mxu0 0
    %5308 = vmatprep.subr.bf16.mxu0 0
    %5309 = vmatpush2.bf16.msra.mxu0 0
    %5310 = vmatprep.subr.bf16.mxu0 0
    %5311 = vmatpush2.bf16.msra.mxu0 0
    %5312 = vmatprep.subr.bf16.mxu0 0
    %5313 = vmatpush2.bf16.msra.mxu0 0
    %5314 = vmatprep.mubr.bf16.mxu0 0
    %5315 = vmatmul.mubr.bf16.gmra.mxu0 %v5265
    %v5316 = vpop.f32.mrf.mxu0
    %v5317 = vadd.f32 0.0, %v5316
    %v5318 = vpop.f32.mrf.mxu0
    %v5319 = vpop.f32.mrf.mxu0
    %v5320 = vadd.f32 0.0, %v5319
    %v5321 = vpop.f32.mrf.mxu0
    %5322 = vmatprep.mubr.bf16.mxu0 0
    %5323 = vmatmul.mubr.bf16.gmra.mxu0 %v5268
    %v5324 = vpop.f32.mrf.mxu0
    %v5325 = vadd.f32 0.0, %v5324
    %v5326 = vpop.f32.mrf.mxu0
    %v5327 = vpop.f32.mrf.mxu0
    %v5328 = vadd.f32 0.0, %v5327
    %v5329 = vpop.f32.mrf.mxu0
    %5330 = vmatprep.mubr.bf16.mxu0 0
    %5331 = vmatmul.mubr.bf16.gmra.mxu0 %v5271
    %v5332 = vpop.f32.mrf.mxu0
    %v5333 = vadd.f32 0.0, %v5332
    %v5334 = vpop.f32.mrf.mxu0
    %v5335 = vpop.f32.mrf.mxu0
    %v5336 = vadd.f32 0.0, %v5335
    %v5337 = vpop.f32.mrf.mxu0
    %5338 = vmatprep.mubr.bf16.mxu0 0
    %5339 = vmatmul.mubr.bf16.gmra.mxu0 %v5274
    %v5340 = vpop.f32.mrf.mxu0
    %v5341 = vadd.f32 0.0, %v5340
    %v5342 = vpop.f32.mrf.mxu0
    %v5343 = vpop.f32.mrf.mxu0
    %v5344 = vadd.f32 0.0, %v5343
    %v5345 = vpop.f32.mrf.mxu0
    %5346 = vmatprep.mubr.bf16.mxu0 0
    %5347 = vmatmul.mubr.bf16.gmra.mxu0 %v5277
    %v5348 = vpop.f32.mrf.mxu0
    %v5349 = vadd.f32 0.0, %v5348
    %v5350 = vpop.f32.mrf.mxu0
    %v5351 = vpop.f32.mrf.mxu0
    %v5352 = vadd.f32 0.0, %v5351
    %v5353 = vpop.f32.mrf.mxu0
    %5354 = vdwg.mxu0
    %v5355 = vadd.f32 %v5190, %v5317
    %v5356 = vadd.f32 %v5191, %v5320
    %v5357 = vadd.f32 %v5192, %v5325
    %v5358 = vadd.f32 %v5193, %v5328
    %v5359 = vadd.f32 %v5194, %v5333
    %v5360 = vadd.f32 %v5195, %v5336
    %v5361 = vadd.f32 %v5196, %v5341
    %v5362 = vadd.f32 %v5197, %v5344
    %v5363 = vadd.f32 %v5198, %v5349
    %v5364 = vadd.f32 %v5199, %v5352
    %5365 = vrot.lane.b32.xlu0 %v4237, 121
    %v5366 = vpop.permute.xlu0 %5365
    %5367 = vrot.lane.b32.xlu0 %v4238, 121
    %v5368 = vpop.permute.xlu0 %5367
    %5369 = vrot.lane.b32.xlu0 %v4239, 121
    %v5370 = vpop.permute.xlu0 %5369
    %5371 = vrot.lane.b32.xlu0 %v4240, 121
    %v5372 = vpop.permute.xlu0 %5371
    %5373 = vrot.lane.b32.xlu0 %v4241, 121
    %v5374 = vpop.permute.xlu0 %5373
    %5375 = vrot.lane.b32.xlu0 %v4242, 121
    %v5376 = vpop.permute.xlu0 %5375
    %5377 = vrot.lane.b32.xlu0 %v4243, 121
    %v5378 = vpop.permute.xlu0 %5377
    %5379 = vrot.lane.b32.xlu0 %v4244, 121
    %v5380 = vpop.permute.xlu0 %5379
    %5381 = vrot.lane.b32.xlu0 %v4245, 121
    %v5382 = vpop.permute.xlu0 %5381
    %5383 = vrot.lane.b32.xlu0 %v4246, 121
    %v5384 = vpop.permute.xlu0 %5383
    %5385 = vrot.lane.b32.xlu0 %v4247, 121
    %v5386 = vpop.permute.xlu0 %5385
    %v5387 = vpack.c.bf16 %v5368, %v5366
    %v5388 = vpack.c.bf16 %v5372, %v5370
    %v5389 = vpack.c.bf16 %v5376, %v5374
    %v5390 = vpack.c.bf16 %v5380, %v5378
    %v5391 = vpack.c.bf16 %v5384, %v5382
    %v5392 = vpack.c.bf16 %v5386, %v5386
    %s5393 = scalar_lea.vmem [#allocation4], 280
    %v5394 = vld [vmem:[%s5393] sm:$0xf]
    %v5395 = vld [vmem:[%s5393 + $0x4] sm:$0xf]
    %v5396 = vld [vmem:[%s5393 + $0x8] sm:$0xf]
    %v5397 = vld [vmem:[%s5393 + $0xc] sm:$0xf]
    %v5398 = vld [vmem:[%s5393 + $0x10] sm:$0xf]
    %v5399 = vld [vmem:[%s5393 + $0x14] sm:$0xf]
    %v5400 = vld [vmem:[%s5393 + $0x18] sm:$0xf]
    %v5401 = vld [vmem:[%s5393 + $0x1c] sm:$0xf]
    %v5402 = vld [vmem:[%s5393 + $0x20] sm:$0xf]
    %v5403 = vld [vmem:[%s5393 + $0x24] sm:$0xf]
    %v5414 = vunpack.c.l.b16 %v5394
    %v5415 = vunpack.c.l.b16 %v5395
    %v5416 = vunpack.c.l.b16 %v5396
    %v5417 = vunpack.c.l.b16 %v5397
    %v5418 = vunpack.c.l.b16 %v5398
    %v5419 = vunpack.c.l.b16 %v5399
    %v5420 = vunpack.c.l.b16 %v5400
    %v5421 = vunpack.c.l.b16 %v5401
    %v5422 = vunpack.c.l.b16 %v5402
    %v5423 = vunpack.c.l.b16 %v5403
    %v5424 = vpack.c.b16 %v5415, %v5414
    %v5425 = vpack.c.b16 %v5417, %v5416
    %v5426 = vpack.c.b16 %v5419, %v5418
    %v5427 = vpack.c.b16 %v5421, %v5420
    %v5428 = vpack.c.b16 %v5423, %v5422
    %v5430 = vsel %vm4332, %v5424, 0
    %v5433 = vsel %vm4332, %v5425, 0
    %v5436 = vsel %vm4332, %v5426, 0
    %v5439 = vsel %vm4332, %v5427, 0
    %v5442 = vsel %vm4332, %v5428, 0
    %v5445 = vsel %vm979, %v5392, 0
    %5447 = vmatprep.subr.bf16.mxu0 0
    %5448 = vmatpush1.bf16.msra.mxu0 0
    %5449 = vmatprep.subr.bf16.mxu0 0
    %5450 = vmatpush1.bf16.msra.mxu0 0
    %5451 = vmatprep.subr.bf16.mxu0 0
    %5452 = vmatpush1.bf16.msra.mxu0 %v5445
    %5453 = vmatprep.subr.bf16.mxu0 0
    %5454 = vmatpush1.bf16.msra.mxu0 %v5391
    %5455 = vmatprep.subr.bf16.mxu0 0
    %5456 = vmatpush1.bf16.msra.mxu0 %v5390
    %5457 = vmatprep.subr.bf16.mxu0 0
    %5458 = vmatpush1.bf16.msra.mxu0 %v5389
    %5459 = vmatprep.subr.bf16.mxu0 0
    %5460 = vmatpush1.bf16.msra.mxu0 %v5388
    %5461 = vmatprep.subr.bf16.mxu0 0
    %5462 = vmatpush1.bf16.msra.mxu0 %v5387
    %5463 = vmatprep.subr.bf16.mxu0 0
    %5464 = vmatpush2.bf16.msra.mxu0 0
    %5465 = vmatprep.subr.bf16.mxu0 0
    %5466 = vmatpush2.bf16.msra.mxu0 0
    %5467 = vmatprep.subr.bf16.mxu0 0
    %5468 = vmatpush2.bf16.msra.mxu0 0
    %5469 = vmatprep.subr.bf16.mxu0 0
    %5470 = vmatpush2.bf16.msra.mxu0 0
    %5471 = vmatprep.subr.bf16.mxu0 0
    %5472 = vmatpush2.bf16.msra.mxu0 0
    %5473 = vmatprep.subr.bf16.mxu0 0
    %5474 = vmatpush2.bf16.msra.mxu0 0
    %5475 = vmatprep.subr.bf16.mxu0 0
    %5476 = vmatpush2.bf16.msra.mxu0 0
    %5477 = vmatprep.subr.bf16.mxu0 0
    %5478 = vmatpush2.bf16.msra.mxu0 0
    %5479 = vmatprep.mubr.bf16.mxu0 0
    %5480 = vmatmul.mubr.bf16.gmra.mxu0 %v5430
    %v5481 = vpop.f32.mrf.mxu0
    %v5482 = vadd.f32 0.0, %v5481
    %v5483 = vpop.f32.mrf.mxu0
    %v5484 = vpop.f32.mrf.mxu0
    %v5485 = vadd.f32 0.0, %v5484
    %v5486 = vpop.f32.mrf.mxu0
    %5487 = vmatprep.mubr.bf16.mxu0 0
    %5488 = vmatmul.mubr.bf16.gmra.mxu0 %v5433
    %v5489 = vpop.f32.mrf.mxu0
    %v5490 = vadd.f32 0.0, %v5489
    %v5491 = vpop.f32.mrf.mxu0
    %v5492 = vpop.f32.mrf.mxu0
    %v5493 = vadd.f32 0.0, %v5492
    %v5494 = vpop.f32.mrf.mxu0
    %5495 = vmatprep.mubr.bf16.mxu0 0
    %5496 = vmatmul.mubr.bf16.gmra.mxu0 %v5436
    %v5497 = vpop.f32.mrf.mxu0
    %v5498 = vadd.f32 0.0, %v5497
    %v5499 = vpop.f32.mrf.mxu0
    %v5500 = vpop.f32.mrf.mxu0
    %v5501 = vadd.f32 0.0, %v5500
    %v5502 = vpop.f32.mrf.mxu0
    %5503 = vmatprep.mubr.bf16.mxu0 0
    %5504 = vmatmul.mubr.bf16.gmra.mxu0 %v5439
    %v5505 = vpop.f32.mrf.mxu0
    %v5506 = vadd.f32 0.0, %v5505
    %v5507 = vpop.f32.mrf.mxu0
    %v5508 = vpop.f32.mrf.mxu0
    %v5509 = vadd.f32 0.0, %v5508
    %v5510 = vpop.f32.mrf.mxu0
    %5511 = vmatprep.mubr.bf16.mxu0 0
    %5512 = vmatmul.mubr.bf16.gmra.mxu0 %v5442
    %v5513 = vpop.f32.mrf.mxu0
    %v5514 = vadd.f32 0.0, %v5513
    %v5515 = vpop.f32.mrf.mxu0
    %v5516 = vpop.f32.mrf.mxu0
    %v5517 = vadd.f32 0.0, %v5516
    %v5518 = vpop.f32.mrf.mxu0
    %5519 = vdwg.mxu0
    %v5520 = vadd.f32 %v5355, %v5482
    %v5521 = vadd.f32 %v5356, %v5485
    %v5522 = vadd.f32 %v5357, %v5490
    %v5523 = vadd.f32 %v5358, %v5493
    %v5524 = vadd.f32 %v5359, %v5498
    %v5525 = vadd.f32 %v5360, %v5501
    %v5526 = vadd.f32 %v5361, %v5506
    %v5527 = vadd.f32 %v5362, %v5509
    %v5528 = vadd.f32 %v5363, %v5514
    %v5529 = vadd.f32 %v5364, %v5517
    %5530 = vrot.lane.b32.xlu0 %v4237, 120
    %v5531 = vpop.permute.xlu0 %5530
    %5532 = vrot.lane.b32.xlu0 %v4238, 120
    %v5533 = vpop.permute.xlu0 %5532
    %5534 = vrot.lane.b32.xlu0 %v4239, 120
    %v5535 = vpop.permute.xlu0 %5534
    %5536 = vrot.lane.b32.xlu0 %v4240, 120
    %v5537 = vpop.permute.xlu0 %5536
    %5538 = vrot.lane.b32.xlu0 %v4241, 120
    %v5539 = vpop.permute.xlu0 %5538
    %5540 = vrot.lane.b32.xlu0 %v4242, 120
    %v5541 = vpop.permute.xlu0 %5540
    %5542 = vrot.lane.b32.xlu0 %v4243, 120
    %v5543 = vpop.permute.xlu0 %5542
    %5544 = vrot.lane.b32.xlu0 %v4244, 120
    %v5545 = vpop.permute.xlu0 %5544
    %5546 = vrot.lane.b32.xlu0 %v4245, 120
    %v5547 = vpop.permute.xlu0 %5546
    %5548 = vrot.lane.b32.xlu0 %v4246, 120
    %v5549 = vpop.permute.xlu0 %5548
    %5550 = vrot.lane.b32.xlu0 %v4247, 120
    %v5551 = vpop.permute.xlu0 %5550
    %v5552 = vpack.c.bf16 %v5533, %v5531
    %v5553 = vpack.c.bf16 %v5537, %v5535
    %v5554 = vpack.c.bf16 %v5541, %v5539
    %v5555 = vpack.c.bf16 %v5545, %v5543
    %v5556 = vpack.c.bf16 %v5549, %v5547
    %v5557 = vpack.c.bf16 %v5551, %v5551
    %s5558 = scalar_lea.vmem [#allocation4], 320
    %v5559 = vld [vmem:[%s5558] sm:$0xf]
    %v5560 = vld [vmem:[%s5558 + $0x4] sm:$0xf]
    %v5561 = vld [vmem:[%s5558 + $0x8] sm:$0xf]
    %v5562 = vld [vmem:[%s5558 + $0xc] sm:$0xf]
    %v5563 = vld [vmem:[%s5558 + $0x10] sm:$0xf]
    %v5564 = vld [vmem:[%s5558 + $0x14] sm:$0xf]
    %v5565 = vld [vmem:[%s5558 + $0x18] sm:$0xf]
    %v5566 = vld [vmem:[%s5558 + $0x1c] sm:$0xf]
    %v5567 = vld [vmem:[%s5558 + $0x20] sm:$0xf]
    %v5568 = vld [vmem:[%s5558 + $0x24] sm:$0xf]
    %v5579 = vunpack.c.l.b16 %v5559
    %v5580 = vunpack.c.l.b16 %v5560
    %v5581 = vunpack.c.l.b16 %v5561
    %v5582 = vunpack.c.l.b16 %v5562
    %v5583 = vunpack.c.l.b16 %v5563
    %v5584 = vunpack.c.l.b16 %v5564
    %v5585 = vunpack.c.l.b16 %v5565
    %v5586 = vunpack.c.l.b16 %v5566
    %v5587 = vunpack.c.l.b16 %v5567
    %v5588 = vunpack.c.l.b16 %v5568
    %v5589 = vpack.c.b16 %v5580, %v5579
    %v5590 = vpack.c.b16 %v5582, %v5581
    %v5591 = vpack.c.b16 %v5584, %v5583
    %v5592 = vpack.c.b16 %v5586, %v5585
    %v5593 = vpack.c.b16 %v5588, %v5587
    %v5595 = vsel %vm4332, %v5589, 0
    %v5598 = vsel %vm4332, %v5590, 0
    %v5601 = vsel %vm4332, %v5591, 0
    %v5604 = vsel %vm4332, %v5592, 0
    %v5607 = vsel %vm4332, %v5593, 0
    %v5610 = vsel %vm979, %v5557, 0
    %5612 = vmatprep.subr.bf16.mxu0 0
    %5613 = vmatpush1.bf16.msra.mxu0 0
    %5614 = vmatprep.subr.bf16.mxu0 0
    %5615 = vmatpush1.bf16.msra.mxu0 0
    %5616 = vmatprep.subr.bf16.mxu0 0
    %5617 = vmatpush1.bf16.msra.mxu0 %v5610
    %5618 = vmatprep.subr.bf16.mxu0 0
    %5619 = vmatpush1.bf16.msra.mxu0 %v5556
    %5620 = vmatprep.subr.bf16.mxu0 0
    %5621 = vmatpush1.bf16.msra.mxu0 %v5555
    %5622 = vmatprep.subr.bf16.mxu0 0
    %5623 = vmatpush1.bf16.msra.mxu0 %v5554
    %5624 = vmatprep.subr.bf16.mxu0 0
    %5625 = vmatpush1.bf16.msra.mxu0 %v5553
    %5626 = vmatprep.subr.bf16.mxu0 0
    %5627 = vmatpush1.bf16.msra.mxu0 %v5552
    %5628 = vmatprep.subr.bf16.mxu0 0
    %5629 = vmatpush2.bf16.msra.mxu0 0
    %5630 = vmatprep.subr.bf16.mxu0 0
    %5631 = vmatpush2.bf16.msra.mxu0 0
    %5632 = vmatprep.subr.bf16.mxu0 0
    %5633 = vmatpush2.bf16.msra.mxu0 0
    %5634 = vmatprep.subr.bf16.mxu0 0
    %5635 = vmatpush2.bf16.msra.mxu0 0
    %5636 = vmatprep.subr.bf16.mxu0 0
    %5637 = vmatpush2.bf16.msra.mxu0 0
    %5638 = vmatprep.subr.bf16.mxu0 0
    %5639 = vmatpush2.bf16.msra.mxu0 0
    %5640 = vmatprep.subr.bf16.mxu0 0
    %5641 = vmatpush2.bf16.msra.mxu0 0
    %5642 = vmatprep.subr.bf16.mxu0 0
    %5643 = vmatpush2.bf16.msra.mxu0 0
    %5644 = vmatprep.mubr.bf16.mxu0 0
    %5645 = vmatmul.mubr.bf16.gmra.mxu0 %v5595
    %v5646 = vpop.f32.mrf.mxu0
    %v5647 = vadd.f32 0.0, %v5646
    %v5648 = vpop.f32.mrf.mxu0
    %v5649 = vpop.f32.mrf.mxu0
    %v5650 = vadd.f32 0.0, %v5649
    %v5651 = vpop.f32.mrf.mxu0
    %5652 = vmatprep.mubr.bf16.mxu0 0
    %5653 = vmatmul.mubr.bf16.gmra.mxu0 %v5598
    %v5654 = vpop.f32.mrf.mxu0
    %v5655 = vadd.f32 0.0, %v5654
    %v5656 = vpop.f32.mrf.mxu0
    %v5657 = vpop.f32.mrf.mxu0
    %v5658 = vadd.f32 0.0, %v5657
    %v5659 = vpop.f32.mrf.mxu0
    %5660 = vmatprep.mubr.bf16.mxu0 0
    %5661 = vmatmul.mubr.bf16.gmra.mxu0 %v5601
    %v5662 = vpop.f32.mrf.mxu0
    %v5663 = vadd.f32 0.0, %v5662
    %v5664 = vpop.f32.mrf.mxu0
    %v5665 = vpop.f32.mrf.mxu0
    %v5666 = vadd.f32 0.0, %v5665
    %v5667 = vpop.f32.mrf.mxu0
    %5668 = vmatprep.mubr.bf16.mxu0 0
    %5669 = vmatmul.mubr.bf16.gmra.mxu0 %v5604
    %v5670 = vpop.f32.mrf.mxu0
    %v5671 = vadd.f32 0.0, %v5670
    %v5672 = vpop.f32.mrf.mxu0
    %v5673 = vpop.f32.mrf.mxu0
    %v5674 = vadd.f32 0.0, %v5673
    %v5675 = vpop.f32.mrf.mxu0
    %5676 = vmatprep.mubr.bf16.mxu0 0
    %5677 = vmatmul.mubr.bf16.gmra.mxu0 %v5607
    %v5678 = vpop.f32.mrf.mxu0
    %v5679 = vadd.f32 0.0, %v5678
    %v5680 = vpop.f32.mrf.mxu0
    %v5681 = vpop.f32.mrf.mxu0
    %v5682 = vadd.f32 0.0, %v5681
    %v5683 = vpop.f32.mrf.mxu0
    %5684 = vdwg.mxu0
    %v5685 = vadd.f32 %v5520, %v5647
    %v5686 = vadd.f32 %v5521, %v5650
    %v5687 = vadd.f32 %v5522, %v5655
    %v5688 = vadd.f32 %v5523, %v5658
    %v5689 = vadd.f32 %v5524, %v5663
    %v5690 = vadd.f32 %v5525, %v5666
    %v5691 = vadd.f32 %v5526, %v5671
    %v5692 = vadd.f32 %v5527, %v5674
    %v5693 = vadd.f32 %v5528, %v5679
    %v5694 = vadd.f32 %v5529, %v5682
    %5695 = vrot.lane.b32.xlu0 %v4237, 119
    %v5696 = vpop.permute.xlu0 %5695
    %5697 = vrot.lane.b32.xlu0 %v4238, 119
    %v5698 = vpop.permute.xlu0 %5697
    %5699 = vrot.lane.b32.xlu0 %v4239, 119
    %v5700 = vpop.permute.xlu0 %5699
    %5701 = vrot.lane.b32.xlu0 %v4240, 119
    %v5702 = vpop.permute.xlu0 %5701
    %5703 = vrot.lane.b32.xlu0 %v4241, 119
    %v5704 = vpop.permute.xlu0 %5703
    %5705 = vrot.lane.b32.xlu0 %v4242, 119
    %v5706 = vpop.permute.xlu0 %5705
    %5707 = vrot.lane.b32.xlu0 %v4243, 119
    %v5708 = vpop.permute.xlu0 %5707
    %5709 = vrot.lane.b32.xlu0 %v4244, 119
    %v5710 = vpop.permute.xlu0 %5709
    %5711 = vrot.lane.b32.xlu0 %v4245, 119
    %v5712 = vpop.permute.xlu0 %5711
    %5713 = vrot.lane.b32.xlu0 %v4246, 119
    %v5714 = vpop.permute.xlu0 %5713
    %5715 = vrot.lane.b32.xlu0 %v4247, 119
    %v5716 = vpop.permute.xlu0 %5715
    %v5717 = vpack.c.bf16 %v5698, %v5696
    %v5718 = vpack.c.bf16 %v5702, %v5700
    %v5719 = vpack.c.bf16 %v5706, %v5704
    %v5720 = vpack.c.bf16 %v5710, %v5708
    %v5721 = vpack.c.bf16 %v5714, %v5712
    %v5722 = vpack.c.bf16 %v5716, %v5716
    %s5723 = scalar_lea.vmem [#allocation4], 360
    %v5724 = vld [vmem:[%s5723] sm:$0xf]
    %v5725 = vld [vmem:[%s5723 + $0x4] sm:$0xf]
    %v5726 = vld [vmem:[%s5723 + $0x8] sm:$0xf]
    %v5727 = vld [vmem:[%s5723 + $0xc] sm:$0xf]
    %v5728 = vld [vmem:[%s5723 + $0x10] sm:$0xf]
    %v5729 = vld [vmem:[%s5723 + $0x14] sm:$0xf]
    %v5730 = vld [vmem:[%s5723 + $0x18] sm:$0xf]
    %v5731 = vld [vmem:[%s5723 + $0x1c] sm:$0xf]
    %v5732 = vld [vmem:[%s5723 + $0x20] sm:$0xf]
    %v5733 = vld [vmem:[%s5723 + $0x24] sm:$0xf]
    %v5744 = vunpack.c.l.b16 %v5724
    %v5745 = vunpack.c.l.b16 %v5725
    %v5746 = vunpack.c.l.b16 %v5726
    %v5747 = vunpack.c.l.b16 %v5727
    %v5748 = vunpack.c.l.b16 %v5728
    %v5749 = vunpack.c.l.b16 %v5729
    %v5750 = vunpack.c.l.b16 %v5730
    %v5751 = vunpack.c.l.b16 %v5731
    %v5752 = vunpack.c.l.b16 %v5732
    %v5753 = vunpack.c.l.b16 %v5733
    %v5754 = vpack.c.b16 %v5745, %v5744
    %v5755 = vpack.c.b16 %v5747, %v5746
    %v5756 = vpack.c.b16 %v5749, %v5748
    %v5757 = vpack.c.b16 %v5751, %v5750
    %v5758 = vpack.c.b16 %v5753, %v5752
    %v5760 = vsel %vm4332, %v5754, 0
    %v5763 = vsel %vm4332, %v5755, 0
    %v5766 = vsel %vm4332, %v5756, 0
    %v5769 = vsel %vm4332, %v5757, 0
    %v5772 = vsel %vm4332, %v5758, 0
    %v5775 = vsel %vm979, %v5722, 0
    %5777 = vmatprep.subr.bf16.mxu0 0
    %5778 = vmatpush1.bf16.msra.mxu0 0
    %5779 = vmatprep.subr.bf16.mxu0 0
    %5780 = vmatpush1.bf16.msra.mxu0 0
    %5781 = vmatprep.subr.bf16.mxu0 0
    %5782 = vmatpush1.bf16.msra.mxu0 %v5775
    %5783 = vmatprep.subr.bf16.mxu0 0
    %5784 = vmatpush1.bf16.msra.mxu0 %v5721
    %5785 = vmatprep.subr.bf16.mxu0 0
    %5786 = vmatpush1.bf16.msra.mxu0 %v5720
    %5787 = vmatprep.subr.bf16.mxu0 0
    %5788 = vmatpush1.bf16.msra.mxu0 %v5719
    %5789 = vmatprep.subr.bf16.mxu0 0
    %5790 = vmatpush1.bf16.msra.mxu0 %v5718
    %5791 = vmatprep.subr.bf16.mxu0 0
    %5792 = vmatpush1.bf16.msra.mxu0 %v5717
    %5793 = vmatprep.subr.bf16.mxu0 0
    %5794 = vmatpush2.bf16.msra.mxu0 0
    %5795 = vmatprep.subr.bf16.mxu0 0
    %5796 = vmatpush2.bf16.msra.mxu0 0
    %5797 = vmatprep.subr.bf16.mxu0 0
    %5798 = vmatpush2.bf16.msra.mxu0 0
    %5799 = vmatprep.subr.bf16.mxu0 0
    %5800 = vmatpush2.bf16.msra.mxu0 0
    %5801 = vmatprep.subr.bf16.mxu0 0
    %5802 = vmatpush2.bf16.msra.mxu0 0
    %5803 = vmatprep.subr.bf16.mxu0 0
    %5804 = vmatpush2.bf16.msra.mxu0 0
    %5805 = vmatprep.subr.bf16.mxu0 0
    %5806 = vmatpush2.bf16.msra.mxu0 0
    %5807 = vmatprep.subr.bf16.mxu0 0
    %5808 = vmatpush2.bf16.msra.mxu0 0
    %5809 = vmatprep.mubr.bf16.mxu0 0
    %5810 = vmatmul.mubr.bf16.gmra.mxu0 %v5760
    %v5811 = vpop.f32.mrf.mxu0
    %v5812 = vadd.f32 0.0, %v5811
    %v5813 = vpop.f32.mrf.mxu0
    %v5814 = vpop.f32.mrf.mxu0
    %v5815 = vadd.f32 0.0, %v5814
    %v5816 = vpop.f32.mrf.mxu0
    %5817 = vmatprep.mubr.bf16.mxu0 0
    %5818 = vmatmul.mubr.bf16.gmra.mxu0 %v5763
    %v5819 = vpop.f32.mrf.mxu0
    %v5820 = vadd.f32 0.0, %v5819
    %v5821 = vpop.f32.mrf.mxu0
    %v5822 = vpop.f32.mrf.mxu0
    %v5823 = vadd.f32 0.0, %v5822
    %v5824 = vpop.f32.mrf.mxu0
    %5825 = vmatprep.mubr.bf16.mxu0 0
    %5826 = vmatmul.mubr.bf16.gmra.mxu0 %v5766
    %v5827 = vpop.f32.mrf.mxu0
    %v5828 = vadd.f32 0.0, %v5827
    %v5829 = vpop.f32.mrf.mxu0
    %v5830 = vpop.f32.mrf.mxu0
    %v5831 = vadd.f32 0.0, %v5830
    %v5832 = vpop.f32.mrf.mxu0
    %5833 = vmatprep.mubr.bf16.mxu0 0
    %5834 = vmatmul.mubr.bf16.gmra.mxu0 %v5769
    %v5835 = vpop.f32.mrf.mxu0
    %v5836 = vadd.f32 0.0, %v5835
    %v5837 = vpop.f32.mrf.mxu0
    %v5838 = vpop.f32.mrf.mxu0
    %v5839 = vadd.f32 0.0, %v5838
    %v5840 = vpop.f32.mrf.mxu0
    %5841 = vmatprep.mubr.bf16.mxu0 0
    %5842 = vmatmul.mubr.bf16.gmra.mxu0 %v5772
    %v5843 = vpop.f32.mrf.mxu0
    %v5844 = vadd.f32 0.0, %v5843
    %v5845 = vpop.f32.mrf.mxu0
    %v5846 = vpop.f32.mrf.mxu0
    %v5847 = vadd.f32 0.0, %v5846
    %v5848 = vpop.f32.mrf.mxu0
    %5849 = vdwg.mxu0
    %v5850 = vadd.f32 %v5685, %v5812
    %v5851 = vadd.f32 %v5686, %v5815
    %v5852 = vadd.f32 %v5687, %v5820
    %v5853 = vadd.f32 %v5688, %v5823
    %v5854 = vadd.f32 %v5689, %v5828
    %v5855 = vadd.f32 %v5690, %v5831
    %v5856 = vadd.f32 %v5691, %v5836
    %v5857 = vadd.f32 %v5692, %v5839
    %v5858 = vadd.f32 %v5693, %v5844
    %v5859 = vadd.f32 %v5694, %v5847
    %v5860 = vstv %s38
    %v5861 = vadd.f32 %v5850, %v5860
    %v5862 = vadd.f32 %v5851, %v5860
    %v5863 = vadd.f32 %v5852, %v5860
    %v5864 = vadd.f32 %v5853, %v5860
    %v5865 = vadd.f32 %v5854, %v5860
    %v5866 = vadd.f32 %v5855, %v5860
    %v5867 = vadd.f32 %v5856, %v5860
    %v5868 = vadd.f32 %v5857, %v5860
    %v5869 = vadd.f32 %v5858, %v5860
    %v5870 = vadd.f32 %v5859, %v5860
    %v5871 = vmax.f32 %v5861, 0.0
    %v5872 = vmax.f32 %v5862, 0.0
    %v5873 = vmax.f32 %v5863, 0.0
    %v5874 = vmax.f32 %v5864, 0.0
    %v5875 = vmax.f32 %v5865, 0.0
    %v5876 = vmax.f32 %v5866, 0.0
    %v5877 = vmax.f32 %v5867, 0.0
    %v5878 = vmax.f32 %v5868, 0.0
    %v5879 = vmax.f32 %v5869, 0.0
    %v5880 = vmax.f32 %v5870, 0.0
    %s5881 = smul.u32 %s900, 8
    %s5882 = smul.u32 %s5881, 1
    %s5883 = sshll.u32 %s5882, 4
    %5884 = dma.done %s227, %s5883
    %v5885 = vpack.c.bf16 %v5872, %v5871
    %v5886 = vpack.c.bf16 %v5874, %v5873
    %v5887 = vpack.c.bf16 %v5876, %v5875
    %v5888 = vpack.c.bf16 %v5878, %v5877
    %v5889 = vpack.c.bf16 %v5880, %v5879
    %v5890 = vld [vmem:[#allocation5] sm:$0xf]
    %v5891 = vld [vmem:[#allocation5 + $0x4] sm:$0xf]
    %v5892 = vld [vmem:[#allocation5 + $0x8] sm:$0xf]
    %v5893 = vld [vmem:[#allocation5 + $0xc] sm:$0xf]
    %v5894 = vld [vmem:[#allocation5 + $0x10] sm:$0xf]
    %v5895 = vld [vmem:[#allocation5 + $0x14] sm:$0xf]
    %v5896 = vld [vmem:[#allocation5 + $0x18] sm:$0xf]
    %v5897 = vld [vmem:[#allocation5 + $0x1c] sm:$0xf]
    %5898 = vrot.lane.b32.xlu0 %v5871, 127
    %v5899 = vpop.permute.xlu0 %5898
    %5900 = vrot.lane.b32.xlu0 %v5872, 127
    %v5901 = vpop.permute.xlu0 %5900
    %5902 = vrot.lane.b32.xlu0 %v5873, 127
    %v5903 = vpop.permute.xlu0 %5902
    %5904 = vrot.lane.b32.xlu0 %v5874, 127
    %v5905 = vpop.permute.xlu0 %5904
    %5906 = vrot.lane.b32.xlu0 %v5875, 127
    %v5907 = vpop.permute.xlu0 %5906
    %5908 = vrot.lane.b32.xlu0 %v5876, 127
    %v5909 = vpop.permute.xlu0 %5908
    %5910 = vrot.lane.b32.xlu0 %v5877, 127
    %v5911 = vpop.permute.xlu0 %5910
    %5912 = vrot.lane.b32.xlu0 %v5878, 127
    %v5913 = vpop.permute.xlu0 %5912
    %5914 = vrot.lane.b32.xlu0 %v5879, 127
    %v5915 = vpop.permute.xlu0 %5914
    %5916 = vrot.lane.b32.xlu0 %v5880, 127
    %v5917 = vpop.permute.xlu0 %5916
    %v5918 = vpack.c.bf16 %v5901, %v5899
    %v5919 = vpack.c.bf16 %v5905, %v5903
    %v5920 = vpack.c.bf16 %v5909, %v5907
    %v5921 = vpack.c.bf16 %v5913, %v5911
    %v5922 = vpack.c.bf16 %v5917, %v5915
    %s5923 = scalar_lea.vmem [#allocation5], 32
    %v5924 = vld [vmem:[%s5923] sm:$0xf]
    %v5925 = vld [vmem:[%s5923 + $0x4] sm:$0xf]
    %v5926 = vld [vmem:[%s5923 + $0x8] sm:$0xf]
    %v5927 = vld [vmem:[%s5923 + $0xc] sm:$0xf]
    %v5928 = vld [vmem:[%s5923 + $0x10] sm:$0xf]
    %v5929 = vld [vmem:[%s5923 + $0x14] sm:$0xf]
    %v5930 = vld [vmem:[%s5923 + $0x18] sm:$0xf]
    %v5931 = vld [vmem:[%s5923 + $0x1c] sm:$0xf]
    %v5940 = vunpack.c.l.b16 %v5924
    %v5941 = vunpack.c.l.b16 %v5925
    %v5942 = vunpack.c.l.b16 %v5926
    %v5943 = vunpack.c.l.b16 %v5927
    %v5944 = vunpack.c.l.b16 %v5928
    %v5945 = vunpack.c.l.b16 %v5929
    %v5946 = vunpack.c.l.b16 %v5930
    %v5947 = vunpack.c.l.b16 %v5931
    %v5948 = vpack.c.b16 %v5941, %v5940
    %v5949 = vpack.c.b16 %v5943, %v5942
    %v5950 = vpack.c.b16 %v5945, %v5944
    %v5951 = vpack.c.b16 %v5947, %v5946
    %vm5952 = vcmask 654336
    %v5954 = vsel %vm5952, %v5948, 0
    %v5957 = vsel %vm5952, %v5949, 0
    %v5960 = vsel %vm5952, %v5950, 0
    %v5963 = vsel %vm5952, %v5951, 0
    %5965 = vmatprep.subr.bf16.mxu0 0
    %5966 = vmatpush1.bf16.msra.mxu0 0
    %5967 = vmatprep.subr.bf16.mxu0 0
    %5968 = vmatpush1.bf16.msra.mxu0 0
    %5969 = vmatprep.subr.bf16.mxu0 0
    %5970 = vmatpush1.bf16.msra.mxu0 0
    %5971 = vmatprep.subr.bf16.mxu0 0
    %5972 = vmatpush1.bf16.msra.mxu0 %v5922
    %5973 = vmatprep.subr.bf16.mxu0 0
    %5974 = vmatpush1.bf16.msra.mxu0 %v5921
    %5975 = vmatprep.subr.bf16.mxu0 0
    %5976 = vmatpush1.bf16.msra.mxu0 %v5920
    %5977 = vmatprep.subr.bf16.mxu0 0
    %5978 = vmatpush1.bf16.msra.mxu0 %v5919
    %5979 = vmatprep.subr.bf16.mxu0 0
    %5980 = vmatpush1.bf16.msra.mxu0 %v5918
    %5981 = vmatprep.subr.bf16.mxu0 0
    %5982 = vmatpush2.bf16.msra.mxu0 0
    %5983 = vmatprep.subr.bf16.mxu0 0
    %5984 = vmatpush2.bf16.msra.mxu0 0
    %5985 = vmatprep.subr.bf16.mxu0 0
    %5986 = vmatpush2.bf16.msra.mxu0 0
    %5987 = vmatprep.subr.bf16.mxu0 0
    %5988 = vmatpush2.bf16.msra.mxu0 0
    %5989 = vmatprep.subr.bf16.mxu0 0
    %5990 = vmatpush2.bf16.msra.mxu0 0
    %5991 = vmatprep.subr.bf16.mxu0 0
    %5992 = vmatpush2.bf16.msra.mxu0 0
    %5993 = vmatprep.subr.bf16.mxu0 0
    %5994 = vmatpush2.bf16.msra.mxu0 0
    %5995 = vmatprep.subr.bf16.mxu0 0
    %5996 = vmatpush2.bf16.msra.mxu0 0
    %5997 = vmatprep.mubr.bf16.mxu0 0
    %5998 = vmatmul.mubr.bf16.gmra.mxu0 %v5954
    %v5999 = vpop.f32.mrf.mxu0
    %v6000 = vadd.f32 0.0, %v5999
    %v6001 = vpop.f32.mrf.mxu0
    %v6002 = vpop.f32.mrf.mxu0
    %v6003 = vadd.f32 0.0, %v6002
    %v6004 = vpop.f32.mrf.mxu0
    %6005 = vmatprep.mubr.bf16.mxu0 0
    %6006 = vmatmul.mubr.bf16.gmra.mxu0 %v5957
    %v6007 = vpop.f32.mrf.mxu0
    %v6008 = vadd.f32 0.0, %v6007
    %v6009 = vpop.f32.mrf.mxu0
    %v6010 = vpop.f32.mrf.mxu0
    %v6011 = vadd.f32 0.0, %v6010
    %v6012 = vpop.f32.mrf.mxu0
    %6013 = vmatprep.mubr.bf16.mxu0 0
    %6014 = vmatmul.mubr.bf16.gmra.mxu0 %v5960
    %v6015 = vpop.f32.mrf.mxu0
    %v6016 = vadd.f32 0.0, %v6015
    %v6017 = vpop.f32.mrf.mxu0
    %v6018 = vpop.f32.mrf.mxu0
    %v6019 = vadd.f32 0.0, %v6018
    %v6020 = vpop.f32.mrf.mxu0
    %6021 = vmatprep.mubr.bf16.mxu0 0
    %6022 = vmatmul.mubr.bf16.gmra.mxu0 %v5963
    %v6023 = vpop.f32.mrf.mxu0
    %v6024 = vadd.f32 0.0, %v6023
    %v6025 = vpop.f32.mrf.mxu0
    %v6026 = vpop.f32.mrf.mxu0
    %v6027 = vadd.f32 0.0, %v6026
    %v6028 = vpop.f32.mrf.mxu0
    %6029 = vdwg.mxu0
    %v6038 = vunpack.c.l.b16 %v5890
    %v6039 = vunpack.c.l.b16 %v5891
    %v6040 = vunpack.c.l.b16 %v5892
    %v6041 = vunpack.c.l.b16 %v5893
    %v6042 = vunpack.c.l.b16 %v5894
    %v6043 = vunpack.c.l.b16 %v5895
    %v6044 = vunpack.c.l.b16 %v5896
    %v6045 = vunpack.c.l.b16 %v5897
    %v6046 = vpack.c.b16 %v6039, %v6038
    %v6047 = vpack.c.b16 %v6041, %v6040
    %v6048 = vpack.c.b16 %v6043, %v6042
    %v6049 = vpack.c.b16 %v6045, %v6044
    %v6051 = vsel %vm5952, %v6046, 0
    %v6054 = vsel %vm5952, %v6047, 0
    %v6057 = vsel %vm5952, %v6048, 0
    %v6060 = vsel %vm5952, %v6049, 0
    %6062 = vmatprep.subr.bf16.mxu0 0
    %6063 = vmatpush1.bf16.msra.mxu0 0
    %6064 = vmatprep.subr.bf16.mxu0 0
    %6065 = vmatpush1.bf16.msra.mxu0 0
    %6066 = vmatprep.subr.bf16.mxu0 0
    %6067 = vmatpush1.bf16.msra.mxu0 0
    %6068 = vmatprep.subr.bf16.mxu0 0
    %6069 = vmatpush1.bf16.msra.mxu0 %v5889
    %6070 = vmatprep.subr.bf16.mxu0 0
    %6071 = vmatpush1.bf16.msra.mxu0 %v5888
    %6072 = vmatprep.subr.bf16.mxu0 0
    %6073 = vmatpush1.bf16.msra.mxu0 %v5887
    %6074 = vmatprep.subr.bf16.mxu0 0
    %6075 = vmatpush1.bf16.msra.mxu0 %v5886
    %6076 = vmatprep.subr.bf16.mxu0 0
    %6077 = vmatpush1.bf16.msra.mxu0 %v5885
    %6078 = vmatprep.subr.bf16.mxu0 0
    %6079 = vmatpush2.bf16.msra.mxu0 0
    %6080 = vmatprep.subr.bf16.mxu0 0
    %6081 = vmatpush2.bf16.msra.mxu0 0
    %6082 = vmatprep.subr.bf16.mxu0 0
    %6083 = vmatpush2.bf16.msra.mxu0 0
    %6084 = vmatprep.subr.bf16.mxu0 0
    %6085 = vmatpush2.bf16.msra.mxu0 0
    %6086 = vmatprep.subr.bf16.mxu0 0
    %6087 = vmatpush2.bf16.msra.mxu0 0
    %6088 = vmatprep.subr.bf16.mxu0 0
    %6089 = vmatpush2.bf16.msra.mxu0 0
    %6090 = vmatprep.subr.bf16.mxu0 0
    %6091 = vmatpush2.bf16.msra.mxu0 0
    %6092 = vmatprep.subr.bf16.mxu0 0
    %6093 = vmatpush2.bf16.msra.mxu0 0
    %6094 = vmatprep.mubr.bf16.mxu0 0
    %6095 = vmatmul.mubr.bf16.gmra.mxu0 %v6051
    %v6096 = vpop.f32.mrf.mxu0
    %v6097 = vadd.f32 %v6000, %v6096
    %v6098 = vpop.f32.mrf.mxu0
    %v6099 = vpop.f32.mrf.mxu0
    %v6100 = vadd.f32 %v6003, %v6099
    %v6101 = vpop.f32.mrf.mxu0
    %6102 = vmatprep.mubr.bf16.mxu0 0
    %6103 = vmatmul.mubr.bf16.gmra.mxu0 %v6054
    %v6104 = vpop.f32.mrf.mxu0
    %v6105 = vadd.f32 %v6008, %v6104
    %v6106 = vpop.f32.mrf.mxu0
    %v6107 = vpop.f32.mrf.mxu0
    %v6108 = vadd.f32 %v6011, %v6107
    %v6109 = vpop.f32.mrf.mxu0
    %6110 = vmatprep.mubr.bf16.mxu0 0
    %6111 = vmatmul.mubr.bf16.gmra.mxu0 %v6057
    %v6112 = vpop.f32.mrf.mxu0
    %v6113 = vadd.f32 %v6016, %v6112
    %v6114 = vpop.f32.mrf.mxu0
    %v6115 = vpop.f32.mrf.mxu0
    %v6116 = vadd.f32 %v6019, %v6115
    %v6117 = vpop.f32.mrf.mxu0
    %6118 = vmatprep.mubr.bf16.mxu0 0
    %6119 = vmatmul.mubr.bf16.gmra.mxu0 %v6060
    %v6120 = vpop.f32.mrf.mxu0
    %v6121 = vadd.f32 %v6024, %v6120
    %v6122 = vpop.f32.mrf.mxu0
    %v6123 = vpop.f32.mrf.mxu0
    %v6124 = vadd.f32 %v6027, %v6123
    %v6125 = vpop.f32.mrf.mxu0
    %6126 = vdwg.mxu0
    %6127 = vrot.lane.b32.xlu0 %v5871, 126
    %v6128 = vpop.permute.xlu0 %6127
    %6129 = vrot.lane.b32.xlu0 %v5872, 126
    %v6130 = vpop.permute.xlu0 %6129
    %6131 = vrot.lane.b32.xlu0 %v5873, 126
    %v6132 = vpop.permute.xlu0 %6131
    %6133 = vrot.lane.b32.xlu0 %v5874, 126
    %v6134 = vpop.permute.xlu0 %6133
    %6135 = vrot.lane.b32.xlu0 %v5875, 126
    %v6136 = vpop.permute.xlu0 %6135
    %6137 = vrot.lane.b32.xlu0 %v5876, 126
    %v6138 = vpop.permute.xlu0 %6137
    %6139 = vrot.lane.b32.xlu0 %v5877, 126
    %v6140 = vpop.permute.xlu0 %6139
    %6141 = vrot.lane.b32.xlu0 %v5878, 126
    %v6142 = vpop.permute.xlu0 %6141
    %6143 = vrot.lane.b32.xlu0 %v5879, 126
    %v6144 = vpop.permute.xlu0 %6143
    %6145 = vrot.lane.b32.xlu0 %v5880, 126
    %v6146 = vpop.permute.xlu0 %6145
    %v6147 = vpack.c.bf16 %v6130, %v6128
    %v6148 = vpack.c.bf16 %v6134, %v6132
    %v6149 = vpack.c.bf16 %v6138, %v6136
    %v6150 = vpack.c.bf16 %v6142, %v6140
    %v6151 = vpack.c.bf16 %v6146, %v6144
    %s6152 = scalar_lea.vmem [#allocation5], 64
    %v6153 = vld [vmem:[%s6152] sm:$0xf]
    %v6154 = vld [vmem:[%s6152 + $0x4] sm:$0xf]
    %v6155 = vld [vmem:[%s6152 + $0x8] sm:$0xf]
    %v6156 = vld [vmem:[%s6152 + $0xc] sm:$0xf]
    %v6157 = vld [vmem:[%s6152 + $0x10] sm:$0xf]
    %v6158 = vld [vmem:[%s6152 + $0x14] sm:$0xf]
    %v6159 = vld [vmem:[%s6152 + $0x18] sm:$0xf]
    %v6160 = vld [vmem:[%s6152 + $0x1c] sm:$0xf]
    %v6169 = vunpack.c.l.b16 %v6153
    %v6170 = vunpack.c.l.b16 %v6154
    %v6171 = vunpack.c.l.b16 %v6155
    %v6172 = vunpack.c.l.b16 %v6156
    %v6173 = vunpack.c.l.b16 %v6157
    %v6174 = vunpack.c.l.b16 %v6158
    %v6175 = vunpack.c.l.b16 %v6159
    %v6176 = vunpack.c.l.b16 %v6160
    %v6177 = vpack.c.b16 %v6170, %v6169
    %v6178 = vpack.c.b16 %v6172, %v6171
    %v6179 = vpack.c.b16 %v6174, %v6173
    %v6180 = vpack.c.b16 %v6176, %v6175
    %v6182 = vsel %vm5952, %v6177, 0
    %v6185 = vsel %vm5952, %v6178, 0
    %v6188 = vsel %vm5952, %v6179, 0
    %v6191 = vsel %vm5952, %v6180, 0
    %6193 = vmatprep.subr.bf16.mxu0 0
    %6194 = vmatpush1.bf16.msra.mxu0 0
    %6195 = vmatprep.subr.bf16.mxu0 0
    %6196 = vmatpush1.bf16.msra.mxu0 0
    %6197 = vmatprep.subr.bf16.mxu0 0
    %6198 = vmatpush1.bf16.msra.mxu0 0
    %6199 = vmatprep.subr.bf16.mxu0 0
    %6200 = vmatpush1.bf16.msra.mxu0 %v6151
    %6201 = vmatprep.subr.bf16.mxu0 0
    %6202 = vmatpush1.bf16.msra.mxu0 %v6150
    %6203 = vmatprep.subr.bf16.mxu0 0
    %6204 = vmatpush1.bf16.msra.mxu0 %v6149
    %6205 = vmatprep.subr.bf16.mxu0 0
    %6206 = vmatpush1.bf16.msra.mxu0 %v6148
    %6207 = vmatprep.subr.bf16.mxu0 0
    %6208 = vmatpush1.bf16.msra.mxu0 %v6147
    %6209 = vmatprep.subr.bf16.mxu0 0
    %6210 = vmatpush2.bf16.msra.mxu0 0
    %6211 = vmatprep.subr.bf16.mxu0 0
    %6212 = vmatpush2.bf16.msra.mxu0 0
    %6213 = vmatprep.subr.bf16.mxu0 0
    %6214 = vmatpush2.bf16.msra.mxu0 0
    %6215 = vmatprep.subr.bf16.mxu0 0
    %6216 = vmatpush2.bf16.msra.mxu0 0
    %6217 = vmatprep.subr.bf16.mxu0 0
    %6218 = vmatpush2.bf16.msra.mxu0 0
    %6219 = vmatprep.subr.bf16.mxu0 0
    %6220 = vmatpush2.bf16.msra.mxu0 0
    %6221 = vmatprep.subr.bf16.mxu0 0
    %6222 = vmatpush2.bf16.msra.mxu0 0
    %6223 = vmatprep.subr.bf16.mxu0 0
    %6224 = vmatpush2.bf16.msra.mxu0 0
    %6225 = vmatprep.mubr.bf16.mxu0 0
    %6226 = vmatmul.mubr.bf16.gmra.mxu0 %v6182
    %v6227 = vpop.f32.mrf.mxu0
    %v6228 = vadd.f32 0.0, %v6227
    %v6229 = vpop.f32.mrf.mxu0
    %v6230 = vpop.f32.mrf.mxu0
    %v6231 = vadd.f32 0.0, %v6230
    %v6232 = vpop.f32.mrf.mxu0
    %6233 = vmatprep.mubr.bf16.mxu0 0
    %6234 = vmatmul.mubr.bf16.gmra.mxu0 %v6185
    %v6235 = vpop.f32.mrf.mxu0
    %v6236 = vadd.f32 0.0, %v6235
    %v6237 = vpop.f32.mrf.mxu0
    %v6238 = vpop.f32.mrf.mxu0
    %v6239 = vadd.f32 0.0, %v6238
    %v6240 = vpop.f32.mrf.mxu0
    %6241 = vmatprep.mubr.bf16.mxu0 0
    %6242 = vmatmul.mubr.bf16.gmra.mxu0 %v6188
    %v6243 = vpop.f32.mrf.mxu0
    %v6244 = vadd.f32 0.0, %v6243
    %v6245 = vpop.f32.mrf.mxu0
    %v6246 = vpop.f32.mrf.mxu0
    %v6247 = vadd.f32 0.0, %v6246
    %v6248 = vpop.f32.mrf.mxu0
    %6249 = vmatprep.mubr.bf16.mxu0 0
    %6250 = vmatmul.mubr.bf16.gmra.mxu0 %v6191
    %v6251 = vpop.f32.mrf.mxu0
    %v6252 = vadd.f32 0.0, %v6251
    %v6253 = vpop.f32.mrf.mxu0
    %v6254 = vpop.f32.mrf.mxu0
    %v6255 = vadd.f32 0.0, %v6254
    %v6256 = vpop.f32.mrf.mxu0
    %6257 = vdwg.mxu0
    %v6258 = vadd.f32 %v6097, %v6228
    %v6259 = vadd.f32 %v6100, %v6231
    %v6260 = vadd.f32 %v6105, %v6236
    %v6261 = vadd.f32 %v6108, %v6239
    %v6262 = vadd.f32 %v6113, %v6244
    %v6263 = vadd.f32 %v6116, %v6247
    %v6264 = vadd.f32 %v6121, %v6252
    %v6265 = vadd.f32 %v6124, %v6255
    %6266 = vrot.lane.b32.xlu0 %v5871, 125
    %v6267 = vpop.permute.xlu0 %6266
    %6268 = vrot.lane.b32.xlu0 %v5872, 125
    %v6269 = vpop.permute.xlu0 %6268
    %6270 = vrot.lane.b32.xlu0 %v5873, 125
    %v6271 = vpop.permute.xlu0 %6270
    %6272 = vrot.lane.b32.xlu0 %v5874, 125
    %v6273 = vpop.permute.xlu0 %6272
    %6274 = vrot.lane.b32.xlu0 %v5875, 125
    %v6275 = vpop.permute.xlu0 %6274
    %6276 = vrot.lane.b32.xlu0 %v5876, 125
    %v6277 = vpop.permute.xlu0 %6276
    %6278 = vrot.lane.b32.xlu0 %v5877, 125
    %v6279 = vpop.permute.xlu0 %6278
    %6280 = vrot.lane.b32.xlu0 %v5878, 125
    %v6281 = vpop.permute.xlu0 %6280
    %6282 = vrot.lane.b32.xlu0 %v5879, 125
    %v6283 = vpop.permute.xlu0 %6282
    %6284 = vrot.lane.b32.xlu0 %v5880, 125
    %v6285 = vpop.permute.xlu0 %6284
    %v6286 = vpack.c.bf16 %v6269, %v6267
    %v6287 = vpack.c.bf16 %v6273, %v6271
    %v6288 = vpack.c.bf16 %v6277, %v6275
    %v6289 = vpack.c.bf16 %v6281, %v6279
    %v6290 = vpack.c.bf16 %v6285, %v6283
    %s6291 = scalar_lea.vmem [#allocation5], 96
    %v6292 = vld [vmem:[%s6291] sm:$0xf]
    %v6293 = vld [vmem:[%s6291 + $0x4] sm:$0xf]
    %v6294 = vld [vmem:[%s6291 + $0x8] sm:$0xf]
    %v6295 = vld [vmem:[%s6291 + $0xc] sm:$0xf]
    %v6296 = vld [vmem:[%s6291 + $0x10] sm:$0xf]
    %v6297 = vld [vmem:[%s6291 + $0x14] sm:$0xf]
    %v6298 = vld [vmem:[%s6291 + $0x18] sm:$0xf]
    %v6299 = vld [vmem:[%s6291 + $0x1c] sm:$0xf]
    %v6308 = vunpack.c.l.b16 %v6292
    %v6309 = vunpack.c.l.b16 %v6293
    %v6310 = vunpack.c.l.b16 %v6294
    %v6311 = vunpack.c.l.b16 %v6295
    %v6312 = vunpack.c.l.b16 %v6296
    %v6313 = vunpack.c.l.b16 %v6297
    %v6314 = vunpack.c.l.b16 %v6298
    %v6315 = vunpack.c.l.b16 %v6299
    %v6316 = vpack.c.b16 %v6309, %v6308
    %v6317 = vpack.c.b16 %v6311, %v6310
    %v6318 = vpack.c.b16 %v6313, %v6312
    %v6319 = vpack.c.b16 %v6315, %v6314
    %v6321 = vsel %vm5952, %v6316, 0
    %v6324 = vsel %vm5952, %v6317, 0
    %v6327 = vsel %vm5952, %v6318, 0
    %v6330 = vsel %vm5952, %v6319, 0
    %6332 = vmatprep.subr.bf16.mxu0 0
    %6333 = vmatpush1.bf16.msra.mxu0 0
    %6334 = vmatprep.subr.bf16.mxu0 0
    %6335 = vmatpush1.bf16.msra.mxu0 0
    %6336 = vmatprep.subr.bf16.mxu0 0
    %6337 = vmatpush1.bf16.msra.mxu0 0
    %6338 = vmatprep.subr.bf16.mxu0 0
    %6339 = vmatpush1.bf16.msra.mxu0 %v6290
    %6340 = vmatprep.subr.bf16.mxu0 0
    %6341 = vmatpush1.bf16.msra.mxu0 %v6289
    %6342 = vmatprep.subr.bf16.mxu0 0
    %6343 = vmatpush1.bf16.msra.mxu0 %v6288
    %6344 = vmatprep.subr.bf16.mxu0 0
    %6345 = vmatpush1.bf16.msra.mxu0 %v6287
    %6346 = vmatprep.subr.bf16.mxu0 0
    %6347 = vmatpush1.bf16.msra.mxu0 %v6286
    %6348 = vmatprep.subr.bf16.mxu0 0
    %6349 = vmatpush2.bf16.msra.mxu0 0
    %6350 = vmatprep.subr.bf16.mxu0 0
    %6351 = vmatpush2.bf16.msra.mxu0 0
    %6352 = vmatprep.subr.bf16.mxu0 0
    %6353 = vmatpush2.bf16.msra.mxu0 0
    %6354 = vmatprep.subr.bf16.mxu0 0
    %6355 = vmatpush2.bf16.msra.mxu0 0
    %6356 = vmatprep.subr.bf16.mxu0 0
    %6357 = vmatpush2.bf16.msra.mxu0 0
    %6358 = vmatprep.subr.bf16.mxu0 0
    %6359 = vmatpush2.bf16.msra.mxu0 0
    %6360 = vmatprep.subr.bf16.mxu0 0
    %6361 = vmatpush2.bf16.msra.mxu0 0
    %6362 = vmatprep.subr.bf16.mxu0 0
    %6363 = vmatpush2.bf16.msra.mxu0 0
    %6364 = vmatprep.mubr.bf16.mxu0 0
    %6365 = vmatmul.mubr.bf16.gmra.mxu0 %v6321
    %v6366 = vpop.f32.mrf.mxu0
    %v6367 = vadd.f32 0.0, %v6366
    %v6368 = vpop.f32.mrf.mxu0
    %v6369 = vpop.f32.mrf.mxu0
    %v6370 = vadd.f32 0.0, %v6369
    %v6371 = vpop.f32.mrf.mxu0
    %6372 = vmatprep.mubr.bf16.mxu0 0
    %6373 = vmatmul.mubr.bf16.gmra.mxu0 %v6324
    %v6374 = vpop.f32.mrf.mxu0
    %v6375 = vadd.f32 0.0, %v6374
    %v6376 = vpop.f32.mrf.mxu0
    %v6377 = vpop.f32.mrf.mxu0
    %v6378 = vadd.f32 0.0, %v6377
    %v6379 = vpop.f32.mrf.mxu0
    %6380 = vmatprep.mubr.bf16.mxu0 0
    %6381 = vmatmul.mubr.bf16.gmra.mxu0 %v6327
    %v6382 = vpop.f32.mrf.mxu0
    %v6383 = vadd.f32 0.0, %v6382
    %v6384 = vpop.f32.mrf.mxu0
    %v6385 = vpop.f32.mrf.mxu0
    %v6386 = vadd.f32 0.0, %v6385
    %v6387 = vpop.f32.mrf.mxu0
    %6388 = vmatprep.mubr.bf16.mxu0 0
    %6389 = vmatmul.mubr.bf16.gmra.mxu0 %v6330
    %v6390 = vpop.f32.mrf.mxu0
    %v6391 = vadd.f32 0.0, %v6390
    %v6392 = vpop.f32.mrf.mxu0
    %v6393 = vpop.f32.mrf.mxu0
    %v6394 = vadd.f32 0.0, %v6393
    %v6395 = vpop.f32.mrf.mxu0
    %6396 = vdwg.mxu0
    %v6397 = vadd.f32 %v6258, %v6367
    %v6398 = vadd.f32 %v6259, %v6370
    %v6399 = vadd.f32 %v6260, %v6375
    %v6400 = vadd.f32 %v6261, %v6378
    %v6401 = vadd.f32 %v6262, %v6383
    %v6402 = vadd.f32 %v6263, %v6386
    %v6403 = vadd.f32 %v6264, %v6391
    %v6404 = vadd.f32 %v6265, %v6394
    %6405 = vrot.lane.b32.xlu0 %v5871, 124
    %v6406 = vpop.permute.xlu0 %6405
    %6407 = vrot.lane.b32.xlu0 %v5872, 124
    %v6408 = vpop.permute.xlu0 %6407
    %6409 = vrot.lane.b32.xlu0 %v5873, 124
    %v6410 = vpop.permute.xlu0 %6409
    %6411 = vrot.lane.b32.xlu0 %v5874, 124
    %v6412 = vpop.permute.xlu0 %6411
    %6413 = vrot.lane.b32.xlu0 %v5875, 124
    %v6414 = vpop.permute.xlu0 %6413
    %6415 = vrot.lane.b32.xlu0 %v5876, 124
    %v6416 = vpop.permute.xlu0 %6415
    %6417 = vrot.lane.b32.xlu0 %v5877, 124
    %v6418 = vpop.permute.xlu0 %6417
    %6419 = vrot.lane.b32.xlu0 %v5878, 124
    %v6420 = vpop.permute.xlu0 %6419
    %6421 = vrot.lane.b32.xlu0 %v5879, 124
    %v6422 = vpop.permute.xlu0 %6421
    %6423 = vrot.lane.b32.xlu0 %v5880, 124
    %v6424 = vpop.permute.xlu0 %6423
    %v6425 = vpack.c.bf16 %v6408, %v6406
    %v6426 = vpack.c.bf16 %v6412, %v6410
    %v6427 = vpack.c.bf16 %v6416, %v6414
    %v6428 = vpack.c.bf16 %v6420, %v6418
    %v6429 = vpack.c.bf16 %v6424, %v6422
    %s6430 = scalar_lea.vmem [#allocation5], 128
    %v6431 = vld [vmem:[%s6430] sm:$0xf]
    %v6432 = vld [vmem:[%s6430 + $0x4] sm:$0xf]
    %v6433 = vld [vmem:[%s6430 + $0x8] sm:$0xf]
    %v6434 = vld [vmem:[%s6430 + $0xc] sm:$0xf]
    %v6435 = vld [vmem:[%s6430 + $0x10] sm:$0xf]
    %v6436 = vld [vmem:[%s6430 + $0x14] sm:$0xf]
    %v6437 = vld [vmem:[%s6430 + $0x18] sm:$0xf]
    %v6438 = vld [vmem:[%s6430 + $0x1c] sm:$0xf]
    %v6447 = vunpack.c.l.b16 %v6431
    %v6448 = vunpack.c.l.b16 %v6432
    %v6449 = vunpack.c.l.b16 %v6433
    %v6450 = vunpack.c.l.b16 %v6434
    %v6451 = vunpack.c.l.b16 %v6435
    %v6452 = vunpack.c.l.b16 %v6436
    %v6453 = vunpack.c.l.b16 %v6437
    %v6454 = vunpack.c.l.b16 %v6438
    %v6455 = vpack.c.b16 %v6448, %v6447
    %v6456 = vpack.c.b16 %v6450, %v6449
    %v6457 = vpack.c.b16 %v6452, %v6451
    %v6458 = vpack.c.b16 %v6454, %v6453
    %v6460 = vsel %vm5952, %v6455, 0
    %v6463 = vsel %vm5952, %v6456, 0
    %v6466 = vsel %vm5952, %v6457, 0
    %v6469 = vsel %vm5952, %v6458, 0
    %6471 = vmatprep.subr.bf16.mxu0 0
    %6472 = vmatpush1.bf16.msra.mxu0 0
    %6473 = vmatprep.subr.bf16.mxu0 0
    %6474 = vmatpush1.bf16.msra.mxu0 0
    %6475 = vmatprep.subr.bf16.mxu0 0
    %6476 = vmatpush1.bf16.msra.mxu0 0
    %6477 = vmatprep.subr.bf16.mxu0 0
    %6478 = vmatpush1.bf16.msra.mxu0 %v6429
    %6479 = vmatprep.subr.bf16.mxu0 0
    %6480 = vmatpush1.bf16.msra.mxu0 %v6428
    %6481 = vmatprep.subr.bf16.mxu0 0
    %6482 = vmatpush1.bf16.msra.mxu0 %v6427
    %6483 = vmatprep.subr.bf16.mxu0 0
    %6484 = vmatpush1.bf16.msra.mxu0 %v6426
    %6485 = vmatprep.subr.bf16.mxu0 0
    %6486 = vmatpush1.bf16.msra.mxu0 %v6425
    %6487 = vmatprep.subr.bf16.mxu0 0
    %6488 = vmatpush2.bf16.msra.mxu0 0
    %6489 = vmatprep.subr.bf16.mxu0 0
    %6490 = vmatpush2.bf16.msra.mxu0 0
    %6491 = vmatprep.subr.bf16.mxu0 0
    %6492 = vmatpush2.bf16.msra.mxu0 0
    %6493 = vmatprep.subr.bf16.mxu0 0
    %6494 = vmatpush2.bf16.msra.mxu0 0
    %6495 = vmatprep.subr.bf16.mxu0 0
    %6496 = vmatpush2.bf16.msra.mxu0 0
    %6497 = vmatprep.subr.bf16.mxu0 0
    %6498 = vmatpush2.bf16.msra.mxu0 0
    %6499 = vmatprep.subr.bf16.mxu0 0
    %6500 = vmatpush2.bf16.msra.mxu0 0
    %6501 = vmatprep.subr.bf16.mxu0 0
    %6502 = vmatpush2.bf16.msra.mxu0 0
    %6503 = vmatprep.mubr.bf16.mxu0 0
    %6504 = vmatmul.mubr.bf16.gmra.mxu0 %v6460
    %v6505 = vpop.f32.mrf.mxu0
    %v6506 = vadd.f32 0.0, %v6505
    %v6507 = vpop.f32.mrf.mxu0
    %v6508 = vpop.f32.mrf.mxu0
    %v6509 = vadd.f32 0.0, %v6508
    %v6510 = vpop.f32.mrf.mxu0
    %6511 = vmatprep.mubr.bf16.mxu0 0
    %6512 = vmatmul.mubr.bf16.gmra.mxu0 %v6463
    %v6513 = vpop.f32.mrf.mxu0
    %v6514 = vadd.f32 0.0, %v6513
    %v6515 = vpop.f32.mrf.mxu0
    %v6516 = vpop.f32.mrf.mxu0
    %v6517 = vadd.f32 0.0, %v6516
    %v6518 = vpop.f32.mrf.mxu0
    %6519 = vmatprep.mubr.bf16.mxu0 0
    %6520 = vmatmul.mubr.bf16.gmra.mxu0 %v6466
    %v6521 = vpop.f32.mrf.mxu0
    %v6522 = vadd.f32 0.0, %v6521
    %v6523 = vpop.f32.mrf.mxu0
    %v6524 = vpop.f32.mrf.mxu0
    %v6525 = vadd.f32 0.0, %v6524
    %v6526 = vpop.f32.mrf.mxu0
    %6527 = vmatprep.mubr.bf16.mxu0 0
    %6528 = vmatmul.mubr.bf16.gmra.mxu0 %v6469
    %v6529 = vpop.f32.mrf.mxu0
    %v6530 = vadd.f32 0.0, %v6529
    %v6531 = vpop.f32.mrf.mxu0
    %v6532 = vpop.f32.mrf.mxu0
    %v6533 = vadd.f32 0.0, %v6532
    %v6534 = vpop.f32.mrf.mxu0
    %6535 = vdwg.mxu0
    %v6536 = vadd.f32 %v6397, %v6506
    %v6537 = vadd.f32 %v6398, %v6509
    %v6538 = vadd.f32 %v6399, %v6514
    %v6539 = vadd.f32 %v6400, %v6517
    %v6540 = vadd.f32 %v6401, %v6522
    %v6541 = vadd.f32 %v6402, %v6525
    %v6542 = vadd.f32 %v6403, %v6530
    %v6543 = vadd.f32 %v6404, %v6533
    %6544 = vrot.lane.b32.xlu0 %v5871, 123
    %v6545 = vpop.permute.xlu0 %6544
    %6546 = vrot.lane.b32.xlu0 %v5872, 123
    %v6547 = vpop.permute.xlu0 %6546
    %6548 = vrot.lane.b32.xlu0 %v5873, 123
    %v6549 = vpop.permute.xlu0 %6548
    %6550 = vrot.lane.b32.xlu0 %v5874, 123
    %v6551 = vpop.permute.xlu0 %6550
    %6552 = vrot.lane.b32.xlu0 %v5875, 123
    %v6553 = vpop.permute.xlu0 %6552
    %6554 = vrot.lane.b32.xlu0 %v5876, 123
    %v6555 = vpop.permute.xlu0 %6554
    %6556 = vrot.lane.b32.xlu0 %v5877, 123
    %v6557 = vpop.permute.xlu0 %6556
    %6558 = vrot.lane.b32.xlu0 %v5878, 123
    %v6559 = vpop.permute.xlu0 %6558
    %6560 = vrot.lane.b32.xlu0 %v5879, 123
    %v6561 = vpop.permute.xlu0 %6560
    %6562 = vrot.lane.b32.xlu0 %v5880, 123
    %v6563 = vpop.permute.xlu0 %6562
    %v6564 = vpack.c.bf16 %v6547, %v6545
    %v6565 = vpack.c.bf16 %v6551, %v6549
    %v6566 = vpack.c.bf16 %v6555, %v6553
    %v6567 = vpack.c.bf16 %v6559, %v6557
    %v6568 = vpack.c.bf16 %v6563, %v6561
    %s6569 = scalar_lea.vmem [#allocation5], 160
    %v6570 = vld [vmem:[%s6569] sm:$0xf]
    %v6571 = vld [vmem:[%s6569 + $0x4] sm:$0xf]
    %v6572 = vld [vmem:[%s6569 + $0x8] sm:$0xf]
    %v6573 = vld [vmem:[%s6569 + $0xc] sm:$0xf]
    %v6574 = vld [vmem:[%s6569 + $0x10] sm:$0xf]
    %v6575 = vld [vmem:[%s6569 + $0x14] sm:$0xf]
    %v6576 = vld [vmem:[%s6569 + $0x18] sm:$0xf]
    %v6577 = vld [vmem:[%s6569 + $0x1c] sm:$0xf]
    %v6586 = vunpack.c.l.b16 %v6570
    %v6587 = vunpack.c.l.b16 %v6571
    %v6588 = vunpack.c.l.b16 %v6572
    %v6589 = vunpack.c.l.b16 %v6573
    %v6590 = vunpack.c.l.b16 %v6574
    %v6591 = vunpack.c.l.b16 %v6575
    %v6592 = vunpack.c.l.b16 %v6576
    %v6593 = vunpack.c.l.b16 %v6577
    %v6594 = vpack.c.b16 %v6587, %v6586
    %v6595 = vpack.c.b16 %v6589, %v6588
    %v6596 = vpack.c.b16 %v6591, %v6590
    %v6597 = vpack.c.b16 %v6593, %v6592
    %v6599 = vsel %vm5952, %v6594, 0
    %v6602 = vsel %vm5952, %v6595, 0
    %v6605 = vsel %vm5952, %v6596, 0
    %v6608 = vsel %vm5952, %v6597, 0
    %6610 = vmatprep.subr.bf16.mxu0 0
    %6611 = vmatpush1.bf16.msra.mxu0 0
    %6612 = vmatprep.subr.bf16.mxu0 0
    %6613 = vmatpush1.bf16.msra.mxu0 0
    %6614 = vmatprep.subr.bf16.mxu0 0
    %6615 = vmatpush1.bf16.msra.mxu0 0
    %6616 = vmatprep.subr.bf16.mxu0 0
    %6617 = vmatpush1.bf16.msra.mxu0 %v6568
    %6618 = vmatprep.subr.bf16.mxu0 0
    %6619 = vmatpush1.bf16.msra.mxu0 %v6567
    %6620 = vmatprep.subr.bf16.mxu0 0
    %6621 = vmatpush1.bf16.msra.mxu0 %v6566
    %6622 = vmatprep.subr.bf16.mxu0 0
    %6623 = vmatpush1.bf16.msra.mxu0 %v6565
    %6624 = vmatprep.subr.bf16.mxu0 0
    %6625 = vmatpush1.bf16.msra.mxu0 %v6564
    %6626 = vmatprep.subr.bf16.mxu0 0
    %6627 = vmatpush2.bf16.msra.mxu0 0
    %6628 = vmatprep.subr.bf16.mxu0 0
    %6629 = vmatpush2.bf16.msra.mxu0 0
    %6630 = vmatprep.subr.bf16.mxu0 0
    %6631 = vmatpush2.bf16.msra.mxu0 0
    %6632 = vmatprep.subr.bf16.mxu0 0
    %6633 = vmatpush2.bf16.msra.mxu0 0
    %6634 = vmatprep.subr.bf16.mxu0 0
    %6635 = vmatpush2.bf16.msra.mxu0 0
    %6636 = vmatprep.subr.bf16.mxu0 0
    %6637 = vmatpush2.bf16.msra.mxu0 0
    %6638 = vmatprep.subr.bf16.mxu0 0
    %6639 = vmatpush2.bf16.msra.mxu0 0
    %6640 = vmatprep.subr.bf16.mxu0 0
    %6641 = vmatpush2.bf16.msra.mxu0 0
    %6642 = vmatprep.mubr.bf16.mxu0 0
    %6643 = vmatmul.mubr.bf16.gmra.mxu0 %v6599
    %v6644 = vpop.f32.mrf.mxu0
    %v6645 = vadd.f32 0.0, %v6644
    %v6646 = vpop.f32.mrf.mxu0
    %v6647 = vpop.f32.mrf.mxu0
    %v6648 = vadd.f32 0.0, %v6647
    %v6649 = vpop.f32.mrf.mxu0
    %6650 = vmatprep.mubr.bf16.mxu0 0
    %6651 = vmatmul.mubr.bf16.gmra.mxu0 %v6602
    %v6652 = vpop.f32.mrf.mxu0
    %v6653 = vadd.f32 0.0, %v6652
    %v6654 = vpop.f32.mrf.mxu0
    %v6655 = vpop.f32.mrf.mxu0
    %v6656 = vadd.f32 0.0, %v6655
    %v6657 = vpop.f32.mrf.mxu0
    %6658 = vmatprep.mubr.bf16.mxu0 0
    %6659 = vmatmul.mubr.bf16.gmra.mxu0 %v6605
    %v6660 = vpop.f32.mrf.mxu0
    %v6661 = vadd.f32 0.0, %v6660
    %v6662 = vpop.f32.mrf.mxu0
    %v6663 = vpop.f32.mrf.mxu0
    %v6664 = vadd.f32 0.0, %v6663
    %v6665 = vpop.f32.mrf.mxu0
    %6666 = vmatprep.mubr.bf16.mxu0 0
    %6667 = vmatmul.mubr.bf16.gmra.mxu0 %v6608
    %v6668 = vpop.f32.mrf.mxu0
    %v6669 = vadd.f32 0.0, %v6668
    %v6670 = vpop.f32.mrf.mxu0
    %v6671 = vpop.f32.mrf.mxu0
    %v6672 = vadd.f32 0.0, %v6671
    %v6673 = vpop.f32.mrf.mxu0
    %6674 = vdwg.mxu0
    %v6675 = vadd.f32 %v6536, %v6645
    %v6676 = vadd.f32 %v6537, %v6648
    %v6677 = vadd.f32 %v6538, %v6653
    %v6678 = vadd.f32 %v6539, %v6656
    %v6679 = vadd.f32 %v6540, %v6661
    %v6680 = vadd.f32 %v6541, %v6664
    %v6681 = vadd.f32 %v6542, %v6669
    %v6682 = vadd.f32 %v6543, %v6672
    %6683 = vrot.lane.b32.xlu0 %v5871, 122
    %v6684 = vpop.permute.xlu0 %6683
    %6685 = vrot.lane.b32.xlu0 %v5872, 122
    %v6686 = vpop.permute.xlu0 %6685
    %6687 = vrot.lane.b32.xlu0 %v5873, 122
    %v6688 = vpop.permute.xlu0 %6687
    %6689 = vrot.lane.b32.xlu0 %v5874, 122
    %v6690 = vpop.permute.xlu0 %6689
    %6691 = vrot.lane.b32.xlu0 %v5875, 122
    %v6692 = vpop.permute.xlu0 %6691
    %6693 = vrot.lane.b32.xlu0 %v5876, 122
    %v6694 = vpop.permute.xlu0 %6693
    %6695 = vrot.lane.b32.xlu0 %v5877, 122
    %v6696 = vpop.permute.xlu0 %6695
    %6697 = vrot.lane.b32.xlu0 %v5878, 122
    %v6698 = vpop.permute.xlu0 %6697
    %6699 = vrot.lane.b32.xlu0 %v5879, 122
    %v6700 = vpop.permute.xlu0 %6699
    %6701 = vrot.lane.b32.xlu0 %v5880, 122
    %v6702 = vpop.permute.xlu0 %6701
    %v6703 = vpack.c.bf16 %v6686, %v6684
    %v6704 = vpack.c.bf16 %v6690, %v6688
    %v6705 = vpack.c.bf16 %v6694, %v6692
    %v6706 = vpack.c.bf16 %v6698, %v6696
    %v6707 = vpack.c.bf16 %v6702, %v6700
    %s6708 = scalar_lea.vmem [#allocation5], 192
    %v6709 = vld [vmem:[%s6708] sm:$0xf]
    %v6710 = vld [vmem:[%s6708 + $0x4] sm:$0xf]
    %v6711 = vld [vmem:[%s6708 + $0x8] sm:$0xf]
    %v6712 = vld [vmem:[%s6708 + $0xc] sm:$0xf]
    %v6713 = vld [vmem:[%s6708 + $0x10] sm:$0xf]
    %v6714 = vld [vmem:[%s6708 + $0x14] sm:$0xf]
    %v6715 = vld [vmem:[%s6708 + $0x18] sm:$0xf]
    %v6716 = vld [vmem:[%s6708 + $0x1c] sm:$0xf]
    %v6725 = vunpack.c.l.b16 %v6709
    %v6726 = vunpack.c.l.b16 %v6710
    %v6727 = vunpack.c.l.b16 %v6711
    %v6728 = vunpack.c.l.b16 %v6712
    %v6729 = vunpack.c.l.b16 %v6713
    %v6730 = vunpack.c.l.b16 %v6714
    %v6731 = vunpack.c.l.b16 %v6715
    %v6732 = vunpack.c.l.b16 %v6716
    %v6733 = vpack.c.b16 %v6726, %v6725
    %v6734 = vpack.c.b16 %v6728, %v6727
    %v6735 = vpack.c.b16 %v6730, %v6729
    %v6736 = vpack.c.b16 %v6732, %v6731
    %v6738 = vsel %vm5952, %v6733, 0
    %v6741 = vsel %vm5952, %v6734, 0
    %v6744 = vsel %vm5952, %v6735, 0
    %v6747 = vsel %vm5952, %v6736, 0
    %6749 = vmatprep.subr.bf16.mxu0 0
    %6750 = vmatpush1.bf16.msra.mxu0 0
    %6751 = vmatprep.subr.bf16.mxu0 0
    %6752 = vmatpush1.bf16.msra.mxu0 0
    %6753 = vmatprep.subr.bf16.mxu0 0
    %6754 = vmatpush1.bf16.msra.mxu0 0
    %6755 = vmatprep.subr.bf16.mxu0 0
    %6756 = vmatpush1.bf16.msra.mxu0 %v6707
    %6757 = vmatprep.subr.bf16.mxu0 0
    %6758 = vmatpush1.bf16.msra.mxu0 %v6706
    %6759 = vmatprep.subr.bf16.mxu0 0
    %6760 = vmatpush1.bf16.msra.mxu0 %v6705
    %6761 = vmatprep.subr.bf16.mxu0 0
    %6762 = vmatpush1.bf16.msra.mxu0 %v6704
    %6763 = vmatprep.subr.bf16.mxu0 0
    %6764 = vmatpush1.bf16.msra.mxu0 %v6703
    %6765 = vmatprep.subr.bf16.mxu0 0
    %6766 = vmatpush2.bf16.msra.mxu0 0
    %6767 = vmatprep.subr.bf16.mxu0 0
    %6768 = vmatpush2.bf16.msra.mxu0 0
    %6769 = vmatprep.subr.bf16.mxu0 0
    %6770 = vmatpush2.bf16.msra.mxu0 0
    %6771 = vmatprep.subr.bf16.mxu0 0
    %6772 = vmatpush2.bf16.msra.mxu0 0
    %6773 = vmatprep.subr.bf16.mxu0 0
    %6774 = vmatpush2.bf16.msra.mxu0 0
    %6775 = vmatprep.subr.bf16.mxu0 0
    %6776 = vmatpush2.bf16.msra.mxu0 0
    %6777 = vmatprep.subr.bf16.mxu0 0
    %6778 = vmatpush2.bf16.msra.mxu0 0
    %6779 = vmatprep.subr.bf16.mxu0 0
    %6780 = vmatpush2.bf16.msra.mxu0 0
    %6781 = vmatprep.mubr.bf16.mxu0 0
    %6782 = vmatmul.mubr.bf16.gmra.mxu0 %v6738
    %v6783 = vpop.f32.mrf.mxu0
    %v6784 = vadd.f32 0.0, %v6783
    %v6785 = vpop.f32.mrf.mxu0
    %v6786 = vpop.f32.mrf.mxu0
    %v6787 = vadd.f32 0.0, %v6786
    %v6788 = vpop.f32.mrf.mxu0
    %6789 = vmatprep.mubr.bf16.mxu0 0
    %6790 = vmatmul.mubr.bf16.gmra.mxu0 %v6741
    %v6791 = vpop.f32.mrf.mxu0
    %v6792 = vadd.f32 0.0, %v6791
    %v6793 = vpop.f32.mrf.mxu0
    %v6794 = vpop.f32.mrf.mxu0
    %v6795 = vadd.f32 0.0, %v6794
    %v6796 = vpop.f32.mrf.mxu0
    %6797 = vmatprep.mubr.bf16.mxu0 0
    %6798 = vmatmul.mubr.bf16.gmra.mxu0 %v6744
    %v6799 = vpop.f32.mrf.mxu0
    %v6800 = vadd.f32 0.0, %v6799
    %v6801 = vpop.f32.mrf.mxu0
    %v6802 = vpop.f32.mrf.mxu0
    %v6803 = vadd.f32 0.0, %v6802
    %v6804 = vpop.f32.mrf.mxu0
    %6805 = vmatprep.mubr.bf16.mxu0 0
    %6806 = vmatmul.mubr.bf16.gmra.mxu0 %v6747
    %v6807 = vpop.f32.mrf.mxu0
    %v6808 = vadd.f32 0.0, %v6807
    %v6809 = vpop.f32.mrf.mxu0
    %v6810 = vpop.f32.mrf.mxu0
    %v6811 = vadd.f32 0.0, %v6810
    %v6812 = vpop.f32.mrf.mxu0
    %6813 = vdwg.mxu0
    %v6814 = vadd.f32 %v6675, %v6784
    %v6815 = vadd.f32 %v6676, %v6787
    %v6816 = vadd.f32 %v6677, %v6792
    %v6817 = vadd.f32 %v6678, %v6795
    %v6818 = vadd.f32 %v6679, %v6800
    %v6819 = vadd.f32 %v6680, %v6803
    %v6820 = vadd.f32 %v6681, %v6808
    %v6821 = vadd.f32 %v6682, %v6811
    %6822 = vrot.lane.b32.xlu0 %v5871, 121
    %v6823 = vpop.permute.xlu0 %6822
    %6824 = vrot.lane.b32.xlu0 %v5872, 121
    %v6825 = vpop.permute.xlu0 %6824
    %6826 = vrot.lane.b32.xlu0 %v5873, 121
    %v6827 = vpop.permute.xlu0 %6826
    %6828 = vrot.lane.b32.xlu0 %v5874, 121
    %v6829 = vpop.permute.xlu0 %6828
    %6830 = vrot.lane.b32.xlu0 %v5875, 121
    %v6831 = vpop.permute.xlu0 %6830
    %6832 = vrot.lane.b32.xlu0 %v5876, 121
    %v6833 = vpop.permute.xlu0 %6832
    %6834 = vrot.lane.b32.xlu0 %v5877, 121
    %v6835 = vpop.permute.xlu0 %6834
    %6836 = vrot.lane.b32.xlu0 %v5878, 121
    %v6837 = vpop.permute.xlu0 %6836
    %6838 = vrot.lane.b32.xlu0 %v5879, 121
    %v6839 = vpop.permute.xlu0 %6838
    %6840 = vrot.lane.b32.xlu0 %v5880, 121
    %v6841 = vpop.permute.xlu0 %6840
    %v6842 = vpack.c.bf16 %v6825, %v6823
    %v6843 = vpack.c.bf16 %v6829, %v6827
    %v6844 = vpack.c.bf16 %v6833, %v6831
    %v6845 = vpack.c.bf16 %v6837, %v6835
    %v6846 = vpack.c.bf16 %v6841, %v6839
    %s6847 = scalar_lea.vmem [#allocation5], 224
    %v6848 = vld [vmem:[%s6847] sm:$0xf]
    %v6849 = vld [vmem:[%s6847 + $0x4] sm:$0xf]
    %v6850 = vld [vmem:[%s6847 + $0x8] sm:$0xf]
    %v6851 = vld [vmem:[%s6847 + $0xc] sm:$0xf]
    %v6852 = vld [vmem:[%s6847 + $0x10] sm:$0xf]
    %v6853 = vld [vmem:[%s6847 + $0x14] sm:$0xf]
    %v6854 = vld [vmem:[%s6847 + $0x18] sm:$0xf]
    %v6855 = vld [vmem:[%s6847 + $0x1c] sm:$0xf]
    %v6864 = vunpack.c.l.b16 %v6848
    %v6865 = vunpack.c.l.b16 %v6849
    %v6866 = vunpack.c.l.b16 %v6850
    %v6867 = vunpack.c.l.b16 %v6851
    %v6868 = vunpack.c.l.b16 %v6852
    %v6869 = vunpack.c.l.b16 %v6853
    %v6870 = vunpack.c.l.b16 %v6854
    %v6871 = vunpack.c.l.b16 %v6855
    %v6872 = vpack.c.b16 %v6865, %v6864
    %v6873 = vpack.c.b16 %v6867, %v6866
    %v6874 = vpack.c.b16 %v6869, %v6868
    %v6875 = vpack.c.b16 %v6871, %v6870
    %v6877 = vsel %vm5952, %v6872, 0
    %v6880 = vsel %vm5952, %v6873, 0
    %v6883 = vsel %vm5952, %v6874, 0
    %v6886 = vsel %vm5952, %v6875, 0
    %6888 = vmatprep.subr.bf16.mxu0 0
    %6889 = vmatpush1.bf16.msra.mxu0 0
    %6890 = vmatprep.subr.bf16.mxu0 0
    %6891 = vmatpush1.bf16.msra.mxu0 0
    %6892 = vmatprep.subr.bf16.mxu0 0
    %6893 = vmatpush1.bf16.msra.mxu0 0
    %6894 = vmatprep.subr.bf16.mxu0 0
    %6895 = vmatpush1.bf16.msra.mxu0 %v6846
    %6896 = vmatprep.subr.bf16.mxu0 0
    %6897 = vmatpush1.bf16.msra.mxu0 %v6845
    %6898 = vmatprep.subr.bf16.mxu0 0
    %6899 = vmatpush1.bf16.msra.mxu0 %v6844
    %6900 = vmatprep.subr.bf16.mxu0 0
    %6901 = vmatpush1.bf16.msra.mxu0 %v6843
    %6902 = vmatprep.subr.bf16.mxu0 0
    %6903 = vmatpush1.bf16.msra.mxu0 %v6842
    %6904 = vmatprep.subr.bf16.mxu0 0
    %6905 = vmatpush2.bf16.msra.mxu0 0
    %6906 = vmatprep.subr.bf16.mxu0 0
    %6907 = vmatpush2.bf16.msra.mxu0 0
    %6908 = vmatprep.subr.bf16.mxu0 0
    %6909 = vmatpush2.bf16.msra.mxu0 0
    %6910 = vmatprep.subr.bf16.mxu0 0
    %6911 = vmatpush2.bf16.msra.mxu0 0
    %6912 = vmatprep.subr.bf16.mxu0 0
    %6913 = vmatpush2.bf16.msra.mxu0 0
    %6914 = vmatprep.subr.bf16.mxu0 0
    %6915 = vmatpush2.bf16.msra.mxu0 0
    %6916 = vmatprep.subr.bf16.mxu0 0
    %6917 = vmatpush2.bf16.msra.mxu0 0
    %6918 = vmatprep.subr.bf16.mxu0 0
    %6919 = vmatpush2.bf16.msra.mxu0 0
    %6920 = vmatprep.mubr.bf16.mxu0 0
    %6921 = vmatmul.mubr.bf16.gmra.mxu0 %v6877
    %v6922 = vpop.f32.mrf.mxu0
    %v6923 = vadd.f32 0.0, %v6922
    %v6924 = vpop.f32.mrf.mxu0
    %v6925 = vpop.f32.mrf.mxu0
    %v6926 = vadd.f32 0.0, %v6925
    %v6927 = vpop.f32.mrf.mxu0
    %6928 = vmatprep.mubr.bf16.mxu0 0
    %6929 = vmatmul.mubr.bf16.gmra.mxu0 %v6880
    %v6930 = vpop.f32.mrf.mxu0
    %v6931 = vadd.f32 0.0, %v6930
    %v6932 = vpop.f32.mrf.mxu0
    %v6933 = vpop.f32.mrf.mxu0
    %v6934 = vadd.f32 0.0, %v6933
    %v6935 = vpop.f32.mrf.mxu0
    %6936 = vmatprep.mubr.bf16.mxu0 0
    %6937 = vmatmul.mubr.bf16.gmra.mxu0 %v6883
    %v6938 = vpop.f32.mrf.mxu0
    %v6939 = vadd.f32 0.0, %v6938
    %v6940 = vpop.f32.mrf.mxu0
    %v6941 = vpop.f32.mrf.mxu0
    %v6942 = vadd.f32 0.0, %v6941
    %v6943 = vpop.f32.mrf.mxu0
    %6944 = vmatprep.mubr.bf16.mxu0 0
    %6945 = vmatmul.mubr.bf16.gmra.mxu0 %v6886
    %v6946 = vpop.f32.mrf.mxu0
    %v6947 = vadd.f32 0.0, %v6946
    %v6948 = vpop.f32.mrf.mxu0
    %v6949 = vpop.f32.mrf.mxu0
    %v6950 = vadd.f32 0.0, %v6949
    %v6951 = vpop.f32.mrf.mxu0
    %6952 = vdwg.mxu0
    %v6953 = vadd.f32 %v6814, %v6923
    %v6954 = vadd.f32 %v6815, %v6926
    %v6955 = vadd.f32 %v6816, %v6931
    %v6956 = vadd.f32 %v6817, %v6934
    %v6957 = vadd.f32 %v6818, %v6939
    %v6958 = vadd.f32 %v6819, %v6942
    %v6959 = vadd.f32 %v6820, %v6947
    %v6960 = vadd.f32 %v6821, %v6950
    %6961 = vrot.lane.b32.xlu0 %v5871, 120
    %v6962 = vpop.permute.xlu0 %6961
    %6963 = vrot.lane.b32.xlu0 %v5872, 120
    %v6964 = vpop.permute.xlu0 %6963
    %6965 = vrot.lane.b32.xlu0 %v5873, 120
    %v6966 = vpop.permute.xlu0 %6965
    %6967 = vrot.lane.b32.xlu0 %v5874, 120
    %v6968 = vpop.permute.xlu0 %6967
    %6969 = vrot.lane.b32.xlu0 %v5875, 120
    %v6970 = vpop.permute.xlu0 %6969
    %6971 = vrot.lane.b32.xlu0 %v5876, 120
    %v6972 = vpop.permute.xlu0 %6971
    %6973 = vrot.lane.b32.xlu0 %v5877, 120
    %v6974 = vpop.permute.xlu0 %6973
    %6975 = vrot.lane.b32.xlu0 %v5878, 120
    %v6976 = vpop.permute.xlu0 %6975
    %6977 = vrot.lane.b32.xlu0 %v5879, 120
    %v6978 = vpop.permute.xlu0 %6977
    %6979 = vrot.lane.b32.xlu0 %v5880, 120
    %v6980 = vpop.permute.xlu0 %6979
    %v6981 = vpack.c.bf16 %v6964, %v6962
    %v6982 = vpack.c.bf16 %v6968, %v6966
    %v6983 = vpack.c.bf16 %v6972, %v6970
    %v6984 = vpack.c.bf16 %v6976, %v6974
    %v6985 = vpack.c.bf16 %v6980, %v6978
    %s6986 = scalar_lea.vmem [#allocation5], 256
    %v6987 = vld [vmem:[%s6986] sm:$0xf]
    %v6988 = vld [vmem:[%s6986 + $0x4] sm:$0xf]
    %v6989 = vld [vmem:[%s6986 + $0x8] sm:$0xf]
    %v6990 = vld [vmem:[%s6986 + $0xc] sm:$0xf]
    %v6991 = vld [vmem:[%s6986 + $0x10] sm:$0xf]
    %v6992 = vld [vmem:[%s6986 + $0x14] sm:$0xf]
    %v6993 = vld [vmem:[%s6986 + $0x18] sm:$0xf]
    %v6994 = vld [vmem:[%s6986 + $0x1c] sm:$0xf]
    %v7003 = vunpack.c.l.b16 %v6987
    %v7004 = vunpack.c.l.b16 %v6988
    %v7005 = vunpack.c.l.b16 %v6989
    %v7006 = vunpack.c.l.b16 %v6990
    %v7007 = vunpack.c.l.b16 %v6991
    %v7008 = vunpack.c.l.b16 %v6992
    %v7009 = vunpack.c.l.b16 %v6993
    %v7010 = vunpack.c.l.b16 %v6994
    %v7011 = vpack.c.b16 %v7004, %v7003
    %v7012 = vpack.c.b16 %v7006, %v7005
    %v7013 = vpack.c.b16 %v7008, %v7007
    %v7014 = vpack.c.b16 %v7010, %v7009
    %v7016 = vsel %vm5952, %v7011, 0
    %v7019 = vsel %vm5952, %v7012, 0
    %v7022 = vsel %vm5952, %v7013, 0
    %v7025 = vsel %vm5952, %v7014, 0
    %7027 = vmatprep.subr.bf16.mxu0 0
    %7028 = vmatpush1.bf16.msra.mxu0 0
    %7029 = vmatprep.subr.bf16.mxu0 0
    %7030 = vmatpush1.bf16.msra.mxu0 0
    %7031 = vmatprep.subr.bf16.mxu0 0
    %7032 = vmatpush1.bf16.msra.mxu0 0
    %7033 = vmatprep.subr.bf16.mxu0 0
    %7034 = vmatpush1.bf16.msra.mxu0 %v6985
    %7035 = vmatprep.subr.bf16.mxu0 0
    %7036 = vmatpush1.bf16.msra.mxu0 %v6984
    %7037 = vmatprep.subr.bf16.mxu0 0
    %7038 = vmatpush1.bf16.msra.mxu0 %v6983
    %7039 = vmatprep.subr.bf16.mxu0 0
    %7040 = vmatpush1.bf16.msra.mxu0 %v6982
    %7041 = vmatprep.subr.bf16.mxu0 0
    %7042 = vmatpush1.bf16.msra.mxu0 %v6981
    %7043 = vmatprep.subr.bf16.mxu0 0
    %7044 = vmatpush2.bf16.msra.mxu0 0
    %7045 = vmatprep.subr.bf16.mxu0 0
    %7046 = vmatpush2.bf16.msra.mxu0 0
    %7047 = vmatprep.subr.bf16.mxu0 0
    %7048 = vmatpush2.bf16.msra.mxu0 0
    %7049 = vmatprep.subr.bf16.mxu0 0
    %7050 = vmatpush2.bf16.msra.mxu0 0
    %7051 = vmatprep.subr.bf16.mxu0 0
    %7052 = vmatpush2.bf16.msra.mxu0 0
    %7053 = vmatprep.subr.bf16.mxu0 0
    %7054 = vmatpush2.bf16.msra.mxu0 0
    %7055 = vmatprep.subr.bf16.mxu0 0
    %7056 = vmatpush2.bf16.msra.mxu0 0
    %7057 = vmatprep.subr.bf16.mxu0 0
    %7058 = vmatpush2.bf16.msra.mxu0 0
    %7059 = vmatprep.mubr.bf16.mxu0 0
    %7060 = vmatmul.mubr.bf16.gmra.mxu0 %v7016
    %v7061 = vpop.f32.mrf.mxu0
    %v7062 = vadd.f32 0.0, %v7061
    %v7063 = vpop.f32.mrf.mxu0
    %v7064 = vpop.f32.mrf.mxu0
    %v7065 = vadd.f32 0.0, %v7064
    %v7066 = vpop.f32.mrf.mxu0
    %7067 = vmatprep.mubr.bf16.mxu0 0
    %7068 = vmatmul.mubr.bf16.gmra.mxu0 %v7019
    %v7069 = vpop.f32.mrf.mxu0
    %v7070 = vadd.f32 0.0, %v7069
    %v7071 = vpop.f32.mrf.mxu0
    %v7072 = vpop.f32.mrf.mxu0
    %v7073 = vadd.f32 0.0, %v7072
    %v7074 = vpop.f32.mrf.mxu0
    %7075 = vmatprep.mubr.bf16.mxu0 0
    %7076 = vmatmul.mubr.bf16.gmra.mxu0 %v7022
    %v7077 = vpop.f32.mrf.mxu0
    %v7078 = vadd.f32 0.0, %v7077
    %v7079 = vpop.f32.mrf.mxu0
    %v7080 = vpop.f32.mrf.mxu0
    %v7081 = vadd.f32 0.0, %v7080
    %v7082 = vpop.f32.mrf.mxu0
    %7083 = vmatprep.mubr.bf16.mxu0 0
    %7084 = vmatmul.mubr.bf16.gmra.mxu0 %v7025
    %v7085 = vpop.f32.mrf.mxu0
    %v7086 = vadd.f32 0.0, %v7085
    %v7087 = vpop.f32.mrf.mxu0
    %v7088 = vpop.f32.mrf.mxu0
    %v7089 = vadd.f32 0.0, %v7088
    %v7090 = vpop.f32.mrf.mxu0
    %7091 = vdwg.mxu0
    %v7092 = vadd.f32 %v6953, %v7062
    %v7093 = vadd.f32 %v6954, %v7065
    %v7094 = vadd.f32 %v6955, %v7070
    %v7095 = vadd.f32 %v6956, %v7073
    %v7096 = vadd.f32 %v6957, %v7078
    %v7097 = vadd.f32 %v6958, %v7081
    %v7098 = vadd.f32 %v6959, %v7086
    %v7099 = vadd.f32 %v6960, %v7089
    %7100 = vrot.lane.b32.xlu0 %v5871, 119
    %v7101 = vpop.permute.xlu0 %7100
    %7102 = vrot.lane.b32.xlu0 %v5872, 119
    %v7103 = vpop.permute.xlu0 %7102
    %7104 = vrot.lane.b32.xlu0 %v5873, 119
    %v7105 = vpop.permute.xlu0 %7104
    %7106 = vrot.lane.b32.xlu0 %v5874, 119
    %v7107 = vpop.permute.xlu0 %7106
    %7108 = vrot.lane.b32.xlu0 %v5875, 119
    %v7109 = vpop.permute.xlu0 %7108
    %7110 = vrot.lane.b32.xlu0 %v5876, 119
    %v7111 = vpop.permute.xlu0 %7110
    %7112 = vrot.lane.b32.xlu0 %v5877, 119
    %v7113 = vpop.permute.xlu0 %7112
    %7114 = vrot.lane.b32.xlu0 %v5878, 119
    %v7115 = vpop.permute.xlu0 %7114
    %7116 = vrot.lane.b32.xlu0 %v5879, 119
    %v7117 = vpop.permute.xlu0 %7116
    %7118 = vrot.lane.b32.xlu0 %v5880, 119
    %v7119 = vpop.permute.xlu0 %7118
    %v7120 = vpack.c.bf16 %v7103, %v7101
    %v7121 = vpack.c.bf16 %v7107, %v7105
    %v7122 = vpack.c.bf16 %v7111, %v7109
    %v7123 = vpack.c.bf16 %v7115, %v7113
    %v7124 = vpack.c.bf16 %v7119, %v7117
    %s7125 = scalar_lea.vmem [#allocation5], 288
    %v7126 = vld [vmem:[%s7125] sm:$0xf]
    %v7127 = vld [vmem:[%s7125 + $0x4] sm:$0xf]
    %v7128 = vld [vmem:[%s7125 + $0x8] sm:$0xf]
    %v7129 = vld [vmem:[%s7125 + $0xc] sm:$0xf]
    %v7130 = vld [vmem:[%s7125 + $0x10] sm:$0xf]
    %v7131 = vld [vmem:[%s7125 + $0x14] sm:$0xf]
    %v7132 = vld [vmem:[%s7125 + $0x18] sm:$0xf]
    %v7133 = vld [vmem:[%s7125 + $0x1c] sm:$0xf]
    %v7142 = vunpack.c.l.b16 %v7126
    %v7143 = vunpack.c.l.b16 %v7127
    %v7144 = vunpack.c.l.b16 %v7128
    %v7145 = vunpack.c.l.b16 %v7129
    %v7146 = vunpack.c.l.b16 %v7130
    %v7147 = vunpack.c.l.b16 %v7131
    %v7148 = vunpack.c.l.b16 %v7132
    %v7149 = vunpack.c.l.b16 %v7133
    %v7150 = vpack.c.b16 %v7143, %v7142
    %v7151 = vpack.c.b16 %v7145, %v7144
    %v7152 = vpack.c.b16 %v7147, %v7146
    %v7153 = vpack.c.b16 %v7149, %v7148
    %v7155 = vsel %vm5952, %v7150, 0
    %v7158 = vsel %vm5952, %v7151, 0
    %v7161 = vsel %vm5952, %v7152, 0
    %v7164 = vsel %vm5952, %v7153, 0
    %7166 = vmatprep.subr.bf16.mxu0 0
    %7167 = vmatpush1.bf16.msra.mxu0 0
    %7168 = vmatprep.subr.bf16.mxu0 0
    %7169 = vmatpush1.bf16.msra.mxu0 0
    %7170 = vmatprep.subr.bf16.mxu0 0
    %7171 = vmatpush1.bf16.msra.mxu0 0
    %7172 = vmatprep.subr.bf16.mxu0 0
    %7173 = vmatpush1.bf16.msra.mxu0 %v7124
    %7174 = vmatprep.subr.bf16.mxu0 0
    %7175 = vmatpush1.bf16.msra.mxu0 %v7123
    %7176 = vmatprep.subr.bf16.mxu0 0
    %7177 = vmatpush1.bf16.msra.mxu0 %v7122
    %7178 = vmatprep.subr.bf16.mxu0 0
    %7179 = vmatpush1.bf16.msra.mxu0 %v7121
    %7180 = vmatprep.subr.bf16.mxu0 0
    %7181 = vmatpush1.bf16.msra.mxu0 %v7120
    %7182 = vmatprep.subr.bf16.mxu0 0
    %7183 = vmatpush2.bf16.msra.mxu0 0
    %7184 = vmatprep.subr.bf16.mxu0 0
    %7185 = vmatpush2.bf16.msra.mxu0 0
    %7186 = vmatprep.subr.bf16.mxu0 0
    %7187 = vmatpush2.bf16.msra.mxu0 0
    %7188 = vmatprep.subr.bf16.mxu0 0
    %7189 = vmatpush2.bf16.msra.mxu0 0
    %7190 = vmatprep.subr.bf16.mxu0 0
    %7191 = vmatpush2.bf16.msra.mxu0 0
    %7192 = vmatprep.subr.bf16.mxu0 0
    %7193 = vmatpush2.bf16.msra.mxu0 0
    %7194 = vmatprep.subr.bf16.mxu0 0
    %7195 = vmatpush2.bf16.msra.mxu0 0
    %7196 = vmatprep.subr.bf16.mxu0 0
    %7197 = vmatpush2.bf16.msra.mxu0 0
    %7198 = vmatprep.mubr.bf16.mxu0 0
    %7199 = vmatmul.mubr.bf16.gmra.mxu0 %v7155
    %v7200 = vpop.f32.mrf.mxu0
    %v7201 = vadd.f32 0.0, %v7200
    %v7202 = vpop.f32.mrf.mxu0
    %v7203 = vpop.f32.mrf.mxu0
    %v7204 = vadd.f32 0.0, %v7203
    %v7205 = vpop.f32.mrf.mxu0
    %7206 = vmatprep.mubr.bf16.mxu0 0
    %7207 = vmatmul.mubr.bf16.gmra.mxu0 %v7158
    %v7208 = vpop.f32.mrf.mxu0
    %v7209 = vadd.f32 0.0, %v7208
    %v7210 = vpop.f32.mrf.mxu0
    %v7211 = vpop.f32.mrf.mxu0
    %v7212 = vadd.f32 0.0, %v7211
    %v7213 = vpop.f32.mrf.mxu0
    %7214 = vmatprep.mubr.bf16.mxu0 0
    %7215 = vmatmul.mubr.bf16.gmra.mxu0 %v7161
    %v7216 = vpop.f32.mrf.mxu0
    %v7217 = vadd.f32 0.0, %v7216
    %v7218 = vpop.f32.mrf.mxu0
    %v7219 = vpop.f32.mrf.mxu0
    %v7220 = vadd.f32 0.0, %v7219
    %v7221 = vpop.f32.mrf.mxu0
    %7222 = vmatprep.mubr.bf16.mxu0 0
    %7223 = vmatmul.mubr.bf16.gmra.mxu0 %v7164
    %v7224 = vpop.f32.mrf.mxu0
    %v7225 = vadd.f32 0.0, %v7224
    %v7226 = vpop.f32.mrf.mxu0
    %v7227 = vpop.f32.mrf.mxu0
    %v7228 = vadd.f32 0.0, %v7227
    %v7229 = vpop.f32.mrf.mxu0
    %7230 = vdwg.mxu0
    %v7231 = vadd.f32 %v7092, %v7201
    %v7232 = vadd.f32 %v7093, %v7204
    %v7233 = vadd.f32 %v7094, %v7209
    %v7234 = vadd.f32 %v7095, %v7212
    %v7235 = vadd.f32 %v7096, %v7217
    %v7236 = vadd.f32 %v7097, %v7220
    %v7237 = vadd.f32 %v7098, %v7225
    %v7238 = vadd.f32 %v7099, %v7228
    %v7239 = vstv %s39
    %v7240 = vadd.f32 %v7231, %v7239
    %v7241 = vadd.f32 %v7232, %v7239
    %v7242 = vadd.f32 %v7233, %v7239
    %v7243 = vadd.f32 %v7234, %v7239
    %v7244 = vadd.f32 %v7235, %v7239
    %v7245 = vadd.f32 %v7236, %v7239
    %v7246 = vadd.f32 %v7237, %v7239
    %v7247 = vadd.f32 %v7238, %v7239
    %v7248 = vmax.f32 %v7240, 0.0
    %v7249 = vmax.f32 %v7241, 0.0
    %v7250 = vmax.f32 %v7242, 0.0
    %v7251 = vmax.f32 %v7243, 0.0
    %v7252 = vmax.f32 %v7244, 0.0
    %v7253 = vmax.f32 %v7245, 0.0
    %v7254 = vmax.f32 %v7246, 0.0
    %v7255 = vmax.f32 %v7247, 0.0
    %s7256 = smul.u32 %s900, 7
    %s7257 = smul.u32 %s7256, 1
    %s7258 = sshll.u32 %s7257, 4
    %7259 = dma.done %s349, %s7258
    %v7260 = vpack.c.bf16 %v7249, %v7248
    %v7261 = vpack.c.bf16 %v7251, %v7250
    %v7262 = vpack.c.bf16 %v7253, %v7252
    %v7263 = vpack.c.bf16 %v7255, %v7254
    %v7264 = vld [vmem:[#allocation6] sm:$0xf]
    %v7265 = vld [vmem:[#allocation6 + $0x4] sm:$0xf]
    %v7266 = vld [vmem:[#allocation6 + $0x8] sm:$0xf]
    %v7267 = vld [vmem:[#allocation6 + $0xc] sm:$0xf]
    %v7268 = vld [vmem:[#allocation6 + $0x10] sm:$0xf]
    %v7269 = vld [vmem:[#allocation6 + $0x14] sm:$0xf]
    %v7270 = vld [vmem:[#allocation6 + $0x18] sm:$0xf]
    %7271 = vrot.lane.b32.xlu0 %v7248, 127
    %v7272 = vpop.permute.xlu0 %7271
    %7273 = vrot.lane.b32.xlu0 %v7249, 127
    %v7274 = vpop.permute.xlu0 %7273
    %7275 = vrot.lane.b32.xlu0 %v7250, 127
    %v7276 = vpop.permute.xlu0 %7275
    %7277 = vrot.lane.b32.xlu0 %v7251, 127
    %v7278 = vpop.permute.xlu0 %7277
    %7279 = vrot.lane.b32.xlu0 %v7252, 127
    %v7280 = vpop.permute.xlu0 %7279
    %7281 = vrot.lane.b32.xlu0 %v7253, 127
    %v7282 = vpop.permute.xlu0 %7281
    %7283 = vrot.lane.b32.xlu0 %v7254, 127
    %v7284 = vpop.permute.xlu0 %7283
    %7285 = vrot.lane.b32.xlu0 %v7255, 127
    %v7286 = vpop.permute.xlu0 %7285
    %v7287 = vpack.c.bf16 %v7274, %v7272
    %v7288 = vpack.c.bf16 %v7278, %v7276
    %v7289 = vpack.c.bf16 %v7282, %v7280
    %v7290 = vpack.c.bf16 %v7286, %v7284
    %s7291 = scalar_lea.vmem [#allocation6], 28
    %v7292 = vld [vmem:[%s7291] sm:$0xf]
    %v7293 = vld [vmem:[%s7291 + $0x4] sm:$0xf]
    %v7294 = vld [vmem:[%s7291 + $0x8] sm:$0xf]
    %v7295 = vld [vmem:[%s7291 + $0xc] sm:$0xf]
    %v7296 = vld [vmem:[%s7291 + $0x10] sm:$0xf]
    %v7297 = vld [vmem:[%s7291 + $0x14] sm:$0xf]
    %v7298 = vld [vmem:[%s7291 + $0x18] sm:$0xf]
    %v7306 = vunpack.c.l.b16 %v7292
    %v7307 = vunpack.c.l.b16 %v7293
    %v7308 = vunpack.c.l.b16 %v7294
    %v7309 = vunpack.c.l.b16 %v7295
    %v7310 = vunpack.c.l.b16 %v7296
    %v7311 = vunpack.c.l.b16 %v7297
    %v7312 = vunpack.c.l.b16 %v7298
    %v7313 = vpack.c.b16 %v7307, %v7306
    %v7314 = vpack.c.b16 %v7309, %v7308
    %v7315 = vpack.c.b16 %v7311, %v7310
    %v7316 = vpack.c.b16 %v7312, %v7312
    %vm7317 = vcmask 523264
    %v7319 = vsel %vm7317, %v7313, 0
    %v7322 = vsel %vm7317, %v7314, 0
    %v7325 = vsel %vm7317, %v7315, 0
    %v7328 = vsel %vm7317, %v7316, 0
    %7330 = vmatprep.subr.bf16.mxu0 0
    %7331 = vmatpush1.bf16.msra.mxu0 0
    %7332 = vmatprep.subr.bf16.mxu0 0
    %7333 = vmatpush1.bf16.msra.mxu0 0
    %7334 = vmatprep.subr.bf16.mxu0 0
    %7335 = vmatpush1.bf16.msra.mxu0 0
    %7336 = vmatprep.subr.bf16.mxu0 0
    %7337 = vmatpush1.bf16.msra.mxu0 0
    %7338 = vmatprep.subr.bf16.mxu0 0
    %7339 = vmatpush1.bf16.msra.mxu0 %v7290
    %7340 = vmatprep.subr.bf16.mxu0 0
    %7341 = vmatpush1.bf16.msra.mxu0 %v7289
    %7342 = vmatprep.subr.bf16.mxu0 0
    %7343 = vmatpush1.bf16.msra.mxu0 %v7288
    %7344 = vmatprep.subr.bf16.mxu0 0
    %7345 = vmatpush1.bf16.msra.mxu0 %v7287
    %7346 = vmatprep.subr.bf16.mxu0 0
    %7347 = vmatpush2.bf16.msra.mxu0 0
    %7348 = vmatprep.subr.bf16.mxu0 0
    %7349 = vmatpush2.bf16.msra.mxu0 0
    %7350 = vmatprep.subr.bf16.mxu0 0
    %7351 = vmatpush2.bf16.msra.mxu0 0
    %7352 = vmatprep.subr.bf16.mxu0 0
    %7353 = vmatpush2.bf16.msra.mxu0 0
    %7354 = vmatprep.subr.bf16.mxu0 0
    %7355 = vmatpush2.bf16.msra.mxu0 0
    %7356 = vmatprep.subr.bf16.mxu0 0
    %7357 = vmatpush2.bf16.msra.mxu0 0
    %7358 = vmatprep.subr.bf16.mxu0 0
    %7359 = vmatpush2.bf16.msra.mxu0 0
    %7360 = vmatprep.subr.bf16.mxu0 0
    %7361 = vmatpush2.bf16.msra.mxu0 0
    %7362 = vmatprep.mubr.bf16.mxu0 0
    %7363 = vmatmul.mubr.bf16.gmra.mxu0 %v7319
    %v7364 = vpop.f32.mrf.mxu0
    %v7365 = vadd.f32 0.0, %v7364
    %v7366 = vpop.f32.mrf.mxu0
    %v7367 = vpop.f32.mrf.mxu0
    %v7368 = vadd.f32 0.0, %v7367
    %v7369 = vpop.f32.mrf.mxu0
    %7370 = vmatprep.mubr.bf16.mxu0 0
    %7371 = vmatmul.mubr.bf16.gmra.mxu0 %v7322
    %v7372 = vpop.f32.mrf.mxu0
    %v7373 = vadd.f32 0.0, %v7372
    %v7374 = vpop.f32.mrf.mxu0
    %v7375 = vpop.f32.mrf.mxu0
    %v7376 = vadd.f32 0.0, %v7375
    %v7377 = vpop.f32.mrf.mxu0
    %7378 = vmatprep.mubr.bf16.mxu0 0
    %7379 = vmatmul.mubr.bf16.gmra.mxu0 %v7325
    %v7380 = vpop.f32.mrf.mxu0
    %v7381 = vadd.f32 0.0, %v7380
    %v7382 = vpop.f32.mrf.mxu0
    %v7383 = vpop.f32.mrf.mxu0
    %v7384 = vadd.f32 0.0, %v7383
    %v7385 = vpop.f32.mrf.mxu0
    %7386 = vmatprep.mubr.bf16.mxu0 0
    %7387 = vmatmul.mubr.bf16.gmra.mxu0 %v7328
    %v7388 = vpop.f32.mrf.mxu0
    %v7389 = vadd.f32 0.0, %v7388
    %v7390 = vpop.f32.mrf.mxu0
    %v7391 = vpop.f32.mrf.mxu0
    %v7392 = vpop.f32.mrf.mxu0
    %7393 = vdwg.mxu0
    %v7401 = vunpack.c.l.b16 %v7264
    %v7402 = vunpack.c.l.b16 %v7265
    %v7403 = vunpack.c.l.b16 %v7266
    %v7404 = vunpack.c.l.b16 %v7267
    %v7405 = vunpack.c.l.b16 %v7268
    %v7406 = vunpack.c.l.b16 %v7269
    %v7407 = vunpack.c.l.b16 %v7270
    %v7408 = vpack.c.b16 %v7402, %v7401
    %v7409 = vpack.c.b16 %v7404, %v7403
    %v7410 = vpack.c.b16 %v7406, %v7405
    %v7411 = vpack.c.b16 %v7407, %v7407
    %v7413 = vsel %vm7317, %v7408, 0
    %v7416 = vsel %vm7317, %v7409, 0
    %v7419 = vsel %vm7317, %v7410, 0
    %v7422 = vsel %vm7317, %v7411, 0
    %7424 = vmatprep.subr.bf16.mxu0 0
    %7425 = vmatpush1.bf16.msra.mxu0 0
    %7426 = vmatprep.subr.bf16.mxu0 0
    %7427 = vmatpush1.bf16.msra.mxu0 0
    %7428 = vmatprep.subr.bf16.mxu0 0
    %7429 = vmatpush1.bf16.msra.mxu0 0
    %7430 = vmatprep.subr.bf16.mxu0 0
    %7431 = vmatpush1.bf16.msra.mxu0 0
    %7432 = vmatprep.subr.bf16.mxu0 0
    %7433 = vmatpush1.bf16.msra.mxu0 %v7263
    %7434 = vmatprep.subr.bf16.mxu0 0
    %7435 = vmatpush1.bf16.msra.mxu0 %v7262
    %7436 = vmatprep.subr.bf16.mxu0 0
    %7437 = vmatpush1.bf16.msra.mxu0 %v7261
    %7438 = vmatprep.subr.bf16.mxu0 0
    %7439 = vmatpush1.bf16.msra.mxu0 %v7260
    %7440 = vmatprep.subr.bf16.mxu0 0
    %7441 = vmatpush2.bf16.msra.mxu0 0
    %7442 = vmatprep.subr.bf16.mxu0 0
    %7443 = vmatpush2.bf16.msra.mxu0 0
    %7444 = vmatprep.subr.bf16.mxu0 0
    %7445 = vmatpush2.bf16.msra.mxu0 0
    %7446 = vmatprep.subr.bf16.mxu0 0
    %7447 = vmatpush2.bf16.msra.mxu0 0
    %7448 = vmatprep.subr.bf16.mxu0 0
    %7449 = vmatpush2.bf16.msra.mxu0 0
    %7450 = vmatprep.subr.bf16.mxu0 0
    %7451 = vmatpush2.bf16.msra.mxu0 0
    %7452 = vmatprep.subr.bf16.mxu0 0
    %7453 = vmatpush2.bf16.msra.mxu0 0
    %7454 = vmatprep.subr.bf16.mxu0 0
    %7455 = vmatpush2.bf16.msra.mxu0 0
    %7456 = vmatprep.mubr.bf16.mxu0 0
    %7457 = vmatmul.mubr.bf16.gmra.mxu0 %v7413
    %v7458 = vpop.f32.mrf.mxu0
    %v7459 = vadd.f32 %v7365, %v7458
    %v7460 = vpop.f32.mrf.mxu0
    %v7461 = vpop.f32.mrf.mxu0
    %v7462 = vadd.f32 %v7368, %v7461
    %v7463 = vpop.f32.mrf.mxu0
    %7464 = vmatprep.mubr.bf16.mxu0 0
    %7465 = vmatmul.mubr.bf16.gmra.mxu0 %v7416
    %v7466 = vpop.f32.mrf.mxu0
    %v7467 = vadd.f32 %v7373, %v7466
    %v7468 = vpop.f32.mrf.mxu0
    %v7469 = vpop.f32.mrf.mxu0
    %v7470 = vadd.f32 %v7376, %v7469
    %v7471 = vpop.f32.mrf.mxu0
    %7472 = vmatprep.mubr.bf16.mxu0 0
    %7473 = vmatmul.mubr.bf16.gmra.mxu0 %v7419
    %v7474 = vpop.f32.mrf.mxu0
    %v7475 = vadd.f32 %v7381, %v7474
    %v7476 = vpop.f32.mrf.mxu0
    %v7477 = vpop.f32.mrf.mxu0
    %v7478 = vadd.f32 %v7384, %v7477
    %v7479 = vpop.f32.mrf.mxu0
    %7480 = vmatprep.mubr.bf16.mxu0 0
    %7481 = vmatmul.mubr.bf16.gmra.mxu0 %v7422
    %v7482 = vpop.f32.mrf.mxu0
    %v7483 = vadd.f32 %v7389, %v7482
    %v7484 = vpop.f32.mrf.mxu0
    %v7485 = vpop.f32.mrf.mxu0
    %v7486 = vpop.f32.mrf.mxu0
    %7487 = vdwg.mxu0
    %7488 = vrot.lane.b32.xlu0 %v7248, 126
    %v7489 = vpop.permute.xlu0 %7488
    %7490 = vrot.lane.b32.xlu0 %v7249, 126
    %v7491 = vpop.permute.xlu0 %7490
    %7492 = vrot.lane.b32.xlu0 %v7250, 126
    %v7493 = vpop.permute.xlu0 %7492
    %7494 = vrot.lane.b32.xlu0 %v7251, 126
    %v7495 = vpop.permute.xlu0 %7494
    %7496 = vrot.lane.b32.xlu0 %v7252, 126
    %v7497 = vpop.permute.xlu0 %7496
    %7498 = vrot.lane.b32.xlu0 %v7253, 126
    %v7499 = vpop.permute.xlu0 %7498
    %7500 = vrot.lane.b32.xlu0 %v7254, 126
    %v7501 = vpop.permute.xlu0 %7500
    %7502 = vrot.lane.b32.xlu0 %v7255, 126
    %v7503 = vpop.permute.xlu0 %7502
    %v7504 = vpack.c.bf16 %v7491, %v7489
    %v7505 = vpack.c.bf16 %v7495, %v7493
    %v7506 = vpack.c.bf16 %v7499, %v7497
    %v7507 = vpack.c.bf16 %v7503, %v7501
    %s7508 = scalar_lea.vmem [#allocation6], 56
    %v7509 = vld [vmem:[%s7508] sm:$0xf]
    %v7510 = vld [vmem:[%s7508 + $0x4] sm:$0xf]
    %v7511 = vld [vmem:[%s7508 + $0x8] sm:$0xf]
    %v7512 = vld [vmem:[%s7508 + $0xc] sm:$0xf]
    %v7513 = vld [vmem:[%s7508 + $0x10] sm:$0xf]
    %v7514 = vld [vmem:[%s7508 + $0x14] sm:$0xf]
    %v7515 = vld [vmem:[%s7508 + $0x18] sm:$0xf]
    %v7523 = vunpack.c.l.b16 %v7509
    %v7524 = vunpack.c.l.b16 %v7510
    %v7525 = vunpack.c.l.b16 %v7511
    %v7526 = vunpack.c.l.b16 %v7512
    %v7527 = vunpack.c.l.b16 %v7513
    %v7528 = vunpack.c.l.b16 %v7514
    %v7529 = vunpack.c.l.b16 %v7515
    %v7530 = vpack.c.b16 %v7524, %v7523
    %v7531 = vpack.c.b16 %v7526, %v7525
    %v7532 = vpack.c.b16 %v7528, %v7527
    %v7533 = vpack.c.b16 %v7529, %v7529
    %v7535 = vsel %vm7317, %v7530, 0
    %v7538 = vsel %vm7317, %v7531, 0
    %v7541 = vsel %vm7317, %v7532, 0
    %v7544 = vsel %vm7317, %v7533, 0
    %7546 = vmatprep.subr.bf16.mxu0 0
    %7547 = vmatpush1.bf16.msra.mxu0 0
    %7548 = vmatprep.subr.bf16.mxu0 0
    %7549 = vmatpush1.bf16.msra.mxu0 0
    %7550 = vmatprep.subr.bf16.mxu0 0
    %7551 = vmatpush1.bf16.msra.mxu0 0
    %7552 = vmatprep.subr.bf16.mxu0 0
    %7553 = vmatpush1.bf16.msra.mxu0 0
    %7554 = vmatprep.subr.bf16.mxu0 0
    %7555 = vmatpush1.bf16.msra.mxu0 %v7507
    %7556 = vmatprep.subr.bf16.mxu0 0
    %7557 = vmatpush1.bf16.msra.mxu0 %v7506
    %7558 = vmatprep.subr.bf16.mxu0 0
    %7559 = vmatpush1.bf16.msra.mxu0 %v7505
    %7560 = vmatprep.subr.bf16.mxu0 0
    %7561 = vmatpush1.bf16.msra.mxu0 %v7504
    %7562 = vmatprep.subr.bf16.mxu0 0
    %7563 = vmatpush2.bf16.msra.mxu0 0
    %7564 = vmatprep.subr.bf16.mxu0 0
    %7565 = vmatpush2.bf16.msra.mxu0 0
    %7566 = vmatprep.subr.bf16.mxu0 0
    %7567 = vmatpush2.bf16.msra.mxu0 0
    %7568 = vmatprep.subr.bf16.mxu0 0
    %7569 = vmatpush2.bf16.msra.mxu0 0
    %7570 = vmatprep.subr.bf16.mxu0 0
    %7571 = vmatpush2.bf16.msra.mxu0 0
    %7572 = vmatprep.subr.bf16.mxu0 0
    %7573 = vmatpush2.bf16.msra.mxu0 0
    %7574 = vmatprep.subr.bf16.mxu0 0
    %7575 = vmatpush2.bf16.msra.mxu0 0
    %7576 = vmatprep.subr.bf16.mxu0 0
    %7577 = vmatpush2.bf16.msra.mxu0 0
    %7578 = vmatprep.mubr.bf16.mxu0 0
    %7579 = vmatmul.mubr.bf16.gmra.mxu0 %v7535
    %v7580 = vpop.f32.mrf.mxu0
    %v7581 = vadd.f32 0.0, %v7580
    %v7582 = vpop.f32.mrf.mxu0
    %v7583 = vpop.f32.mrf.mxu0
    %v7584 = vadd.f32 0.0, %v7583
    %v7585 = vpop.f32.mrf.mxu0
    %7586 = vmatprep.mubr.bf16.mxu0 0
    %7587 = vmatmul.mubr.bf16.gmra.mxu0 %v7538
    %v7588 = vpop.f32.mrf.mxu0
    %v7589 = vadd.f32 0.0, %v7588
    %v7590 = vpop.f32.mrf.mxu0
    %v7591 = vpop.f32.mrf.mxu0
    %v7592 = vadd.f32 0.0, %v7591
    %v7593 = vpop.f32.mrf.mxu0
    %7594 = vmatprep.mubr.bf16.mxu0 0
    %7595 = vmatmul.mubr.bf16.gmra.mxu0 %v7541
    %v7596 = vpop.f32.mrf.mxu0
    %v7597 = vadd.f32 0.0, %v7596
    %v7598 = vpop.f32.mrf.mxu0
    %v7599 = vpop.f32.mrf.mxu0
    %v7600 = vadd.f32 0.0, %v7599
    %v7601 = vpop.f32.mrf.mxu0
    %7602 = vmatprep.mubr.bf16.mxu0 0
    %7603 = vmatmul.mubr.bf16.gmra.mxu0 %v7544
    %v7604 = vpop.f32.mrf.mxu0
    %v7605 = vadd.f32 0.0, %v7604
    %v7606 = vpop.f32.mrf.mxu0
    %v7607 = vpop.f32.mrf.mxu0
    %v7608 = vpop.f32.mrf.mxu0
    %7609 = vdwg.mxu0
    %v7610 = vadd.f32 %v7459, %v7581
    %v7611 = vadd.f32 %v7462, %v7584
    %v7612 = vadd.f32 %v7467, %v7589
    %v7613 = vadd.f32 %v7470, %v7592
    %v7614 = vadd.f32 %v7475, %v7597
    %v7615 = vadd.f32 %v7478, %v7600
    %v7616 = vadd.f32 %v7483, %v7605
    %7617 = vrot.lane.b32.xlu0 %v7248, 125
    %v7618 = vpop.permute.xlu0 %7617
    %7619 = vrot.lane.b32.xlu0 %v7249, 125
    %v7620 = vpop.permute.xlu0 %7619
    %7621 = vrot.lane.b32.xlu0 %v7250, 125
    %v7622 = vpop.permute.xlu0 %7621
    %7623 = vrot.lane.b32.xlu0 %v7251, 125
    %v7624 = vpop.permute.xlu0 %7623
    %7625 = vrot.lane.b32.xlu0 %v7252, 125
    %v7626 = vpop.permute.xlu0 %7625
    %7627 = vrot.lane.b32.xlu0 %v7253, 125
    %v7628 = vpop.permute.xlu0 %7627
    %7629 = vrot.lane.b32.xlu0 %v7254, 125
    %v7630 = vpop.permute.xlu0 %7629
    %7631 = vrot.lane.b32.xlu0 %v7255, 125
    %v7632 = vpop.permute.xlu0 %7631
    %v7633 = vpack.c.bf16 %v7620, %v7618
    %v7634 = vpack.c.bf16 %v7624, %v7622
    %v7635 = vpack.c.bf16 %v7628, %v7626
    %v7636 = vpack.c.bf16 %v7632, %v7630
    %s7637 = scalar_lea.vmem [#allocation6], 84
    %v7638 = vld [vmem:[%s7637] sm:$0xf]
    %v7639 = vld [vmem:[%s7637 + $0x4] sm:$0xf]
    %v7640 = vld [vmem:[%s7637 + $0x8] sm:$0xf]
    %v7641 = vld [vmem:[%s7637 + $0xc] sm:$0xf]
    %v7642 = vld [vmem:[%s7637 + $0x10] sm:$0xf]
    %v7643 = vld [vmem:[%s7637 + $0x14] sm:$0xf]
    %v7644 = vld [vmem:[%s7637 + $0x18] sm:$0xf]
    %v7652 = vunpack.c.l.b16 %v7638
    %v7653 = vunpack.c.l.b16 %v7639
    %v7654 = vunpack.c.l.b16 %v7640
    %v7655 = vunpack.c.l.b16 %v7641
    %v7656 = vunpack.c.l.b16 %v7642
    %v7657 = vunpack.c.l.b16 %v7643
    %v7658 = vunpack.c.l.b16 %v7644
    %v7659 = vpack.c.b16 %v7653, %v7652
    %v7660 = vpack.c.b16 %v7655, %v7654
    %v7661 = vpack.c.b16 %v7657, %v7656
    %v7662 = vpack.c.b16 %v7658, %v7658
    %v7664 = vsel %vm7317, %v7659, 0
    %v7667 = vsel %vm7317, %v7660, 0
    %v7670 = vsel %vm7317, %v7661, 0
    %v7673 = vsel %vm7317, %v7662, 0
    %7675 = vmatprep.subr.bf16.mxu0 0
    %7676 = vmatpush1.bf16.msra.mxu0 0
    %7677 = vmatprep.subr.bf16.mxu0 0
    %7678 = vmatpush1.bf16.msra.mxu0 0
    %7679 = vmatprep.subr.bf16.mxu0 0
    %7680 = vmatpush1.bf16.msra.mxu0 0
    %7681 = vmatprep.subr.bf16.mxu0 0
    %7682 = vmatpush1.bf16.msra.mxu0 0
    %7683 = vmatprep.subr.bf16.mxu0 0
    %7684 = vmatpush1.bf16.msra.mxu0 %v7636
    %7685 = vmatprep.subr.bf16.mxu0 0
    %7686 = vmatpush1.bf16.msra.mxu0 %v7635
    %7687 = vmatprep.subr.bf16.mxu0 0
    %7688 = vmatpush1.bf16.msra.mxu0 %v7634
    %7689 = vmatprep.subr.bf16.mxu0 0
    %7690 = vmatpush1.bf16.msra.mxu0 %v7633
    %7691 = vmatprep.subr.bf16.mxu0 0
    %7692 = vmatpush2.bf16.msra.mxu0 0
    %7693 = vmatprep.subr.bf16.mxu0 0
    %7694 = vmatpush2.bf16.msra.mxu0 0
    %7695 = vmatprep.subr.bf16.mxu0 0
    %7696 = vmatpush2.bf16.msra.mxu0 0
    %7697 = vmatprep.subr.bf16.mxu0 0
    %7698 = vmatpush2.bf16.msra.mxu0 0
    %7699 = vmatprep.subr.bf16.mxu0 0
    %7700 = vmatpush2.bf16.msra.mxu0 0
    %7701 = vmatprep.subr.bf16.mxu0 0
    %7702 = vmatpush2.bf16.msra.mxu0 0
    %7703 = vmatprep.subr.bf16.mxu0 0
    %7704 = vmatpush2.bf16.msra.mxu0 0
    %7705 = vmatprep.subr.bf16.mxu0 0
    %7706 = vmatpush2.bf16.msra.mxu0 0
    %7707 = vmatprep.mubr.bf16.mxu0 0
    %7708 = vmatmul.mubr.bf16.gmra.mxu0 %v7664
    %v7709 = vpop.f32.mrf.mxu0
    %v7710 = vadd.f32 0.0, %v7709
    %v7711 = vpop.f32.mrf.mxu0
    %v7712 = vpop.f32.mrf.mxu0
    %v7713 = vadd.f32 0.0, %v7712
    %v7714 = vpop.f32.mrf.mxu0
    %7715 = vmatprep.mubr.bf16.mxu0 0
    %7716 = vmatmul.mubr.bf16.gmra.mxu0 %v7667
    %v7717 = vpop.f32.mrf.mxu0
    %v7718 = vadd.f32 0.0, %v7717
    %v7719 = vpop.f32.mrf.mxu0
    %v7720 = vpop.f32.mrf.mxu0
    %v7721 = vadd.f32 0.0, %v7720
    %v7722 = vpop.f32.mrf.mxu0
    %7723 = vmatprep.mubr.bf16.mxu0 0
    %7724 = vmatmul.mubr.bf16.gmra.mxu0 %v7670
    %v7725 = vpop.f32.mrf.mxu0
    %v7726 = vadd.f32 0.0, %v7725
    %v7727 = vpop.f32.mrf.mxu0
    %v7728 = vpop.f32.mrf.mxu0
    %v7729 = vadd.f32 0.0, %v7728
    %v7730 = vpop.f32.mrf.mxu0
    %7731 = vmatprep.mubr.bf16.mxu0 0
    %7732 = vmatmul.mubr.bf16.gmra.mxu0 %v7673
    %v7733 = vpop.f32.mrf.mxu0
    %v7734 = vadd.f32 0.0, %v7733
    %v7735 = vpop.f32.mrf.mxu0
    %v7736 = vpop.f32.mrf.mxu0
    %v7737 = vpop.f32.mrf.mxu0
    %7738 = vdwg.mxu0
    %v7739 = vadd.f32 %v7610, %v7710
    %v7740 = vadd.f32 %v7611, %v7713
    %v7741 = vadd.f32 %v7612, %v7718
    %v7742 = vadd.f32 %v7613, %v7721
    %v7743 = vadd.f32 %v7614, %v7726
    %v7744 = vadd.f32 %v7615, %v7729
    %v7745 = vadd.f32 %v7616, %v7734
    %7746 = vrot.lane.b32.xlu0 %v7248, 124
    %v7747 = vpop.permute.xlu0 %7746
    %7748 = vrot.lane.b32.xlu0 %v7249, 124
    %v7749 = vpop.permute.xlu0 %7748
    %7750 = vrot.lane.b32.xlu0 %v7250, 124
    %v7751 = vpop.permute.xlu0 %7750
    %7752 = vrot.lane.b32.xlu0 %v7251, 124
    %v7753 = vpop.permute.xlu0 %7752
    %7754 = vrot.lane.b32.xlu0 %v7252, 124
    %v7755 = vpop.permute.xlu0 %7754
    %7756 = vrot.lane.b32.xlu0 %v7253, 124
    %v7757 = vpop.permute.xlu0 %7756
    %7758 = vrot.lane.b32.xlu0 %v7254, 124
    %v7759 = vpop.permute.xlu0 %7758
    %7760 = vrot.lane.b32.xlu0 %v7255, 124
    %v7761 = vpop.permute.xlu0 %7760
    %v7762 = vpack.c.bf16 %v7749, %v7747
    %v7763 = vpack.c.bf16 %v7753, %v7751
    %v7764 = vpack.c.bf16 %v7757, %v7755
    %v7765 = vpack.c.bf16 %v7761, %v7759
    %s7766 = scalar_lea.vmem [#allocation6], 112
    %v7767 = vld [vmem:[%s7766] sm:$0xf]
    %v7768 = vld [vmem:[%s7766 + $0x4] sm:$0xf]
    %v7769 = vld [vmem:[%s7766 + $0x8] sm:$0xf]
    %v7770 = vld [vmem:[%s7766 + $0xc] sm:$0xf]
    %v7771 = vld [vmem:[%s7766 + $0x10] sm:$0xf]
    %v7772 = vld [vmem:[%s7766 + $0x14] sm:$0xf]
    %v7773 = vld [vmem:[%s7766 + $0x18] sm:$0xf]
    %v7781 = vunpack.c.l.b16 %v7767
    %v7782 = vunpack.c.l.b16 %v7768
    %v7783 = vunpack.c.l.b16 %v7769
    %v7784 = vunpack.c.l.b16 %v7770
    %v7785 = vunpack.c.l.b16 %v7771
    %v7786 = vunpack.c.l.b16 %v7772
    %v7787 = vunpack.c.l.b16 %v7773
    %v7788 = vpack.c.b16 %v7782, %v7781
    %v7789 = vpack.c.b16 %v7784, %v7783
    %v7790 = vpack.c.b16 %v7786, %v7785
    %v7791 = vpack.c.b16 %v7787, %v7787
    %v7793 = vsel %vm7317, %v7788, 0
    %v7796 = vsel %vm7317, %v7789, 0
    %v7799 = vsel %vm7317, %v7790, 0
    %v7802 = vsel %vm7317, %v7791, 0
    %7804 = vmatprep.subr.bf16.mxu0 0
    %7805 = vmatpush1.bf16.msra.mxu0 0
    %7806 = vmatprep.subr.bf16.mxu0 0
    %7807 = vmatpush1.bf16.msra.mxu0 0
    %7808 = vmatprep.subr.bf16.mxu0 0
    %7809 = vmatpush1.bf16.msra.mxu0 0
    %7810 = vmatprep.subr.bf16.mxu0 0
    %7811 = vmatpush1.bf16.msra.mxu0 0
    %7812 = vmatprep.subr.bf16.mxu0 0
    %7813 = vmatpush1.bf16.msra.mxu0 %v7765
    %7814 = vmatprep.subr.bf16.mxu0 0
    %7815 = vmatpush1.bf16.msra.mxu0 %v7764
    %7816 = vmatprep.subr.bf16.mxu0 0
    %7817 = vmatpush1.bf16.msra.mxu0 %v7763
    %7818 = vmatprep.subr.bf16.mxu0 0
    %7819 = vmatpush1.bf16.msra.mxu0 %v7762
    %7820 = vmatprep.subr.bf16.mxu0 0
    %7821 = vmatpush2.bf16.msra.mxu0 0
    %7822 = vmatprep.subr.bf16.mxu0 0
    %7823 = vmatpush2.bf16.msra.mxu0 0
    %7824 = vmatprep.subr.bf16.mxu0 0
    %7825 = vmatpush2.bf16.msra.mxu0 0
    %7826 = vmatprep.subr.bf16.mxu0 0
    %7827 = vmatpush2.bf16.msra.mxu0 0
    %7828 = vmatprep.subr.bf16.mxu0 0
    %7829 = vmatpush2.bf16.msra.mxu0 0
    %7830 = vmatprep.subr.bf16.mxu0 0
    %7831 = vmatpush2.bf16.msra.mxu0 0
    %7832 = vmatprep.subr.bf16.mxu0 0
    %7833 = vmatpush2.bf16.msra.mxu0 0
    %7834 = vmatprep.subr.bf16.mxu0 0
    %7835 = vmatpush2.bf16.msra.mxu0 0
    %7836 = vmatprep.mubr.bf16.mxu0 0
    %7837 = vmatmul.mubr.bf16.gmra.mxu0 %v7793
    %v7838 = vpop.f32.mrf.mxu0
    %v7839 = vadd.f32 0.0, %v7838
    %v7840 = vpop.f32.mrf.mxu0
    %v7841 = vpop.f32.mrf.mxu0
    %v7842 = vadd.f32 0.0, %v7841
    %v7843 = vpop.f32.mrf.mxu0
    %7844 = vmatprep.mubr.bf16.mxu0 0
    %7845 = vmatmul.mubr.bf16.gmra.mxu0 %v7796
    %v7846 = vpop.f32.mrf.mxu0
    %v7847 = vadd.f32 0.0, %v7846
    %v7848 = vpop.f32.mrf.mxu0
    %v7849 = vpop.f32.mrf.mxu0
    %v7850 = vadd.f32 0.0, %v7849
    %v7851 = vpop.f32.mrf.mxu0
    %7852 = vmatprep.mubr.bf16.mxu0 0
    %7853 = vmatmul.mubr.bf16.gmra.mxu0 %v7799
    %v7854 = vpop.f32.mrf.mxu0
    %v7855 = vadd.f32 0.0, %v7854
    %v7856 = vpop.f32.mrf.mxu0
    %v7857 = vpop.f32.mrf.mxu0
    %v7858 = vadd.f32 0.0, %v7857
    %v7859 = vpop.f32.mrf.mxu0
    %7860 = vmatprep.mubr.bf16.mxu0 0
    %7861 = vmatmul.mubr.bf16.gmra.mxu0 %v7802
    %v7862 = vpop.f32.mrf.mxu0
    %v7863 = vadd.f32 0.0, %v7862
    %v7864 = vpop.f32.mrf.mxu0
    %v7865 = vpop.f32.mrf.mxu0
    %v7866 = vpop.f32.mrf.mxu0
    %7867 = vdwg.mxu0
    %v7868 = vadd.f32 %v7739, %v7839
    %v7869 = vadd.f32 %v7740, %v7842
    %v7870 = vadd.f32 %v7741, %v7847
    %v7871 = vadd.f32 %v7742, %v7850
    %v7872 = vadd.f32 %v7743, %v7855
    %v7873 = vadd.f32 %v7744, %v7858
    %v7874 = vadd.f32 %v7745, %v7863
    %7875 = vrot.lane.b32.xlu0 %v7248, 123
    %v7876 = vpop.permute.xlu0 %7875
    %7877 = vrot.lane.b32.xlu0 %v7249, 123
    %v7878 = vpop.permute.xlu0 %7877
    %7879 = vrot.lane.b32.xlu0 %v7250, 123
    %v7880 = vpop.permute.xlu0 %7879
    %7881 = vrot.lane.b32.xlu0 %v7251, 123
    %v7882 = vpop.permute.xlu0 %7881
    %7883 = vrot.lane.b32.xlu0 %v7252, 123
    %v7884 = vpop.permute.xlu0 %7883
    %7885 = vrot.lane.b32.xlu0 %v7253, 123
    %v7886 = vpop.permute.xlu0 %7885
    %7887 = vrot.lane.b32.xlu0 %v7254, 123
    %v7888 = vpop.permute.xlu0 %7887
    %7889 = vrot.lane.b32.xlu0 %v7255, 123
    %v7890 = vpop.permute.xlu0 %7889
    %v7891 = vpack.c.bf16 %v7878, %v7876
    %v7892 = vpack.c.bf16 %v7882, %v7880
    %v7893 = vpack.c.bf16 %v7886, %v7884
    %v7894 = vpack.c.bf16 %v7890, %v7888
    %s7895 = scalar_lea.vmem [#allocation6], 140
    %v7896 = vld [vmem:[%s7895] sm:$0xf]
    %v7897 = vld [vmem:[%s7895 + $0x4] sm:$0xf]
    %v7898 = vld [vmem:[%s7895 + $0x8] sm:$0xf]
    %v7899 = vld [vmem:[%s7895 + $0xc] sm:$0xf]
    %v7900 = vld [vmem:[%s7895 + $0x10] sm:$0xf]
    %v7901 = vld [vmem:[%s7895 + $0x14] sm:$0xf]
    %v7902 = vld [vmem:[%s7895 + $0x18] sm:$0xf]
    %v7910 = vunpack.c.l.b16 %v7896
    %v7911 = vunpack.c.l.b16 %v7897
    %v7912 = vunpack.c.l.b16 %v7898
    %v7913 = vunpack.c.l.b16 %v7899
    %v7914 = vunpack.c.l.b16 %v7900
    %v7915 = vunpack.c.l.b16 %v7901
    %v7916 = vunpack.c.l.b16 %v7902
    %v7917 = vpack.c.b16 %v7911, %v7910
    %v7918 = vpack.c.b16 %v7913, %v7912
    %v7919 = vpack.c.b16 %v7915, %v7914
    %v7920 = vpack.c.b16 %v7916, %v7916
    %v7922 = vsel %vm7317, %v7917, 0
    %v7925 = vsel %vm7317, %v7918, 0
    %v7928 = vsel %vm7317, %v7919, 0
    %v7931 = vsel %vm7317, %v7920, 0
    %7933 = vmatprep.subr.bf16.mxu0 0
    %7934 = vmatpush1.bf16.msra.mxu0 0
    %7935 = vmatprep.subr.bf16.mxu0 0
    %7936 = vmatpush1.bf16.msra.mxu0 0
    %7937 = vmatprep.subr.bf16.mxu0 0
    %7938 = vmatpush1.bf16.msra.mxu0 0
    %7939 = vmatprep.subr.bf16.mxu0 0
    %7940 = vmatpush1.bf16.msra.mxu0 0
    %7941 = vmatprep.subr.bf16.mxu0 0
    %7942 = vmatpush1.bf16.msra.mxu0 %v7894
    %7943 = vmatprep.subr.bf16.mxu0 0
    %7944 = vmatpush1.bf16.msra.mxu0 %v7893
    %7945 = vmatprep.subr.bf16.mxu0 0
    %7946 = vmatpush1.bf16.msra.mxu0 %v7892
    %7947 = vmatprep.subr.bf16.mxu0 0
    %7948 = vmatpush1.bf16.msra.mxu0 %v7891
    %7949 = vmatprep.subr.bf16.mxu0 0
    %7950 = vmatpush2.bf16.msra.mxu0 0
    %7951 = vmatprep.subr.bf16.mxu0 0
    %7952 = vmatpush2.bf16.msra.mxu0 0
    %7953 = vmatprep.subr.bf16.mxu0 0
    %7954 = vmatpush2.bf16.msra.mxu0 0
    %7955 = vmatprep.subr.bf16.mxu0 0
    %7956 = vmatpush2.bf16.msra.mxu0 0
    %7957 = vmatprep.subr.bf16.mxu0 0
    %7958 = vmatpush2.bf16.msra.mxu0 0
    %7959 = vmatprep.subr.bf16.mxu0 0
    %7960 = vmatpush2.bf16.msra.mxu0 0
    %7961 = vmatprep.subr.bf16.mxu0 0
    %7962 = vmatpush2.bf16.msra.mxu0 0
    %7963 = vmatprep.subr.bf16.mxu0 0
    %7964 = vmatpush2.bf16.msra.mxu0 0
    %7965 = vmatprep.mubr.bf16.mxu0 0
    %7966 = vmatmul.mubr.bf16.gmra.mxu0 %v7922
    %v7967 = vpop.f32.mrf.mxu0
    %v7968 = vadd.f32 0.0, %v7967
    %v7969 = vpop.f32.mrf.mxu0
    %v7970 = vpop.f32.mrf.mxu0
    %v7971 = vadd.f32 0.0, %v7970
    %v7972 = vpop.f32.mrf.mxu0
    %7973 = vmatprep.mubr.bf16.mxu0 0
    %7974 = vmatmul.mubr.bf16.gmra.mxu0 %v7925
    %v7975 = vpop.f32.mrf.mxu0
    %v7976 = vadd.f32 0.0, %v7975
    %v7977 = vpop.f32.mrf.mxu0
    %v7978 = vpop.f32.mrf.mxu0
    %v7979 = vadd.f32 0.0, %v7978
    %v7980 = vpop.f32.mrf.mxu0
    %7981 = vmatprep.mubr.bf16.mxu0 0
    %7982 = vmatmul.mubr.bf16.gmra.mxu0 %v7928
    %v7983 = vpop.f32.mrf.mxu0
    %v7984 = vadd.f32 0.0, %v7983
    %v7985 = vpop.f32.mrf.mxu0
    %v7986 = vpop.f32.mrf.mxu0
    %v7987 = vadd.f32 0.0, %v7986
    %v7988 = vpop.f32.mrf.mxu0
    %7989 = vmatprep.mubr.bf16.mxu0 0
    %7990 = vmatmul.mubr.bf16.gmra.mxu0 %v7931
    %v7991 = vpop.f32.mrf.mxu0
    %v7992 = vadd.f32 0.0, %v7991
    %v7993 = vpop.f32.mrf.mxu0
    %v7994 = vpop.f32.mrf.mxu0
    %v7995 = vpop.f32.mrf.mxu0
    %7996 = vdwg.mxu0
    %v7997 = vadd.f32 %v7868, %v7968
    %v7998 = vadd.f32 %v7869, %v7971
    %v7999 = vadd.f32 %v7870, %v7976
    %v8000 = vadd.f32 %v7871, %v7979
    %v8001 = vadd.f32 %v7872, %v7984
    %v8002 = vadd.f32 %v7873, %v7987
    %v8003 = vadd.f32 %v7874, %v7992
    %8004 = vrot.lane.b32.xlu0 %v7248, 122
    %v8005 = vpop.permute.xlu0 %8004
    %8006 = vrot.lane.b32.xlu0 %v7249, 122
    %v8007 = vpop.permute.xlu0 %8006
    %8008 = vrot.lane.b32.xlu0 %v7250, 122
    %v8009 = vpop.permute.xlu0 %8008
    %8010 = vrot.lane.b32.xlu0 %v7251, 122
    %v8011 = vpop.permute.xlu0 %8010
    %8012 = vrot.lane.b32.xlu0 %v7252, 122
    %v8013 = vpop.permute.xlu0 %8012
    %8014 = vrot.lane.b32.xlu0 %v7253, 122
    %v8015 = vpop.permute.xlu0 %8014
    %8016 = vrot.lane.b32.xlu0 %v7254, 122
    %v8017 = vpop.permute.xlu0 %8016
    %8018 = vrot.lane.b32.xlu0 %v7255, 122
    %v8019 = vpop.permute.xlu0 %8018
    %v8020 = vpack.c.bf16 %v8007, %v8005
    %v8021 = vpack.c.bf16 %v8011, %v8009
    %v8022 = vpack.c.bf16 %v8015, %v8013
    %v8023 = vpack.c.bf16 %v8019, %v8017
    %s8024 = scalar_lea.vmem [#allocation6], 168
    %v8025 = vld [vmem:[%s8024] sm:$0xf]
    %v8026 = vld [vmem:[%s8024 + $0x4] sm:$0xf]
    %v8027 = vld [vmem:[%s8024 + $0x8] sm:$0xf]
    %v8028 = vld [vmem:[%s8024 + $0xc] sm:$0xf]
    %v8029 = vld [vmem:[%s8024 + $0x10] sm:$0xf]
    %v8030 = vld [vmem:[%s8024 + $0x14] sm:$0xf]
    %v8031 = vld [vmem:[%s8024 + $0x18] sm:$0xf]
    %v8039 = vunpack.c.l.b16 %v8025
    %v8040 = vunpack.c.l.b16 %v8026
    %v8041 = vunpack.c.l.b16 %v8027
    %v8042 = vunpack.c.l.b16 %v8028
    %v8043 = vunpack.c.l.b16 %v8029
    %v8044 = vunpack.c.l.b16 %v8030
    %v8045 = vunpack.c.l.b16 %v8031
    %v8046 = vpack.c.b16 %v8040, %v8039
    %v8047 = vpack.c.b16 %v8042, %v8041
    %v8048 = vpack.c.b16 %v8044, %v8043
    %v8049 = vpack.c.b16 %v8045, %v8045
    %v8051 = vsel %vm7317, %v8046, 0
    %v8054 = vsel %vm7317, %v8047, 0
    %v8057 = vsel %vm7317, %v8048, 0
    %v8060 = vsel %vm7317, %v8049, 0
    %8062 = vmatprep.subr.bf16.mxu0 0
    %8063 = vmatpush1.bf16.msra.mxu0 0
    %8064 = vmatprep.subr.bf16.mxu0 0
    %8065 = vmatpush1.bf16.msra.mxu0 0
    %8066 = vmatprep.subr.bf16.mxu0 0
    %8067 = vmatpush1.bf16.msra.mxu0 0
    %8068 = vmatprep.subr.bf16.mxu0 0
    %8069 = vmatpush1.bf16.msra.mxu0 0
    %8070 = vmatprep.subr.bf16.mxu0 0
    %8071 = vmatpush1.bf16.msra.mxu0 %v8023
    %8072 = vmatprep.subr.bf16.mxu0 0
    %8073 = vmatpush1.bf16.msra.mxu0 %v8022
    %8074 = vmatprep.subr.bf16.mxu0 0
    %8075 = vmatpush1.bf16.msra.mxu0 %v8021
    %8076 = vmatprep.subr.bf16.mxu0 0
    %8077 = vmatpush1.bf16.msra.mxu0 %v8020
    %8078 = vmatprep.subr.bf16.mxu0 0
    %8079 = vmatpush2.bf16.msra.mxu0 0
    %8080 = vmatprep.subr.bf16.mxu0 0
    %8081 = vmatpush2.bf16.msra.mxu0 0
    %8082 = vmatprep.subr.bf16.mxu0 0
    %8083 = vmatpush2.bf16.msra.mxu0 0
    %8084 = vmatprep.subr.bf16.mxu0 0
    %8085 = vmatpush2.bf16.msra.mxu0 0
    %8086 = vmatprep.subr.bf16.mxu0 0
    %8087 = vmatpush2.bf16.msra.mxu0 0
    %8088 = vmatprep.subr.bf16.mxu0 0
    %8089 = vmatpush2.bf16.msra.mxu0 0
    %8090 = vmatprep.subr.bf16.mxu0 0
    %8091 = vmatpush2.bf16.msra.mxu0 0
    %8092 = vmatprep.subr.bf16.mxu0 0
    %8093 = vmatpush2.bf16.msra.mxu0 0
    %8094 = vmatprep.mubr.bf16.mxu0 0
    %8095 = vmatmul.mubr.bf16.gmra.mxu0 %v8051
    %v8096 = vpop.f32.mrf.mxu0
    %v8097 = vadd.f32 0.0, %v8096
    %v8098 = vpop.f32.mrf.mxu0
    %v8099 = vpop.f32.mrf.mxu0
    %v8100 = vadd.f32 0.0, %v8099
    %v8101 = vpop.f32.mrf.mxu0
    %8102 = vmatprep.mubr.bf16.mxu0 0
    %8103 = vmatmul.mubr.bf16.gmra.mxu0 %v8054
    %v8104 = vpop.f32.mrf.mxu0
    %v8105 = vadd.f32 0.0, %v8104
    %v8106 = vpop.f32.mrf.mxu0
    %v8107 = vpop.f32.mrf.mxu0
    %v8108 = vadd.f32 0.0, %v8107
    %v8109 = vpop.f32.mrf.mxu0
    %8110 = vmatprep.mubr.bf16.mxu0 0
    %8111 = vmatmul.mubr.bf16.gmra.mxu0 %v8057
    %v8112 = vpop.f32.mrf.mxu0
    %v8113 = vadd.f32 0.0, %v8112
    %v8114 = vpop.f32.mrf.mxu0
    %v8115 = vpop.f32.mrf.mxu0
    %v8116 = vadd.f32 0.0, %v8115
    %v8117 = vpop.f32.mrf.mxu0
    %8118 = vmatprep.mubr.bf16.mxu0 0
    %8119 = vmatmul.mubr.bf16.gmra.mxu0 %v8060
    %v8120 = vpop.f32.mrf.mxu0
    %v8121 = vadd.f32 0.0, %v8120
    %v8122 = vpop.f32.mrf.mxu0
    %v8123 = vpop.f32.mrf.mxu0
    %v8124 = vpop.f32.mrf.mxu0
    %8125 = vdwg.mxu0
    %v8126 = vadd.f32 %v7997, %v8097
    %v8127 = vadd.f32 %v7998, %v8100
    %v8128 = vadd.f32 %v7999, %v8105
    %v8129 = vadd.f32 %v8000, %v8108
    %v8130 = vadd.f32 %v8001, %v8113
    %v8131 = vadd.f32 %v8002, %v8116
    %v8132 = vadd.f32 %v8003, %v8121
    %8133 = vrot.lane.b32.xlu0 %v7248, 121
    %v8134 = vpop.permute.xlu0 %8133
    %8135 = vrot.lane.b32.xlu0 %v7249, 121
    %v8136 = vpop.permute.xlu0 %8135
    %8137 = vrot.lane.b32.xlu0 %v7250, 121
    %v8138 = vpop.permute.xlu0 %8137
    %8139 = vrot.lane.b32.xlu0 %v7251, 121
    %v8140 = vpop.permute.xlu0 %8139
    %8141 = vrot.lane.b32.xlu0 %v7252, 121
    %v8142 = vpop.permute.xlu0 %8141
    %8143 = vrot.lane.b32.xlu0 %v7253, 121
    %v8144 = vpop.permute.xlu0 %8143
    %8145 = vrot.lane.b32.xlu0 %v7254, 121
    %v8146 = vpop.permute.xlu0 %8145
    %8147 = vrot.lane.b32.xlu0 %v7255, 121
    %v8148 = vpop.permute.xlu0 %8147
    %v8149 = vpack.c.bf16 %v8136, %v8134
    %v8150 = vpack.c.bf16 %v8140, %v8138
    %v8151 = vpack.c.bf16 %v8144, %v8142
    %v8152 = vpack.c.bf16 %v8148, %v8146
    %s8153 = scalar_lea.vmem [#allocation6], 196
    %v8154 = vld [vmem:[%s8153] sm:$0xf]
    %v8155 = vld [vmem:[%s8153 + $0x4] sm:$0xf]
    %v8156 = vld [vmem:[%s8153 + $0x8] sm:$0xf]
    %v8157 = vld [vmem:[%s8153 + $0xc] sm:$0xf]
    %v8158 = vld [vmem:[%s8153 + $0x10] sm:$0xf]
    %v8159 = vld [vmem:[%s8153 + $0x14] sm:$0xf]
    %v8160 = vld [vmem:[%s8153 + $0x18] sm:$0xf]
    %v8168 = vunpack.c.l.b16 %v8154
    %v8169 = vunpack.c.l.b16 %v8155
    %v8170 = vunpack.c.l.b16 %v8156
    %v8171 = vunpack.c.l.b16 %v8157
    %v8172 = vunpack.c.l.b16 %v8158
    %v8173 = vunpack.c.l.b16 %v8159
    %v8174 = vunpack.c.l.b16 %v8160
    %v8175 = vpack.c.b16 %v8169, %v8168
    %v8176 = vpack.c.b16 %v8171, %v8170
    %v8177 = vpack.c.b16 %v8173, %v8172
    %v8178 = vpack.c.b16 %v8174, %v8174
    %v8180 = vsel %vm7317, %v8175, 0
    %v8183 = vsel %vm7317, %v8176, 0
    %v8186 = vsel %vm7317, %v8177, 0
    %v8189 = vsel %vm7317, %v8178, 0
    %8191 = vmatprep.subr.bf16.mxu0 0
    %8192 = vmatpush1.bf16.msra.mxu0 0
    %8193 = vmatprep.subr.bf16.mxu0 0
    %8194 = vmatpush1.bf16.msra.mxu0 0
    %8195 = vmatprep.subr.bf16.mxu0 0
    %8196 = vmatpush1.bf16.msra.mxu0 0
    %8197 = vmatprep.subr.bf16.mxu0 0
    %8198 = vmatpush1.bf16.msra.mxu0 0
    %8199 = vmatprep.subr.bf16.mxu0 0
    %8200 = vmatpush1.bf16.msra.mxu0 %v8152
    %8201 = vmatprep.subr.bf16.mxu0 0
    %8202 = vmatpush1.bf16.msra.mxu0 %v8151
    %8203 = vmatprep.subr.bf16.mxu0 0
    %8204 = vmatpush1.bf16.msra.mxu0 %v8150
    %8205 = vmatprep.subr.bf16.mxu0 0
    %8206 = vmatpush1.bf16.msra.mxu0 %v8149
    %8207 = vmatprep.subr.bf16.mxu0 0
    %8208 = vmatpush2.bf16.msra.mxu0 0
    %8209 = vmatprep.subr.bf16.mxu0 0
    %8210 = vmatpush2.bf16.msra.mxu0 0
    %8211 = vmatprep.subr.bf16.mxu0 0
    %8212 = vmatpush2.bf16.msra.mxu0 0
    %8213 = vmatprep.subr.bf16.mxu0 0
    %8214 = vmatpush2.bf16.msra.mxu0 0
    %8215 = vmatprep.subr.bf16.mxu0 0
    %8216 = vmatpush2.bf16.msra.mxu0 0
    %8217 = vmatprep.subr.bf16.mxu0 0
    %8218 = vmatpush2.bf16.msra.mxu0 0
    %8219 = vmatprep.subr.bf16.mxu0 0
    %8220 = vmatpush2.bf16.msra.mxu0 0
    %8221 = vmatprep.subr.bf16.mxu0 0
    %8222 = vmatpush2.bf16.msra.mxu0 0
    %8223 = vmatprep.mubr.bf16.mxu0 0
    %8224 = vmatmul.mubr.bf16.gmra.mxu0 %v8180
    %v8225 = vpop.f32.mrf.mxu0
    %v8226 = vadd.f32 0.0, %v8225
    %v8227 = vpop.f32.mrf.mxu0
    %v8228 = vpop.f32.mrf.mxu0
    %v8229 = vadd.f32 0.0, %v8228
    %v8230 = vpop.f32.mrf.mxu0
    %8231 = vmatprep.mubr.bf16.mxu0 0
    %8232 = vmatmul.mubr.bf16.gmra.mxu0 %v8183
    %v8233 = vpop.f32.mrf.mxu0
    %v8234 = vadd.f32 0.0, %v8233
    %v8235 = vpop.f32.mrf.mxu0
    %v8236 = vpop.f32.mrf.mxu0
    %v8237 = vadd.f32 0.0, %v8236
    %v8238 = vpop.f32.mrf.mxu0
    %8239 = vmatprep.mubr.bf16.mxu0 0
    %8240 = vmatmul.mubr.bf16.gmra.mxu0 %v8186
    %v8241 = vpop.f32.mrf.mxu0
    %v8242 = vadd.f32 0.0, %v8241
    %v8243 = vpop.f32.mrf.mxu0
    %v8244 = vpop.f32.mrf.mxu0
    %v8245 = vadd.f32 0.0, %v8244
    %v8246 = vpop.f32.mrf.mxu0
    %8247 = vmatprep.mubr.bf16.mxu0 0
    %8248 = vmatmul.mubr.bf16.gmra.mxu0 %v8189
    %v8249 = vpop.f32.mrf.mxu0
    %v8250 = vadd.f32 0.0, %v8249
    %v8251 = vpop.f32.mrf.mxu0
    %v8252 = vpop.f32.mrf.mxu0
    %v8253 = vpop.f32.mrf.mxu0
    %8254 = vdwg.mxu0
    %v8255 = vadd.f32 %v8126, %v8226
    %v8256 = vadd.f32 %v8127, %v8229
    %v8257 = vadd.f32 %v8128, %v8234
    %v8258 = vadd.f32 %v8129, %v8237
    %v8259 = vadd.f32 %v8130, %v8242
    %v8260 = vadd.f32 %v8131, %v8245
    %v8261 = vadd.f32 %v8132, %v8250
    %8262 = vrot.lane.b32.xlu0 %v7248, 120
    %v8263 = vpop.permute.xlu0 %8262
    %8264 = vrot.lane.b32.xlu0 %v7249, 120
    %v8265 = vpop.permute.xlu0 %8264
    %8266 = vrot.lane.b32.xlu0 %v7250, 120
    %v8267 = vpop.permute.xlu0 %8266
    %8268 = vrot.lane.b32.xlu0 %v7251, 120
    %v8269 = vpop.permute.xlu0 %8268
    %8270 = vrot.lane.b32.xlu0 %v7252, 120
    %v8271 = vpop.permute.xlu0 %8270
    %8272 = vrot.lane.b32.xlu0 %v7253, 120
    %v8273 = vpop.permute.xlu0 %8272
    %8274 = vrot.lane.b32.xlu0 %v7254, 120
    %v8275 = vpop.permute.xlu0 %8274
    %8276 = vrot.lane.b32.xlu0 %v7255, 120
    %v8277 = vpop.permute.xlu0 %8276
    %v8278 = vpack.c.bf16 %v8265, %v8263
    %v8279 = vpack.c.bf16 %v8269, %v8267
    %v8280 = vpack.c.bf16 %v8273, %v8271
    %v8281 = vpack.c.bf16 %v8277, %v8275
    %s8282 = scalar_lea.vmem [#allocation6], 224
    %v8283 = vld [vmem:[%s8282] sm:$0xf]
    %v8284 = vld [vmem:[%s8282 + $0x4] sm:$0xf]
    %v8285 = vld [vmem:[%s8282 + $0x8] sm:$0xf]
    %v8286 = vld [vmem:[%s8282 + $0xc] sm:$0xf]
    %v8287 = vld [vmem:[%s8282 + $0x10] sm:$0xf]
    %v8288 = vld [vmem:[%s8282 + $0x14] sm:$0xf]
    %v8289 = vld [vmem:[%s8282 + $0x18] sm:$0xf]
    %v8297 = vunpack.c.l.b16 %v8283
    %v8298 = vunpack.c.l.b16 %v8284
    %v8299 = vunpack.c.l.b16 %v8285
    %v8300 = vunpack.c.l.b16 %v8286
    %v8301 = vunpack.c.l.b16 %v8287
    %v8302 = vunpack.c.l.b16 %v8288
    %v8303 = vunpack.c.l.b16 %v8289
    %v8304 = vpack.c.b16 %v8298, %v8297
    %v8305 = vpack.c.b16 %v8300, %v8299
    %v8306 = vpack.c.b16 %v8302, %v8301
    %v8307 = vpack.c.b16 %v8303, %v8303
    %v8309 = vsel %vm7317, %v8304, 0
    %v8312 = vsel %vm7317, %v8305, 0
    %v8315 = vsel %vm7317, %v8306, 0
    %v8318 = vsel %vm7317, %v8307, 0
    %8320 = vmatprep.subr.bf16.mxu0 0
    %8321 = vmatpush1.bf16.msra.mxu0 0
    %8322 = vmatprep.subr.bf16.mxu0 0
    %8323 = vmatpush1.bf16.msra.mxu0 0
    %8324 = vmatprep.subr.bf16.mxu0 0
    %8325 = vmatpush1.bf16.msra.mxu0 0
    %8326 = vmatprep.subr.bf16.mxu0 0
    %8327 = vmatpush1.bf16.msra.mxu0 0
    %8328 = vmatprep.subr.bf16.mxu0 0
    %8329 = vmatpush1.bf16.msra.mxu0 %v8281
    %8330 = vmatprep.subr.bf16.mxu0 0
    %8331 = vmatpush1.bf16.msra.mxu0 %v8280
    %8332 = vmatprep.subr.bf16.mxu0 0
    %8333 = vmatpush1.bf16.msra.mxu0 %v8279
    %8334 = vmatprep.subr.bf16.mxu0 0
    %8335 = vmatpush1.bf16.msra.mxu0 %v8278
    %8336 = vmatprep.subr.bf16.mxu0 0
    %8337 = vmatpush2.bf16.msra.mxu0 0
    %8338 = vmatprep.subr.bf16.mxu0 0
    %8339 = vmatpush2.bf16.msra.mxu0 0
    %8340 = vmatprep.subr.bf16.mxu0 0
    %8341 = vmatpush2.bf16.msra.mxu0 0
    %8342 = vmatprep.subr.bf16.mxu0 0
    %8343 = vmatpush2.bf16.msra.mxu0 0
    %8344 = vmatprep.subr.bf16.mxu0 0
    %8345 = vmatpush2.bf16.msra.mxu0 0
    %8346 = vmatprep.subr.bf16.mxu0 0
    %8347 = vmatpush2.bf16.msra.mxu0 0
    %8348 = vmatprep.subr.bf16.mxu0 0
    %8349 = vmatpush2.bf16.msra.mxu0 0
    %8350 = vmatprep.subr.bf16.mxu0 0
    %8351 = vmatpush2.bf16.msra.mxu0 0
    %8352 = vmatprep.mubr.bf16.mxu0 0
    %8353 = vmatmul.mubr.bf16.gmra.mxu0 %v8309
    %v8354 = vpop.f32.mrf.mxu0
    %v8355 = vadd.f32 0.0, %v8354
    %v8356 = vpop.f32.mrf.mxu0
    %v8357 = vpop.f32.mrf.mxu0
    %v8358 = vadd.f32 0.0, %v8357
    %v8359 = vpop.f32.mrf.mxu0
    %8360 = vmatprep.mubr.bf16.mxu0 0
    %8361 = vmatmul.mubr.bf16.gmra.mxu0 %v8312
    %v8362 = vpop.f32.mrf.mxu0
    %v8363 = vadd.f32 0.0, %v8362
    %v8364 = vpop.f32.mrf.mxu0
    %v8365 = vpop.f32.mrf.mxu0
    %v8366 = vadd.f32 0.0, %v8365
    %v8367 = vpop.f32.mrf.mxu0
    %8368 = vmatprep.mubr.bf16.mxu0 0
    %8369 = vmatmul.mubr.bf16.gmra.mxu0 %v8315
    %v8370 = vpop.f32.mrf.mxu0
    %v8371 = vadd.f32 0.0, %v8370
    %v8372 = vpop.f32.mrf.mxu0
    %v8373 = vpop.f32.mrf.mxu0
    %v8374 = vadd.f32 0.0, %v8373
    %v8375 = vpop.f32.mrf.mxu0
    %8376 = vmatprep.mubr.bf16.mxu0 0
    %8377 = vmatmul.mubr.bf16.gmra.mxu0 %v8318
    %v8378 = vpop.f32.mrf.mxu0
    %v8379 = vadd.f32 0.0, %v8378
    %v8380 = vpop.f32.mrf.mxu0
    %v8381 = vpop.f32.mrf.mxu0
    %v8382 = vpop.f32.mrf.mxu0
    %8383 = vdwg.mxu0
    %v8384 = vadd.f32 %v8255, %v8355
    %v8385 = vadd.f32 %v8256, %v8358
    %v8386 = vadd.f32 %v8257, %v8363
    %v8387 = vadd.f32 %v8258, %v8366
    %v8388 = vadd.f32 %v8259, %v8371
    %v8389 = vadd.f32 %v8260, %v8374
    %v8390 = vadd.f32 %v8261, %v8379
    %8391 = vrot.lane.b32.xlu0 %v7248, 119
    %v8392 = vpop.permute.xlu0 %8391
    %8393 = vrot.lane.b32.xlu0 %v7249, 119
    %v8394 = vpop.permute.xlu0 %8393
    %8395 = vrot.lane.b32.xlu0 %v7250, 119
    %v8396 = vpop.permute.xlu0 %8395
    %8397 = vrot.lane.b32.xlu0 %v7251, 119
    %v8398 = vpop.permute.xlu0 %8397
    %8399 = vrot.lane.b32.xlu0 %v7252, 119
    %v8400 = vpop.permute.xlu0 %8399
    %8401 = vrot.lane.b32.xlu0 %v7253, 119
    %v8402 = vpop.permute.xlu0 %8401
    %8403 = vrot.lane.b32.xlu0 %v7254, 119
    %v8404 = vpop.permute.xlu0 %8403
    %8405 = vrot.lane.b32.xlu0 %v7255, 119
    %v8406 = vpop.permute.xlu0 %8405
    %v8407 = vpack.c.bf16 %v8394, %v8392
    %v8408 = vpack.c.bf16 %v8398, %v8396
    %v8409 = vpack.c.bf16 %v8402, %v8400
    %v8410 = vpack.c.bf16 %v8406, %v8404
    %s8411 = scalar_lea.vmem [#allocation6], 252
    %v8412 = vld [vmem:[%s8411] sm:$0xf]
    %v8413 = vld [vmem:[%s8411 + $0x4] sm:$0xf]
    %v8414 = vld [vmem:[%s8411 + $0x8] sm:$0xf]
    %v8415 = vld [vmem:[%s8411 + $0xc] sm:$0xf]
    %v8416 = vld [vmem:[%s8411 + $0x10] sm:$0xf]
    %v8417 = vld [vmem:[%s8411 + $0x14] sm:$0xf]
    %v8418 = vld [vmem:[%s8411 + $0x18] sm:$0xf]
    %v8426 = vunpack.c.l.b16 %v8412
    %v8427 = vunpack.c.l.b16 %v8413
    %v8428 = vunpack.c.l.b16 %v8414
    %v8429 = vunpack.c.l.b16 %v8415
    %v8430 = vunpack.c.l.b16 %v8416
    %v8431 = vunpack.c.l.b16 %v8417
    %v8432 = vunpack.c.l.b16 %v8418
    %v8433 = vpack.c.b16 %v8427, %v8426
    %v8434 = vpack.c.b16 %v8429, %v8428
    %v8435 = vpack.c.b16 %v8431, %v8430
    %v8436 = vpack.c.b16 %v8432, %v8432
    %v8438 = vsel %vm7317, %v8433, 0
    %v8441 = vsel %vm7317, %v8434, 0
    %v8444 = vsel %vm7317, %v8435, 0
    %v8447 = vsel %vm7317, %v8436, 0
    %8449 = vmatprep.subr.bf16.mxu0 0
    %8450 = vmatpush1.bf16.msra.mxu0 0
    %8451 = vmatprep.subr.bf16.mxu0 0
    %8452 = vmatpush1.bf16.msra.mxu0 0
    %8453 = vmatprep.subr.bf16.mxu0 0
    %8454 = vmatpush1.bf16.msra.mxu0 0
    %8455 = vmatprep.subr.bf16.mxu0 0
    %8456 = vmatpush1.bf16.msra.mxu0 0
    %8457 = vmatprep.subr.bf16.mxu0 0
    %8458 = vmatpush1.bf16.msra.mxu0 %v8410
    %8459 = vmatprep.subr.bf16.mxu0 0
    %8460 = vmatpush1.bf16.msra.mxu0 %v8409
    %8461 = vmatprep.subr.bf16.mxu0 0
    %8462 = vmatpush1.bf16.msra.mxu0 %v8408
    %8463 = vmatprep.subr.bf16.mxu0 0
    %8464 = vmatpush1.bf16.msra.mxu0 %v8407
    %8465 = vmatprep.subr.bf16.mxu0 0
    %8466 = vmatpush2.bf16.msra.mxu0 0
    %8467 = vmatprep.subr.bf16.mxu0 0
    %8468 = vmatpush2.bf16.msra.mxu0 0
    %8469 = vmatprep.subr.bf16.mxu0 0
    %8470 = vmatpush2.bf16.msra.mxu0 0
    %8471 = vmatprep.subr.bf16.mxu0 0
    %8472 = vmatpush2.bf16.msra.mxu0 0
    %8473 = vmatprep.subr.bf16.mxu0 0
    %8474 = vmatpush2.bf16.msra.mxu0 0
    %8475 = vmatprep.subr.bf16.mxu0 0
    %8476 = vmatpush2.bf16.msra.mxu0 0
    %8477 = vmatprep.subr.bf16.mxu0 0
    %8478 = vmatpush2.bf16.msra.mxu0 0
    %8479 = vmatprep.subr.bf16.mxu0 0
    %8480 = vmatpush2.bf16.msra.mxu0 0
    %8481 = vmatprep.mubr.bf16.mxu0 0
    %8482 = vmatmul.mubr.bf16.gmra.mxu0 %v8438
    %v8483 = vpop.f32.mrf.mxu0
    %v8484 = vadd.f32 0.0, %v8483
    %v8485 = vpop.f32.mrf.mxu0
    %v8486 = vpop.f32.mrf.mxu0
    %v8487 = vadd.f32 0.0, %v8486
    %v8488 = vpop.f32.mrf.mxu0
    %8489 = vmatprep.mubr.bf16.mxu0 0
    %8490 = vmatmul.mubr.bf16.gmra.mxu0 %v8441
    %v8491 = vpop.f32.mrf.mxu0
    %v8492 = vadd.f32 0.0, %v8491
    %v8493 = vpop.f32.mrf.mxu0
    %v8494 = vpop.f32.mrf.mxu0
    %v8495 = vadd.f32 0.0, %v8494
    %v8496 = vpop.f32.mrf.mxu0
    %8497 = vmatprep.mubr.bf16.mxu0 0
    %8498 = vmatmul.mubr.bf16.gmra.mxu0 %v8444
    %v8499 = vpop.f32.mrf.mxu0
    %v8500 = vadd.f32 0.0, %v8499
    %v8501 = vpop.f32.mrf.mxu0
    %v8502 = vpop.f32.mrf.mxu0
    %v8503 = vadd.f32 0.0, %v8502
    %v8504 = vpop.f32.mrf.mxu0
    %8505 = vmatprep.mubr.bf16.mxu0 0
    %8506 = vmatmul.mubr.bf16.gmra.mxu0 %v8447
    %v8507 = vpop.f32.mrf.mxu0
    %v8508 = vadd.f32 0.0, %v8507
    %v8509 = vpop.f32.mrf.mxu0
    %v8510 = vpop.f32.mrf.mxu0
    %v8511 = vpop.f32.mrf.mxu0
    %8512 = vdwg.mxu0
    %v8513 = vadd.f32 %v8384, %v8484
    %v8514 = vadd.f32 %v8385, %v8487
    %v8515 = vadd.f32 %v8386, %v8492
    %v8516 = vadd.f32 %v8387, %v8495
    %v8517 = vadd.f32 %v8388, %v8500
    %v8518 = vadd.f32 %v8389, %v8503
    %v8519 = vadd.f32 %v8390, %v8508
    %v8520 = vstv %s40
    %v8521 = vadd.f32 %v8513, %v8520
    %v8522 = vadd.f32 %v8514, %v8520
    %v8523 = vadd.f32 %v8515, %v8520
    %v8524 = vadd.f32 %v8516, %v8520
    %v8525 = vadd.f32 %v8517, %v8520
    %v8526 = vadd.f32 %v8518, %v8520
    %v8527 = vadd.f32 %v8519, %v8520
    %v8528 = vmax.f32 %v8521, 0.0
    %v8529 = vmax.f32 %v8522, 0.0
    %v8530 = vmax.f32 %v8523, 0.0
    %v8531 = vmax.f32 %v8524, 0.0
    %v8532 = vmax.f32 %v8525, 0.0
    %v8533 = vmax.f32 %v8526, 0.0
    %v8534 = vmax.f32 %v8527, 0.0
    %s8535 = smul.u32 4, 6
    %s8536 = smul.u32 %s8535, 7
    %s8537 = smul.u32 %s8536, 1
    %s8538 = sshll.u32 %s8537, 4
    %8539 = dma.done %s361, %s8538
    %v8540 = vpack.c.bf16 %v8529, %v8528
    %v8541 = vpack.c.bf16 %v8531, %v8530
    %v8542 = vpack.c.bf16 %v8533, %v8532
    %v8543 = vpack.c.bf16 %v8534, %v8534
    %v8544 = vld [vmem:[#allocation7] sm:$0xf]
    %v8545 = vld [vmem:[#allocation7 + $0x4] sm:$0xf]
    %v8546 = vld [vmem:[#allocation7 + $0x8] sm:$0xf]
    %v8547 = vld [vmem:[#allocation7 + $0xc] sm:$0xf]
    %v8548 = vld [vmem:[#allocation7 + $0x10] sm:$0xf]
    %v8549 = vld [vmem:[#allocation7 + $0x14] sm:$0xf]
    %v8550 = vld [vmem:[#allocation7 + $0x18] sm:$0xf]
    %8551 = vrot.lane.b32.xlu0 %v8528, 127
    %v8552 = vpop.permute.xlu0 %8551
    %8553 = vrot.lane.b32.xlu0 %v8529, 127
    %v8554 = vpop.permute.xlu0 %8553
    %8555 = vrot.lane.b32.xlu0 %v8530, 127
    %v8556 = vpop.permute.xlu0 %8555
    %8557 = vrot.lane.b32.xlu0 %v8531, 127
    %v8558 = vpop.permute.xlu0 %8557
    %8559 = vrot.lane.b32.xlu0 %v8532, 127
    %v8560 = vpop.permute.xlu0 %8559
    %8561 = vrot.lane.b32.xlu0 %v8533, 127
    %v8562 = vpop.permute.xlu0 %8561
    %8563 = vrot.lane.b32.xlu0 %v8534, 127
    %v8564 = vpop.permute.xlu0 %8563
    %v8565 = vpack.c.bf16 %v8554, %v8552
    %v8566 = vpack.c.bf16 %v8558, %v8556
    %v8567 = vpack.c.bf16 %v8562, %v8560
    %v8568 = vpack.c.bf16 %v8564, %v8564
    %s8569 = scalar_lea.vmem [#allocation7], 28
    %v8570 = vld [vmem:[%s8569] sm:$0xf]
    %v8571 = vld [vmem:[%s8569 + $0x4] sm:$0xf]
    %v8572 = vld [vmem:[%s8569 + $0x8] sm:$0xf]
    %v8573 = vld [vmem:[%s8569 + $0xc] sm:$0xf]
    %v8574 = vld [vmem:[%s8569 + $0x10] sm:$0xf]
    %v8575 = vld [vmem:[%s8569 + $0x14] sm:$0xf]
    %v8576 = vld [vmem:[%s8569 + $0x18] sm:$0xf]
    %v8584 = vunpack.c.l.b16 %v8570
    %v8585 = vunpack.c.l.b16 %v8571
    %v8586 = vunpack.c.l.b16 %v8572
    %v8587 = vunpack.c.l.b16 %v8573
    %v8588 = vunpack.c.l.b16 %v8574
    %v8589 = vunpack.c.l.b16 %v8575
    %v8590 = vunpack.c.l.b16 %v8576
    %v8591 = vpack.c.b16 %v8585, %v8584
    %v8592 = vpack.c.b16 %v8587, %v8586
    %v8593 = vpack.c.b16 %v8589, %v8588
    %v8594 = vpack.c.b16 %v8590, %v8590
    %vm8595 = vcmask 457728
    %v8597 = vsel %vm8595, %v8591, 0
    %v8600 = vsel %vm8595, %v8592, 0
    %v8603 = vsel %vm8595, %v8593, 0
    %v8606 = vsel %vm8595, %v8594, 0
    %v8609 = vsel %vm979, %v8568, 0
    %8611 = vmatprep.subr.bf16.mxu0 0
    %8612 = vmatpush1.bf16.msra.mxu0 0
    %8613 = vmatprep.subr.bf16.mxu0 0
    %8614 = vmatpush1.bf16.msra.mxu0 0
    %8615 = vmatprep.subr.bf16.mxu0 0
    %8616 = vmatpush1.bf16.msra.mxu0 0
    %8617 = vmatprep.subr.bf16.mxu0 0
    %8618 = vmatpush1.bf16.msra.mxu0 0
    %8619 = vmatprep.subr.bf16.mxu0 0
    %8620 = vmatpush1.bf16.msra.mxu0 %v8609
    %8621 = vmatprep.subr.bf16.mxu0 0
    %8622 = vmatpush1.bf16.msra.mxu0 %v8567
    %8623 = vmatprep.subr.bf16.mxu0 0
    %8624 = vmatpush1.bf16.msra.mxu0 %v8566
    %8625 = vmatprep.subr.bf16.mxu0 0
    %8626 = vmatpush1.bf16.msra.mxu0 %v8565
    %8627 = vmatprep.subr.bf16.mxu0 0
    %8628 = vmatpush2.bf16.msra.mxu0 0
    %8629 = vmatprep.subr.bf16.mxu0 0
    %8630 = vmatpush2.bf16.msra.mxu0 0
    %8631 = vmatprep.subr.bf16.mxu0 0
    %8632 = vmatpush2.bf16.msra.mxu0 0
    %8633 = vmatprep.subr.bf16.mxu0 0
    %8634 = vmatpush2.bf16.msra.mxu0 0
    %8635 = vmatprep.subr.bf16.mxu0 0
    %8636 = vmatpush2.bf16.msra.mxu0 0
    %8637 = vmatprep.subr.bf16.mxu0 0
    %8638 = vmatpush2.bf16.msra.mxu0 0
    %8639 = vmatprep.subr.bf16.mxu0 0
    %8640 = vmatpush2.bf16.msra.mxu0 0
    %8641 = vmatprep.subr.bf16.mxu0 0
    %8642 = vmatpush2.bf16.msra.mxu0 0
    %8643 = vmatprep.mubr.bf16.mxu0 0
    %8644 = vmatmul.mubr.bf16.gmra.mxu0 %v8597
    %v8645 = vpop.f32.mrf.mxu0
    %v8646 = vadd.f32 0.0, %v8645
    %v8647 = vpop.f32.mrf.mxu0
    %v8648 = vpop.f32.mrf.mxu0
    %v8649 = vadd.f32 0.0, %v8648
    %v8650 = vpop.f32.mrf.mxu0
    %8651 = vmatprep.mubr.bf16.mxu0 0
    %8652 = vmatmul.mubr.bf16.gmra.mxu0 %v8600
    %v8653 = vpop.f32.mrf.mxu0
    %v8654 = vadd.f32 0.0, %v8653
    %v8655 = vpop.f32.mrf.mxu0
    %v8656 = vpop.f32.mrf.mxu0
    %v8657 = vadd.f32 0.0, %v8656
    %v8658 = vpop.f32.mrf.mxu0
    %8659 = vmatprep.mubr.bf16.mxu0 0
    %8660 = vmatmul.mubr.bf16.gmra.mxu0 %v8603
    %v8661 = vpop.f32.mrf.mxu0
    %v8662 = vadd.f32 0.0, %v8661
    %v8663 = vpop.f32.mrf.mxu0
    %v8664 = vpop.f32.mrf.mxu0
    %v8665 = vadd.f32 0.0, %v8664
    %v8666 = vpop.f32.mrf.mxu0
    %8667 = vmatprep.mubr.bf16.mxu0 0
    %8668 = vmatmul.mubr.bf16.gmra.mxu0 %v8606
    %v8669 = vpop.f32.mrf.mxu0
    %v8670 = vadd.f32 0.0, %v8669
    %v8671 = vpop.f32.mrf.mxu0
    %v8672 = vpop.f32.mrf.mxu0
    %v8673 = vpop.f32.mrf.mxu0
    %8674 = vdwg.mxu0
    %v8682 = vunpack.c.l.b16 %v8544
    %v8683 = vunpack.c.l.b16 %v8545
    %v8684 = vunpack.c.l.b16 %v8546
    %v8685 = vunpack.c.l.b16 %v8547
    %v8686 = vunpack.c.l.b16 %v8548
    %v8687 = vunpack.c.l.b16 %v8549
    %v8688 = vunpack.c.l.b16 %v8550
    %v8689 = vpack.c.b16 %v8683, %v8682
    %v8690 = vpack.c.b16 %v8685, %v8684
    %v8691 = vpack.c.b16 %v8687, %v8686
    %v8692 = vpack.c.b16 %v8688, %v8688
    %v8694 = vsel %vm8595, %v8689, 0
    %v8697 = vsel %vm8595, %v8690, 0
    %v8700 = vsel %vm8595, %v8691, 0
    %v8703 = vsel %vm8595, %v8692, 0
    %v8706 = vsel %vm979, %v8543, 0
    %8708 = vmatprep.subr.bf16.mxu0 0
    %8709 = vmatpush1.bf16.msra.mxu0 0
    %8710 = vmatprep.subr.bf16.mxu0 0
    %8711 = vmatpush1.bf16.msra.mxu0 0
    %8712 = vmatprep.subr.bf16.mxu0 0
    %8713 = vmatpush1.bf16.msra.mxu0 0
    %8714 = vmatprep.subr.bf16.mxu0 0
    %8715 = vmatpush1.bf16.msra.mxu0 0
    %8716 = vmatprep.subr.bf16.mxu0 0
    %8717 = vmatpush1.bf16.msra.mxu0 %v8706
    %8718 = vmatprep.subr.bf16.mxu0 0
    %8719 = vmatpush1.bf16.msra.mxu0 %v8542
    %8720 = vmatprep.subr.bf16.mxu0 0
    %8721 = vmatpush1.bf16.msra.mxu0 %v8541
    %8722 = vmatprep.subr.bf16.mxu0 0
    %8723 = vmatpush1.bf16.msra.mxu0 %v8540
    %8724 = vmatprep.subr.bf16.mxu0 0
    %8725 = vmatpush2.bf16.msra.mxu0 0
    %8726 = vmatprep.subr.bf16.mxu0 0
    %8727 = vmatpush2.bf16.msra.mxu0 0
    %8728 = vmatprep.subr.bf16.mxu0 0
    %8729 = vmatpush2.bf16.msra.mxu0 0
    %8730 = vmatprep.subr.bf16.mxu0 0
    %8731 = vmatpush2.bf16.msra.mxu0 0
    %8732 = vmatprep.subr.bf16.mxu0 0
    %8733 = vmatpush2.bf16.msra.mxu0 0
    %8734 = vmatprep.subr.bf16.mxu0 0
    %8735 = vmatpush2.bf16.msra.mxu0 0
    %8736 = vmatprep.subr.bf16.mxu0 0
    %8737 = vmatpush2.bf16.msra.mxu0 0
    %8738 = vmatprep.subr.bf16.mxu0 0
    %8739 = vmatpush2.bf16.msra.mxu0 0
    %8740 = vmatprep.mubr.bf16.mxu0 0
    %8741 = vmatmul.mubr.bf16.gmra.mxu0 %v8694
    %v8742 = vpop.f32.mrf.mxu0
    %v8743 = vadd.f32 %v8646, %v8742
    %v8744 = vpop.f32.mrf.mxu0
    %v8745 = vpop.f32.mrf.mxu0
    %v8746 = vadd.f32 %v8649, %v8745
    %v8747 = vpop.f32.mrf.mxu0
    %8748 = vmatprep.mubr.bf16.mxu0 0
    %8749 = vmatmul.mubr.bf16.gmra.mxu0 %v8697
    %v8750 = vpop.f32.mrf.mxu0
    %v8751 = vadd.f32 %v8654, %v8750
    %v8752 = vpop.f32.mrf.mxu0
    %v8753 = vpop.f32.mrf.mxu0
    %v8754 = vadd.f32 %v8657, %v8753
    %v8755 = vpop.f32.mrf.mxu0
    %8756 = vmatprep.mubr.bf16.mxu0 0
    %8757 = vmatmul.mubr.bf16.gmra.mxu0 %v8700
    %v8758 = vpop.f32.mrf.mxu0
    %v8759 = vadd.f32 %v8662, %v8758
    %v8760 = vpop.f32.mrf.mxu0
    %v8761 = vpop.f32.mrf.mxu0
    %v8762 = vadd.f32 %v8665, %v8761
    %v8763 = vpop.f32.mrf.mxu0
    %8764 = vmatprep.mubr.bf16.mxu0 0
    %8765 = vmatmul.mubr.bf16.gmra.mxu0 %v8703
    %v8766 = vpop.f32.mrf.mxu0
    %v8767 = vadd.f32 %v8670, %v8766
    %v8768 = vpop.f32.mrf.mxu0
    %v8769 = vpop.f32.mrf.mxu0
    %v8770 = vpop.f32.mrf.mxu0
    %8771 = vdwg.mxu0
    %8772 = vrot.lane.b32.xlu0 %v8528, 126
    %v8773 = vpop.permute.xlu0 %8772
    %8774 = vrot.lane.b32.xlu0 %v8529, 126
    %v8775 = vpop.permute.xlu0 %8774
    %8776 = vrot.lane.b32.xlu0 %v8530, 126
    %v8777 = vpop.permute.xlu0 %8776
    %8778 = vrot.lane.b32.xlu0 %v8531, 126
    %v8779 = vpop.permute.xlu0 %8778
    %8780 = vrot.lane.b32.xlu0 %v8532, 126
    %v8781 = vpop.permute.xlu0 %8780
    %8782 = vrot.lane.b32.xlu0 %v8533, 126
    %v8783 = vpop.permute.xlu0 %8782
    %8784 = vrot.lane.b32.xlu0 %v8534, 126
    %v8785 = vpop.permute.xlu0 %8784
    %v8786 = vpack.c.bf16 %v8775, %v8773
    %v8787 = vpack.c.bf16 %v8779, %v8777
    %v8788 = vpack.c.bf16 %v8783, %v8781
    %v8789 = vpack.c.bf16 %v8785, %v8785
    %s8790 = scalar_lea.vmem [#allocation7], 56
    %v8791 = vld [vmem:[%s8790] sm:$0xf]
    %v8792 = vld [vmem:[%s8790 + $0x4] sm:$0xf]
    %v8793 = vld [vmem:[%s8790 + $0x8] sm:$0xf]
    %v8794 = vld [vmem:[%s8790 + $0xc] sm:$0xf]
    %v8795 = vld [vmem:[%s8790 + $0x10] sm:$0xf]
    %v8796 = vld [vmem:[%s8790 + $0x14] sm:$0xf]
    %v8797 = vld [vmem:[%s8790 + $0x18] sm:$0xf]
    %v8805 = vunpack.c.l.b16 %v8791
    %v8806 = vunpack.c.l.b16 %v8792
    %v8807 = vunpack.c.l.b16 %v8793
    %v8808 = vunpack.c.l.b16 %v8794
    %v8809 = vunpack.c.l.b16 %v8795
    %v8810 = vunpack.c.l.b16 %v8796
    %v8811 = vunpack.c.l.b16 %v8797
    %v8812 = vpack.c.b16 %v8806, %v8805
    %v8813 = vpack.c.b16 %v8808, %v8807
    %v8814 = vpack.c.b16 %v8810, %v8809
    %v8815 = vpack.c.b16 %v8811, %v8811
    %v8817 = vsel %vm8595, %v8812, 0
    %v8820 = vsel %vm8595, %v8813, 0
    %v8823 = vsel %vm8595, %v8814, 0
    %v8826 = vsel %vm8595, %v8815, 0
    %v8829 = vsel %vm979, %v8789, 0
    %8831 = vmatprep.subr.bf16.mxu0 0
    %8832 = vmatpush1.bf16.msra.mxu0 0
    %8833 = vmatprep.subr.bf16.mxu0 0
    %8834 = vmatpush1.bf16.msra.mxu0 0
    %8835 = vmatprep.subr.bf16.mxu0 0
    %8836 = vmatpush1.bf16.msra.mxu0 0
    %8837 = vmatprep.subr.bf16.mxu0 0
    %8838 = vmatpush1.bf16.msra.mxu0 0
    %8839 = vmatprep.subr.bf16.mxu0 0
    %8840 = vmatpush1.bf16.msra.mxu0 %v8829
    %8841 = vmatprep.subr.bf16.mxu0 0
    %8842 = vmatpush1.bf16.msra.mxu0 %v8788
    %8843 = vmatprep.subr.bf16.mxu0 0
    %8844 = vmatpush1.bf16.msra.mxu0 %v8787
    %8845 = vmatprep.subr.bf16.mxu0 0
    %8846 = vmatpush1.bf16.msra.mxu0 %v8786
    %8847 = vmatprep.subr.bf16.mxu0 0
    %8848 = vmatpush2.bf16.msra.mxu0 0
    %8849 = vmatprep.subr.bf16.mxu0 0
    %8850 = vmatpush2.bf16.msra.mxu0 0
    %8851 = vmatprep.subr.bf16.mxu0 0
    %8852 = vmatpush2.bf16.msra.mxu0 0
    %8853 = vmatprep.subr.bf16.mxu0 0
    %8854 = vmatpush2.bf16.msra.mxu0 0
    %8855 = vmatprep.subr.bf16.mxu0 0
    %8856 = vmatpush2.bf16.msra.mxu0 0
    %8857 = vmatprep.subr.bf16.mxu0 0
    %8858 = vmatpush2.bf16.msra.mxu0 0
    %8859 = vmatprep.subr.bf16.mxu0 0
    %8860 = vmatpush2.bf16.msra.mxu0 0
    %8861 = vmatprep.subr.bf16.mxu0 0
    %8862 = vmatpush2.bf16.msra.mxu0 0
    %8863 = vmatprep.mubr.bf16.mxu0 0
    %8864 = vmatmul.mubr.bf16.gmra.mxu0 %v8817
    %v8865 = vpop.f32.mrf.mxu0
    %v8866 = vadd.f32 0.0, %v8865
    %v8867 = vpop.f32.mrf.mxu0
    %v8868 = vpop.f32.mrf.mxu0
    %v8869 = vadd.f32 0.0, %v8868
    %v8870 = vpop.f32.mrf.mxu0
    %8871 = vmatprep.mubr.bf16.mxu0 0
    %8872 = vmatmul.mubr.bf16.gmra.mxu0 %v8820
    %v8873 = vpop.f32.mrf.mxu0
    %v8874 = vadd.f32 0.0, %v8873
    %v8875 = vpop.f32.mrf.mxu0
    %v8876 = vpop.f32.mrf.mxu0
    %v8877 = vadd.f32 0.0, %v8876
    %v8878 = vpop.f32.mrf.mxu0
    %8879 = vmatprep.mubr.bf16.mxu0 0
    %8880 = vmatmul.mubr.bf16.gmra.mxu0 %v8823
    %v8881 = vpop.f32.mrf.mxu0
    %v8882 = vadd.f32 0.0, %v8881
    %v8883 = vpop.f32.mrf.mxu0
    %v8884 = vpop.f32.mrf.mxu0
    %v8885 = vadd.f32 0.0, %v8884
    %v8886 = vpop.f32.mrf.mxu0
    %8887 = vmatprep.mubr.bf16.mxu0 0
    %8888 = vmatmul.mubr.bf16.gmra.mxu0 %v8826
    %v8889 = vpop.f32.mrf.mxu0
    %v8890 = vadd.f32 0.0, %v8889
    %v8891 = vpop.f32.mrf.mxu0
    %v8892 = vpop.f32.mrf.mxu0
    %v8893 = vpop.f32.mrf.mxu0
    %8894 = vdwg.mxu0
    %v8895 = vadd.f32 %v8743, %v8866
    %v8896 = vadd.f32 %v8746, %v8869
    %v8897 = vadd.f32 %v8751, %v8874
    %v8898 = vadd.f32 %v8754, %v8877
    %v8899 = vadd.f32 %v8759, %v8882
    %v8900 = vadd.f32 %v8762, %v8885
    %v8901 = vadd.f32 %v8767, %v8890
    %8902 = vrot.lane.b32.xlu0 %v8528, 125
    %v8903 = vpop.permute.xlu0 %8902
    %8904 = vrot.lane.b32.xlu0 %v8529, 125
    %v8905 = vpop.permute.xlu0 %8904
    %8906 = vrot.lane.b32.xlu0 %v8530, 125
    %v8907 = vpop.permute.xlu0 %8906
    %8908 = vrot.lane.b32.xlu0 %v8531, 125
    %v8909 = vpop.permute.xlu0 %8908
    %8910 = vrot.lane.b32.xlu0 %v8532, 125
    %v8911 = vpop.permute.xlu0 %8910
    %8912 = vrot.lane.b32.xlu0 %v8533, 125
    %v8913 = vpop.permute.xlu0 %8912
    %8914 = vrot.lane.b32.xlu0 %v8534, 125
    %v8915 = vpop.permute.xlu0 %8914
    %v8916 = vpack.c.bf16 %v8905, %v8903
    %v8917 = vpack.c.bf16 %v8909, %v8907
    %v8918 = vpack.c.bf16 %v8913, %v8911
    %v8919 = vpack.c.bf16 %v8915, %v8915
    %s8920 = scalar_lea.vmem [#allocation7], 84
    %v8921 = vld [vmem:[%s8920] sm:$0xf]
    %v8922 = vld [vmem:[%s8920 + $0x4] sm:$0xf]
    %v8923 = vld [vmem:[%s8920 + $0x8] sm:$0xf]
    %v8924 = vld [vmem:[%s8920 + $0xc] sm:$0xf]
    %v8925 = vld [vmem:[%s8920 + $0x10] sm:$0xf]
    %v8926 = vld [vmem:[%s8920 + $0x14] sm:$0xf]
    %v8927 = vld [vmem:[%s8920 + $0x18] sm:$0xf]
    %v8935 = vunpack.c.l.b16 %v8921
    %v8936 = vunpack.c.l.b16 %v8922
    %v8937 = vunpack.c.l.b16 %v8923
    %v8938 = vunpack.c.l.b16 %v8924
    %v8939 = vunpack.c.l.b16 %v8925
    %v8940 = vunpack.c.l.b16 %v8926
    %v8941 = vunpack.c.l.b16 %v8927
    %v8942 = vpack.c.b16 %v8936, %v8935
    %v8943 = vpack.c.b16 %v8938, %v8937
    %v8944 = vpack.c.b16 %v8940, %v8939
    %v8945 = vpack.c.b16 %v8941, %v8941
    %v8947 = vsel %vm8595, %v8942, 0
    %v8950 = vsel %vm8595, %v8943, 0
    %v8953 = vsel %vm8595, %v8944, 0
    %v8956 = vsel %vm8595, %v8945, 0
    %v8959 = vsel %vm979, %v8919, 0
    %8961 = vmatprep.subr.bf16.mxu0 0
    %8962 = vmatpush1.bf16.msra.mxu0 0
    %8963 = vmatprep.subr.bf16.mxu0 0
    %8964 = vmatpush1.bf16.msra.mxu0 0
    %8965 = vmatprep.subr.bf16.mxu0 0
    %8966 = vmatpush1.bf16.msra.mxu0 0
    %8967 = vmatprep.subr.bf16.mxu0 0
    %8968 = vmatpush1.bf16.msra.mxu0 0
    %8969 = vmatprep.subr.bf16.mxu0 0
    %8970 = vmatpush1.bf16.msra.mxu0 %v8959
    %8971 = vmatprep.subr.bf16.mxu0 0
    %8972 = vmatpush1.bf16.msra.mxu0 %v8918
    %8973 = vmatprep.subr.bf16.mxu0 0
    %8974 = vmatpush1.bf16.msra.mxu0 %v8917
    %8975 = vmatprep.subr.bf16.mxu0 0
    %8976 = vmatpush1.bf16.msra.mxu0 %v8916
    %8977 = vmatprep.subr.bf16.mxu0 0
    %8978 = vmatpush2.bf16.msra.mxu0 0
    %8979 = vmatprep.subr.bf16.mxu0 0
    %8980 = vmatpush2.bf16.msra.mxu0 0
    %8981 = vmatprep.subr.bf16.mxu0 0
    %8982 = vmatpush2.bf16.msra.mxu0 0
    %8983 = vmatprep.subr.bf16.mxu0 0
    %8984 = vmatpush2.bf16.msra.mxu0 0
    %8985 = vmatprep.subr.bf16.mxu0 0
    %8986 = vmatpush2.bf16.msra.mxu0 0
    %8987 = vmatprep.subr.bf16.mxu0 0
    %8988 = vmatpush2.bf16.msra.mxu0 0
    %8989 = vmatprep.subr.bf16.mxu0 0
    %8990 = vmatpush2.bf16.msra.mxu0 0
    %8991 = vmatprep.subr.bf16.mxu0 0
    %8992 = vmatpush2.bf16.msra.mxu0 0
    %8993 = vmatprep.mubr.bf16.mxu0 0
    %8994 = vmatmul.mubr.bf16.gmra.mxu0 %v8947
    %v8995 = vpop.f32.mrf.mxu0
    %v8996 = vadd.f32 0.0, %v8995
    %v8997 = vpop.f32.mrf.mxu0
    %v8998 = vpop.f32.mrf.mxu0
    %v8999 = vadd.f32 0.0, %v8998
    %v9000 = vpop.f32.mrf.mxu0
    %9001 = vmatprep.mubr.bf16.mxu0 0
    %9002 = vmatmul.mubr.bf16.gmra.mxu0 %v8950
    %v9003 = vpop.f32.mrf.mxu0
    %v9004 = vadd.f32 0.0, %v9003
    %v9005 = vpop.f32.mrf.mxu0
    %v9006 = vpop.f32.mrf.mxu0
    %v9007 = vadd.f32 0.0, %v9006
    %v9008 = vpop.f32.mrf.mxu0
    %9009 = vmatprep.mubr.bf16.mxu0 0
    %9010 = vmatmul.mubr.bf16.gmra.mxu0 %v8953
    %v9011 = vpop.f32.mrf.mxu0
    %v9012 = vadd.f32 0.0, %v9011
    %v9013 = vpop.f32.mrf.mxu0
    %v9014 = vpop.f32.mrf.mxu0
    %v9015 = vadd.f32 0.0, %v9014
    %v9016 = vpop.f32.mrf.mxu0
    %9017 = vmatprep.mubr.bf16.mxu0 0
    %9018 = vmatmul.mubr.bf16.gmra.mxu0 %v8956
    %v9019 = vpop.f32.mrf.mxu0
    %v9020 = vadd.f32 0.0, %v9019
    %v9021 = vpop.f32.mrf.mxu0
    %v9022 = vpop.f32.mrf.mxu0
    %v9023 = vpop.f32.mrf.mxu0
    %9024 = vdwg.mxu0
    %v9025 = vadd.f32 %v8895, %v8996
    %v9026 = vadd.f32 %v8896, %v8999
    %v9027 = vadd.f32 %v8897, %v9004
    %v9028 = vadd.f32 %v8898, %v9007
    %v9029 = vadd.f32 %v8899, %v9012
    %v9030 = vadd.f32 %v8900, %v9015
    %v9031 = vadd.f32 %v8901, %v9020
    %9032 = vrot.lane.b32.xlu0 %v8528, 124
    %v9033 = vpop.permute.xlu0 %9032
    %9034 = vrot.lane.b32.xlu0 %v8529, 124
    %v9035 = vpop.permute.xlu0 %9034
    %9036 = vrot.lane.b32.xlu0 %v8530, 124
    %v9037 = vpop.permute.xlu0 %9036
    %9038 = vrot.lane.b32.xlu0 %v8531, 124
    %v9039 = vpop.permute.xlu0 %9038
    %9040 = vrot.lane.b32.xlu0 %v8532, 124
    %v9041 = vpop.permute.xlu0 %9040
    %9042 = vrot.lane.b32.xlu0 %v8533, 124
    %v9043 = vpop.permute.xlu0 %9042
    %9044 = vrot.lane.b32.xlu0 %v8534, 124
    %v9045 = vpop.permute.xlu0 %9044
    %v9046 = vpack.c.bf16 %v9035, %v9033
    %v9047 = vpack.c.bf16 %v9039, %v9037
    %v9048 = vpack.c.bf16 %v9043, %v9041
    %v9049 = vpack.c.bf16 %v9045, %v9045
    %s9050 = scalar_lea.vmem [#allocation7], 112
    %v9051 = vld [vmem:[%s9050] sm:$0xf]
    %v9052 = vld [vmem:[%s9050 + $0x4] sm:$0xf]
    %v9053 = vld [vmem:[%s9050 + $0x8] sm:$0xf]
    %v9054 = vld [vmem:[%s9050 + $0xc] sm:$0xf]
    %v9055 = vld [vmem:[%s9050 + $0x10] sm:$0xf]
    %v9056 = vld [vmem:[%s9050 + $0x14] sm:$0xf]
    %v9057 = vld [vmem:[%s9050 + $0x18] sm:$0xf]
    %v9065 = vunpack.c.l.b16 %v9051
    %v9066 = vunpack.c.l.b16 %v9052
    %v9067 = vunpack.c.l.b16 %v9053
    %v9068 = vunpack.c.l.b16 %v9054
    %v9069 = vunpack.c.l.b16 %v9055
    %v9070 = vunpack.c.l.b16 %v9056
    %v9071 = vunpack.c.l.b16 %v9057
    %v9072 = vpack.c.b16 %v9066, %v9065
    %v9073 = vpack.c.b16 %v9068, %v9067
    %v9074 = vpack.c.b16 %v9070, %v9069
    %v9075 = vpack.c.b16 %v9071, %v9071
    %v9077 = vsel %vm8595, %v9072, 0
    %v9080 = vsel %vm8595, %v9073, 0
    %v9083 = vsel %vm8595, %v9074, 0
    %v9086 = vsel %vm8595, %v9075, 0
    %v9089 = vsel %vm979, %v9049, 0
    %9091 = vmatprep.subr.bf16.mxu0 0
    %9092 = vmatpush1.bf16.msra.mxu0 0
    %9093 = vmatprep.subr.bf16.mxu0 0
    %9094 = vmatpush1.bf16.msra.mxu0 0
    %9095 = vmatprep.subr.bf16.mxu0 0
    %9096 = vmatpush1.bf16.msra.mxu0 0
    %9097 = vmatprep.subr.bf16.mxu0 0
    %9098 = vmatpush1.bf16.msra.mxu0 0
    %9099 = vmatprep.subr.bf16.mxu0 0
    %9100 = vmatpush1.bf16.msra.mxu0 %v9089
    %9101 = vmatprep.subr.bf16.mxu0 0
    %9102 = vmatpush1.bf16.msra.mxu0 %v9048
    %9103 = vmatprep.subr.bf16.mxu0 0
    %9104 = vmatpush1.bf16.msra.mxu0 %v9047
    %9105 = vmatprep.subr.bf16.mxu0 0
    %9106 = vmatpush1.bf16.msra.mxu0 %v9046
    %9107 = vmatprep.subr.bf16.mxu0 0
    %9108 = vmatpush2.bf16.msra.mxu0 0
    %9109 = vmatprep.subr.bf16.mxu0 0
    %9110 = vmatpush2.bf16.msra.mxu0 0
    %9111 = vmatprep.subr.bf16.mxu0 0
    %9112 = vmatpush2.bf16.msra.mxu0 0
    %9113 = vmatprep.subr.bf16.mxu0 0
    %9114 = vmatpush2.bf16.msra.mxu0 0
    %9115 = vmatprep.subr.bf16.mxu0 0
    %9116 = vmatpush2.bf16.msra.mxu0 0
    %9117 = vmatprep.subr.bf16.mxu0 0
    %9118 = vmatpush2.bf16.msra.mxu0 0
    %9119 = vmatprep.subr.bf16.mxu0 0
    %9120 = vmatpush2.bf16.msra.mxu0 0
    %9121 = vmatprep.subr.bf16.mxu0 0
    %9122 = vmatpush2.bf16.msra.mxu0 0
    %9123 = vmatprep.mubr.bf16.mxu0 0
    %9124 = vmatmul.mubr.bf16.gmra.mxu0 %v9077
    %v9125 = vpop.f32.mrf.mxu0
    %v9126 = vadd.f32 0.0, %v9125
    %v9127 = vpop.f32.mrf.mxu0
    %v9128 = vpop.f32.mrf.mxu0
    %v9129 = vadd.f32 0.0, %v9128
    %v9130 = vpop.f32.mrf.mxu0
    %9131 = vmatprep.mubr.bf16.mxu0 0
    %9132 = vmatmul.mubr.bf16.gmra.mxu0 %v9080
    %v9133 = vpop.f32.mrf.mxu0
    %v9134 = vadd.f32 0.0, %v9133
    %v9135 = vpop.f32.mrf.mxu0
    %v9136 = vpop.f32.mrf.mxu0
    %v9137 = vadd.f32 0.0, %v9136
    %v9138 = vpop.f32.mrf.mxu0
    %9139 = vmatprep.mubr.bf16.mxu0 0
    %9140 = vmatmul.mubr.bf16.gmra.mxu0 %v9083
    %v9141 = vpop.f32.mrf.mxu0
    %v9142 = vadd.f32 0.0, %v9141
    %v9143 = vpop.f32.mrf.mxu0
    %v9144 = vpop.f32.mrf.mxu0
    %v9145 = vadd.f32 0.0, %v9144
    %v9146 = vpop.f32.mrf.mxu0
    %9147 = vmatprep.mubr.bf16.mxu0 0
    %9148 = vmatmul.mubr.bf16.gmra.mxu0 %v9086
    %v9149 = vpop.f32.mrf.mxu0
    %v9150 = vadd.f32 0.0, %v9149
    %v9151 = vpop.f32.mrf.mxu0
    %v9152 = vpop.f32.mrf.mxu0
    %v9153 = vpop.f32.mrf.mxu0
    %9154 = vdwg.mxu0
    %v9155 = vadd.f32 %v9025, %v9126
    %v9156 = vadd.f32 %v9026, %v9129
    %v9157 = vadd.f32 %v9027, %v9134
    %v9158 = vadd.f32 %v9028, %v9137
    %v9159 = vadd.f32 %v9029, %v9142
    %v9160 = vadd.f32 %v9030, %v9145
    %v9161 = vadd.f32 %v9031, %v9150
    %9162 = vrot.lane.b32.xlu0 %v8528, 123
    %v9163 = vpop.permute.xlu0 %9162
    %9164 = vrot.lane.b32.xlu0 %v8529, 123
    %v9165 = vpop.permute.xlu0 %9164
    %9166 = vrot.lane.b32.xlu0 %v8530, 123
    %v9167 = vpop.permute.xlu0 %9166
    %9168 = vrot.lane.b32.xlu0 %v8531, 123
    %v9169 = vpop.permute.xlu0 %9168
    %9170 = vrot.lane.b32.xlu0 %v8532, 123
    %v9171 = vpop.permute.xlu0 %9170
    %9172 = vrot.lane.b32.xlu0 %v8533, 123
    %v9173 = vpop.permute.xlu0 %9172
    %9174 = vrot.lane.b32.xlu0 %v8534, 123
    %v9175 = vpop.permute.xlu0 %9174
    %v9176 = vpack.c.bf16 %v9165, %v9163
    %v9177 = vpack.c.bf16 %v9169, %v9167
    %v9178 = vpack.c.bf16 %v9173, %v9171
    %v9179 = vpack.c.bf16 %v9175, %v9175
    %s9180 = scalar_lea.vmem [#allocation7], 140
    %v9181 = vld [vmem:[%s9180] sm:$0xf]
    %v9182 = vld [vmem:[%s9180 + $0x4] sm:$0xf]
    %v9183 = vld [vmem:[%s9180 + $0x8] sm:$0xf]
    %v9184 = vld [vmem:[%s9180 + $0xc] sm:$0xf]
    %v9185 = vld [vmem:[%s9180 + $0x10] sm:$0xf]
    %v9186 = vld [vmem:[%s9180 + $0x14] sm:$0xf]
    %v9187 = vld [vmem:[%s9180 + $0x18] sm:$0xf]
    %v9195 = vunpack.c.l.b16 %v9181
    %v9196 = vunpack.c.l.b16 %v9182
    %v9197 = vunpack.c.l.b16 %v9183
    %v9198 = vunpack.c.l.b16 %v9184
    %v9199 = vunpack.c.l.b16 %v9185
    %v9200 = vunpack.c.l.b16 %v9186
    %v9201 = vunpack.c.l.b16 %v9187
    %v9202 = vpack.c.b16 %v9196, %v9195
    %v9203 = vpack.c.b16 %v9198, %v9197
    %v9204 = vpack.c.b16 %v9200, %v9199
    %v9205 = vpack.c.b16 %v9201, %v9201
    %v9207 = vsel %vm8595, %v9202, 0
    %v9210 = vsel %vm8595, %v9203, 0
    %v9213 = vsel %vm8595, %v9204, 0
    %v9216 = vsel %vm8595, %v9205, 0
    %v9219 = vsel %vm979, %v9179, 0
    %9221 = vmatprep.subr.bf16.mxu0 0
    %9222 = vmatpush1.bf16.msra.mxu0 0
    %9223 = vmatprep.subr.bf16.mxu0 0
    %9224 = vmatpush1.bf16.msra.mxu0 0
    %9225 = vmatprep.subr.bf16.mxu0 0
    %9226 = vmatpush1.bf16.msra.mxu0 0
    %9227 = vmatprep.subr.bf16.mxu0 0
    %9228 = vmatpush1.bf16.msra.mxu0 0
    %9229 = vmatprep.subr.bf16.mxu0 0
    %9230 = vmatpush1.bf16.msra.mxu0 %v9219
    %9231 = vmatprep.subr.bf16.mxu0 0
    %9232 = vmatpush1.bf16.msra.mxu0 %v9178
    %9233 = vmatprep.subr.bf16.mxu0 0
    %9234 = vmatpush1.bf16.msra.mxu0 %v9177
    %9235 = vmatprep.subr.bf16.mxu0 0
    %9236 = vmatpush1.bf16.msra.mxu0 %v9176
    %9237 = vmatprep.subr.bf16.mxu0 0
    %9238 = vmatpush2.bf16.msra.mxu0 0
    %9239 = vmatprep.subr.bf16.mxu0 0
    %9240 = vmatpush2.bf16.msra.mxu0 0
    %9241 = vmatprep.subr.bf16.mxu0 0
    %9242 = vmatpush2.bf16.msra.mxu0 0
    %9243 = vmatprep.subr.bf16.mxu0 0
    %9244 = vmatpush2.bf16.msra.mxu0 0
    %9245 = vmatprep.subr.bf16.mxu0 0
    %9246 = vmatpush2.bf16.msra.mxu0 0
    %9247 = vmatprep.subr.bf16.mxu0 0
    %9248 = vmatpush2.bf16.msra.mxu0 0
    %9249 = vmatprep.subr.bf16.mxu0 0
    %9250 = vmatpush2.bf16.msra.mxu0 0
    %9251 = vmatprep.subr.bf16.mxu0 0
    %9252 = vmatpush2.bf16.msra.mxu0 0
    %9253 = vmatprep.mubr.bf16.mxu0 0
    %9254 = vmatmul.mubr.bf16.gmra.mxu0 %v9207
    %v9255 = vpop.f32.mrf.mxu0
    %v9256 = vadd.f32 0.0, %v9255
    %v9257 = vpop.f32.mrf.mxu0
    %v9258 = vpop.f32.mrf.mxu0
    %v9259 = vadd.f32 0.0, %v9258
    %v9260 = vpop.f32.mrf.mxu0
    %9261 = vmatprep.mubr.bf16.mxu0 0
    %9262 = vmatmul.mubr.bf16.gmra.mxu0 %v9210
    %v9263 = vpop.f32.mrf.mxu0
    %v9264 = vadd.f32 0.0, %v9263
    %v9265 = vpop.f32.mrf.mxu0
    %v9266 = vpop.f32.mrf.mxu0
    %v9267 = vadd.f32 0.0, %v9266
    %v9268 = vpop.f32.mrf.mxu0
    %9269 = vmatprep.mubr.bf16.mxu0 0
    %9270 = vmatmul.mubr.bf16.gmra.mxu0 %v9213
    %v9271 = vpop.f32.mrf.mxu0
    %v9272 = vadd.f32 0.0, %v9271
    %v9273 = vpop.f32.mrf.mxu0
    %v9274 = vpop.f32.mrf.mxu0
    %v9275 = vadd.f32 0.0, %v9274
    %v9276 = vpop.f32.mrf.mxu0
    %9277 = vmatprep.mubr.bf16.mxu0 0
    %9278 = vmatmul.mubr.bf16.gmra.mxu0 %v9216
    %v9279 = vpop.f32.mrf.mxu0
    %v9280 = vadd.f32 0.0, %v9279
    %v9281 = vpop.f32.mrf.mxu0
    %v9282 = vpop.f32.mrf.mxu0
    %v9283 = vpop.f32.mrf.mxu0
    %9284 = vdwg.mxu0
    %v9285 = vadd.f32 %v9155, %v9256
    %v9286 = vadd.f32 %v9156, %v9259
    %v9287 = vadd.f32 %v9157, %v9264
    %v9288 = vadd.f32 %v9158, %v9267
    %v9289 = vadd.f32 %v9159, %v9272
    %v9290 = vadd.f32 %v9160, %v9275
    %v9291 = vadd.f32 %v9161, %v9280
    %v9292 = vstv %s41
    %v9293 = vadd.f32 %v9285, %v9292
    %v9294 = vadd.f32 %v9286, %v9292
    %v9295 = vadd.f32 %v9287, %v9292
    %v9296 = vadd.f32 %v9288, %v9292
    %v9297 = vadd.f32 %v9289, %v9292
    %v9298 = vadd.f32 %v9290, %v9292
    %v9299 = vadd.f32 %v9291, %v9292
    %v9300 = vmax.f32 %v9293, 0.0
    %v9301 = vmax.f32 %v9294, 0.0
    %v9302 = vmax.f32 %v9295, 0.0
    %v9303 = vmax.f32 %v9296, 0.0
    %v9304 = vmax.f32 %v9297, 0.0
    %v9305 = vmax.f32 %v9298, 0.0
    %v9306 = vmax.f32 %v9299, 0.0
    %s9307 = smul.u32 128, 1
    %s9308 = sshll.u32 %s9307, 4
    %9309 = dma.done %s373, %s9308
    %s9310 = sshll.u32 %s9307, 4
    %9311 = dma.done %s447, %s9310
    %s9312 = sshll.u32 %s9307, 4
    %9313 = dma.done %s459, %s9312
    %s9314 = smul.u32 32, 1
    %s9315 = sshll.u32 %s9314, 4
    %9316 = dma.done %s533, %s9315
    %v9317 = vld [vmem:[#allocation8] sm:$0xff]
    %v9318 = vld [vmem:[#allocation8 + $0x8] sm:$0xff]
    %v9319 = vld [vmem:[#allocation8 + $0x10] sm:$0xff]
    %v9320 = vld [vmem:[#allocation8 + $0x18] sm:$0xff]
    %v9321 = vld [vmem:[#allocation8 + $0x20] sm:$0xff]
    %v9322 = vld [vmem:[#allocation8 + $0x28] sm:$0xff]
    %v9323 = vld [vmem:[#allocation8 + $0x30] sm:$0xff]
    %v9324 = vld [vmem:[#allocation8 + $0x38] sm:$0xff]
    %v9325 = vld [vmem:[#allocation8 + $0x40] sm:$0xff]
    %v9326 = vld [vmem:[#allocation8 + $0x48] sm:$0xff]
    %v9327 = vld [vmem:[#allocation8 + $0x50] sm:$0xff]
    %v9328 = vld [vmem:[#allocation8 + $0x58] sm:$0xff]
    %v9329 = vld [vmem:[#allocation8 + $0x60] sm:$0xff]
    %v9330 = vld [vmem:[#allocation8 + $0x68] sm:$0xff]
    %v9331 = vld [vmem:[#allocation8 + $0x70] sm:$0xff]
    %v9332 = vld [vmem:[#allocation8 + $0x78] sm:$0xff]
    %v9334 = vsel %vm8595, %v9317, 0
    %v9337 = vsel %vm8595, %v9318, 0
    %v9340 = vsel %vm8595, %v9319, 0
    %v9343 = vsel %vm8595, %v9320, 0
    %v9346 = vsel %vm8595, %v9321, 0
    %v9349 = vsel %vm8595, %v9322, 0
    %v9352 = vsel %vm8595, %v9323, 0
    %v9355 = vsel %vm8595, %v9324, 0
    %v9358 = vsel %vm8595, %v9325, 0
    %v9361 = vsel %vm8595, %v9326, 0
    %v9364 = vsel %vm8595, %v9327, 0
    %v9367 = vsel %vm8595, %v9328, 0
    %v9370 = vsel %vm8595, %v9329, 0
    %v9373 = vsel %vm8595, %v9330, 0
    %v9376 = vsel %vm8595, %v9331, 0
    %v9379 = vsel %vm8595, %v9332, 0
    %9381 = vmatprep.subr.mxu0 0.0
    %9382 = vmatpush1.msra.mxu0 0.0
    %9383 = vmatprep.subr.mxu0 0.0
    %9384 = vmatpush1.msra.mxu0 0.0
    %9385 = vmatprep.subr.mxu0 0.0
    %9386 = vmatpush1.msra.mxu0 0.0
    %9387 = vmatprep.subr.mxu0 0.0
    %9388 = vmatpush1.msra.mxu0 0.0
    %9389 = vmatprep.subr.mxu0 0.0
    %9390 = vmatpush1.msra.mxu0 0.0
    %9391 = vmatprep.subr.mxu0 0.0
    %9392 = vmatpush1.msra.mxu0 0.0
    %9393 = vmatprep.subr.mxu0 0.0
    %9394 = vmatpush1.msra.mxu0 0.0
    %9395 = vmatprep.subr.mxu0 0.0
    %9396 = vmatpush1.msra.mxu0 0.0
    %9397 = vmatprep.subr.mxu0 0.0
    %9398 = vmatpush1.msra.mxu0 0.0
    %9399 = vmatprep.subr.mxu0 0.0
    %9400 = vmatpush1.msra.mxu0 %v9306
    %9401 = vmatprep.subr.mxu0 0.0
    %9402 = vmatpush1.msra.mxu0 %v9305
    %9403 = vmatprep.subr.mxu0 0.0
    %9404 = vmatpush1.msra.mxu0 %v9304
    %9405 = vmatprep.subr.mxu0 0.0
    %9406 = vmatpush1.msra.mxu0 %v9303
    %9407 = vmatprep.subr.mxu0 0.0
    %9408 = vmatpush1.msra.mxu0 %v9302
    %9409 = vmatprep.subr.mxu0 0.0
    %9410 = vmatpush1.msra.mxu0 %v9301
    %9411 = vmatprep.subr.mxu0 0.0
    %9412 = vmatpush1.msra.mxu0 %v9300
    %9413 = vmatprep.subr.mxu0 0.0
    %9414 = vmatpush2.msra.mxu0 0.0
    %9415 = vmatprep.subr.mxu0 0.0
    %9416 = vmatpush2.msra.mxu0 0.0
    %9417 = vmatprep.subr.mxu0 0.0
    %9418 = vmatpush2.msra.mxu0 0.0
    %9419 = vmatprep.subr.mxu0 0.0
    %9420 = vmatpush2.msra.mxu0 0.0
    %9421 = vmatprep.subr.mxu0 0.0
    %9422 = vmatpush2.msra.mxu0 0.0
    %9423 = vmatprep.subr.mxu0 0.0
    %9424 = vmatpush2.msra.mxu0 0.0
    %9425 = vmatprep.subr.mxu0 0.0
    %9426 = vmatpush2.msra.mxu0 0.0
    %9427 = vmatprep.subr.mxu0 0.0
    %9428 = vmatpush2.msra.mxu0 0.0
    %9429 = vmatprep.subr.mxu0 0.0
    %9430 = vmatpush2.msra.mxu0 0.0
    %9431 = vmatprep.subr.mxu0 0.0
    %9432 = vmatpush2.msra.mxu0 0.0
    %9433 = vmatprep.subr.mxu0 0.0
    %9434 = vmatpush2.msra.mxu0 0.0
    %9435 = vmatprep.subr.mxu0 0.0
    %9436 = vmatpush2.msra.mxu0 0.0
    %9437 = vmatprep.subr.mxu0 0.0
    %9438 = vmatpush2.msra.mxu0 0.0
    %9439 = vmatprep.subr.mxu0 0.0
    %9440 = vmatpush2.msra.mxu0 0.0
    %9441 = vmatprep.subr.mxu0 0.0
    %9442 = vmatpush2.msra.mxu0 0.0
    %9443 = vmatprep.subr.mxu0 0.0
    %9444 = vmatpush2.msra.mxu0 0.0
    %9445 = vmatprep.mubr.f32.mxu0 0.0
    %9446 = vmatmul.mubr.f32.gmra.mxu0 %v9334
    %v9447 = vpop.f32.mrf.mxu0
    %v9448 = vadd.f32 0.0, %v9447
    %v9449 = vpop.f32.mrf.mxu0
    %9450 = vmatprep.mubr.f32.mxu0 0.0
    %9451 = vmatmul.mubr.f32.gmra.mxu0 %v9337
    %v9452 = vpop.f32.mrf.mxu0
    %v9453 = vadd.f32 0.0, %v9452
    %v9454 = vpop.f32.mrf.mxu0
    %9455 = vmatprep.mubr.f32.mxu0 0.0
    %9456 = vmatmul.mubr.f32.gmra.mxu0 %v9340
    %v9457 = vpop.f32.mrf.mxu0
    %v9458 = vadd.f32 0.0, %v9457
    %v9459 = vpop.f32.mrf.mxu0
    %9460 = vmatprep.mubr.f32.mxu0 0.0
    %9461 = vmatmul.mubr.f32.gmra.mxu0 %v9343
    %v9462 = vpop.f32.mrf.mxu0
    %v9463 = vadd.f32 0.0, %v9462
    %v9464 = vpop.f32.mrf.mxu0
    %9465 = vmatprep.mubr.f32.mxu0 0.0
    %9466 = vmatmul.mubr.f32.gmra.mxu0 %v9346
    %v9467 = vpop.f32.mrf.mxu0
    %v9468 = vadd.f32 0.0, %v9467
    %v9469 = vpop.f32.mrf.mxu0
    %9470 = vmatprep.mubr.f32.mxu0 0.0
    %9471 = vmatmul.mubr.f32.gmra.mxu0 %v9349
    %v9472 = vpop.f32.mrf.mxu0
    %v9473 = vadd.f32 0.0, %v9472
    %v9474 = vpop.f32.mrf.mxu0
    %9475 = vmatprep.mubr.f32.mxu0 0.0
    %9476 = vmatmul.mubr.f32.gmra.mxu0 %v9352
    %v9477 = vpop.f32.mrf.mxu0
    %v9478 = vadd.f32 0.0, %v9477
    %v9479 = vpop.f32.mrf.mxu0
    %9480 = vmatprep.mubr.f32.mxu0 0.0
    %9481 = vmatmul.mubr.f32.gmra.mxu0 %v9355
    %v9482 = vpop.f32.mrf.mxu0
    %v9483 = vadd.f32 0.0, %v9482
    %v9484 = vpop.f32.mrf.mxu0
    %9485 = vmatprep.mubr.f32.mxu0 0.0
    %9486 = vmatmul.mubr.f32.gmra.mxu0 %v9358
    %v9487 = vpop.f32.mrf.mxu0
    %v9488 = vadd.f32 0.0, %v9487
    %v9489 = vpop.f32.mrf.mxu0
    %9490 = vmatprep.mubr.f32.mxu0 0.0
    %9491 = vmatmul.mubr.f32.gmra.mxu0 %v9361
    %v9492 = vpop.f32.mrf.mxu0
    %v9493 = vadd.f32 0.0, %v9492
    %v9494 = vpop.f32.mrf.mxu0
    %9495 = vmatprep.mubr.f32.mxu0 0.0
    %9496 = vmatmul.mubr.f32.gmra.mxu0 %v9364
    %v9497 = vpop.f32.mrf.mxu0
    %v9498 = vadd.f32 0.0, %v9497
    %v9499 = vpop.f32.mrf.mxu0
    %9500 = vmatprep.mubr.f32.mxu0 0.0
    %9501 = vmatmul.mubr.f32.gmra.mxu0 %v9367
    %v9502 = vpop.f32.mrf.mxu0
    %v9503 = vadd.f32 0.0, %v9502
    %v9504 = vpop.f32.mrf.mxu0
    %9505 = vmatprep.mubr.f32.mxu0 0.0
    %9506 = vmatmul.mubr.f32.gmra.mxu0 %v9370
    %v9507 = vpop.f32.mrf.mxu0
    %v9508 = vadd.f32 0.0, %v9507
    %v9509 = vpop.f32.mrf.mxu0
    %9510 = vmatprep.mubr.f32.mxu0 0.0
    %9511 = vmatmul.mubr.f32.gmra.mxu0 %v9373
    %v9512 = vpop.f32.mrf.mxu0
    %v9513 = vadd.f32 0.0, %v9512
    %v9514 = vpop.f32.mrf.mxu0
    %9515 = vmatprep.mubr.f32.mxu0 0.0
    %9516 = vmatmul.mubr.f32.gmra.mxu0 %v9376
    %v9517 = vpop.f32.mrf.mxu0
    %v9518 = vadd.f32 0.0, %v9517
    %v9519 = vpop.f32.mrf.mxu0
    %9520 = vmatprep.mubr.f32.mxu0 0.0
    %9521 = vmatmul.mubr.f32.gmra.mxu0 %v9379
    %v9522 = vpop.f32.mrf.mxu0
    %v9523 = vadd.f32 0.0, %v9522
    %v9524 = vpop.f32.mrf.mxu0
    %9525 = vdwg.mxu0
    %v9526 = vld [vmem:[#allocation9] sm:$0xff]
    %v9527 = vld [vmem:[#allocation9 + $0x8] sm:$0xff]
    %v9528 = vld [vmem:[#allocation9 + $0x10] sm:$0xff]
    %v9529 = vld [vmem:[#allocation9 + $0x18] sm:$0xff]
    %v9530 = vld [vmem:[#allocation9 + $0x20] sm:$0xff]
    %v9531 = vld [vmem:[#allocation9 + $0x28] sm:$0xff]
    %v9532 = vld [vmem:[#allocation9 + $0x30] sm:$0xff]
    %v9533 = vld [vmem:[#allocation9 + $0x38] sm:$0xff]
    %v9534 = vld [vmem:[#allocation9 + $0x40] sm:$0xff]
    %v9535 = vld [vmem:[#allocation9 + $0x48] sm:$0xff]
    %v9536 = vld [vmem:[#allocation9 + $0x50] sm:$0xff]
    %v9537 = vld [vmem:[#allocation9 + $0x58] sm:$0xff]
    %v9538 = vld [vmem:[#allocation9 + $0x60] sm:$0xff]
    %v9539 = vld [vmem:[#allocation9 + $0x68] sm:$0xff]
    %v9540 = vld [vmem:[#allocation9 + $0x70] sm:$0xff]
    %v9541 = vld [vmem:[#allocation9 + $0x78] sm:$0xff]
    %v9542 = vmul.f32 %v9448, %v9526
    %v9543 = vmul.f32 %v9453, %v9527
    %v9544 = vmul.f32 %v9458, %v9528
    %v9545 = vmul.f32 %v9463, %v9529
    %v9546 = vmul.f32 %v9468, %v9530
    %v9547 = vmul.f32 %v9473, %v9531
    %v9548 = vmul.f32 %v9478, %v9532
    %v9549 = vmul.f32 %v9483, %v9533
    %v9550 = vmul.f32 %v9488, %v9534
    %v9551 = vmul.f32 %v9493, %v9535
    %v9552 = vmul.f32 %v9498, %v9536
    %v9553 = vmul.f32 %v9503, %v9537
    %v9554 = vmul.f32 %v9508, %v9538
    %v9555 = vmul.f32 %v9513, %v9539
    %v9556 = vmul.f32 %v9518, %v9540
    %v9557 = vmul.f32 %v9523, %v9541
    %9558 = vadd.xlane.f32.xlu0 %v9542
    %v9559 = vpop.xlane.xlu0 %9558
    %9560 = vadd.xlane.f32.xlu0 %v9543
    %v9561 = vpop.xlane.xlu0 %9560
    %9562 = vadd.xlane.f32.xlu0 %v9544
    %v9563 = vpop.xlane.xlu0 %9562
    %9564 = vadd.xlane.f32.xlu0 %v9545
    %v9565 = vpop.xlane.xlu0 %9564
    %9566 = vadd.xlane.f32.xlu0 %v9546
    %v9567 = vpop.xlane.xlu0 %9566
    %9568 = vadd.xlane.f32.xlu0 %v9547
    %v9569 = vpop.xlane.xlu0 %9568
    %9570 = vadd.xlane.f32.xlu0 %v9548
    %v9571 = vpop.xlane.xlu0 %9570
    %9572 = vadd.xlane.f32.xlu0 %v9549
    %v9573 = vpop.xlane.xlu0 %9572
    %9574 = vadd.xlane.f32.xlu0 %v9550
    %v9575 = vpop.xlane.xlu0 %9574
    %9576 = vadd.xlane.f32.xlu0 %v9551
    %v9577 = vpop.xlane.xlu0 %9576
    %9578 = vadd.xlane.f32.xlu0 %v9552
    %v9579 = vpop.xlane.xlu0 %9578
    %9580 = vadd.xlane.f32.xlu0 %v9553
    %v9581 = vpop.xlane.xlu0 %9580
    %9582 = vadd.xlane.f32.xlu0 %v9554
    %v9583 = vpop.xlane.xlu0 %9582
    %9584 = vadd.xlane.f32.xlu0 %v9555
    %v9585 = vpop.xlane.xlu0 %9584
    %9586 = vadd.xlane.f32.xlu0 %v9556
    %v9587 = vpop.xlane.xlu0 %9586
    %9588 = vadd.xlane.f32.xlu0 %v9557
    %v9589 = vpop.xlane.xlu0 %9588
    %v9590 = vld [vmem:[#allocation10] sm:$0xff]
    %v9591 = vld [vmem:[#allocation10 + $0x8] sm:$0xff]
    %v9592 = vld [vmem:[#allocation10 + $0x10] sm:$0xff]
    %v9593 = vld [vmem:[#allocation10 + $0x18] sm:$0xff]
    %v9594 = vld [vmem:[#allocation10 + $0x20] sm:$0xff]
    %v9595 = vld [vmem:[#allocation10 + $0x28] sm:$0xff]
    %v9596 = vld [vmem:[#allocation10 + $0x30] sm:$0xff]
    %v9597 = vld [vmem:[#allocation10 + $0x38] sm:$0xff]
    %v9598 = vld [vmem:[#allocation10 + $0x40] sm:$0xff]
    %v9599 = vld [vmem:[#allocation10 + $0x48] sm:$0xff]
    %v9600 = vld [vmem:[#allocation10 + $0x50] sm:$0xff]
    %v9601 = vld [vmem:[#allocation10 + $0x58] sm:$0xff]
    %v9602 = vld [vmem:[#allocation10 + $0x60] sm:$0xff]
    %v9603 = vld [vmem:[#allocation10 + $0x68] sm:$0xff]
    %v9604 = vld [vmem:[#allocation10 + $0x70] sm:$0xff]
    %v9605 = vld [vmem:[#allocation10 + $0x78] sm:$0xff]
    %v9606 = vmul.f32 %v9590, %v9559
    %v9607 = vmul.f32 %v9591, %v9561
    %v9608 = vmul.f32 %v9592, %v9563
    %v9609 = vmul.f32 %v9593, %v9565
    %v9610 = vmul.f32 %v9594, %v9567
    %v9611 = vmul.f32 %v9595, %v9569
    %v9612 = vmul.f32 %v9596, %v9571
    %v9613 = vmul.f32 %v9597, %v9573
    %v9614 = vmul.f32 %v9598, %v9575
    %v9615 = vmul.f32 %v9599, %v9577
    %v9616 = vmul.f32 %v9600, %v9579
    %v9617 = vmul.f32 %v9601, %v9581
    %v9618 = vmul.f32 %v9602, %v9583
    %v9619 = vmul.f32 %v9603, %v9585
    %v9620 = vmul.f32 %v9604, %v9587
    %v9621 = vmul.f32 %v9605, %v9589
    %vm9622 = vcmask 261120
    %v9623 = vsel %vm9622, %v9606, 0.0
    %v9624 = vsel %vm9622, %v9607, 0.0
    %v9625 = vadd.f32 %v9623, %v9624
    %v9626 = vsel %vm9622, %v9608, 0.0
    %v9627 = vadd.f32 %v9625, %v9626
    %v9628 = vsel %vm9622, %v9609, 0.0
    %v9629 = vadd.f32 %v9627, %v9628
    %v9630 = vsel %vm9622, %v9610, 0.0
    %v9631 = vadd.f32 %v9629, %v9630
    %v9632 = vsel %vm9622, %v9611, 0.0
    %v9633 = vadd.f32 %v9631, %v9632
    %v9634 = vsel %vm9622, %v9612, 0.0
    %v9635 = vadd.f32 %v9633, %v9634
    %v9636 = vsel %vm9622, %v9613, 0.0
    %v9637 = vadd.f32 %v9635, %v9636
    %v9638 = vsel %vm9622, %v9614, 0.0
    %v9639 = vadd.f32 %v9637, %v9638
    %v9640 = vsel %vm9622, %v9615, 0.0
    %v9641 = vadd.f32 %v9639, %v9640
    %v9642 = vsel %vm9622, %v9616, 0.0
    %v9643 = vadd.f32 %v9641, %v9642
    %v9644 = vsel %vm9622, %v9617, 0.0
    %v9645 = vadd.f32 %v9643, %v9644
    %v9646 = vsel %vm9622, %v9618, 0.0
    %v9647 = vadd.f32 %v9645, %v9646
    %v9648 = vsel %vm9622, %v9619, 0.0
    %v9649 = vadd.f32 %v9647, %v9648
    %v9650 = vsel %vm9622, %v9620, 0.0
    %v9651 = vadd.f32 %v9649, %v9650
    %v9652 = vsel %vm9622, %v9621, 0.0
    %v9653 = vadd.f32 %v9651, %v9652
    %v9654 = vrot.slane %v9653, 4
    %v9655 = vadd.f32 %v9653, %v9654
    %v9656 = vrot.slane %v9655, 2
    %v9657 = vadd.f32 %v9655, %v9656
    %v9658 = vrot.slane %v9657, 1
    %v9659 = vadd.f32 %v9657, %v9658
    %v9660 = vmax.f32 %v9659, 0.0
    %v9661 = vld [vmem:[#allocation11] sm:$0xff]
    %v9662 = vld [vmem:[#allocation11 + $0x8] sm:$0xff]
    %v9663 = vld [vmem:[#allocation11 + $0x10] sm:$0xff]
    %v9664 = vld [vmem:[#allocation11 + $0x18] sm:$0xff]
    %v9666 = vsel %vm9622, %v9660, 0
    %9668 = vmatprep.subr.mxu0 0.0
    %9669 = vmatpush1.msra.mxu0 0.0
    %9670 = vmatprep.subr.mxu0 0.0
    %9671 = vmatpush1.msra.mxu0 0.0
    %9672 = vmatprep.subr.mxu0 0.0
    %9673 = vmatpush1.msra.mxu0 0.0
    %9674 = vmatprep.subr.mxu0 0.0
    %9675 = vmatpush1.msra.mxu0 0.0
    %9676 = vmatprep.subr.mxu0 0.0
    %9677 = vmatpush1.msra.mxu0 0.0
    %9678 = vmatprep.subr.mxu0 0.0
    %9679 = vmatpush1.msra.mxu0 0.0
    %9680 = vmatprep.subr.mxu0 0.0
    %9681 = vmatpush1.msra.mxu0 0.0
    %9682 = vmatprep.subr.mxu0 0.0
    %9683 = vmatpush1.msra.mxu0 0.0
    %9684 = vmatprep.subr.mxu0 0.0
    %9685 = vmatpush1.msra.mxu0 0.0
    %9686 = vmatprep.subr.mxu0 0.0
    %9687 = vmatpush1.msra.mxu0 0.0
    %9688 = vmatprep.subr.mxu0 0.0
    %9689 = vmatpush1.msra.mxu0 0.0
    %9690 = vmatprep.subr.mxu0 0.0
    %9691 = vmatpush1.msra.mxu0 0.0
    %9692 = vmatprep.subr.mxu0 0.0
    %9693 = vmatpush1.msra.mxu0 %v9664
    %9694 = vmatprep.subr.mxu0 0.0
    %9695 = vmatpush1.msra.mxu0 %v9663
    %9696 = vmatprep.subr.mxu0 0.0
    %9697 = vmatpush1.msra.mxu0 %v9662
    %9698 = vmatprep.subr.mxu0 0.0
    %9699 = vmatpush1.msra.mxu0 %v9661
    %9700 = vmatprep.subr.mxu0 0.0
    %9701 = vmatpush2.msra.mxu0 0.0
    %9702 = vmatprep.subr.mxu0 0.0
    %9703 = vmatpush2.msra.mxu0 0.0
    %9704 = vmatprep.subr.mxu0 0.0
    %9705 = vmatpush2.msra.mxu0 0.0
    %9706 = vmatprep.subr.mxu0 0.0
    %9707 = vmatpush2.msra.mxu0 0.0
    %9708 = vmatprep.subr.mxu0 0.0
    %9709 = vmatpush2.msra.mxu0 0.0
    %9710 = vmatprep.subr.mxu0 0.0
    %9711 = vmatpush2.msra.mxu0 0.0
    %9712 = vmatprep.subr.mxu0 0.0
    %9713 = vmatpush2.msra.mxu0 0.0
    %9714 = vmatprep.subr.mxu0 0.0
    %9715 = vmatpush2.msra.mxu0 0.0
    %9716 = vmatprep.subr.mxu0 0.0
    %9717 = vmatpush2.msra.mxu0 0.0
    %9718 = vmatprep.subr.mxu0 0.0
    %9719 = vmatpush2.msra.mxu0 0.0
    %9720 = vmatprep.subr.mxu0 0.0
    %9721 = vmatpush2.msra.mxu0 0.0
    %9722 = vmatprep.subr.mxu0 0.0
    %9723 = vmatpush2.msra.mxu0 0.0
    %9724 = vmatprep.subr.mxu0 0.0
    %9725 = vmatpush2.msra.mxu0 0.0
    %9726 = vmatprep.subr.mxu0 0.0
    %9727 = vmatpush2.msra.mxu0 0.0
    %9728 = vmatprep.subr.mxu0 0.0
    %9729 = vmatpush2.msra.mxu0 0.0
    %9730 = vmatprep.subr.mxu0 0.0
    %9731 = vmatpush2.msra.mxu0 0.0
    %9732 = vmatprep.mubr.f32.mxu0 0.0
    %9733 = vmatmul.mubr.f32.gmra.mxu0 %v9666
    %v9734 = vpop.f32.mrf.mxu0
    %v9735 = vadd.f32 0.0, %v9734
    %v9736 = vpop.f32.mrf.mxu0
    %9737 = vdwg.mxu0
    %v9738 = vmax.f32 %v9735, 0.0
    %vm9739 = vcmask 32768
    %v9740 = vsel %vm9739, %v9738, -inf
    %9741 = vmax.xlane.f32.xlu0 %v9740
    %v9742 = vpop.xlane.xlu0 %9741
    %v9743 = vsub.f32 %v9738, %v9742
    %v9744 = vmul.f32 %v9743, 1.442695
    %v9745 = vpow.pop %v9744
    %v9746 = vsel %vm9739, %v9745, 0.0
    %9747 = vadd.xlane.f32.xlu0 %v9746
    %v9748 = vpop.xlane.xlu0 %9747
    %v9749 = vrcp.pop %v9748
    %v9750 = vmul.f32 %v9745, %v9749
    %9751 = vst.msk [vmem:[#allocation16] sm:$0x1] %vm9739, %v9750
    // Predicated region
    $region204: #{p4_cnn_forward.1} parent=1 // pred_check
      _
    $region205: #{p4_cnn_forward.1} parent=1 // pred_check_branch
      %9753 = sbr.rel (0) target = $region207
    $region206: #{p4_cnn_forward.1} parent=1 // pred_region
      %s9755 = ssub.s32 16, 16
      %9756 = vsyncadd [#allocation14], %s9755
      %s9758 = sshll.u32 [#allocation16], 4
      %s9759 = int_to_ptr.vmem [resolvable:$true] %s9758
      %9761 = dma.vmem_to_hbm [thread:$0]  %s9759, 16, %s12, [#allocation14]
    $region207: #{p4_cnn_forward.1} parent=1 // pred_fallthru
      _
    // Predicated region
    $region208: #{p4_cnn_forward.1} parent=1 // pred_check
      _
    $region209: #{p4_cnn_forward.1} parent=1 // pred_check_branch
      %9763 = sbr.rel (0) target = $region211
    $region210: #{p4_cnn_forward.1} parent=1 // pred_region
      %9764 = dma.done [#allocation14], 16
    $region211: #{p4_cnn_forward.1} parent=1 // pred_fallthru
      _
    %9765 = vsyncpa [#allocation14], 1
    %9766 = vsyncpa [#allocation15], 1
  %9767 = vsyncmov [#allocation12]
  %s9768 = vpop.sfrf %9767
  %p9769 = scmp.eq.s32.totalorder %s9768, 0
  %p9770 = pneg %p9769
  %9772 = shalt.err (%p9770)
  %s9773 = scalar_lea.sflag [#allocation12], 1
  %9774 = vsyncmov %s9773
  %s9775 = vpop.sfrf %9774
  %p9776 = scmp.eq.s32.totalorder %s9775, 0
  %p9777 = pneg %p9776
  %9779 = shalt.err (%p9777)
  %s9780 = scalar_lea.sflag [#allocation12], 2
  %9781 = vsyncmov %s9780
  %s9782 = vpop.sfrf %9781
  %p9783 = scmp.eq.s32.totalorder %s9782, 0
  %p9784 = pneg %p9783
  %9786 = shalt.err (%p9784)
  %s9787 = scalar_lea.sflag [#allocation12], 3
  %9788 = vsyncmov %s9787
  %s9789 = vpop.sfrf %9788
  %p9790 = scmp.eq.s32.totalorder %s9789, 0
  %p9791 = pneg %p9790
  %9793 = shalt.err (%p9791)
  %s9794 = scalar_lea.sflag [#allocation12], 4
  %9795 = vsyncmov %s9794
  %s9796 = vpop.sfrf %9795
  %p9797 = scmp.eq.s32.totalorder %s9796, 0
  %p9798 = pneg %p9797
  %9800 = shalt.err (%p9798)
  %s9801 = scalar_lea.sflag [#allocation12], 5
  %9802 = vsyncmov %s9801
  %s9803 = vpop.sfrf %9802
  %p9804 = scmp.eq.s32.totalorder %s9803, 0
  %p9805 = pneg %p9804
  %9807 = shalt.err (%p9805)
  %s9808 = scalar_lea.sflag [#allocation12], 6
  %9809 = vsyncmov %s9808
  %s9810 = vpop.sfrf %9809
  %p9811 = scmp.eq.s32.totalorder %s9810, 0
  %p9812 = pneg %p9811
  %9814 = shalt.err (%p9812)
  %s9815 = scalar_lea.sflag [#allocation12], 7
  %9816 = vsyncmov %s9815
  %s9817 = vpop.sfrf %9816
  %p9818 = scmp.eq.s32.totalorder %s9817, 0
  %p9819 = pneg %p9818
  %9821 = shalt.err (%p9819)
  %s9822 = scalar_lea.sflag [#allocation12], 8
  %9823 = vsyncmov %s9822
  %s9824 = vpop.sfrf %9823
  %p9825 = scmp.eq.s32.totalorder %s9824, 0
  %p9826 = pneg %p9825
  %9828 = shalt.err (%p9826)
  %s9829 = scalar_lea.sflag [#allocation12], 9
  %9830 = vsyncmov %s9829
  %s9831 = vpop.sfrf %9830
  %p9832 = scmp.eq.s32.totalorder %s9831, 0
  %p9833 = pneg %p9832
  %9835 = shalt.err (%p9833)

</llo_original>
